<compile_context>
chip_gen: v7x
topology: tpu7x:2x2x1
jax: 0.10.0
libtpu: 0.0.40
codegen_flags: <defaults>
</compile_context>

<pallas_src>
import jax
import jax.numpy as jnp
import numpy as np
from jax.experimental import pallas as pl
from jax.experimental.pallas import tpu as pltpu

# ---- static hyper-parameters (mirror query_encoder.__init__) ----
VOCAB = 64
E = 32            # embedding_size == word_vec_size
H_GRU = 32        # hidden_size_gru (bidirectional -> H2 per direction)
H2 = H_GRU // 2
L_GRU = 2         # num_layers_gru
H_MLP = 32        # hidden_size_mlp
L_MLP = 2         # num_layers_mlp (>= 2 branch of the module)
B = 2             # batch
T = 8             # max_query_len
BP = 8            # batch padded to a full sublane tile
assert E == H_GRU          # lets us stack per-layer GRU input weights together
assert B <= BP


def _sig(x):
    return 1.0 / (1.0 + jnp.exp(-x))


def _gru_mlp_kernel(emb_ref, mask_ref,
                    wih_ref, whh_ref, bx_ref, bhn_ref,
                    w0_ref, b0_ref, w1_ref, b1_ref,
                    out_ref,
                    fwd_ref, bwd_ref, dfw_ref, dbw_ref):
    """Bidirectional 2-layer GRU + diff features + 2-layer MLP, fully unrolled."""
    f32 = jnp.float32
    G = 3 * H2

    emb = emb_ref[...]                      # (T*BP, E)
    mask = mask_ref[...]                    # (T*BP, 1)  valid=1, pad=0
    maskh = jnp.broadcast_to(mask, (T * BP, H2))   # hoisted lane-broadcast

    for layer in range(L_GRU):              # static (unrolled) layers
        last = layer == L_GRU - 1
        wih_l = wih_ref[layer]              # (Din, 2*G), both directions stacked

        # ---- hoisted input projection for all T steps & both directions ----
        if layer == 0:
            gx = jnp.dot(emb, wih_l, preferred_element_type=f32)
        else:
            # distribute over weight slices instead of concat([fwd, bwd], -1)
            gx = (jnp.dot(fwd_ref[...], wih_l[:H2, :], preferred_element_type=f32)
                  + jnp.dot(bwd_ref[...], wih_l[H2:, :], preferred_element_type=f32))
        gx = gx + bx_ref[layer]             # b_ih (all gates) + b_hh (r,z) folded

        whh_f = whh_ref[layer, 0]           # (H2, G)
        whh_b = whh_ref[layer, 1]
        bhn_f = jnp.broadcast_to(bhn_ref[layer, 0], (BP, H2))   # n-gate b_hh
        bhn_b = jnp.broadcast_to(bhn_ref[layer, 1], (BP, H2))

        hf = jnp.zeros((BP, H2), f32)
        hb = jnp.zeros((BP, H2), f32)
        pf = jnp.zeros((BP, H2), f32)       # previous fwd output (diff, last layer)
        pb = jnp.zeros((BP, H2), f32)       # "next"   bwd output (diff, last layer)
        of_dst = dfw_ref if last else fwd_ref
        ob_dst = dbw_ref if last else bwd_ref

        # ---- fully unrolled recurrence, both directions fused per step ----
        for s in range(T):
            tf, tb = s, T - 1 - s
            rf, rb = tf * BP, tb * BP
            gxf = gx[rf:rf + BP, 0:G]       # (BP, 3*H2) forward gates
            gxb = gx[rb:rb + BP, G:2 * G]   # (BP, 3*H2) backward gates
            mf = maskh[rf:rf + BP, :]       # (BP, H2)
            mb = maskh[rb:rb + BP, :]

            ghf = jnp.dot(hf, whh_f, preferred_element_type=f32)
            ghb = jnp.dot(hb, whh_b, preferred_element_type=f32)

            r_f = _sig(gxf[:, :H2] + ghf[:, :H2])
            z_f = _sig(gxf[:, H2:2 * H2] + ghf[:, H2:2 * H2])
            n_f = jnp.tanh(gxf[:, 2 * H2:] + r_f * (ghf[:, 2 * H2:] + bhn_f))
            r_b = _sig(gxb[:, :H2] + ghb[:, :H2])
            z_b = _sig(gxb[:, H2:2 * H2] + ghb[:, H2:2 * H2])
            n_b = jnp.tanh(gxb[:, 2 * H2:] + r_b * (ghb[:, 2 * H2:] + bhn_b))

            hf_raw = n_f + z_f * (hf - n_f)          # == (1-z)*n + z*h
            hb_raw = n_b + z_b * (hb - n_b)
            hf = hf + mf * (hf_raw - hf)             # packed seq: freeze h at pads
            hb = hb + mb * (hb_raw - hb)
            of = mf * hf_raw                         # pad_packed_sequence -> zeros
            ob = mb * hb_raw

            if last:
                of_dst[rf:rf + BP, :] = of - pf      # diff with previous time step
                ob_dst[rb:rb + BP, :] = ob - pb      # diff with next time step
                pf, pb = of, ob
            else:
                of_dst[rf:rf + BP, :] = of
                ob_dst[rb:rb + BP, :] = ob

    # ---- batched MLP epilogue: split-weight matmuls (no concat), 2 matmuls ----
    w0 = w0_ref[...]                                  # (H_GRU + E, H_MLP)
    h1 = (jnp.dot(dfw_ref[...], w0[:H2, :], preferred_element_type=f32)
          + jnp.dot(dbw_ref[...], w0[H2:2 * H2, :], preferred_element_type=f32)
          + jnp.dot(emb, w0[2 * H2:, :], preferred_element_type=f32)
          + b0_ref[...])
    h1 = jnp.maximum(h1, 0.0)
    logit = jnp.dot(h1, w1_ref[...], preferred_element_type=f32) + b1_ref[...]  # (T*BP,1)

    # masked_fill(~mask, -inf) then sigmoid  ==  sigmoid at valid, 0 at pads
    prob = pl.reciprocal(1.0 + jnp.exp(-logit), approx=True)
    out_ref[...] = jnp.where(mask > 0.0, prob, 0.0)


def _full_spec(shape):
    return pl.BlockSpec(shape, lambda i: (0,) * len(shape))


def _pallas_forward(emb_flat, mask_flat, wih_c, whh, bx, bhn, w0, b0, w1, b1):
    return pl.pallas_call(
        _gru_mlp_kernel,
        out_shape=jax.ShapeDtypeStruct((T * BP, 1), jnp.float32),
        grid_spec=pltpu.PrefetchScalarGridSpec(
            num_scalar_prefetch=0,
            grid=(1,),
            in_specs=[
                _full_spec((T * BP, E)),               # emb, time-major flattened
                _full_spec((T * BP, 1)),               # length mask
                _full_spec((L_GRU, E, 6 * H2)),        # GRU W_ih (both directions)
                _full_spec((L_GRU, 2, H2, 3 * H2)),    # GRU W_hh
                _full_spec((L_GRU, 1, 6 * H2)),        # folded input-side biases
                _full_spec((L_GRU, 2, 1, H2)),         # n-gate b_hh
                _full_spec((H_GRU + E, H_MLP)),        # MLP W0
                _full_spec((1, H_MLP)),                # MLP b0
                _full_spec((H_MLP, 1)),                # MLP W1
                _full_spec((1, 1)),                    # MLP b1
            ],
            out_specs=_full_spec((T * BP, 1)),
            scratch_shapes=[pltpu.VMEM((T * BP, H2), jnp.float32)
                            for _ in range(4)]),       # fwd, bwd, diff_f, diff_b
        compiler_params=pltpu.CompilerParams(
            dimension_semantics=("arbitrary",)),
    )(emb_flat, mask_flat, wih_c, whh, bx, bhn, w0, b0, w1, b1)


def _prep_params(p):
    """Repack GRU weights: stack directions, fold b_ih + r/z part of b_hh."""
    wih, whh = p['wih'], p['whh']                     # (L,2,E,3H2), (L,2,H2,3H2)
    bih, bhh = p['bih'], p['bhh']                     # (L,2,1,3H2)
    wih_c = jnp.concatenate([wih[:, 0], wih[:, 1]], axis=-1)       # (L, E, 6H2)
    bxd = bih.at[..., :2 * H2].add(bhh[..., :2 * H2])              # fold b_hh r,z
    bx = jnp.concatenate([bxd[:, 0], bxd[:, 1]], axis=-1)          # (L, 1, 6H2)
    bhn = bhh[..., 2 * H2:]                                        # (L, 2, 1, H2)
    return wih_c, whh, bx, bhn


@jax.jit
def query_encoder_forward(queries, query_lens, params):
    """queries: (B, T) int32 token ids (batch-first); query_lens: (B,) int32."""
    emb = jnp.take(params['emb'], queries, axis=0).astype(jnp.float32)    # (B, T, E)
    mask_bt = (jnp.arange(T)[None, :] < query_lens[:, None]).astype(jnp.float32)

    # time-major, batch padded to BP sublanes, flattened to (T*BP, .) in XLA
    emb_t = jnp.transpose(emb, (1, 0, 2))                                 # (T, B, E)
    emb_p = jnp.pad(emb_t, ((0, 0), (0, BP - B), (0, 0)))                 # (T, BP, E)
    mask_t = jnp.transpose(mask_bt)                                       # (T, B)
    mask_p = jnp.pad(mask_t, ((0, 0), (0, BP - B)))                       # (T, BP)
    emb_flat = emb_p.reshape(T * BP, E)
    mask_flat = mask_p.reshape(T * BP, 1)

    wih_c, whh, bx, bhn = _prep_params(params)
    out_flat = _pallas_forward(emb_flat, mask_flat, wih_c, whh, bx, bhn,
                               params['w0'], params['b0'],
                               params['w1'], params['b1'])                # (T*BP, 1)
    return jnp.transpose(out_flat.reshape(T, BP)[:, :B])                  # (B, T)


def init_params(key):
    ks = jax.random.split(key, 10)
    u = lambda k, shape: 0.1 * jax.random.uniform(k, shape, jnp.float32, -1.0, 1.0)
    emb = u(ks[0], (VOCAB, E)).at[0].set(0.0)        # padding_idx=0
    return dict(
        emb=emb,
        wih=u(ks[1], (L_GRU, 2, E, 3 * H2)),
        whh=u(ks[2], (L_GRU, 2, H2, 3 * H2)),
        bih=u(ks[3], (L_GRU, 2, 1, 3 * H2)),
        bhh=u(ks[4], (L_GRU, 2, 1, 3 * H2)),
        w0=u(ks[5], (H_GRU + E, H_MLP)),
        b0=u(ks[6], (1, H_MLP)),
        w1=u(ks[7], (H_MLP, 1)),
        b1=u(ks[8], (1, 1)),
    )


def reference_forward(queries, lens, p):
    """Pure numpy reference replicating the PyTorch forward (eval mode)."""
    sig = lambda x: 1.0 / (1.0 + np.exp(-x))
    emb_tbl = np.asarray(p['emb'])
    wih, whh = np.asarray(p['wih']), np.asarray(p['whh'])
    bih, bhh = np.asarray(p['bih']), np.asarray(p['bhh'])
    w0, b0 = np.asarray(p['w0']), np.asarray(p['b0'])
    w1, b1 = np.asarray(p['w1']), np.asarray(p['b1'])
    queries = np.asarray(queries); lens = np.asarray(lens)

    emb = emb_tbl[queries]                                    # (B, T, E)
    mask = (np.arange(T)[None, :] < lens[:, None])            # (B, T)
    mf = mask.astype(np.float32)
    x = emb
    for layer in range(L_GRU):
        outs = np.zeros((B, T, H_GRU), np.float32)
        for d in range(2):
            h = np.zeros((B, H2), np.float32)
            order = range(T) if d == 0 else range(T - 1, -1, -1)
            for t in order:
                gx = x[:, t, :] @ wih[layer, d] + bih[layer, d]
                gh = h @ whh[layer, d] + bhh[layer, d]
                r = sig(gx[:, :H2] + gh[:, :H2])
                z = sig(gx[:, H2:2 * H2] + gh[:, H2:2 * H2])
                n = np.tanh(gx[:, 2 * H2:] + r * gh[:, 2 * H2:])
                hn = (1.0 - z) * n + z * h
                m = mf[:, t:t + 1]
                h = m * hn + (1.0 - m) * h
                outs[:, t, d * H2:(d + 1) * H2] = m * h
        x = outs
    fwd, bwd = x[..., :H2], x[..., H2:]
    zro = np.zeros((B, 1, H2), np.float32)
    prev_f = np.concatenate([zro, fwd[:, :-1]], axis=1)
    prev_b = np.concatenate([bwd[:, 1:], zro], axis=1)
    feat = np.concatenate([fwd - prev_f, bwd - prev_b, emb], axis=-1)
    h1 = np.maximum(feat @ w0 + b0, 0.0)
    logit = (h1 @ w1 + b1)[..., 0]
    return np.where(mask, sig(logit), 0.0)


if __name__ == "__main__":
    key = jax.random.PRNGKey(0)
    pkey, qkey = jax.random.split(key)
    params = init_params(pkey)

    query_lens = jnp.array([T, 5], dtype=jnp.int32)           # sorted descending
    queries = jax.random.randint(qkey, (B, T), 1, VOCAB, dtype=jnp.int32)
    queries = jnp.where(jnp.arange(T)[None, :] < query_lens[:, None], queries, 0)

    out = query_encoder_forward(queries, query_lens, params)
    out = jax.block_until_ready(out)

    ref = reference_forward(queries, query_lens, params)
    assert out.shape == (B, T)
    np.testing.assert_allclose(np.asarray(out), ref, rtol=2e-3, atol=2e-3)
    print("KERNEL_OK")
</pallas_src>

<mosaic_0001>
module attributes {stable_mosaic.version = 11 : i64} {
  func.func @_gru_mlp_kernel(%arg0: i32, %arg1: memref<64x32xf32, #tpu.memory_space<vmem>>, %arg2: memref<64x1xf32, #tpu.memory_space<vmem>>, %arg3: memref<2x32x96xf32, #tpu.memory_space<vmem>>, %arg4: memref<2x2x16x48xf32, #tpu.memory_space<vmem>>, %arg5: memref<2x1x96xf32, #tpu.memory_space<vmem>>, %arg6: memref<2x2x1x16xf32, #tpu.memory_space<vmem>>, %arg7: memref<64x32xf32, #tpu.memory_space<vmem>>, %arg8: memref<1x32xf32, #tpu.memory_space<vmem>>, %arg9: memref<32x1xf32, #tpu.memory_space<vmem>>, %arg10: memref<1x1xf32, #tpu.memory_space<vmem>>, %arg11: memref<64x1xf32, #tpu.memory_space<vmem>>, %arg12: memref<64x16xf32, #tpu.memory_space<vmem>>, %arg13: memref<64x16xf32, #tpu.memory_space<vmem>>, %arg14: memref<64x16xf32, #tpu.memory_space<vmem>>, %arg15: memref<64x16xf32, #tpu.memory_space<vmem>>) attributes {dimension_semantics = [#tpu.dimension_semantics<arbitrary>], iteration_bounds = array<i64: 1>, scalar_prefetch = 0 : i64, scratch_operands = 4 : i64, tpu.core_type = #tpu.core_type<tc>, window_params = [{pipeline_mode = #tpu.pipeline_mode<synchronous>, transform_indices = @transform_0, window_bounds = array<i64: 64, 32>}, {pipeline_mode = #tpu.pipeline_mode<synchronous>, transform_indices = @transform_1, window_bounds = array<i64: 64, 1>}, {pipeline_mode = #tpu.pipeline_mode<synchronous>, transform_indices = @transform_2, window_bounds = array<i64: 2, 32, 96>}, {pipeline_mode = #tpu.pipeline_mode<synchronous>, transform_indices = @transform_3, window_bounds = array<i64: 2, 2, 16, 48>}, {pipeline_mode = #tpu.pipeline_mode<synchronous>, transform_indices = @transform_4, window_bounds = array<i64: 2, 1, 96>}, {pipeline_mode = #tpu.pipeline_mode<synchronous>, transform_indices = @transform_5, window_bounds = array<i64: 2, 2, 1, 16>}, {pipeline_mode = #tpu.pipeline_mode<synchronous>, transform_indices = @transform_6, window_bounds = array<i64: 64, 32>}, {pipeline_mode = #tpu.pipeline_mode<synchronous>, transform_indices = @transform_7, window_bounds = array<i64: 1, 32>}, {pipeline_mode = #tpu.pipeline_mode<synchronous>, transform_indices = @transform_8, window_bounds = array<i64: 32, 1>}, {pipeline_mode = #tpu.pipeline_mode<synchronous>, transform_indices = @transform_9, window_bounds = array<i64: 1, 1>}, {pipeline_mode = #tpu.pipeline_mode<synchronous>, transform_indices = @transform_10, window_bounds = array<i64: 64, 1>}]} {
    %c0 = arith.constant 0 : index
    %c0_0 = arith.constant 0 : index
    %0 = vector.load %arg1[%c0, %c0_0] : memref<64x32xf32, #tpu.memory_space<vmem>>, vector<64x32xf32>
    %c0_1 = arith.constant 0 : index
    %c0_2 = arith.constant 0 : index
    %1 = vector.load %arg2[%c0_1, %c0_2] : memref<64x1xf32, #tpu.memory_space<vmem>>, vector<64x1xf32>
    %2 = vector.shape_cast %1 : vector<64x1xf32> to vector<64x1xf32>
    %3 = vector.broadcast %2 : vector<64x1xf32> to vector<64x16xf32>
    %c0_3 = arith.constant 0 : index
    %c0_4 = arith.constant 0 : index
    %c0_5 = arith.constant 0 : index
    %4 = vector.load %arg3[%c0_3, %c0_4, %c0_5] : memref<2x32x96xf32, #tpu.memory_space<vmem>>, vector<1x32x96xf32>
    %5 = vector.shape_cast %4 : vector<1x32x96xf32> to vector<32x96xf32>
    %cst = arith.constant dense<0.000000e+00> : vector<64x96xf32>
    %6 = tpu.matmul %0, %5, %cst {dimension_numbers = #tpu.dot_dimension_numbers<[1], [0], [0], [1], [0, 0, 1, 1], [], []>} : vector<64x32xf32>, vector<32x96xf32>, vector<64x96xf32> -> vector<64x96xf32>
    %c0_6 = arith.constant 0 : index
    %c0_7 = arith.constant 0 : index
    %c0_8 = arith.constant 0 : index
    %7 = vector.load %arg5[%c0_6, %c0_7, %c0_8] : memref<2x1x96xf32, #tpu.memory_space<vmem>>, vector<1x1x96xf32>
    %8 = vector.shape_cast %7 : vector<1x1x96xf32> to vector<1x96xf32>
    %9 = vector.broadcast %8 : vector<1x96xf32> to vector<64x96xf32>
    %10 = arith.addf %6, %9 : vector<64x96xf32>
    %c0_9 = arith.constant 0 : index
    %c0_10 = arith.constant 0 : index
    %c0_11 = arith.constant 0 : index
    %c0_12 = arith.constant 0 : index
    %11 = vector.load %arg4[%c0_9, %c0_10, %c0_11, %c0_12] : memref<2x2x16x48xf32, #tpu.memory_space<vmem>>, vector<1x1x16x48xf32>
    %12 = vector.shape_cast %11 : vector<1x1x16x48xf32> to vector<16x48xf32>
    %c0_13 = arith.constant 0 : index
    %c1 = arith.constant 1 : index
    %c0_14 = arith.constant 0 : index
    %c0_15 = arith.constant 0 : index
    %13 = vector.load %arg4[%c0_13, %c1, %c0_14, %c0_15] : memref<2x2x16x48xf32, #tpu.memory_space<vmem>>, vector<1x1x16x48xf32>
    %14 = vector.shape_cast %13 : vector<1x1x16x48xf32> to vector<16x48xf32>
    %c0_16 = arith.constant 0 : index
    %c0_17 = arith.constant 0 : index
    %c0_18 = arith.constant 0 : index
    %c0_19 = arith.constant 0 : index
    %15 = vector.load %arg6[%c0_16, %c0_17, %c0_18, %c0_19] : memref<2x2x1x16xf32, #tpu.memory_space<vmem>>, vector<1x1x1x16xf32>
    %16 = vector.shape_cast %15 : vector<1x1x1x16xf32> to vector<1x16xf32>
    %17 = vector.shape_cast %16 : vector<1x16xf32> to vector<1x16xf32>
    %18 = vector.broadcast %17 : vector<1x16xf32> to vector<8x16xf32>
    %c0_20 = arith.constant 0 : index
    %c1_21 = arith.constant 1 : index
    %c0_22 = arith.constant 0 : index
    %c0_23 = arith.constant 0 : index
    %19 = vector.load %arg6[%c0_20, %c1_21, %c0_22, %c0_23] : memref<2x2x1x16xf32, #tpu.memory_space<vmem>>, vector<1x1x1x16xf32>
    %20 = vector.shape_cast %19 : vector<1x1x1x16xf32> to vector<1x16xf32>
    %21 = vector.shape_cast %20 : vector<1x16xf32> to vector<1x16xf32>
    %22 = vector.broadcast %21 : vector<1x16xf32> to vector<8x16xf32>
    %cst_24 = arith.constant 0.000000e+00 : f32
    %23 = vector.broadcast %cst_24 : f32 to vector<8x16xf32>
    %cst_25 = arith.constant 0.000000e+00 : f32
    %24 = vector.broadcast %cst_25 : f32 to vector<8x16xf32>
    %25 = vector.extract_strided_slice %10 {offsets = [0, 0], sizes = [8, 48], strides = [1, 1]} : vector<64x96xf32> to vector<8x48xf32>
    %26 = vector.extract_strided_slice %10 {offsets = [56, 48], sizes = [8, 48], strides = [1, 1]} : vector<64x96xf32> to vector<8x48xf32>
    %27 = vector.extract_strided_slice %3 {offsets = [0, 0], sizes = [8, 16], strides = [1, 1]} : vector<64x16xf32> to vector<8x16xf32>
    %28 = vector.extract_strided_slice %3 {offsets = [56, 0], sizes = [8, 16], strides = [1, 1]} : vector<64x16xf32> to vector<8x16xf32>
    %cst_26 = arith.constant dense<0.000000e+00> : vector<8x48xf32>
    %29 = tpu.matmul %23, %12, %cst_26 {dimension_numbers = #tpu.dot_dimension_numbers<[1], [0], [0], [1], [0, 0, 1, 1], [], []>} : vector<8x16xf32>, vector<16x48xf32>, vector<8x48xf32> -> vector<8x48xf32>
    %cst_27 = arith.constant dense<0.000000e+00> : vector<8x48xf32>
    %30 = tpu.matmul %24, %14, %cst_27 {dimension_numbers = #tpu.dot_dimension_numbers<[1], [0], [0], [1], [0, 0, 1, 1], [], []>} : vector<8x16xf32>, vector<16x48xf32>, vector<8x48xf32> -> vector<8x48xf32>
    %31 = vector.extract_strided_slice %25 {offsets = [0, 0], sizes = [8, 16], strides = [1, 1]} : vector<8x48xf32> to vector<8x16xf32>
    %32 = vector.extract_strided_slice %29 {offsets = [0, 0], sizes = [8, 16], strides = [1, 1]} : vector<8x48xf32> to vector<8x16xf32>
    %33 = arith.addf %31, %32 : vector<8x16xf32>
    %cst_28 = arith.constant 0.000000e+00 : f32
    %34 = vector.broadcast %cst_28 : f32 to vector<8x16xf32>
    %35 = arith.subf %34, %33 : vector<8x16xf32>
    %36 = math.exp %35 : vector<8x16xf32>
    %cst_29 = arith.constant 1.000000e+00 : f32
    %37 = vector.broadcast %cst_29 : f32 to vector<8x16xf32>
    %38 = arith.addf %37, %36 : vector<8x16xf32>
    %cst_30 = arith.constant 1.000000e+00 : f32
    %39 = vector.broadcast %cst_30 : f32 to vector<8x16xf32>
    %40 = arith.divf %39, %38 : vector<8x16xf32>
    %41 = vector.extract_strided_slice %25 {offsets = [0, 16], sizes = [8, 16], strides = [1, 1]} : vector<8x48xf32> to vector<8x16xf32>
    %42 = vector.extract_strided_slice %29 {offsets = [0, 16], sizes = [8, 16], strides = [1, 1]} : vector<8x48xf32> to vector<8x16xf32>
    %43 = arith.addf %41, %42 : vector<8x16xf32>
    %cst_31 = arith.constant 0.000000e+00 : f32
    %44 = vector.broadcast %cst_31 : f32 to vector<8x16xf32>
    %45 = arith.subf %44, %43 : vector<8x16xf32>
    %46 = math.exp %45 : vector<8x16xf32>
    %cst_32 = arith.constant 1.000000e+00 : f32
    %47 = vector.broadcast %cst_32 : f32 to vector<8x16xf32>
    %48 = arith.addf %47, %46 : vector<8x16xf32>
    %cst_33 = arith.constant 1.000000e+00 : f32
    %49 = vector.broadcast %cst_33 : f32 to vector<8x16xf32>
    %50 = arith.divf %49, %48 : vector<8x16xf32>
    %51 = vector.extract_strided_slice %25 {offsets = [0, 32], sizes = [8, 16], strides = [1, 1]} : vector<8x48xf32> to vector<8x16xf32>
    %52 = vector.extract_strided_slice %29 {offsets = [0, 32], sizes = [8, 16], strides = [1, 1]} : vector<8x48xf32> to vector<8x16xf32>
    %53 = arith.addf %52, %18 : vector<8x16xf32>
    %54 = arith.mulf %40, %53 : vector<8x16xf32>
    %55 = arith.addf %51, %54 : vector<8x16xf32>
    %56 = math.tanh %55 : vector<8x16xf32>
    %57 = vector.extract_strided_slice %26 {offsets = [0, 0], sizes = [8, 16], strides = [1, 1]} : vector<8x48xf32> to vector<8x16xf32>
    %58 = vector.extract_strided_slice %30 {offsets = [0, 0], sizes = [8, 16], strides = [1, 1]} : vector<8x48xf32> to vector<8x16xf32>
    %59 = arith.addf %57, %58 : vector<8x16xf32>
    %cst_34 = arith.constant 0.000000e+00 : f32
    %60 = vector.broadcast %cst_34 : f32 to vector<8x16xf32>
    %61 = arith.subf %60, %59 : vector<8x16xf32>
    %62 = math.exp %61 : vector<8x16xf32>
    %cst_35 = arith.constant 1.000000e+00 : f32
    %63 = vector.broadcast %cst_35 : f32 to vector<8x16xf32>
    %64 = arith.addf %63, %62 : vector<8x16xf32>
    %cst_36 = arith.constant 1.000000e+00 : f32
    %65 = vector.broadcast %cst_36 : f32 to vector<8x16xf32>
    %66 = arith.divf %65, %64 : vector<8x16xf32>
    %67 = vector.extract_strided_slice %26 {offsets = [0, 16], sizes = [8, 16], strides = [1, 1]} : vector<8x48xf32> to vector<8x16xf32>
    %68 = vector.extract_strided_slice %30 {offsets = [0, 16], sizes = [8, 16], strides = [1, 1]} : vector<8x48xf32> to vector<8x16xf32>
    %69 = arith.addf %67, %68 : vector<8x16xf32>
    %cst_37 = arith.constant 0.000000e+00 : f32
    %70 = vector.broadcast %cst_37 : f32 to vector<8x16xf32>
    %71 = arith.subf %70, %69 : vector<8x16xf32>
    %72 = math.exp %71 : vector<8x16xf32>
    %cst_38 = arith.constant 1.000000e+00 : f32
    %73 = vector.broadcast %cst_38 : f32 to vector<8x16xf32>
    %74 = arith.addf %73, %72 : vector<8x16xf32>
    %cst_39 = arith.constant 1.000000e+00 : f32
    %75 = vector.broadcast %cst_39 : f32 to vector<8x16xf32>
    %76 = arith.divf %75, %74 : vector<8x16xf32>
    %77 = vector.extract_strided_slice %26 {offsets = [0, 32], sizes = [8, 16], strides = [1, 1]} : vector<8x48xf32> to vector<8x16xf32>
    %78 = vector.extract_strided_slice %30 {offsets = [0, 32], sizes = [8, 16], strides = [1, 1]} : vector<8x48xf32> to vector<8x16xf32>
    %79 = arith.addf %78, %22 : vector<8x16xf32>
    %80 = arith.mulf %66, %79 : vector<8x16xf32>
    %81 = arith.addf %77, %80 : vector<8x16xf32>
    %82 = math.tanh %81 : vector<8x16xf32>
    %83 = arith.subf %23, %56 : vector<8x16xf32>
    %84 = arith.mulf %50, %83 : vector<8x16xf32>
    %85 = arith.addf %56, %84 : vector<8x16xf32>
    %86 = arith.subf %24, %82 : vector<8x16xf32>
    %87 = arith.mulf %76, %86 : vector<8x16xf32>
    %88 = arith.addf %82, %87 : vector<8x16xf32>
    %89 = arith.subf %85, %23 : vector<8x16xf32>
    %90 = arith.mulf %27, %89 : vector<8x16xf32>
    %91 = arith.addf %23, %90 : vector<8x16xf32>
    %92 = arith.subf %88, %24 : vector<8x16xf32>
    %93 = arith.mulf %28, %92 : vector<8x16xf32>
    %94 = arith.addf %24, %93 : vector<8x16xf32>
    %95 = arith.mulf %27, %85 : vector<8x16xf32>
    %96 = arith.mulf %28, %88 : vector<8x16xf32>
    %c0_40 = arith.constant 0 : index
    %c0_41 = arith.constant 0 : index
    %97 = vector.load %arg12[%c0_40, %c0_41] : memref<64x16xf32, #tpu.memory_space<vmem>>, vector<8x16xf32>
    tpu.vector_store %arg12[%c0_40, %c0_41], %95 {strides = array<i32>} : memref<64x16xf32, #tpu.memory_space<vmem>>, vector<8x16xf32>,
    %c56 = arith.constant 56 : index
    %c0_42 = arith.constant 0 : index
    %98 = vector.load %arg13[%c56, %c0_42] : memref<64x16xf32, #tpu.memory_space<vmem>>, vector<8x16xf32>
    tpu.vector_store %arg13[%c56, %c0_42], %96 {strides = array<i32>} : memref<64x16xf32, #tpu.memory_space<vmem>>, vector<8x16xf32>,
    %99 = vector.extract_strided_slice %10 {offsets = [8, 0], sizes = [8, 48], strides = [1, 1]} : vector<64x96xf32> to vector<8x48xf32>
    %100 = vector.extract_strided_slice %10 {offsets = [48, 48], sizes = [8, 48], strides = [1, 1]} : vector<64x96xf32> to vector<8x48xf32>
    %101 = vector.extract_strided_slice %3 {offsets = [8, 0], sizes = [8, 16], strides = [1, 1]} : vector<64x16xf32> to vector<8x16xf32>
    %102 = vector.extract_strided_slice %3 {offsets = [48, 0], sizes = [8, 16], strides = [1, 1]} : vector<64x16xf32> to vector<8x16xf32>
    %cst_43 = arith.constant dense<0.000000e+00> : vector<8x48xf32>
    %103 = tpu.matmul %91, %12, %cst_43 {dimension_numbers = #tpu.dot_dimension_numbers<[1], [0], [0], [1], [0, 0, 1, 1], [], []>} : vector<8x16xf32>, vector<16x48xf32>, vector<8x48xf32> -> vector<8x48xf32>
    %cst_44 = arith.constant dense<0.000000e+00> : vector<8x48xf32>
    %104 = tpu.matmul %94, %14, %cst_44 {dimension_numbers = #tpu.dot_dimension_numbers<[1], [0], [0], [1], [0, 0, 1, 1], [], []>} : vector<8x16xf32>, vector<16x48xf32>, vector<8x48xf32> -> vector<8x48xf32>
    %105 = vector.extract_strided_slice %99 {offsets = [0, 0], sizes = [8, 16], strides = [1, 1]} : vector<8x48xf32> to vector<8x16xf32>
    %106 = vector.extract_strided_slice %103 {offsets = [0, 0], sizes = [8, 16], strides = [1, 1]} : vector<8x48xf32> to vector<8x16xf32>
    %107 = arith.addf %105, %106 : vector<8x16xf32>
    %cst_45 = arith.constant 0.000000e+00 : f32
    %108 = vector.broadcast %cst_45 : f32 to vector<8x16xf32>
    %109 = arith.subf %108, %107 : vector<8x16xf32>
    %110 = math.exp %109 : vector<8x16xf32>
    %cst_46 = arith.constant 1.000000e+00 : f32
    %111 = vector.broadcast %cst_46 : f32 to vector<8x16xf32>
    %112 = arith.addf %111, %110 : vector<8x16xf32>
    %cst_47 = arith.constant 1.000000e+00 : f32
    %113 = vector.broadcast %cst_47 : f32 to vector<8x16xf32>
    %114 = arith.divf %113, %112 : vector<8x16xf32>
    %115 = vector.extract_strided_slice %99 {offsets = [0, 16], sizes = [8, 16], strides = [1, 1]} : vector<8x48xf32> to vector<8x16xf32>
    %116 = vector.extract_strided_slice %103 {offsets = [0, 16], sizes = [8, 16], strides = [1, 1]} : vector<8x48xf32> to vector<8x16xf32>
    %117 = arith.addf %115, %116 : vector<8x16xf32>
    %cst_48 = arith.constant 0.000000e+00 : f32
    %118 = vector.broadcast %cst_48 : f32 to vector<8x16xf32>
    %119 = arith.subf %118, %117 : vector<8x16xf32>
    %120 = math.exp %119 : vector<8x16xf32>
    %cst_49 = arith.constant 1.000000e+00 : f32
    %121 = vector.broadcast %cst_49 : f32 to vector<8x16xf32>
    %122 = arith.addf %121, %120 : vector<8x16xf32>
    %cst_50 = arith.constant 1.000000e+00 : f32
    %123 = vector.broadcast %cst_50 : f32 to vector<8x16xf32>
    %124 = arith.divf %123, %122 : vector<8x16xf32>
    %125 = vector.extract_strided_slice %99 {offsets = [0, 32], sizes = [8, 16], strides = [1, 1]} : vector<8x48xf32> to vector<8x16xf32>
    %126 = vector.extract_strided_slice %103 {offsets = [0, 32], sizes = [8, 16], strides = [1, 1]} : vector<8x48xf32> to vector<8x16xf32>
    %127 = arith.addf %126, %18 : vector<8x16xf32>
    %128 = arith.mulf %114, %127 : vector<8x16xf32>
    %129 = arith.addf %125, %128 : vector<8x16xf32>
    %130 = math.tanh %129 : vector<8x16xf32>
    %131 = vector.extract_strided_slice %100 {offsets = [0, 0], sizes = [8, 16], strides = [1, 1]} : vector<8x48xf32> to vector<8x16xf32>
    %132 = vector.extract_strided_slice %104 {offsets = [0, 0], sizes = [8, 16], strides = [1, 1]} : vector<8x48xf32> to vector<8x16xf32>
    %133 = arith.addf %131, %132 : vector<8x16xf32>
    %cst_51 = arith.constant 0.000000e+00 : f32
    %134 = vector.broadcast %cst_51 : f32 to vector<8x16xf32>
    %135 = arith.subf %134, %133 : vector<8x16xf32>
    %136 = math.exp %135 : vector<8x16xf32>
    %cst_52 = arith.constant 1.000000e+00 : f32
    %137 = vector.broadcast %cst_52 : f32 to vector<8x16xf32>
    %138 = arith.addf %137, %136 : vector<8x16xf32>
    %cst_53 = arith.constant 1.000000e+00 : f32
    %139 = vector.broadcast %cst_53 : f32 to vector<8x16xf32>
    %140 = arith.divf %139, %138 : vector<8x16xf32>
    %141 = vector.extract_strided_slice %100 {offsets = [0, 16], sizes = [8, 16], strides = [1, 1]} : vector<8x48xf32> to vector<8x16xf32>
    %142 = vector.extract_strided_slice %104 {offsets = [0, 16], sizes = [8, 16], strides = [1, 1]} : vector<8x48xf32> to vector<8x16xf32>
    %143 = arith.addf %141, %142 : vector<8x16xf32>
    %cst_54 = arith.constant 0.000000e+00 : f32
    %144 = vector.broadcast %cst_54 : f32 to vector<8x16xf32>
    %145 = arith.subf %144, %143 : vector<8x16xf32>
    %146 = math.exp %145 : vector<8x16xf32>
    %cst_55 = arith.constant 1.000000e+00 : f32
    %147 = vector.broadcast %cst_55 : f32 to vector<8x16xf32>
    %148 = arith.addf %147, %146 : vector<8x16xf32>
    %cst_56 = arith.constant 1.000000e+00 : f32
    %149 = vector.broadcast %cst_56 : f32 to vector<8x16xf32>
    %150 = arith.divf %149, %148 : vector<8x16xf32>
    %151 = vector.extract_strided_slice %100 {offsets = [0, 32], sizes = [8, 16], strides = [1, 1]} : vector<8x48xf32> to vector<8x16xf32>
    %152 = vector.extract_strided_slice %104 {offsets = [0, 32], sizes = [8, 16], strides = [1, 1]} : vector<8x48xf32> to vector<8x16xf32>
    %153 = arith.addf %152, %22 : vector<8x16xf32>
    %154 = arith.mulf %140, %153 : vector<8x16xf32>
    %155 = arith.addf %151, %154 : vector<8x16xf32>
    %156 = math.tanh %155 : vector<8x16xf32>
    %157 = arith.subf %91, %130 : vector<8x16xf32>
    %158 = arith.mulf %124, %157 : vector<8x16xf32>
    %159 = arith.addf %130, %158 : vector<8x16xf32>
    %160 = arith.subf %94, %156 : vector<8x16xf32>
    %161 = arith.mulf %150, %160 : vector<8x16xf32>
    %162 = arith.addf %156, %161 : vector<8x16xf32>
    %163 = arith.subf %159, %91 : vector<8x16xf32>
    %164 = arith.mulf %101, %163 : vector<8x16xf32>
    %165 = arith.addf %91, %164 : vector<8x16xf32>
    %166 = arith.subf %162, %94 : vector<8x16xf32>
    %167 = arith.mulf %102, %166 : vector<8x16xf32>
    %168 = arith.addf %94, %167 : vector<8x16xf32>
    %169 = arith.mulf %101, %159 : vector<8x16xf32>
    %170 = arith.mulf %102, %162 : vector<8x16xf32>
    %c8 = arith.constant 8 : index
    %c0_57 = arith.constant 0 : index
    %171 = vector.load %arg12[%c8, %c0_57] : memref<64x16xf32, #tpu.memory_space<vmem>>, vector<8x16xf32>
    tpu.vector_store %arg12[%c8, %c0_57], %169 {strides = array<i32>} : memref<64x16xf32, #tpu.memory_space<vmem>>, vector<8x16xf32>,
    %c48 = arith.constant 48 : index
    %c0_58 = arith.constant 0 : index
    %172 = vector.load %arg13[%c48, %c0_58] : memref<64x16xf32, #tpu.memory_space<vmem>>, vector<8x16xf32>
    tpu.vector_store %arg13[%c48, %c0_58], %170 {strides = array<i32>} : memref<64x16xf32, #tpu.memory_space<vmem>>, vector<8x16xf32>,
    %173 = vector.extract_strided_slice %10 {offsets = [16, 0], sizes = [8, 48], strides = [1, 1]} : vector<64x96xf32> to vector<8x48xf32>
    %174 = vector.extract_strided_slice %10 {offsets = [40, 48], sizes = [8, 48], strides = [1, 1]} : vector<64x96xf32> to vector<8x48xf32>
    %175 = vector.extract_strided_slice %3 {offsets = [16, 0], sizes = [8, 16], strides = [1, 1]} : vector<64x16xf32> to vector<8x16xf32>
    %176 = vector.extract_strided_slice %3 {offsets = [40, 0], sizes = [8, 16], strides = [1, 1]} : vector<64x16xf32> to vector<8x16xf32>
    %cst_59 = arith.constant dense<0.000000e+00> : vector<8x48xf32>
    %177 = tpu.matmul %165, %12, %cst_59 {dimension_numbers = #tpu.dot_dimension_numbers<[1], [0], [0], [1], [0, 0, 1, 1], [], []>} : vector<8x16xf32>, vector<16x48xf32>, vector<8x48xf32> -> vector<8x48xf32>
    %cst_60 = arith.constant dense<0.000000e+00> : vector<8x48xf32>
    %178 = tpu.matmul %168, %14, %cst_60 {dimension_numbers = #tpu.dot_dimension_numbers<[1], [0], [0], [1], [0, 0, 1, 1], [], []>} : vector<8x16xf32>, vector<16x48xf32>, vector<8x48xf32> -> vector<8x48xf32>
    %179 = vector.extract_strided_slice %173 {offsets = [0, 0], sizes = [8, 16], strides = [1, 1]} : vector<8x48xf32> to vector<8x16xf32>
    %180 = vector.extract_strided_slice %177 {offsets = [0, 0], sizes = [8, 16], strides = [1, 1]} : vector<8x48xf32> to vector<8x16xf32>
    %181 = arith.addf %179, %180 : vector<8x16xf32>
    %cst_61 = arith.constant 0.000000e+00 : f32
    %182 = vector.broadcast %cst_61 : f32 to vector<8x16xf32>
    %183 = arith.subf %182, %181 : vector<8x16xf32>
    %184 = math.exp %183 : vector<8x16xf32>
    %cst_62 = arith.constant 1.000000e+00 : f32
    %185 = vector.broadcast %cst_62 : f32 to vector<8x16xf32>
    %186 = arith.addf %185, %184 : vector<8x16xf32>
    %cst_63 = arith.constant 1.000000e+00 : f32
    %187 = vector.broadcast %cst_63 : f32 to vector<8x16xf32>
    %188 = arith.divf %187, %186 : vector<8x16xf32>
    %189 = vector.extract_strided_slice %173 {offsets = [0, 16], sizes = [8, 16], strides = [1, 1]} : vector<8x48xf32> to vector<8x16xf32>
    %190 = vector.extract_strided_slice %177 {offsets = [0, 16], sizes = [8, 16], strides = [1, 1]} : vector<8x48xf32> to vector<8x16xf32>
    %191 = arith.addf %189, %190 : vector<8x16xf32>
    %cst_64 = arith.constant 0.000000e+00 : f32
    %192 = vector.broadcast %cst_64 : f32 to vector<8x16xf32>
    %193 = arith.subf %192, %191 : vector<8x16xf32>
    %194 = math.exp %193 : vector<8x16xf32>
    %cst_65 = arith.constant 1.000000e+00 : f32
    %195 = vector.broadcast %cst_65 : f32 to vector<8x16xf32>
    %196 = arith.addf %195, %194 : vector<8x16xf32>
    %cst_66 = arith.constant 1.000000e+00 : f32
    %197 = vector.broadcast %cst_66 : f32 to vector<8x16xf32>
    %198 = arith.divf %197, %196 : vector<8x16xf32>
    %199 = vector.extract_strided_slice %173 {offsets = [0, 32], sizes = [8, 16], strides = [1, 1]} : vector<8x48xf32> to vector<8x16xf32>
    %200 = vector.extract_strided_slice %177 {offsets = [0, 32], sizes = [8, 16], strides = [1, 1]} : vector<8x48xf32> to vector<8x16xf32>
    %201 = arith.addf %200, %18 : vector<8x16xf32>
    %202 = arith.mulf %188, %201 : vector<8x16xf32>
    %203 = arith.addf %199, %202 : vector<8x16xf32>
    %204 = math.tanh %203 : vector<8x16xf32>
    %205 = vector.extract_strided_slice %174 {offsets = [0, 0], sizes = [8, 16], strides = [1, 1]} : vector<8x48xf32> to vector<8x16xf32>
    %206 = vector.extract_strided_slice %178 {offsets = [0, 0], sizes = [8, 16], strides = [1, 1]} : vector<8x48xf32> to vector<8x16xf32>
    %207 = arith.addf %205, %206 : vector<8x16xf32>
    %cst_67 = arith.constant 0.000000e+00 : f32
    %208 = vector.broadcast %cst_67 : f32 to vector<8x16xf32>
    %209 = arith.subf %208, %207 : vector<8x16xf32>
    %210 = math.exp %209 : vector<8x16xf32>
    %cst_68 = arith.constant 1.000000e+00 : f32
    %211 = vector.broadcast %cst_68 : f32 to vector<8x16xf32>
    %212 = arith.addf %211, %210 : vector<8x16xf32>
    %cst_69 = arith.constant 1.000000e+00 : f32
    %213 = vector.broadcast %cst_69 : f32 to vector<8x16xf32>
    %214 = arith.divf %213, %212 : vector<8x16xf32>
    %215 = vector.extract_strided_slice %174 {offsets = [0, 16], sizes = [8, 16], strides = [1, 1]} : vector<8x48xf32> to vector<8x16xf32>
    %216 = vector.extract_strided_slice %178 {offsets = [0, 16], sizes = [8, 16], strides = [1, 1]} : vector<8x48xf32> to vector<8x16xf32>
    %217 = arith.addf %215, %216 : vector<8x16xf32>
    %cst_70 = arith.constant 0.000000e+00 : f32
    %218 = vector.broadcast %cst_70 : f32 to vector<8x16xf32>
    %219 = arith.subf %218, %217 : vector<8x16xf32>
    %220 = math.exp %219 : vector<8x16xf32>
    %cst_71 = arith.constant 1.000000e+00 : f32
    %221 = vector.broadcast %cst_71 : f32 to vector<8x16xf32>
    %222 = arith.addf %221, %220 : vector<8x16xf32>
    %cst_72 = arith.constant 1.000000e+00 : f32
    %223 = vector.broadcast %cst_72 : f32 to vector<8x16xf32>
    %224 = arith.divf %223, %222 : vector<8x16xf32>
    %225 = vector.extract_strided_slice %174 {offsets = [0, 32], sizes = [8, 16], strides = [1, 1]} : vector<8x48xf32> to vector<8x16xf32>
    %226 = vector.extract_strided_slice %178 {offsets = [0, 32], sizes = [8, 16], strides = [1, 1]} : vector<8x48xf32> to vector<8x16xf32>
    %227 = arith.addf %226, %22 : vector<8x16xf32>
    %228 = arith.mulf %214, %227 : vector<8x16xf32>
    %229 = arith.addf %225, %228 : vector<8x16xf32>
    %230 = math.tanh %229 : vector<8x16xf32>
    %231 = arith.subf %165, %204 : vector<8x16xf32>
    %232 = arith.mulf %198, %231 : vector<8x16xf32>
    %233 = arith.addf %204, %232 : vector<8x16xf32>
    %234 = arith.subf %168, %230 : vector<8x16xf32>
    %235 = arith.mulf %224, %234 : vector<8x16xf32>
    %236 = arith.addf %230, %235 : vector<8x16xf32>
    %237 = arith.subf %233, %165 : vector<8x16xf32>
    %238 = arith.mulf %175, %237 : vector<8x16xf32>
    %239 = arith.addf %165, %238 : vector<8x16xf32>
    %240 = arith.subf %236, %168 : vector<8x16xf32>
    %241 = arith.mulf %176, %240 : vector<8x16xf32>
    %242 = arith.addf %168, %241 : vector<8x16xf32>
    %243 = arith.mulf %175, %233 : vector<8x16xf32>
    %244 = arith.mulf %176, %236 : vector<8x16xf32>
    %c16 = arith.constant 16 : index
    %c0_73 = arith.constant 0 : index
    %245 = vector.load %arg12[%c16, %c0_73] : memref<64x16xf32, #tpu.memory_space<vmem>>, vector<8x16xf32>
    tpu.vector_store %arg12[%c16, %c0_73], %243 {strides = array<i32>} : memref<64x16xf32, #tpu.memory_space<vmem>>, vector<8x16xf32>,
    %c40 = arith.constant 40 : index
    %c0_74 = arith.constant 0 : index
    %246 = vector.load %arg13[%c40, %c0_74] : memref<64x16xf32, #tpu.memory_space<vmem>>, vector<8x16xf32>
    tpu.vector_store %arg13[%c40, %c0_74], %244 {strides = array<i32>} : memref<64x16xf32, #tpu.memory_space<vmem>>, vector<8x16xf32>,
    %247 = vector.extract_strided_slice %10 {offsets = [24, 0], sizes = [8, 48], strides = [1, 1]} : vector<64x96xf32> to vector<8x48xf32>
    %248 = vector.extract_strided_slice %10 {offsets = [32, 48], sizes = [8, 48], strides = [1, 1]} : vector<64x96xf32> to vector<8x48xf32>
    %249 = vector.extract_strided_slice %3 {offsets = [24, 0], sizes = [8, 16], strides = [1, 1]} : vector<64x16xf32> to vector<8x16xf32>
    %250 = vector.extract_strided_slice %3 {offsets = [32, 0], sizes = [8, 16], strides = [1, 1]} : vector<64x16xf32> to vector<8x16xf32>
    %cst_75 = arith.constant dense<0.000000e+00> : vector<8x48xf32>
    %251 = tpu.matmul %239, %12, %cst_75 {dimension_numbers = #tpu.dot_dimension_numbers<[1], [0], [0], [1], [0, 0, 1, 1], [], []>} : vector<8x16xf32>, vector<16x48xf32>, vector<8x48xf32> -> vector<8x48xf32>
    %cst_76 = arith.constant dense<0.000000e+00> : vector<8x48xf32>
    %252 = tpu.matmul %242, %14, %cst_76 {dimension_numbers = #tpu.dot_dimension_numbers<[1], [0], [0], [1], [0, 0, 1, 1], [], []>} : vector<8x16xf32>, vector<16x48xf32>, vector<8x48xf32> -> vector<8x48xf32>
    %253 = vector.extract_strided_slice %247 {offsets = [0, 0], sizes = [8, 16], strides = [1, 1]} : vector<8x48xf32> to vector<8x16xf32>
    %254 = vector.extract_strided_slice %251 {offsets = [0, 0], sizes = [8, 16], strides = [1, 1]} : vector<8x48xf32> to vector<8x16xf32>
    %255 = arith.addf %253, %254 : vector<8x16xf32>
    %cst_77 = arith.constant 0.000000e+00 : f32
    %256 = vector.broadcast %cst_77 : f32 to vector<8x16xf32>
    %257 = arith.subf %256, %255 : vector<8x16xf32>
    %258 = math.exp %257 : vector<8x16xf32>
    %cst_78 = arith.constant 1.000000e+00 : f32
    %259 = vector.broadcast %cst_78 : f32 to vector<8x16xf32>
    %260 = arith.addf %259, %258 : vector<8x16xf32>
    %cst_79 = arith.constant 1.000000e+00 : f32
    %261 = vector.broadcast %cst_79 : f32 to vector<8x16xf32>
    %262 = arith.divf %261, %260 : vector<8x16xf32>
    %263 = vector.extract_strided_slice %247 {offsets = [0, 16], sizes = [8, 16], strides = [1, 1]} : vector<8x48xf32> to vector<8x16xf32>
    %264 = vector.extract_strided_slice %251 {offsets = [0, 16], sizes = [8, 16], strides = [1, 1]} : vector<8x48xf32> to vector<8x16xf32>
    %265 = arith.addf %263, %264 : vector<8x16xf32>
    %cst_80 = arith.constant 0.000000e+00 : f32
    %266 = vector.broadcast %cst_80 : f32 to vector<8x16xf32>
    %267 = arith.subf %266, %265 : vector<8x16xf32>
    %268 = math.exp %267 : vector<8x16xf32>
    %cst_81 = arith.constant 1.000000e+00 : f32
    %269 = vector.broadcast %cst_81 : f32 to vector<8x16xf32>
    %270 = arith.addf %269, %268 : vector<8x16xf32>
    %cst_82 = arith.constant 1.000000e+00 : f32
    %271 = vector.broadcast %cst_82 : f32 to vector<8x16xf32>
    %272 = arith.divf %271, %270 : vector<8x16xf32>
    %273 = vector.extract_strided_slice %247 {offsets = [0, 32], sizes = [8, 16], strides = [1, 1]} : vector<8x48xf32> to vector<8x16xf32>
    %274 = vector.extract_strided_slice %251 {offsets = [0, 32], sizes = [8, 16], strides = [1, 1]} : vector<8x48xf32> to vector<8x16xf32>
    %275 = arith.addf %274, %18 : vector<8x16xf32>
    %276 = arith.mulf %262, %275 : vector<8x16xf32>
    %277 = arith.addf %273, %276 : vector<8x16xf32>
    %278 = math.tanh %277 : vector<8x16xf32>
    %279 = vector.extract_strided_slice %248 {offsets = [0, 0], sizes = [8, 16], strides = [1, 1]} : vector<8x48xf32> to vector<8x16xf32>
    %280 = vector.extract_strided_slice %252 {offsets = [0, 0], sizes = [8, 16], strides = [1, 1]} : vector<8x48xf32> to vector<8x16xf32>
    %281 = arith.addf %279, %280 : vector<8x16xf32>
    %cst_83 = arith.constant 0.000000e+00 : f32
    %282 = vector.broadcast %cst_83 : f32 to vector<8x16xf32>
    %283 = arith.subf %282, %281 : vector<8x16xf32>
    %284 = math.exp %283 : vector<8x16xf32>
    %cst_84 = arith.constant 1.000000e+00 : f32
    %285 = vector.broadcast %cst_84 : f32 to vector<8x16xf32>
    %286 = arith.addf %285, %284 : vector<8x16xf32>
    %cst_85 = arith.constant 1.000000e+00 : f32
    %287 = vector.broadcast %cst_85 : f32 to vector<8x16xf32>
    %288 = arith.divf %287, %286 : vector<8x16xf32>
    %289 = vector.extract_strided_slice %248 {offsets = [0, 16], sizes = [8, 16], strides = [1, 1]} : vector<8x48xf32> to vector<8x16xf32>
    %290 = vector.extract_strided_slice %252 {offsets = [0, 16], sizes = [8, 16], strides = [1, 1]} : vector<8x48xf32> to vector<8x16xf32>
    %291 = arith.addf %289, %290 : vector<8x16xf32>
    %cst_86 = arith.constant 0.000000e+00 : f32
    %292 = vector.broadcast %cst_86 : f32 to vector<8x16xf32>
    %293 = arith.subf %292, %291 : vector<8x16xf32>
    %294 = math.exp %293 : vector<8x16xf32>
    %cst_87 = arith.constant 1.000000e+00 : f32
    %295 = vector.broadcast %cst_87 : f32 to vector<8x16xf32>
    %296 = arith.addf %295, %294 : vector<8x16xf32>
    %cst_88 = arith.constant 1.000000e+00 : f32
    %297 = vector.broadcast %cst_88 : f32 to vector<8x16xf32>
    %298 = arith.divf %297, %296 : vector<8x16xf32>
    %299 = vector.extract_strided_slice %248 {offsets = [0, 32], sizes = [8, 16], strides = [1, 1]} : vector<8x48xf32> to vector<8x16xf32>
    %300 = vector.extract_strided_slice %252 {offsets = [0, 32], sizes = [8, 16], strides = [1, 1]} : vector<8x48xf32> to vector<8x16xf32>
    %301 = arith.addf %300, %22 : vector<8x16xf32>
    %302 = arith.mulf %288, %301 : vector<8x16xf32>
    %303 = arith.addf %299, %302 : vector<8x16xf32>
    %304 = math.tanh %303 : vector<8x16xf32>
    %305 = arith.subf %239, %278 : vector<8x16xf32>
    %306 = arith.mulf %272, %305 : vector<8x16xf32>
    %307 = arith.addf %278, %306 : vector<8x16xf32>
    %308 = arith.subf %242, %304 : vector<8x16xf32>
    %309 = arith.mulf %298, %308 : vector<8x16xf32>
    %310 = arith.addf %304, %309 : vector<8x16xf32>
    %311 = arith.subf %307, %239 : vector<8x16xf32>
    %312 = arith.mulf %249, %311 : vector<8x16xf32>
    %313 = arith.addf %239, %312 : vector<8x16xf32>
    %314 = arith.subf %310, %242 : vector<8x16xf32>
    %315 = arith.mulf %250, %314 : vector<8x16xf32>
    %316 = arith.addf %242, %315 : vector<8x16xf32>
    %317 = arith.mulf %249, %307 : vector<8x16xf32>
    %318 = arith.mulf %250, %310 : vector<8x16xf32>
    %c24 = arith.constant 24 : index
    %c0_89 = arith.constant 0 : index
    %319 = vector.load %arg12[%c24, %c0_89] : memref<64x16xf32, #tpu.memory_space<vmem>>, vector<8x16xf32>
    tpu.vector_store %arg12[%c24, %c0_89], %317 {strides = array<i32>} : memref<64x16xf32, #tpu.memory_space<vmem>>, vector<8x16xf32>,
    %c32 = arith.constant 32 : index
    %c0_90 = arith.constant 0 : index
    %320 = vector.load %arg13[%c32, %c0_90] : memref<64x16xf32, #tpu.memory_space<vmem>>, vector<8x16xf32>
    tpu.vector_store %arg13[%c32, %c0_90], %318 {strides = array<i32>} : memref<64x16xf32, #tpu.memory_space<vmem>>, vector<8x16xf32>,
    %321 = vector.extract_strided_slice %10 {offsets = [32, 0], sizes = [8, 48], strides = [1, 1]} : vector<64x96xf32> to vector<8x48xf32>
    %322 = vector.extract_strided_slice %10 {offsets = [24, 48], sizes = [8, 48], strides = [1, 1]} : vector<64x96xf32> to vector<8x48xf32>
    %323 = vector.extract_strided_slice %3 {offsets = [32, 0], sizes = [8, 16], strides = [1, 1]} : vector<64x16xf32> to vector<8x16xf32>
    %324 = vector.extract_strided_slice %3 {offsets = [24, 0], sizes = [8, 16], strides = [1, 1]} : vector<64x16xf32> to vector<8x16xf32>
    %cst_91 = arith.constant dense<0.000000e+00> : vector<8x48xf32>
    %325 = tpu.matmul %313, %12, %cst_91 {dimension_numbers = #tpu.dot_dimension_numbers<[1], [0], [0], [1], [0, 0, 1, 1], [], []>} : vector<8x16xf32>, vector<16x48xf32>, vector<8x48xf32> -> vector<8x48xf32>
    %cst_92 = arith.constant dense<0.000000e+00> : vector<8x48xf32>
    %326 = tpu.matmul %316, %14, %cst_92 {dimension_numbers = #tpu.dot_dimension_numbers<[1], [0], [0], [1], [0, 0, 1, 1], [], []>} : vector<8x16xf32>, vector<16x48xf32>, vector<8x48xf32> -> vector<8x48xf32>
    %327 = vector.extract_strided_slice %321 {offsets = [0, 0], sizes = [8, 16], strides = [1, 1]} : vector<8x48xf32> to vector<8x16xf32>
    %328 = vector.extract_strided_slice %325 {offsets = [0, 0], sizes = [8, 16], strides = [1, 1]} : vector<8x48xf32> to vector<8x16xf32>
    %329 = arith.addf %327, %328 : vector<8x16xf32>
    %cst_93 = arith.constant 0.000000e+00 : f32
    %330 = vector.broadcast %cst_93 : f32 to vector<8x16xf32>
    %331 = arith.subf %330, %329 : vector<8x16xf32>
    %332 = math.exp %331 : vector<8x16xf32>
    %cst_94 = arith.constant 1.000000e+00 : f32
    %333 = vector.broadcast %cst_94 : f32 to vector<8x16xf32>
    %334 = arith.addf %333, %332 : vector<8x16xf32>
    %cst_95 = arith.constant 1.000000e+00 : f32
    %335 = vector.broadcast %cst_95 : f32 to vector<8x16xf32>
    %336 = arith.divf %335, %334 : vector<8x16xf32>
    %337 = vector.extract_strided_slice %321 {offsets = [0, 16], sizes = [8, 16], strides = [1, 1]} : vector<8x48xf32> to vector<8x16xf32>
    %338 = vector.extract_strided_slice %325 {offsets = [0, 16], sizes = [8, 16], strides = [1, 1]} : vector<8x48xf32> to vector<8x16xf32>
    %339 = arith.addf %337, %338 : vector<8x16xf32>
    %cst_96 = arith.constant 0.000000e+00 : f32
    %340 = vector.broadcast %cst_96 : f32 to vector<8x16xf32>
    %341 = arith.subf %340, %339 : vector<8x16xf32>
    %342 = math.exp %341 : vector<8x16xf32>
    %cst_97 = arith.constant 1.000000e+00 : f32
    %343 = vector.broadcast %cst_97 : f32 to vector<8x16xf32>
    %344 = arith.addf %343, %342 : vector<8x16xf32>
    %cst_98 = arith.constant 1.000000e+00 : f32
    %345 = vector.broadcast %cst_98 : f32 to vector<8x16xf32>
    %346 = arith.divf %345, %344 : vector<8x16xf32>
    %347 = vector.extract_strided_slice %321 {offsets = [0, 32], sizes = [8, 16], strides = [1, 1]} : vector<8x48xf32> to vector<8x16xf32>
    %348 = vector.extract_strided_slice %325 {offsets = [0, 32], sizes = [8, 16], strides = [1, 1]} : vector<8x48xf32> to vector<8x16xf32>
    %349 = arith.addf %348, %18 : vector<8x16xf32>
    %350 = arith.mulf %336, %349 : vector<8x16xf32>
    %351 = arith.addf %347, %350 : vector<8x16xf32>
    %352 = math.tanh %351 : vector<8x16xf32>
    %353 = vector.extract_strided_slice %322 {offsets = [0, 0], sizes = [8, 16], strides = [1, 1]} : vector<8x48xf32> to vector<8x16xf32>
    %354 = vector.extract_strided_slice %326 {offsets = [0, 0], sizes = [8, 16], strides = [1, 1]} : vector<8x48xf32> to vector<8x16xf32>
    %355 = arith.addf %353, %354 : vector<8x16xf32>
    %cst_99 = arith.constant 0.000000e+00 : f32
    %356 = vector.broadcast %cst_99 : f32 to vector<8x16xf32>
    %357 = arith.subf %356, %355 : vector<8x16xf32>
    %358 = math.exp %357 : vector<8x16xf32>
    %cst_100 = arith.constant 1.000000e+00 : f32
    %359 = vector.broadcast %cst_100 : f32 to vector<8x16xf32>
    %360 = arith.addf %359, %358 : vector<8x16xf32>
    %cst_101 = arith.constant 1.000000e+00 : f32
    %361 = vector.broadcast %cst_101 : f32 to vector<8x16xf32>
    %362 = arith.divf %361, %360 : vector<8x16xf32>
    %363 = vector.extract_strided_slice %322 {offsets = [0, 16], sizes = [8, 16], strides = [1, 1]} : vector<8x48xf32> to vector<8x16xf32>
    %364 = vector.extract_strided_slice %326 {offsets = [0, 16], sizes = [8, 16], strides = [1, 1]} : vector<8x48xf32> to vector<8x16xf32>
    %365 = arith.addf %363, %364 : vector<8x16xf32>
    %cst_102 = arith.constant 0.000000e+00 : f32
    %366 = vector.broadcast %cst_102 : f32 to vector<8x16xf32>
    %367 = arith.subf %366, %365 : vector<8x16xf32>
    %368 = math.exp %367 : vector<8x16xf32>
    %cst_103 = arith.constant 1.000000e+00 : f32
    %369 = vector.broadcast %cst_103 : f32 to vector<8x16xf32>
    %370 = arith.addf %369, %368 : vector<8x16xf32>
    %cst_104 = arith.constant 1.000000e+00 : f32
    %371 = vector.broadcast %cst_104 : f32 to vector<8x16xf32>
    %372 = arith.divf %371, %370 : vector<8x16xf32>
    %373 = vector.extract_strided_slice %322 {offsets = [0, 32], sizes = [8, 16], strides = [1, 1]} : vector<8x48xf32> to vector<8x16xf32>
    %374 = vector.extract_strided_slice %326 {offsets = [0, 32], sizes = [8, 16], strides = [1, 1]} : vector<8x48xf32> to vector<8x16xf32>
    %375 = arith.addf %374, %22 : vector<8x16xf32>
    %376 = arith.mulf %362, %375 : vector<8x16xf32>
    %377 = arith.addf %373, %376 : vector<8x16xf32>
    %378 = math.tanh %377 : vector<8x16xf32>
    %379 = arith.subf %313, %352 : vector<8x16xf32>
    %380 = arith.mulf %346, %379 : vector<8x16xf32>
    %381 = arith.addf %352, %380 : vector<8x16xf32>
    %382 = arith.subf %316, %378 : vector<8x16xf32>
    %383 = arith.mulf %372, %382 : vector<8x16xf32>
    %384 = arith.addf %378, %383 : vector<8x16xf32>
    %385 = arith.subf %381, %313 : vector<8x16xf32>
    %386 = arith.mulf %323, %385 : vector<8x16xf32>
    %387 = arith.addf %313, %386 : vector<8x16xf32>
    %388 = arith.subf %384, %316 : vector<8x16xf32>
    %389 = arith.mulf %324, %388 : vector<8x16xf32>
    %390 = arith.addf %316, %389 : vector<8x16xf32>
    %391 = arith.mulf %323, %381 : vector<8x16xf32>
    %392 = arith.mulf %324, %384 : vector<8x16xf32>
    %c32_105 = arith.constant 32 : index
    %c0_106 = arith.constant 0 : index
    %393 = vector.load %arg12[%c32_105, %c0_106] : memref<64x16xf32, #tpu.memory_space<vmem>>, vector<8x16xf32>
    tpu.vector_store %arg12[%c32_105, %c0_106], %391 {strides = array<i32>} : memref<64x16xf32, #tpu.memory_space<vmem>>, vector<8x16xf32>,
    %c24_107 = arith.constant 24 : index
    %c0_108 = arith.constant 0 : index
    %394 = vector.load %arg13[%c24_107, %c0_108] : memref<64x16xf32, #tpu.memory_space<vmem>>, vector<8x16xf32>
    tpu.vector_store %arg13[%c24_107, %c0_108], %392 {strides = array<i32>} : memref<64x16xf32, #tpu.memory_space<vmem>>, vector<8x16xf32>,
    %395 = vector.extract_strided_slice %10 {offsets = [40, 0], sizes = [8, 48], strides = [1, 1]} : vector<64x96xf32> to vector<8x48xf32>
    %396 = vector.extract_strided_slice %10 {offsets = [16, 48], sizes = [8, 48], strides = [1, 1]} : vector<64x96xf32> to vector<8x48xf32>
    %397 = vector.extract_strided_slice %3 {offsets = [40, 0], sizes = [8, 16], strides = [1, 1]} : vector<64x16xf32> to vector<8x16xf32>
    %398 = vector.extract_strided_slice %3 {offsets = [16, 0], sizes = [8, 16], strides = [1, 1]} : vector<64x16xf32> to vector<8x16xf32>
    %cst_109 = arith.constant dense<0.000000e+00> : vector<8x48xf32>
    %399 = tpu.matmul %387, %12, %cst_109 {dimension_numbers = #tpu.dot_dimension_numbers<[1], [0], [0], [1], [0, 0, 1, 1], [], []>} : vector<8x16xf32>, vector<16x48xf32>, vector<8x48xf32> -> vector<8x48xf32>
    %cst_110 = arith.constant dense<0.000000e+00> : vector<8x48xf32>
    %400 = tpu.matmul %390, %14, %cst_110 {dimension_numbers = #tpu.dot_dimension_numbers<[1], [0], [0], [1], [0, 0, 1, 1], [], []>} : vector<8x16xf32>, vector<16x48xf32>, vector<8x48xf32> -> vector<8x48xf32>
    %401 = vector.extract_strided_slice %395 {offsets = [0, 0], sizes = [8, 16], strides = [1, 1]} : vector<8x48xf32> to vector<8x16xf32>
    %402 = vector.extract_strided_slice %399 {offsets = [0, 0], sizes = [8, 16], strides = [1, 1]} : vector<8x48xf32> to vector<8x16xf32>
    %403 = arith.addf %401, %402 : vector<8x16xf32>
    %cst_111 = arith.constant 0.000000e+00 : f32
    %404 = vector.broadcast %cst_111 : f32 to vector<8x16xf32>
    %405 = arith.subf %404, %403 : vector<8x16xf32>
    %406 = math.exp %405 : vector<8x16xf32>
    %cst_112 = arith.constant 1.000000e+00 : f32
    %407 = vector.broadcast %cst_112 : f32 to vector<8x16xf32>
    %408 = arith.addf %407, %406 : vector<8x16xf32>
    %cst_113 = arith.constant 1.000000e+00 : f32
    %409 = vector.broadcast %cst_113 : f32 to vector<8x16xf32>
    %410 = arith.divf %409, %408 : vector<8x16xf32>
    %411 = vector.extract_strided_slice %395 {offsets = [0, 16], sizes = [8, 16], strides = [1, 1]} : vector<8x48xf32> to vector<8x16xf32>
    %412 = vector.extract_strided_slice %399 {offsets = [0, 16], sizes = [8, 16], strides = [1, 1]} : vector<8x48xf32> to vector<8x16xf32>
    %413 = arith.addf %411, %412 : vector<8x16xf32>
    %cst_114 = arith.constant 0.000000e+00 : f32
    %414 = vector.broadcast %cst_114 : f32 to vector<8x16xf32>
    %415 = arith.subf %414, %413 : vector<8x16xf32>
    %416 = math.exp %415 : vector<8x16xf32>
    %cst_115 = arith.constant 1.000000e+00 : f32
    %417 = vector.broadcast %cst_115 : f32 to vector<8x16xf32>
    %418 = arith.addf %417, %416 : vector<8x16xf32>
    %cst_116 = arith.constant 1.000000e+00 : f32
    %419 = vector.broadcast %cst_116 : f32 to vector<8x16xf32>
    %420 = arith.divf %419, %418 : vector<8x16xf32>
    %421 = vector.extract_strided_slice %395 {offsets = [0, 32], sizes = [8, 16], strides = [1, 1]} : vector<8x48xf32> to vector<8x16xf32>
    %422 = vector.extract_strided_slice %399 {offsets = [0, 32], sizes = [8, 16], strides = [1, 1]} : vector<8x48xf32> to vector<8x16xf32>
    %423 = arith.addf %422, %18 : vector<8x16xf32>
    %424 = arith.mulf %410, %423 : vector<8x16xf32>
    %425 = arith.addf %421, %424 : vector<8x16xf32>
    %426 = math.tanh %425 : vector<8x16xf32>
    %427 = vector.extract_strided_slice %396 {offsets = [0, 0], sizes = [8, 16], strides = [1, 1]} : vector<8x48xf32> to vector<8x16xf32>
    %428 = vector.extract_strided_slice %400 {offsets = [0, 0], sizes = [8, 16], strides = [1, 1]} : vector<8x48xf32> to vector<8x16xf32>
    %429 = arith.addf %427, %428 : vector<8x16xf32>
    %cst_117 = arith.constant 0.000000e+00 : f32
    %430 = vector.broadcast %cst_117 : f32 to vector<8x16xf32>
    %431 = arith.subf %430, %429 : vector<8x16xf32>
    %432 = math.exp %431 : vector<8x16xf32>
    %cst_118 = arith.constant 1.000000e+00 : f32
    %433 = vector.broadcast %cst_118 : f32 to vector<8x16xf32>
    %434 = arith.addf %433, %432 : vector<8x16xf32>
    %cst_119 = arith.constant 1.000000e+00 : f32
    %435 = vector.broadcast %cst_119 : f32 to vector<8x16xf32>
    %436 = arith.divf %435, %434 : vector<8x16xf32>
    %437 = vector.extract_strided_slice %396 {offsets = [0, 16], sizes = [8, 16], strides = [1, 1]} : vector<8x48xf32> to vector<8x16xf32>
    %438 = vector.extract_strided_slice %400 {offsets = [0, 16], sizes = [8, 16], strides = [1, 1]} : vector<8x48xf32> to vector<8x16xf32>
    %439 = arith.addf %437, %438 : vector<8x16xf32>
    %cst_120 = arith.constant 0.000000e+00 : f32
    %440 = vector.broadcast %cst_120 : f32 to vector<8x16xf32>
    %441 = arith.subf %440, %439 : vector<8x16xf32>
    %442 = math.exp %441 : vector<8x16xf32>
    %cst_121 = arith.constant 1.000000e+00 : f32
    %443 = vector.broadcast %cst_121 : f32 to vector<8x16xf32>
    %444 = arith.addf %443, %442 : vector<8x16xf32>
    %cst_122 = arith.constant 1.000000e+00 : f32
    %445 = vector.broadcast %cst_122 : f32 to vector<8x16xf32>
    %446 = arith.divf %445, %444 : vector<8x16xf32>
    %447 = vector.extract_strided_slice %396 {offsets = [0, 32], sizes = [8, 16], strides = [1, 1]} : vector<8x48xf32> to vector<8x16xf32>
    %448 = vector.extract_strided_slice %400 {offsets = [0, 32], sizes = [8, 16], strides = [1, 1]} : vector<8x48xf32> to vector<8x16xf32>
    %449 = arith.addf %448, %22 : vector<8x16xf32>
    %450 = arith.mulf %436, %449 : vector<8x16xf32>
    %451 = arith.addf %447, %450 : vector<8x16xf32>
    %452 = math.tanh %451 : vector<8x16xf32>
    %453 = arith.subf %387, %426 : vector<8x16xf32>
    %454 = arith.mulf %420, %453 : vector<8x16xf32>
    %455 = arith.addf %426, %454 : vector<8x16xf32>
    %456 = arith.subf %390, %452 : vector<8x16xf32>
    %457 = arith.mulf %446, %456 : vector<8x16xf32>
    %458 = arith.addf %452, %457 : vector<8x16xf32>
    %459 = arith.subf %455, %387 : vector<8x16xf32>
    %460 = arith.mulf %397, %459 : vector<8x16xf32>
    %461 = arith.addf %387, %460 : vector<8x16xf32>
    %462 = arith.subf %458, %390 : vector<8x16xf32>
    %463 = arith.mulf %398, %462 : vector<8x16xf32>
    %464 = arith.addf %390, %463 : vector<8x16xf32>
    %465 = arith.mulf %397, %455 : vector<8x16xf32>
    %466 = arith.mulf %398, %458 : vector<8x16xf32>
    %c40_123 = arith.constant 40 : index
    %c0_124 = arith.constant 0 : index
    %467 = vector.load %arg12[%c40_123, %c0_124] : memref<64x16xf32, #tpu.memory_space<vmem>>, vector<8x16xf32>
    tpu.vector_store %arg12[%c40_123, %c0_124], %465 {strides = array<i32>} : memref<64x16xf32, #tpu.memory_space<vmem>>, vector<8x16xf32>,
    %c16_125 = arith.constant 16 : index
    %c0_126 = arith.constant 0 : index
    %468 = vector.load %arg13[%c16_125, %c0_126] : memref<64x16xf32, #tpu.memory_space<vmem>>, vector<8x16xf32>
    tpu.vector_store %arg13[%c16_125, %c0_126], %466 {strides = array<i32>} : memref<64x16xf32, #tpu.memory_space<vmem>>, vector<8x16xf32>,
    %469 = vector.extract_strided_slice %10 {offsets = [48, 0], sizes = [8, 48], strides = [1, 1]} : vector<64x96xf32> to vector<8x48xf32>
    %470 = vector.extract_strided_slice %10 {offsets = [8, 48], sizes = [8, 48], strides = [1, 1]} : vector<64x96xf32> to vector<8x48xf32>
    %471 = vector.extract_strided_slice %3 {offsets = [48, 0], sizes = [8, 16], strides = [1, 1]} : vector<64x16xf32> to vector<8x16xf32>
    %472 = vector.extract_strided_slice %3 {offsets = [8, 0], sizes = [8, 16], strides = [1, 1]} : vector<64x16xf32> to vector<8x16xf32>
    %cst_127 = arith.constant dense<0.000000e+00> : vector<8x48xf32>
    %473 = tpu.matmul %461, %12, %cst_127 {dimension_numbers = #tpu.dot_dimension_numbers<[1], [0], [0], [1], [0, 0, 1, 1], [], []>} : vector<8x16xf32>, vector<16x48xf32>, vector<8x48xf32> -> vector<8x48xf32>
    %cst_128 = arith.constant dense<0.000000e+00> : vector<8x48xf32>
    %474 = tpu.matmul %464, %14, %cst_128 {dimension_numbers = #tpu.dot_dimension_numbers<[1], [0], [0], [1], [0, 0, 1, 1], [], []>} : vector<8x16xf32>, vector<16x48xf32>, vector<8x48xf32> -> vector<8x48xf32>
    %475 = vector.extract_strided_slice %469 {offsets = [0, 0], sizes = [8, 16], strides = [1, 1]} : vector<8x48xf32> to vector<8x16xf32>
    %476 = vector.extract_strided_slice %473 {offsets = [0, 0], sizes = [8, 16], strides = [1, 1]} : vector<8x48xf32> to vector<8x16xf32>
    %477 = arith.addf %475, %476 : vector<8x16xf32>
    %cst_129 = arith.constant 0.000000e+00 : f32
    %478 = vector.broadcast %cst_129 : f32 to vector<8x16xf32>
    %479 = arith.subf %478, %477 : vector<8x16xf32>
    %480 = math.exp %479 : vector<8x16xf32>
    %cst_130 = arith.constant 1.000000e+00 : f32
    %481 = vector.broadcast %cst_130 : f32 to vector<8x16xf32>
    %482 = arith.addf %481, %480 : vector<8x16xf32>
    %cst_131 = arith.constant 1.000000e+00 : f32
    %483 = vector.broadcast %cst_131 : f32 to vector<8x16xf32>
    %484 = arith.divf %483, %482 : vector<8x16xf32>
    %485 = vector.extract_strided_slice %469 {offsets = [0, 16], sizes = [8, 16], strides = [1, 1]} : vector<8x48xf32> to vector<8x16xf32>
    %486 = vector.extract_strided_slice %473 {offsets = [0, 16], sizes = [8, 16], strides = [1, 1]} : vector<8x48xf32> to vector<8x16xf32>
    %487 = arith.addf %485, %486 : vector<8x16xf32>
    %cst_132 = arith.constant 0.000000e+00 : f32
    %488 = vector.broadcast %cst_132 : f32 to vector<8x16xf32>
    %489 = arith.subf %488, %487 : vector<8x16xf32>
    %490 = math.exp %489 : vector<8x16xf32>
    %cst_133 = arith.constant 1.000000e+00 : f32
    %491 = vector.broadcast %cst_133 : f32 to vector<8x16xf32>
    %492 = arith.addf %491, %490 : vector<8x16xf32>
    %cst_134 = arith.constant 1.000000e+00 : f32
    %493 = vector.broadcast %cst_134 : f32 to vector<8x16xf32>
    %494 = arith.divf %493, %492 : vector<8x16xf32>
    %495 = vector.extract_strided_slice %469 {offsets = [0, 32], sizes = [8, 16], strides = [1, 1]} : vector<8x48xf32> to vector<8x16xf32>
    %496 = vector.extract_strided_slice %473 {offsets = [0, 32], sizes = [8, 16], strides = [1, 1]} : vector<8x48xf32> to vector<8x16xf32>
    %497 = arith.addf %496, %18 : vector<8x16xf32>
    %498 = arith.mulf %484, %497 : vector<8x16xf32>
    %499 = arith.addf %495, %498 : vector<8x16xf32>
    %500 = math.tanh %499 : vector<8x16xf32>
    %501 = vector.extract_strided_slice %470 {offsets = [0, 0], sizes = [8, 16], strides = [1, 1]} : vector<8x48xf32> to vector<8x16xf32>
    %502 = vector.extract_strided_slice %474 {offsets = [0, 0], sizes = [8, 16], strides = [1, 1]} : vector<8x48xf32> to vector<8x16xf32>
    %503 = arith.addf %501, %502 : vector<8x16xf32>
    %cst_135 = arith.constant 0.000000e+00 : f32
    %504 = vector.broadcast %cst_135 : f32 to vector<8x16xf32>
    %505 = arith.subf %504, %503 : vector<8x16xf32>
    %506 = math.exp %505 : vector<8x16xf32>
    %cst_136 = arith.constant 1.000000e+00 : f32
    %507 = vector.broadcast %cst_136 : f32 to vector<8x16xf32>
    %508 = arith.addf %507, %506 : vector<8x16xf32>
    %cst_137 = arith.constant 1.000000e+00 : f32
    %509 = vector.broadcast %cst_137 : f32 to vector<8x16xf32>
    %510 = arith.divf %509, %508 : vector<8x16xf32>
    %511 = vector.extract_strided_slice %470 {offsets = [0, 16], sizes = [8, 16], strides = [1, 1]} : vector<8x48xf32> to vector<8x16xf32>
    %512 = vector.extract_strided_slice %474 {offsets = [0, 16], sizes = [8, 16], strides = [1, 1]} : vector<8x48xf32> to vector<8x16xf32>
    %513 = arith.addf %511, %512 : vector<8x16xf32>
    %cst_138 = arith.constant 0.000000e+00 : f32
    %514 = vector.broadcast %cst_138 : f32 to vector<8x16xf32>
    %515 = arith.subf %514, %513 : vector<8x16xf32>
    %516 = math.exp %515 : vector<8x16xf32>
    %cst_139 = arith.constant 1.000000e+00 : f32
    %517 = vector.broadcast %cst_139 : f32 to vector<8x16xf32>
    %518 = arith.addf %517, %516 : vector<8x16xf32>
    %cst_140 = arith.constant 1.000000e+00 : f32
    %519 = vector.broadcast %cst_140 : f32 to vector<8x16xf32>
    %520 = arith.divf %519, %518 : vector<8x16xf32>
    %521 = vector.extract_strided_slice %470 {offsets = [0, 32], sizes = [8, 16], strides = [1, 1]} : vector<8x48xf32> to vector<8x16xf32>
    %522 = vector.extract_strided_slice %474 {offsets = [0, 32], sizes = [8, 16], strides = [1, 1]} : vector<8x48xf32> to vector<8x16xf32>
    %523 = arith.addf %522, %22 : vector<8x16xf32>
    %524 = arith.mulf %510, %523 : vector<8x16xf32>
    %525 = arith.addf %521, %524 : vector<8x16xf32>
    %526 = math.tanh %525 : vector<8x16xf32>
    %527 = arith.subf %461, %500 : vector<8x16xf32>
    %528 = arith.mulf %494, %527 : vector<8x16xf32>
    %529 = arith.addf %500, %528 : vector<8x16xf32>
    %530 = arith.subf %464, %526 : vector<8x16xf32>
    %531 = arith.mulf %520, %530 : vector<8x16xf32>
    %532 = arith.addf %526, %531 : vector<8x16xf32>
    %533 = arith.subf %529, %461 : vector<8x16xf32>
    %534 = arith.mulf %471, %533 : vector<8x16xf32>
    %535 = arith.addf %461, %534 : vector<8x16xf32>
    %536 = arith.subf %532, %464 : vector<8x16xf32>
    %537 = arith.mulf %472, %536 : vector<8x16xf32>
    %538 = arith.addf %464, %537 : vector<8x16xf32>
    %539 = arith.mulf %471, %529 : vector<8x16xf32>
    %540 = arith.mulf %472, %532 : vector<8x16xf32>
    %c48_141 = arith.constant 48 : index
    %c0_142 = arith.constant 0 : index
    %541 = vector.load %arg12[%c48_141, %c0_142] : memref<64x16xf32, #tpu.memory_space<vmem>>, vector<8x16xf32>
    tpu.vector_store %arg12[%c48_141, %c0_142], %539 {strides = array<i32>} : memref<64x16xf32, #tpu.memory_space<vmem>>, vector<8x16xf32>,
    %c8_143 = arith.constant 8 : index
    %c0_144 = arith.constant 0 : index
    %542 = vector.load %arg13[%c8_143, %c0_144] : memref<64x16xf32, #tpu.memory_space<vmem>>, vector<8x16xf32>
    tpu.vector_store %arg13[%c8_143, %c0_144], %540 {strides = array<i32>} : memref<64x16xf32, #tpu.memory_space<vmem>>, vector<8x16xf32>,
    %543 = vector.extract_strided_slice %10 {offsets = [56, 0], sizes = [8, 48], strides = [1, 1]} : vector<64x96xf32> to vector<8x48xf32>
    %544 = vector.extract_strided_slice %10 {offsets = [0, 48], sizes = [8, 48], strides = [1, 1]} : vector<64x96xf32> to vector<8x48xf32>
    %545 = vector.extract_strided_slice %3 {offsets = [56, 0], sizes = [8, 16], strides = [1, 1]} : vector<64x16xf32> to vector<8x16xf32>
    %546 = vector.extract_strided_slice %3 {offsets = [0, 0], sizes = [8, 16], strides = [1, 1]} : vector<64x16xf32> to vector<8x16xf32>
    %cst_145 = arith.constant dense<0.000000e+00> : vector<8x48xf32>
    %547 = tpu.matmul %535, %12, %cst_145 {dimension_numbers = #tpu.dot_dimension_numbers<[1], [0], [0], [1], [0, 0, 1, 1], [], []>} : vector<8x16xf32>, vector<16x48xf32>, vector<8x48xf32> -> vector<8x48xf32>
    %cst_146 = arith.constant dense<0.000000e+00> : vector<8x48xf32>
    %548 = tpu.matmul %538, %14, %cst_146 {dimension_numbers = #tpu.dot_dimension_numbers<[1], [0], [0], [1], [0, 0, 1, 1], [], []>} : vector<8x16xf32>, vector<16x48xf32>, vector<8x48xf32> -> vector<8x48xf32>
    %549 = vector.extract_strided_slice %543 {offsets = [0, 0], sizes = [8, 16], strides = [1, 1]} : vector<8x48xf32> to vector<8x16xf32>
    %550 = vector.extract_strided_slice %547 {offsets = [0, 0], sizes = [8, 16], strides = [1, 1]} : vector<8x48xf32> to vector<8x16xf32>
    %551 = arith.addf %549, %550 : vector<8x16xf32>
    %cst_147 = arith.constant 0.000000e+00 : f32
    %552 = vector.broadcast %cst_147 : f32 to vector<8x16xf32>
    %553 = arith.subf %552, %551 : vector<8x16xf32>
    %554 = math.exp %553 : vector<8x16xf32>
    %cst_148 = arith.constant 1.000000e+00 : f32
    %555 = vector.broadcast %cst_148 : f32 to vector<8x16xf32>
    %556 = arith.addf %555, %554 : vector<8x16xf32>
    %cst_149 = arith.constant 1.000000e+00 : f32
    %557 = vector.broadcast %cst_149 : f32 to vector<8x16xf32>
    %558 = arith.divf %557, %556 : vector<8x16xf32>
    %559 = vector.extract_strided_slice %543 {offsets = [0, 16], sizes = [8, 16], strides = [1, 1]} : vector<8x48xf32> to vector<8x16xf32>
    %560 = vector.extract_strided_slice %547 {offsets = [0, 16], sizes = [8, 16], strides = [1, 1]} : vector<8x48xf32> to vector<8x16xf32>
    %561 = arith.addf %559, %560 : vector<8x16xf32>
    %cst_150 = arith.constant 0.000000e+00 : f32
    %562 = vector.broadcast %cst_150 : f32 to vector<8x16xf32>
    %563 = arith.subf %562, %561 : vector<8x16xf32>
    %564 = math.exp %563 : vector<8x16xf32>
    %cst_151 = arith.constant 1.000000e+00 : f32
    %565 = vector.broadcast %cst_151 : f32 to vector<8x16xf32>
    %566 = arith.addf %565, %564 : vector<8x16xf32>
    %cst_152 = arith.constant 1.000000e+00 : f32
    %567 = vector.broadcast %cst_152 : f32 to vector<8x16xf32>
    %568 = arith.divf %567, %566 : vector<8x16xf32>
    %569 = vector.extract_strided_slice %543 {offsets = [0, 32], sizes = [8, 16], strides = [1, 1]} : vector<8x48xf32> to vector<8x16xf32>
    %570 = vector.extract_strided_slice %547 {offsets = [0, 32], sizes = [8, 16], strides = [1, 1]} : vector<8x48xf32> to vector<8x16xf32>
    %571 = arith.addf %570, %18 : vector<8x16xf32>
    %572 = arith.mulf %558, %571 : vector<8x16xf32>
    %573 = arith.addf %569, %572 : vector<8x16xf32>
    %574 = math.tanh %573 : vector<8x16xf32>
    %575 = vector.extract_strided_slice %544 {offsets = [0, 0], sizes = [8, 16], strides = [1, 1]} : vector<8x48xf32> to vector<8x16xf32>
    %576 = vector.extract_strided_slice %548 {offsets = [0, 0], sizes = [8, 16], strides = [1, 1]} : vector<8x48xf32> to vector<8x16xf32>
    %577 = arith.addf %575, %576 : vector<8x16xf32>
    %cst_153 = arith.constant 0.000000e+00 : f32
    %578 = vector.broadcast %cst_153 : f32 to vector<8x16xf32>
    %579 = arith.subf %578, %577 : vector<8x16xf32>
    %580 = math.exp %579 : vector<8x16xf32>
    %cst_154 = arith.constant 1.000000e+00 : f32
    %581 = vector.broadcast %cst_154 : f32 to vector<8x16xf32>
    %582 = arith.addf %581, %580 : vector<8x16xf32>
    %cst_155 = arith.constant 1.000000e+00 : f32
    %583 = vector.broadcast %cst_155 : f32 to vector<8x16xf32>
    %584 = arith.divf %583, %582 : vector<8x16xf32>
    %585 = vector.extract_strided_slice %544 {offsets = [0, 16], sizes = [8, 16], strides = [1, 1]} : vector<8x48xf32> to vector<8x16xf32>
    %586 = vector.extract_strided_slice %548 {offsets = [0, 16], sizes = [8, 16], strides = [1, 1]} : vector<8x48xf32> to vector<8x16xf32>
    %587 = arith.addf %585, %586 : vector<8x16xf32>
    %cst_156 = arith.constant 0.000000e+00 : f32
    %588 = vector.broadcast %cst_156 : f32 to vector<8x16xf32>
    %589 = arith.subf %588, %587 : vector<8x16xf32>
    %590 = math.exp %589 : vector<8x16xf32>
    %cst_157 = arith.constant 1.000000e+00 : f32
    %591 = vector.broadcast %cst_157 : f32 to vector<8x16xf32>
    %592 = arith.addf %591, %590 : vector<8x16xf32>
    %cst_158 = arith.constant 1.000000e+00 : f32
    %593 = vector.broadcast %cst_158 : f32 to vector<8x16xf32>
    %594 = arith.divf %593, %592 : vector<8x16xf32>
    %595 = vector.extract_strided_slice %544 {offsets = [0, 32], sizes = [8, 16], strides = [1, 1]} : vector<8x48xf32> to vector<8x16xf32>
    %596 = vector.extract_strided_slice %548 {offsets = [0, 32], sizes = [8, 16], strides = [1, 1]} : vector<8x48xf32> to vector<8x16xf32>
    %597 = arith.addf %596, %22 : vector<8x16xf32>
    %598 = arith.mulf %584, %597 : vector<8x16xf32>
    %599 = arith.addf %595, %598 : vector<8x16xf32>
    %600 = math.tanh %599 : vector<8x16xf32>
    %601 = arith.subf %535, %574 : vector<8x16xf32>
    %602 = arith.mulf %568, %601 : vector<8x16xf32>
    %603 = arith.addf %574, %602 : vector<8x16xf32>
    %604 = arith.subf %538, %600 : vector<8x16xf32>
    %605 = arith.mulf %594, %604 : vector<8x16xf32>
    %606 = arith.addf %600, %605 : vector<8x16xf32>
    %607 = arith.mulf %545, %603 : vector<8x16xf32>
    %608 = arith.mulf %546, %606 : vector<8x16xf32>
    %c56_159 = arith.constant 56 : index
    %c0_160 = arith.constant 0 : index
    %609 = vector.load %arg12[%c56_159, %c0_160] : memref<64x16xf32, #tpu.memory_space<vmem>>, vector<8x16xf32>
    tpu.vector_store %arg12[%c56_159, %c0_160], %607 {strides = array<i32>} : memref<64x16xf32, #tpu.memory_space<vmem>>, vector<8x16xf32>,
    %c0_161 = arith.constant 0 : index
    %c0_162 = arith.constant 0 : index
    %610 = vector.load %arg13[%c0_161, %c0_162] : memref<64x16xf32, #tpu.memory_space<vmem>>, vector<8x16xf32>
    tpu.vector_store %arg13[%c0_161, %c0_162], %608 {strides = array<i32>} : memref<64x16xf32, #tpu.memory_space<vmem>>, vector<8x16xf32>,
    %c1_163 = arith.constant 1 : index
    %c0_164 = arith.constant 0 : index
    %c0_165 = arith.constant 0 : index
    %611 = vector.load %arg3[%c1_163, %c0_164, %c0_165] : memref<2x32x96xf32, #tpu.memory_space<vmem>>, vector<1x32x96xf32>
    %612 = vector.shape_cast %611 : vector<1x32x96xf32> to vector<32x96xf32>
    %c0_166 = arith.constant 0 : index
    %c0_167 = arith.constant 0 : index
    %613 = vector.load %arg12[%c0_166, %c0_167] : memref<64x16xf32, #tpu.memory_space<vmem>>, vector<64x16xf32>
    %614 = vector.extract_strided_slice %612 {offsets = [0, 0], sizes = [16, 96], strides = [1, 1]} : vector<32x96xf32> to vector<16x96xf32>
    %cst_168 = arith.constant dense<0.000000e+00> : vector<64x96xf32>
    %615 = tpu.matmul %613, %614, %cst_168 {dimension_numbers = #tpu.dot_dimension_numbers<[1], [0], [0], [1], [0, 0, 1, 1], [], []>} : vector<64x16xf32>, vector<16x96xf32>, vector<64x96xf32> -> vector<64x96xf32>
    %c0_169 = arith.constant 0 : index
    %c0_170 = arith.constant 0 : index
    %616 = vector.load %arg13[%c0_169, %c0_170] : memref<64x16xf32, #tpu.memory_space<vmem>>, vector<64x16xf32>
    %617 = vector.extract_strided_slice %612 {offsets = [16, 0], sizes = [16, 96], strides = [1, 1]} : vector<32x96xf32> to vector<16x96xf32>
    %cst_171 = arith.constant dense<0.000000e+00> : vector<64x96xf32>
    %618 = tpu.matmul %616, %617, %cst_171 {dimension_numbers = #tpu.dot_dimension_numbers<[1], [0], [0], [1], [0, 0, 1, 1], [], []>} : vector<64x16xf32>, vector<16x96xf32>, vector<64x96xf32> -> vector<64x96xf32>
    %619 = arith.addf %615, %618 : vector<64x96xf32>
    %c1_172 = arith.constant 1 : index
    %c0_173 = arith.constant 0 : index
    %c0_174 = arith.constant 0 : index
    %620 = vector.load %arg5[%c1_172, %c0_173, %c0_174] : memref<2x1x96xf32, #tpu.memory_space<vmem>>, vector<1x1x96xf32>
    %621 = vector.shape_cast %620 : vector<1x1x96xf32> to vector<1x96xf32>
    %622 = vector.broadcast %621 : vector<1x96xf32> to vector<64x96xf32>
    %623 = arith.addf %619, %622 : vector<64x96xf32>
    %c1_175 = arith.constant 1 : index
    %c0_176 = arith.constant 0 : index
    %c0_177 = arith.constant 0 : index
    %c0_178 = arith.constant 0 : index
    %624 = vector.load %arg4[%c1_175, %c0_176, %c0_177, %c0_178] : memref<2x2x16x48xf32, #tpu.memory_space<vmem>>, vector<1x1x16x48xf32>
    %625 = vector.shape_cast %624 : vector<1x1x16x48xf32> to vector<16x48xf32>
    %c1_179 = arith.constant 1 : index
    %c1_180 = arith.constant 1 : index
    %c0_181 = arith.constant 0 : index
    %c0_182 = arith.constant 0 : index
    %626 = vector.load %arg4[%c1_179, %c1_180, %c0_181, %c0_182] : memref<2x2x16x48xf32, #tpu.memory_space<vmem>>, vector<1x1x16x48xf32>
    %627 = vector.shape_cast %626 : vector<1x1x16x48xf32> to vector<16x48xf32>
    %c1_183 = arith.constant 1 : index
    %c0_184 = arith.constant 0 : index
    %c0_185 = arith.constant 0 : index
    %c0_186 = arith.constant 0 : index
    %628 = vector.load %arg6[%c1_183, %c0_184, %c0_185, %c0_186] : memref<2x2x1x16xf32, #tpu.memory_space<vmem>>, vector<1x1x1x16xf32>
    %629 = vector.shape_cast %628 : vector<1x1x1x16xf32> to vector<1x16xf32>
    %630 = vector.shape_cast %629 : vector<1x16xf32> to vector<1x16xf32>
    %631 = vector.broadcast %630 : vector<1x16xf32> to vector<8x16xf32>
    %c1_187 = arith.constant 1 : index
    %c1_188 = arith.constant 1 : index
    %c0_189 = arith.constant 0 : index
    %c0_190 = arith.constant 0 : index
    %632 = vector.load %arg6[%c1_187, %c1_188, %c0_189, %c0_190] : memref<2x2x1x16xf32, #tpu.memory_space<vmem>>, vector<1x1x1x16xf32>
    %633 = vector.shape_cast %632 : vector<1x1x1x16xf32> to vector<1x16xf32>
    %634 = vector.shape_cast %633 : vector<1x16xf32> to vector<1x16xf32>
    %635 = vector.broadcast %634 : vector<1x16xf32> to vector<8x16xf32>
    %cst_191 = arith.constant 0.000000e+00 : f32
    %636 = vector.broadcast %cst_191 : f32 to vector<8x16xf32>
    %cst_192 = arith.constant 0.000000e+00 : f32
    %637 = vector.broadcast %cst_192 : f32 to vector<8x16xf32>
    %cst_193 = arith.constant 0.000000e+00 : f32
    %638 = vector.broadcast %cst_193 : f32 to vector<8x16xf32>
    %cst_194 = arith.constant 0.000000e+00 : f32
    %639 = vector.broadcast %cst_194 : f32 to vector<8x16xf32>
    %640 = vector.extract_strided_slice %623 {offsets = [0, 0], sizes = [8, 48], strides = [1, 1]} : vector<64x96xf32> to vector<8x48xf32>
    %641 = vector.extract_strided_slice %623 {offsets = [56, 48], sizes = [8, 48], strides = [1, 1]} : vector<64x96xf32> to vector<8x48xf32>
    %642 = vector.extract_strided_slice %3 {offsets = [0, 0], sizes = [8, 16], strides = [1, 1]} : vector<64x16xf32> to vector<8x16xf32>
    %643 = vector.extract_strided_slice %3 {offsets = [56, 0], sizes = [8, 16], strides = [1, 1]} : vector<64x16xf32> to vector<8x16xf32>
    %cst_195 = arith.constant dense<0.000000e+00> : vector<8x48xf32>
    %644 = tpu.matmul %636, %625, %cst_195 {dimension_numbers = #tpu.dot_dimension_numbers<[1], [0], [0], [1], [0, 0, 1, 1], [], []>} : vector<8x16xf32>, vector<16x48xf32>, vector<8x48xf32> -> vector<8x48xf32>
    %cst_196 = arith.constant dense<0.000000e+00> : vector<8x48xf32>
    %645 = tpu.matmul %637, %627, %cst_196 {dimension_numbers = #tpu.dot_dimension_numbers<[1], [0], [0], [1], [0, 0, 1, 1], [], []>} : vector<8x16xf32>, vector<16x48xf32>, vector<8x48xf32> -> vector<8x48xf32>
    %646 = vector.extract_strided_slice %640 {offsets = [0, 0], sizes = [8, 16], strides = [1, 1]} : vector<8x48xf32> to vector<8x16xf32>
    %647 = vector.extract_strided_slice %644 {offsets = [0, 0], sizes = [8, 16], strides = [1, 1]} : vector<8x48xf32> to vector<8x16xf32>
    %648 = arith.addf %646, %647 : vector<8x16xf32>
    %cst_197 = arith.constant 0.000000e+00 : f32
    %649 = vector.broadcast %cst_197 : f32 to vector<8x16xf32>
    %650 = arith.subf %649, %648 : vector<8x16xf32>
    %651 = math.exp %650 : vector<8x16xf32>
    %cst_198 = arith.constant 1.000000e+00 : f32
    %652 = vector.broadcast %cst_198 : f32 to vector<8x16xf32>
    %653 = arith.addf %652, %651 : vector<8x16xf32>
    %cst_199 = arith.constant 1.000000e+00 : f32
    %654 = vector.broadcast %cst_199 : f32 to vector<8x16xf32>
    %655 = arith.divf %654, %653 : vector<8x16xf32>
    %656 = vector.extract_strided_slice %640 {offsets = [0, 16], sizes = [8, 16], strides = [1, 1]} : vector<8x48xf32> to vector<8x16xf32>
    %657 = vector.extract_strided_slice %644 {offsets = [0, 16], sizes = [8, 16], strides = [1, 1]} : vector<8x48xf32> to vector<8x16xf32>
    %658 = arith.addf %656, %657 : vector<8x16xf32>
    %cst_200 = arith.constant 0.000000e+00 : f32
    %659 = vector.broadcast %cst_200 : f32 to vector<8x16xf32>
    %660 = arith.subf %659, %658 : vector<8x16xf32>
    %661 = math.exp %660 : vector<8x16xf32>
    %cst_201 = arith.constant 1.000000e+00 : f32
    %662 = vector.broadcast %cst_201 : f32 to vector<8x16xf32>
    %663 = arith.addf %662, %661 : vector<8x16xf32>
    %cst_202 = arith.constant 1.000000e+00 : f32
    %664 = vector.broadcast %cst_202 : f32 to vector<8x16xf32>
    %665 = arith.divf %664, %663 : vector<8x16xf32>
    %666 = vector.extract_strided_slice %640 {offsets = [0, 32], sizes = [8, 16], strides = [1, 1]} : vector<8x48xf32> to vector<8x16xf32>
    %667 = vector.extract_strided_slice %644 {offsets = [0, 32], sizes = [8, 16], strides = [1, 1]} : vector<8x48xf32> to vector<8x16xf32>
    %668 = arith.addf %667, %631 : vector<8x16xf32>
    %669 = arith.mulf %655, %668 : vector<8x16xf32>
    %670 = arith.addf %666, %669 : vector<8x16xf32>
    %671 = math.tanh %670 : vector<8x16xf32>
    %672 = vector.extract_strided_slice %641 {offsets = [0, 0], sizes = [8, 16], strides = [1, 1]} : vector<8x48xf32> to vector<8x16xf32>
    %673 = vector.extract_strided_slice %645 {offsets = [0, 0], sizes = [8, 16], strides = [1, 1]} : vector<8x48xf32> to vector<8x16xf32>
    %674 = arith.addf %672, %673 : vector<8x16xf32>
    %cst_203 = arith.constant 0.000000e+00 : f32
    %675 = vector.broadcast %cst_203 : f32 to vector<8x16xf32>
    %676 = arith.subf %675, %674 : vector<8x16xf32>
    %677 = math.exp %676 : vector<8x16xf32>
    %cst_204 = arith.constant 1.000000e+00 : f32
    %678 = vector.broadcast %cst_204 : f32 to vector<8x16xf32>
    %679 = arith.addf %678, %677 : vector<8x16xf32>
    %cst_205 = arith.constant 1.000000e+00 : f32
    %680 = vector.broadcast %cst_205 : f32 to vector<8x16xf32>
    %681 = arith.divf %680, %679 : vector<8x16xf32>
    %682 = vector.extract_strided_slice %641 {offsets = [0, 16], sizes = [8, 16], strides = [1, 1]} : vector<8x48xf32> to vector<8x16xf32>
    %683 = vector.extract_strided_slice %645 {offsets = [0, 16], sizes = [8, 16], strides = [1, 1]} : vector<8x48xf32> to vector<8x16xf32>
    %684 = arith.addf %682, %683 : vector<8x16xf32>
    %cst_206 = arith.constant 0.000000e+00 : f32
    %685 = vector.broadcast %cst_206 : f32 to vector<8x16xf32>
    %686 = arith.subf %685, %684 : vector<8x16xf32>
    %687 = math.exp %686 : vector<8x16xf32>
    %cst_207 = arith.constant 1.000000e+00 : f32
    %688 = vector.broadcast %cst_207 : f32 to vector<8x16xf32>
    %689 = arith.addf %688, %687 : vector<8x16xf32>
    %cst_208 = arith.constant 1.000000e+00 : f32
    %690 = vector.broadcast %cst_208 : f32 to vector<8x16xf32>
    %691 = arith.divf %690, %689 : vector<8x16xf32>
    %692 = vector.extract_strided_slice %641 {offsets = [0, 32], sizes = [8, 16], strides = [1, 1]} : vector<8x48xf32> to vector<8x16xf32>
    %693 = vector.extract_strided_slice %645 {offsets = [0, 32], sizes = [8, 16], strides = [1, 1]} : vector<8x48xf32> to vector<8x16xf32>
    %694 = arith.addf %693, %635 : vector<8x16xf32>
    %695 = arith.mulf %681, %694 : vector<8x16xf32>
    %696 = arith.addf %692, %695 : vector<8x16xf32>
    %697 = math.tanh %696 : vector<8x16xf32>
    %698 = arith.subf %636, %671 : vector<8x16xf32>
    %699 = arith.mulf %665, %698 : vector<8x16xf32>
    %700 = arith.addf %671, %699 : vector<8x16xf32>
    %701 = arith.subf %637, %697 : vector<8x16xf32>
    %702 = arith.mulf %691, %701 : vector<8x16xf32>
    %703 = arith.addf %697, %702 : vector<8x16xf32>
    %704 = arith.subf %700, %636 : vector<8x16xf32>
    %705 = arith.mulf %642, %704 : vector<8x16xf32>
    %706 = arith.addf %636, %705 : vector<8x16xf32>
    %707 = arith.subf %703, %637 : vector<8x16xf32>
    %708 = arith.mulf %643, %707 : vector<8x16xf32>
    %709 = arith.addf %637, %708 : vector<8x16xf32>
    %710 = arith.mulf %642, %700 : vector<8x16xf32>
    %711 = arith.mulf %643, %703 : vector<8x16xf32>
    %712 = arith.subf %710, %638 : vector<8x16xf32>
    %c0_209 = arith.constant 0 : index
    %c0_210 = arith.constant 0 : index
    %713 = vector.load %arg14[%c0_209, %c0_210] : memref<64x16xf32, #tpu.memory_space<vmem>>, vector<8x16xf32>
    tpu.vector_store %arg14[%c0_209, %c0_210], %712 {strides = array<i32>} : memref<64x16xf32, #tpu.memory_space<vmem>>, vector<8x16xf32>,
    %714 = arith.subf %711, %639 : vector<8x16xf32>
    %c56_211 = arith.constant 56 : index
    %c0_212 = arith.constant 0 : index
    %715 = vector.load %arg15[%c56_211, %c0_212] : memref<64x16xf32, #tpu.memory_space<vmem>>, vector<8x16xf32>
    tpu.vector_store %arg15[%c56_211, %c0_212], %714 {strides = array<i32>} : memref<64x16xf32, #tpu.memory_space<vmem>>, vector<8x16xf32>,
    %716 = vector.extract_strided_slice %623 {offsets = [8, 0], sizes = [8, 48], strides = [1, 1]} : vector<64x96xf32> to vector<8x48xf32>
    %717 = vector.extract_strided_slice %623 {offsets = [48, 48], sizes = [8, 48], strides = [1, 1]} : vector<64x96xf32> to vector<8x48xf32>
    %718 = vector.extract_strided_slice %3 {offsets = [8, 0], sizes = [8, 16], strides = [1, 1]} : vector<64x16xf32> to vector<8x16xf32>
    %719 = vector.extract_strided_slice %3 {offsets = [48, 0], sizes = [8, 16], strides = [1, 1]} : vector<64x16xf32> to vector<8x16xf32>
    %cst_213 = arith.constant dense<0.000000e+00> : vector<8x48xf32>
    %720 = tpu.matmul %706, %625, %cst_213 {dimension_numbers = #tpu.dot_dimension_numbers<[1], [0], [0], [1], [0, 0, 1, 1], [], []>} : vector<8x16xf32>, vector<16x48xf32>, vector<8x48xf32> -> vector<8x48xf32>
    %cst_214 = arith.constant dense<0.000000e+00> : vector<8x48xf32>
    %721 = tpu.matmul %709, %627, %cst_214 {dimension_numbers = #tpu.dot_dimension_numbers<[1], [0], [0], [1], [0, 0, 1, 1], [], []>} : vector<8x16xf32>, vector<16x48xf32>, vector<8x48xf32> -> vector<8x48xf32>
    %722 = vector.extract_strided_slice %716 {offsets = [0, 0], sizes = [8, 16], strides = [1, 1]} : vector<8x48xf32> to vector<8x16xf32>
    %723 = vector.extract_strided_slice %720 {offsets = [0, 0], sizes = [8, 16], strides = [1, 1]} : vector<8x48xf32> to vector<8x16xf32>
    %724 = arith.addf %722, %723 : vector<8x16xf32>
    %cst_215 = arith.constant 0.000000e+00 : f32
    %725 = vector.broadcast %cst_215 : f32 to vector<8x16xf32>
    %726 = arith.subf %725, %724 : vector<8x16xf32>
    %727 = math.exp %726 : vector<8x16xf32>
    %cst_216 = arith.constant 1.000000e+00 : f32
    %728 = vector.broadcast %cst_216 : f32 to vector<8x16xf32>
    %729 = arith.addf %728, %727 : vector<8x16xf32>
    %cst_217 = arith.constant 1.000000e+00 : f32
    %730 = vector.broadcast %cst_217 : f32 to vector<8x16xf32>
    %731 = arith.divf %730, %729 : vector<8x16xf32>
    %732 = vector.extract_strided_slice %716 {offsets = [0, 16], sizes = [8, 16], strides = [1, 1]} : vector<8x48xf32> to vector<8x16xf32>
    %733 = vector.extract_strided_slice %720 {offsets = [0, 16], sizes = [8, 16], strides = [1, 1]} : vector<8x48xf32> to vector<8x16xf32>
    %734 = arith.addf %732, %733 : vector<8x16xf32>
    %cst_218 = arith.constant 0.000000e+00 : f32
    %735 = vector.broadcast %cst_218 : f32 to vector<8x16xf32>
    %736 = arith.subf %735, %734 : vector<8x16xf32>
    %737 = math.exp %736 : vector<8x16xf32>
    %cst_219 = arith.constant 1.000000e+00 : f32
    %738 = vector.broadcast %cst_219 : f32 to vector<8x16xf32>
    %739 = arith.addf %738, %737 : vector<8x16xf32>
    %cst_220 = arith.constant 1.000000e+00 : f32
    %740 = vector.broadcast %cst_220 : f32 to vector<8x16xf32>
    %741 = arith.divf %740, %739 : vector<8x16xf32>
    %742 = vector.extract_strided_slice %716 {offsets = [0, 32], sizes = [8, 16], strides = [1, 1]} : vector<8x48xf32> to vector<8x16xf32>
    %743 = vector.extract_strided_slice %720 {offsets = [0, 32], sizes = [8, 16], strides = [1, 1]} : vector<8x48xf32> to vector<8x16xf32>
    %744 = arith.addf %743, %631 : vector<8x16xf32>
    %745 = arith.mulf %731, %744 : vector<8x16xf32>
    %746 = arith.addf %742, %745 : vector<8x16xf32>
    %747 = math.tanh %746 : vector<8x16xf32>
    %748 = vector.extract_strided_slice %717 {offsets = [0, 0], sizes = [8, 16], strides = [1, 1]} : vector<8x48xf32> to vector<8x16xf32>
    %749 = vector.extract_strided_slice %721 {offsets = [0, 0], sizes = [8, 16], strides = [1, 1]} : vector<8x48xf32> to vector<8x16xf32>
    %750 = arith.addf %748, %749 : vector<8x16xf32>
    %cst_221 = arith.constant 0.000000e+00 : f32
    %751 = vector.broadcast %cst_221 : f32 to vector<8x16xf32>
    %752 = arith.subf %751, %750 : vector<8x16xf32>
    %753 = math.exp %752 : vector<8x16xf32>
    %cst_222 = arith.constant 1.000000e+00 : f32
    %754 = vector.broadcast %cst_222 : f32 to vector<8x16xf32>
    %755 = arith.addf %754, %753 : vector<8x16xf32>
    %cst_223 = arith.constant 1.000000e+00 : f32
    %756 = vector.broadcast %cst_223 : f32 to vector<8x16xf32>
    %757 = arith.divf %756, %755 : vector<8x16xf32>
    %758 = vector.extract_strided_slice %717 {offsets = [0, 16], sizes = [8, 16], strides = [1, 1]} : vector<8x48xf32> to vector<8x16xf32>
    %759 = vector.extract_strided_slice %721 {offsets = [0, 16], sizes = [8, 16], strides = [1, 1]} : vector<8x48xf32> to vector<8x16xf32>
    %760 = arith.addf %758, %759 : vector<8x16xf32>
    %cst_224 = arith.constant 0.000000e+00 : f32
    %761 = vector.broadcast %cst_224 : f32 to vector<8x16xf32>
    %762 = arith.subf %761, %760 : vector<8x16xf32>
    %763 = math.exp %762 : vector<8x16xf32>
    %cst_225 = arith.constant 1.000000e+00 : f32
    %764 = vector.broadcast %cst_225 : f32 to vector<8x16xf32>
    %765 = arith.addf %764, %763 : vector<8x16xf32>
    %cst_226 = arith.constant 1.000000e+00 : f32
    %766 = vector.broadcast %cst_226 : f32 to vector<8x16xf32>
    %767 = arith.divf %766, %765 : vector<8x16xf32>
    %768 = vector.extract_strided_slice %717 {offsets = [0, 32], sizes = [8, 16], strides = [1, 1]} : vector<8x48xf32> to vector<8x16xf32>
    %769 = vector.extract_strided_slice %721 {offsets = [0, 32], sizes = [8, 16], strides = [1, 1]} : vector<8x48xf32> to vector<8x16xf32>
    %770 = arith.addf %769, %635 : vector<8x16xf32>
    %771 = arith.mulf %757, %770 : vector<8x16xf32>
    %772 = arith.addf %768, %771 : vector<8x16xf32>
    %773 = math.tanh %772 : vector<8x16xf32>
    %774 = arith.subf %706, %747 : vector<8x16xf32>
    %775 = arith.mulf %741, %774 : vector<8x16xf32>
    %776 = arith.addf %747, %775 : vector<8x16xf32>
    %777 = arith.subf %709, %773 : vector<8x16xf32>
    %778 = arith.mulf %767, %777 : vector<8x16xf32>
    %779 = arith.addf %773, %778 : vector<8x16xf32>
    %780 = arith.subf %776, %706 : vector<8x16xf32>
    %781 = arith.mulf %718, %780 : vector<8x16xf32>
    %782 = arith.addf %706, %781 : vector<8x16xf32>
    %783 = arith.subf %779, %709 : vector<8x16xf32>
    %784 = arith.mulf %719, %783 : vector<8x16xf32>
    %785 = arith.addf %709, %784 : vector<8x16xf32>
    %786 = arith.mulf %718, %776 : vector<8x16xf32>
    %787 = arith.mulf %719, %779 : vector<8x16xf32>
    %788 = arith.subf %786, %710 : vector<8x16xf32>
    %c8_227 = arith.constant 8 : index
    %c0_228 = arith.constant 0 : index
    %789 = vector.load %arg14[%c8_227, %c0_228] : memref<64x16xf32, #tpu.memory_space<vmem>>, vector<8x16xf32>
    tpu.vector_store %arg14[%c8_227, %c0_228], %788 {strides = array<i32>} : memref<64x16xf32, #tpu.memory_space<vmem>>, vector<8x16xf32>,
    %790 = arith.subf %787, %711 : vector<8x16xf32>
    %c48_229 = arith.constant 48 : index
    %c0_230 = arith.constant 0 : index
    %791 = vector.load %arg15[%c48_229, %c0_230] : memref<64x16xf32, #tpu.memory_space<vmem>>, vector<8x16xf32>
    tpu.vector_store %arg15[%c48_229, %c0_230], %790 {strides = array<i32>} : memref<64x16xf32, #tpu.memory_space<vmem>>, vector<8x16xf32>,
    %792 = vector.extract_strided_slice %623 {offsets = [16, 0], sizes = [8, 48], strides = [1, 1]} : vector<64x96xf32> to vector<8x48xf32>
    %793 = vector.extract_strided_slice %623 {offsets = [40, 48], sizes = [8, 48], strides = [1, 1]} : vector<64x96xf32> to vector<8x48xf32>
    %794 = vector.extract_strided_slice %3 {offsets = [16, 0], sizes = [8, 16], strides = [1, 1]} : vector<64x16xf32> to vector<8x16xf32>
    %795 = vector.extract_strided_slice %3 {offsets = [40, 0], sizes = [8, 16], strides = [1, 1]} : vector<64x16xf32> to vector<8x16xf32>
    %cst_231 = arith.constant dense<0.000000e+00> : vector<8x48xf32>
    %796 = tpu.matmul %782, %625, %cst_231 {dimension_numbers = #tpu.dot_dimension_numbers<[1], [0], [0], [1], [0, 0, 1, 1], [], []>} : vector<8x16xf32>, vector<16x48xf32>, vector<8x48xf32> -> vector<8x48xf32>
    %cst_232 = arith.constant dense<0.000000e+00> : vector<8x48xf32>
    %797 = tpu.matmul %785, %627, %cst_232 {dimension_numbers = #tpu.dot_dimension_numbers<[1], [0], [0], [1], [0, 0, 1, 1], [], []>} : vector<8x16xf32>, vector<16x48xf32>, vector<8x48xf32> -> vector<8x48xf32>
    %798 = vector.extract_strided_slice %792 {offsets = [0, 0], sizes = [8, 16], strides = [1, 1]} : vector<8x48xf32> to vector<8x16xf32>
    %799 = vector.extract_strided_slice %796 {offsets = [0, 0], sizes = [8, 16], strides = [1, 1]} : vector<8x48xf32> to vector<8x16xf32>
    %800 = arith.addf %798, %799 : vector<8x16xf32>
    %cst_233 = arith.constant 0.000000e+00 : f32
    %801 = vector.broadcast %cst_233 : f32 to vector<8x16xf32>
    %802 = arith.subf %801, %800 : vector<8x16xf32>
    %803 = math.exp %802 : vector<8x16xf32>
    %cst_234 = arith.constant 1.000000e+00 : f32
    %804 = vector.broadcast %cst_234 : f32 to vector<8x16xf32>
    %805 = arith.addf %804, %803 : vector<8x16xf32>
    %cst_235 = arith.constant 1.000000e+00 : f32
    %806 = vector.broadcast %cst_235 : f32 to vector<8x16xf32>
    %807 = arith.divf %806, %805 : vector<8x16xf32>
    %808 = vector.extract_strided_slice %792 {offsets = [0, 16], sizes = [8, 16], strides = [1, 1]} : vector<8x48xf32> to vector<8x16xf32>
    %809 = vector.extract_strided_slice %796 {offsets = [0, 16], sizes = [8, 16], strides = [1, 1]} : vector<8x48xf32> to vector<8x16xf32>
    %810 = arith.addf %808, %809 : vector<8x16xf32>
    %cst_236 = arith.constant 0.000000e+00 : f32
    %811 = vector.broadcast %cst_236 : f32 to vector<8x16xf32>
    %812 = arith.subf %811, %810 : vector<8x16xf32>
    %813 = math.exp %812 : vector<8x16xf32>
    %cst_237 = arith.constant 1.000000e+00 : f32
    %814 = vector.broadcast %cst_237 : f32 to vector<8x16xf32>
    %815 = arith.addf %814, %813 : vector<8x16xf32>
    %cst_238 = arith.constant 1.000000e+00 : f32
    %816 = vector.broadcast %cst_238 : f32 to vector<8x16xf32>
    %817 = arith.divf %816, %815 : vector<8x16xf32>
    %818 = vector.extract_strided_slice %792 {offsets = [0, 32], sizes = [8, 16], strides = [1, 1]} : vector<8x48xf32> to vector<8x16xf32>
    %819 = vector.extract_strided_slice %796 {offsets = [0, 32], sizes = [8, 16], strides = [1, 1]} : vector<8x48xf32> to vector<8x16xf32>
    %820 = arith.addf %819, %631 : vector<8x16xf32>
    %821 = arith.mulf %807, %820 : vector<8x16xf32>
    %822 = arith.addf %818, %821 : vector<8x16xf32>
    %823 = math.tanh %822 : vector<8x16xf32>
    %824 = vector.extract_strided_slice %793 {offsets = [0, 0], sizes = [8, 16], strides = [1, 1]} : vector<8x48xf32> to vector<8x16xf32>
    %825 = vector.extract_strided_slice %797 {offsets = [0, 0], sizes = [8, 16], strides = [1, 1]} : vector<8x48xf32> to vector<8x16xf32>
    %826 = arith.addf %824, %825 : vector<8x16xf32>
    %cst_239 = arith.constant 0.000000e+00 : f32
    %827 = vector.broadcast %cst_239 : f32 to vector<8x16xf32>
    %828 = arith.subf %827, %826 : vector<8x16xf32>
    %829 = math.exp %828 : vector<8x16xf32>
    %cst_240 = arith.constant 1.000000e+00 : f32
    %830 = vector.broadcast %cst_240 : f32 to vector<8x16xf32>
    %831 = arith.addf %830, %829 : vector<8x16xf32>
    %cst_241 = arith.constant 1.000000e+00 : f32
    %832 = vector.broadcast %cst_241 : f32 to vector<8x16xf32>
    %833 = arith.divf %832, %831 : vector<8x16xf32>
    %834 = vector.extract_strided_slice %793 {offsets = [0, 16], sizes = [8, 16], strides = [1, 1]} : vector<8x48xf32> to vector<8x16xf32>
    %835 = vector.extract_strided_slice %797 {offsets = [0, 16], sizes = [8, 16], strides = [1, 1]} : vector<8x48xf32> to vector<8x16xf32>
    %836 = arith.addf %834, %835 : vector<8x16xf32>
    %cst_242 = arith.constant 0.000000e+00 : f32
    %837 = vector.broadcast %cst_242 : f32 to vector<8x16xf32>
    %838 = arith.subf %837, %836 : vector<8x16xf32>
    %839 = math.exp %838 : vector<8x16xf32>
    %cst_243 = arith.constant 1.000000e+00 : f32
    %840 = vector.broadcast %cst_243 : f32 to vector<8x16xf32>
    %841 = arith.addf %840, %839 : vector<8x16xf32>
    %cst_244 = arith.constant 1.000000e+00 : f32
    %842 = vector.broadcast %cst_244 : f32 to vector<8x16xf32>
    %843 = arith.divf %842, %841 : vector<8x16xf32>
    %844 = vector.extract_strided_slice %793 {offsets = [0, 32], sizes = [8, 16], strides = [1, 1]} : vector<8x48xf32> to vector<8x16xf32>
    %845 = vector.extract_strided_slice %797 {offsets = [0, 32], sizes = [8, 16], strides = [1, 1]} : vector<8x48xf32> to vector<8x16xf32>
    %846 = arith.addf %845, %635 : vector<8x16xf32>
    %847 = arith.mulf %833, %846 : vector<8x16xf32>
    %848 = arith.addf %844, %847 : vector<8x16xf32>
    %849 = math.tanh %848 : vector<8x16xf32>
    %850 = arith.subf %782, %823 : vector<8x16xf32>
    %851 = arith.mulf %817, %850 : vector<8x16xf32>
    %852 = arith.addf %823, %851 : vector<8x16xf32>
    %853 = arith.subf %785, %849 : vector<8x16xf32>
    %854 = arith.mulf %843, %853 : vector<8x16xf32>
    %855 = arith.addf %849, %854 : vector<8x16xf32>
    %856 = arith.subf %852, %782 : vector<8x16xf32>
    %857 = arith.mulf %794, %856 : vector<8x16xf32>
    %858 = arith.addf %782, %857 : vector<8x16xf32>
    %859 = arith.subf %855, %785 : vector<8x16xf32>
    %860 = arith.mulf %795, %859 : vector<8x16xf32>
    %861 = arith.addf %785, %860 : vector<8x16xf32>
    %862 = arith.mulf %794, %852 : vector<8x16xf32>
    %863 = arith.mulf %795, %855 : vector<8x16xf32>
    %864 = arith.subf %862, %786 : vector<8x16xf32>
    %c16_245 = arith.constant 16 : index
    %c0_246 = arith.constant 0 : index
    %865 = vector.load %arg14[%c16_245, %c0_246] : memref<64x16xf32, #tpu.memory_space<vmem>>, vector<8x16xf32>
    tpu.vector_store %arg14[%c16_245, %c0_246], %864 {strides = array<i32>} : memref<64x16xf32, #tpu.memory_space<vmem>>, vector<8x16xf32>,
    %866 = arith.subf %863, %787 : vector<8x16xf32>
    %c40_247 = arith.constant 40 : index
    %c0_248 = arith.constant 0 : index
    %867 = vector.load %arg15[%c40_247, %c0_248] : memref<64x16xf32, #tpu.memory_space<vmem>>, vector<8x16xf32>
    tpu.vector_store %arg15[%c40_247, %c0_248], %866 {strides = array<i32>} : memref<64x16xf32, #tpu.memory_space<vmem>>, vector<8x16xf32>,
    %868 = vector.extract_strided_slice %623 {offsets = [24, 0], sizes = [8, 48], strides = [1, 1]} : vector<64x96xf32> to vector<8x48xf32>
    %869 = vector.extract_strided_slice %623 {offsets = [32, 48], sizes = [8, 48], strides = [1, 1]} : vector<64x96xf32> to vector<8x48xf32>
    %870 = vector.extract_strided_slice %3 {offsets = [24, 0], sizes = [8, 16], strides = [1, 1]} : vector<64x16xf32> to vector<8x16xf32>
    %871 = vector.extract_strided_slice %3 {offsets = [32, 0], sizes = [8, 16], strides = [1, 1]} : vector<64x16xf32> to vector<8x16xf32>
    %cst_249 = arith.constant dense<0.000000e+00> : vector<8x48xf32>
    %872 = tpu.matmul %858, %625, %cst_249 {dimension_numbers = #tpu.dot_dimension_numbers<[1], [0], [0], [1], [0, 0, 1, 1], [], []>} : vector<8x16xf32>, vector<16x48xf32>, vector<8x48xf32> -> vector<8x48xf32>
    %cst_250 = arith.constant dense<0.000000e+00> : vector<8x48xf32>
    %873 = tpu.matmul %861, %627, %cst_250 {dimension_numbers = #tpu.dot_dimension_numbers<[1], [0], [0], [1], [0, 0, 1, 1], [], []>} : vector<8x16xf32>, vector<16x48xf32>, vector<8x48xf32> -> vector<8x48xf32>
    %874 = vector.extract_strided_slice %868 {offsets = [0, 0], sizes = [8, 16], strides = [1, 1]} : vector<8x48xf32> to vector<8x16xf32>
    %875 = vector.extract_strided_slice %872 {offsets = [0, 0], sizes = [8, 16], strides = [1, 1]} : vector<8x48xf32> to vector<8x16xf32>
    %876 = arith.addf %874, %875 : vector<8x16xf32>
    %cst_251 = arith.constant 0.000000e+00 : f32
    %877 = vector.broadcast %cst_251 : f32 to vector<8x16xf32>
    %878 = arith.subf %877, %876 : vector<8x16xf32>
    %879 = math.exp %878 : vector<8x16xf32>
    %cst_252 = arith.constant 1.000000e+00 : f32
    %880 = vector.broadcast %cst_252 : f32 to vector<8x16xf32>
    %881 = arith.addf %880, %879 : vector<8x16xf32>
    %cst_253 = arith.constant 1.000000e+00 : f32
    %882 = vector.broadcast %cst_253 : f32 to vector<8x16xf32>
    %883 = arith.divf %882, %881 : vector<8x16xf32>
    %884 = vector.extract_strided_slice %868 {offsets = [0, 16], sizes = [8, 16], strides = [1, 1]} : vector<8x48xf32> to vector<8x16xf32>
    %885 = vector.extract_strided_slice %872 {offsets = [0, 16], sizes = [8, 16], strides = [1, 1]} : vector<8x48xf32> to vector<8x16xf32>
    %886 = arith.addf %884, %885 : vector<8x16xf32>
    %cst_254 = arith.constant 0.000000e+00 : f32
    %887 = vector.broadcast %cst_254 : f32 to vector<8x16xf32>
    %888 = arith.subf %887, %886 : vector<8x16xf32>
    %889 = math.exp %888 : vector<8x16xf32>
    %cst_255 = arith.constant 1.000000e+00 : f32
    %890 = vector.broadcast %cst_255 : f32 to vector<8x16xf32>
    %891 = arith.addf %890, %889 : vector<8x16xf32>
    %cst_256 = arith.constant 1.000000e+00 : f32
    %892 = vector.broadcast %cst_256 : f32 to vector<8x16xf32>
    %893 = arith.divf %892, %891 : vector<8x16xf32>
    %894 = vector.extract_strided_slice %868 {offsets = [0, 32], sizes = [8, 16], strides = [1, 1]} : vector<8x48xf32> to vector<8x16xf32>
    %895 = vector.extract_strided_slice %872 {offsets = [0, 32], sizes = [8, 16], strides = [1, 1]} : vector<8x48xf32> to vector<8x16xf32>
    %896 = arith.addf %895, %631 : vector<8x16xf32>
    %897 = arith.mulf %883, %896 : vector<8x16xf32>
    %898 = arith.addf %894, %897 : vector<8x16xf32>
    %899 = math.tanh %898 : vector<8x16xf32>
    %900 = vector.extract_strided_slice %869 {offsets = [0, 0], sizes = [8, 16], strides = [1, 1]} : vector<8x48xf32> to vector<8x16xf32>
    %901 = vector.extract_strided_slice %873 {offsets = [0, 0], sizes = [8, 16], strides = [1, 1]} : vector<8x48xf32> to vector<8x16xf32>
    %902 = arith.addf %900, %901 : vector<8x16xf32>
    %cst_257 = arith.constant 0.000000e+00 : f32
    %903 = vector.broadcast %cst_257 : f32 to vector<8x16xf32>
    %904 = arith.subf %903, %902 : vector<8x16xf32>
    %905 = math.exp %904 : vector<8x16xf32>
    %cst_258 = arith.constant 1.000000e+00 : f32
    %906 = vector.broadcast %cst_258 : f32 to vector<8x16xf32>
    %907 = arith.addf %906, %905 : vector<8x16xf32>
    %cst_259 = arith.constant 1.000000e+00 : f32
    %908 = vector.broadcast %cst_259 : f32 to vector<8x16xf32>
    %909 = arith.divf %908, %907 : vector<8x16xf32>
    %910 = vector.extract_strided_slice %869 {offsets = [0, 16], sizes = [8, 16], strides = [1, 1]} : vector<8x48xf32> to vector<8x16xf32>
    %911 = vector.extract_strided_slice %873 {offsets = [0, 16], sizes = [8, 16], strides = [1, 1]} : vector<8x48xf32> to vector<8x16xf32>
    %912 = arith.addf %910, %911 : vector<8x16xf32>
    %cst_260 = arith.constant 0.000000e+00 : f32
    %913 = vector.broadcast %cst_260 : f32 to vector<8x16xf32>
    %914 = arith.subf %913, %912 : vector<8x16xf32>
    %915 = math.exp %914 : vector<8x16xf32>
    %cst_261 = arith.constant 1.000000e+00 : f32
    %916 = vector.broadcast %cst_261 : f32 to vector<8x16xf32>
    %917 = arith.addf %916, %915 : vector<8x16xf32>
    %cst_262 = arith.constant 1.000000e+00 : f32
    %918 = vector.broadcast %cst_262 : f32 to vector<8x16xf32>
    %919 = arith.divf %918, %917 : vector<8x16xf32>
    %920 = vector.extract_strided_slice %869 {offsets = [0, 32], sizes = [8, 16], strides = [1, 1]} : vector<8x48xf32> to vector<8x16xf32>
    %921 = vector.extract_strided_slice %873 {offsets = [0, 32], sizes = [8, 16], strides = [1, 1]} : vector<8x48xf32> to vector<8x16xf32>
    %922 = arith.addf %921, %635 : vector<8x16xf32>
    %923 = arith.mulf %909, %922 : vector<8x16xf32>
    %924 = arith.addf %920, %923 : vector<8x16xf32>
    %925 = math.tanh %924 : vector<8x16xf32>
    %926 = arith.subf %858, %899 : vector<8x16xf32>
    %927 = arith.mulf %893, %926 : vector<8x16xf32>
    %928 = arith.addf %899, %927 : vector<8x16xf32>
    %929 = arith.subf %861, %925 : vector<8x16xf32>
    %930 = arith.mulf %919, %929 : vector<8x16xf32>
    %931 = arith.addf %925, %930 : vector<8x16xf32>
    %932 = arith.subf %928, %858 : vector<8x16xf32>
    %933 = arith.mulf %870, %932 : vector<8x16xf32>
    %934 = arith.addf %858, %933 : vector<8x16xf32>
    %935 = arith.subf %931, %861 : vector<8x16xf32>
    %936 = arith.mulf %871, %935 : vector<8x16xf32>
    %937 = arith.addf %861, %936 : vector<8x16xf32>
    %938 = arith.mulf %870, %928 : vector<8x16xf32>
    %939 = arith.mulf %871, %931 : vector<8x16xf32>
    %940 = arith.subf %938, %862 : vector<8x16xf32>
    %c24_263 = arith.constant 24 : index
    %c0_264 = arith.constant 0 : index
    %941 = vector.load %arg14[%c24_263, %c0_264] : memref<64x16xf32, #tpu.memory_space<vmem>>, vector<8x16xf32>
    tpu.vector_store %arg14[%c24_263, %c0_264], %940 {strides = array<i32>} : memref<64x16xf32, #tpu.memory_space<vmem>>, vector<8x16xf32>,
    %942 = arith.subf %939, %863 : vector<8x16xf32>
    %c32_265 = arith.constant 32 : index
    %c0_266 = arith.constant 0 : index
    %943 = vector.load %arg15[%c32_265, %c0_266] : memref<64x16xf32, #tpu.memory_space<vmem>>, vector<8x16xf32>
    tpu.vector_store %arg15[%c32_265, %c0_266], %942 {strides = array<i32>} : memref<64x16xf32, #tpu.memory_space<vmem>>, vector<8x16xf32>,
    %944 = vector.extract_strided_slice %623 {offsets = [32, 0], sizes = [8, 48], strides = [1, 1]} : vector<64x96xf32> to vector<8x48xf32>
    %945 = vector.extract_strided_slice %623 {offsets = [24, 48], sizes = [8, 48], strides = [1, 1]} : vector<64x96xf32> to vector<8x48xf32>
    %946 = vector.extract_strided_slice %3 {offsets = [32, 0], sizes = [8, 16], strides = [1, 1]} : vector<64x16xf32> to vector<8x16xf32>
    %947 = vector.extract_strided_slice %3 {offsets = [24, 0], sizes = [8, 16], strides = [1, 1]} : vector<64x16xf32> to vector<8x16xf32>
    %cst_267 = arith.constant dense<0.000000e+00> : vector<8x48xf32>
    %948 = tpu.matmul %934, %625, %cst_267 {dimension_numbers = #tpu.dot_dimension_numbers<[1], [0], [0], [1], [0, 0, 1, 1], [], []>} : vector<8x16xf32>, vector<16x48xf32>, vector<8x48xf32> -> vector<8x48xf32>
    %cst_268 = arith.constant dense<0.000000e+00> : vector<8x48xf32>
    %949 = tpu.matmul %937, %627, %cst_268 {dimension_numbers = #tpu.dot_dimension_numbers<[1], [0], [0], [1], [0, 0, 1, 1], [], []>} : vector<8x16xf32>, vector<16x48xf32>, vector<8x48xf32> -> vector<8x48xf32>
    %950 = vector.extract_strided_slice %944 {offsets = [0, 0], sizes = [8, 16], strides = [1, 1]} : vector<8x48xf32> to vector<8x16xf32>
    %951 = vector.extract_strided_slice %948 {offsets = [0, 0], sizes = [8, 16], strides = [1, 1]} : vector<8x48xf32> to vector<8x16xf32>
    %952 = arith.addf %950, %951 : vector<8x16xf32>
    %cst_269 = arith.constant 0.000000e+00 : f32
    %953 = vector.broadcast %cst_269 : f32 to vector<8x16xf32>
    %954 = arith.subf %953, %952 : vector<8x16xf32>
    %955 = math.exp %954 : vector<8x16xf32>
    %cst_270 = arith.constant 1.000000e+00 : f32
    %956 = vector.broadcast %cst_270 : f32 to vector<8x16xf32>
    %957 = arith.addf %956, %955 : vector<8x16xf32>
    %cst_271 = arith.constant 1.000000e+00 : f32
    %958 = vector.broadcast %cst_271 : f32 to vector<8x16xf32>
    %959 = arith.divf %958, %957 : vector<8x16xf32>
    %960 = vector.extract_strided_slice %944 {offsets = [0, 16], sizes = [8, 16], strides = [1, 1]} : vector<8x48xf32> to vector<8x16xf32>
    %961 = vector.extract_strided_slice %948 {offsets = [0, 16], sizes = [8, 16], strides = [1, 1]} : vector<8x48xf32> to vector<8x16xf32>
    %962 = arith.addf %960, %961 : vector<8x16xf32>
    %cst_272 = arith.constant 0.000000e+00 : f32
    %963 = vector.broadcast %cst_272 : f32 to vector<8x16xf32>
    %964 = arith.subf %963, %962 : vector<8x16xf32>
    %965 = math.exp %964 : vector<8x16xf32>
    %cst_273 = arith.constant 1.000000e+00 : f32
    %966 = vector.broadcast %cst_273 : f32 to vector<8x16xf32>
    %967 = arith.addf %966, %965 : vector<8x16xf32>
    %cst_274 = arith.constant 1.000000e+00 : f32
    %968 = vector.broadcast %cst_274 : f32 to vector<8x16xf32>
    %969 = arith.divf %968, %967 : vector<8x16xf32>
    %970 = vector.extract_strided_slice %944 {offsets = [0, 32], sizes = [8, 16], strides = [1, 1]} : vector<8x48xf32> to vector<8x16xf32>
    %971 = vector.extract_strided_slice %948 {offsets = [0, 32], sizes = [8, 16], strides = [1, 1]} : vector<8x48xf32> to vector<8x16xf32>
    %972 = arith.addf %971, %631 : vector<8x16xf32>
    %973 = arith.mulf %959, %972 : vector<8x16xf32>
    %974 = arith.addf %970, %973 : vector<8x16xf32>
    %975 = math.tanh %974 : vector<8x16xf32>
    %976 = vector.extract_strided_slice %945 {offsets = [0, 0], sizes = [8, 16], strides = [1, 1]} : vector<8x48xf32> to vector<8x16xf32>
    %977 = vector.extract_strided_slice %949 {offsets = [0, 0], sizes = [8, 16], strides = [1, 1]} : vector<8x48xf32> to vector<8x16xf32>
    %978 = arith.addf %976, %977 : vector<8x16xf32>
    %cst_275 = arith.constant 0.000000e+00 : f32
    %979 = vector.broadcast %cst_275 : f32 to vector<8x16xf32>
    %980 = arith.subf %979, %978 : vector<8x16xf32>
    %981 = math.exp %980 : vector<8x16xf32>
    %cst_276 = arith.constant 1.000000e+00 : f32
    %982 = vector.broadcast %cst_276 : f32 to vector<8x16xf32>
    %983 = arith.addf %982, %981 : vector<8x16xf32>
    %cst_277 = arith.constant 1.000000e+00 : f32
    %984 = vector.broadcast %cst_277 : f32 to vector<8x16xf32>
    %985 = arith.divf %984, %983 : vector<8x16xf32>
    %986 = vector.extract_strided_slice %945 {offsets = [0, 16], sizes = [8, 16], strides = [1, 1]} : vector<8x48xf32> to vector<8x16xf32>
    %987 = vector.extract_strided_slice %949 {offsets = [0, 16], sizes = [8, 16], strides = [1, 1]} : vector<8x48xf32> to vector<8x16xf32>
    %988 = arith.addf %986, %987 : vector<8x16xf32>
    %cst_278 = arith.constant 0.000000e+00 : f32
    %989 = vector.broadcast %cst_278 : f32 to vector<8x16xf32>
    %990 = arith.subf %989, %988 : vector<8x16xf32>
    %991 = math.exp %990 : vector<8x16xf32>
    %cst_279 = arith.constant 1.000000e+00 : f32
    %992 = vector.broadcast %cst_279 : f32 to vector<8x16xf32>
    %993 = arith.addf %992, %991 : vector<8x16xf32>
    %cst_280 = arith.constant 1.000000e+00 : f32
    %994 = vector.broadcast %cst_280 : f32 to vector<8x16xf32>
    %995 = arith.divf %994, %993 : vector<8x16xf32>
    %996 = vector.extract_strided_slice %945 {offsets = [0, 32], sizes = [8, 16], strides = [1, 1]} : vector<8x48xf32> to vector<8x16xf32>
    %997 = vector.extract_strided_slice %949 {offsets = [0, 32], sizes = [8, 16], strides = [1, 1]} : vector<8x48xf32> to vector<8x16xf32>
    %998 = arith.addf %997, %635 : vector<8x16xf32>
    %999 = arith.mulf %985, %998 : vector<8x16xf32>
    %1000 = arith.addf %996, %999 : vector<8x16xf32>
    %1001 = math.tanh %1000 : vector<8x16xf32>
    %1002 = arith.subf %934, %975 : vector<8x16xf32>
    %1003 = arith.mulf %969, %1002 : vector<8x16xf32>
    %1004 = arith.addf %975, %1003 : vector<8x16xf32>
    %1005 = arith.subf %937, %1001 : vector<8x16xf32>
    %1006 = arith.mulf %995, %1005 : vector<8x16xf32>
    %1007 = arith.addf %1001, %1006 : vector<8x16xf32>
    %1008 = arith.subf %1004, %934 : vector<8x16xf32>
    %1009 = arith.mulf %946, %1008 : vector<8x16xf32>
    %1010 = arith.addf %934, %1009 : vector<8x16xf32>
    %1011 = arith.subf %1007, %937 : vector<8x16xf32>
    %1012 = arith.mulf %947, %1011 : vector<8x16xf32>
    %1013 = arith.addf %937, %1012 : vector<8x16xf32>
    %1014 = arith.mulf %946, %1004 : vector<8x16xf32>
    %1015 = arith.mulf %947, %1007 : vector<8x16xf32>
    %1016 = arith.subf %1014, %938 : vector<8x16xf32>
    %c32_281 = arith.constant 32 : index
    %c0_282 = arith.constant 0 : index
    %1017 = vector.load %arg14[%c32_281, %c0_282] : memref<64x16xf32, #tpu.memory_space<vmem>>, vector<8x16xf32>
    tpu.vector_store %arg14[%c32_281, %c0_282], %1016 {strides = array<i32>} : memref<64x16xf32, #tpu.memory_space<vmem>>, vector<8x16xf32>,
    %1018 = arith.subf %1015, %939 : vector<8x16xf32>
    %c24_283 = arith.constant 24 : index
    %c0_284 = arith.constant 0 : index
    %1019 = vector.load %arg15[%c24_283, %c0_284] : memref<64x16xf32, #tpu.memory_space<vmem>>, vector<8x16xf32>
    tpu.vector_store %arg15[%c24_283, %c0_284], %1018 {strides = array<i32>} : memref<64x16xf32, #tpu.memory_space<vmem>>, vector<8x16xf32>,
    %1020 = vector.extract_strided_slice %623 {offsets = [40, 0], sizes = [8, 48], strides = [1, 1]} : vector<64x96xf32> to vector<8x48xf32>
    %1021 = vector.extract_strided_slice %623 {offsets = [16, 48], sizes = [8, 48], strides = [1, 1]} : vector<64x96xf32> to vector<8x48xf32>
    %1022 = vector.extract_strided_slice %3 {offsets = [40, 0], sizes = [8, 16], strides = [1, 1]} : vector<64x16xf32> to vector<8x16xf32>
    %1023 = vector.extract_strided_slice %3 {offsets = [16, 0], sizes = [8, 16], strides = [1, 1]} : vector<64x16xf32> to vector<8x16xf32>
    %cst_285 = arith.constant dense<0.000000e+00> : vector<8x48xf32>
    %1024 = tpu.matmul %1010, %625, %cst_285 {dimension_numbers = #tpu.dot_dimension_numbers<[1], [0], [0], [1], [0, 0, 1, 1], [], []>} : vector<8x16xf32>, vector<16x48xf32>, vector<8x48xf32> -> vector<8x48xf32>
    %cst_286 = arith.constant dense<0.000000e+00> : vector<8x48xf32>
    %1025 = tpu.matmul %1013, %627, %cst_286 {dimension_numbers = #tpu.dot_dimension_numbers<[1], [0], [0], [1], [0, 0, 1, 1], [], []>} : vector<8x16xf32>, vector<16x48xf32>, vector<8x48xf32> -> vector<8x48xf32>
    %1026 = vector.extract_strided_slice %1020 {offsets = [0, 0], sizes = [8, 16], strides = [1, 1]} : vector<8x48xf32> to vector<8x16xf32>
    %1027 = vector.extract_strided_slice %1024 {offsets = [0, 0], sizes = [8, 16], strides = [1, 1]} : vector<8x48xf32> to vector<8x16xf32>
    %1028 = arith.addf %1026, %1027 : vector<8x16xf32>
    %cst_287 = arith.constant 0.000000e+00 : f32
    %1029 = vector.broadcast %cst_287 : f32 to vector<8x16xf32>
    %1030 = arith.subf %1029, %1028 : vector<8x16xf32>
    %1031 = math.exp %1030 : vector<8x16xf32>
    %cst_288 = arith.constant 1.000000e+00 : f32
    %1032 = vector.broadcast %cst_288 : f32 to vector<8x16xf32>
    %1033 = arith.addf %1032, %1031 : vector<8x16xf32>
    %cst_289 = arith.constant 1.000000e+00 : f32
    %1034 = vector.broadcast %cst_289 : f32 to vector<8x16xf32>
    %1035 = arith.divf %1034, %1033 : vector<8x16xf32>
    %1036 = vector.extract_strided_slice %1020 {offsets = [0, 16], sizes = [8, 16], strides = [1, 1]} : vector<8x48xf32> to vector<8x16xf32>
    %1037 = vector.extract_strided_slice %1024 {offsets = [0, 16], sizes = [8, 16], strides = [1, 1]} : vector<8x48xf32> to vector<8x16xf32>
    %1038 = arith.addf %1036, %1037 : vector<8x16xf32>
    %cst_290 = arith.constant 0.000000e+00 : f32
    %1039 = vector.broadcast %cst_290 : f32 to vector<8x16xf32>
    %1040 = arith.subf %1039, %1038 : vector<8x16xf32>
    %1041 = math.exp %1040 : vector<8x16xf32>
    %cst_291 = arith.constant 1.000000e+00 : f32
    %1042 = vector.broadcast %cst_291 : f32 to vector<8x16xf32>
    %1043 = arith.addf %1042, %1041 : vector<8x16xf32>
    %cst_292 = arith.constant 1.000000e+00 : f32
    %1044 = vector.broadcast %cst_292 : f32 to vector<8x16xf32>
    %1045 = arith.divf %1044, %1043 : vector<8x16xf32>
    %1046 = vector.extract_strided_slice %1020 {offsets = [0, 32], sizes = [8, 16], strides = [1, 1]} : vector<8x48xf32> to vector<8x16xf32>
    %1047 = vector.extract_strided_slice %1024 {offsets = [0, 32], sizes = [8, 16], strides = [1, 1]} : vector<8x48xf32> to vector<8x16xf32>
    %1048 = arith.addf %1047, %631 : vector<8x16xf32>
    %1049 = arith.mulf %1035, %1048 : vector<8x16xf32>
    %1050 = arith.addf %1046, %1049 : vector<8x16xf32>
    %1051 = math.tanh %1050 : vector<8x16xf32>
    %1052 = vector.extract_strided_slice %1021 {offsets = [0, 0], sizes = [8, 16], strides = [1, 1]} : vector<8x48xf32> to vector<8x16xf32>
    %1053 = vector.extract_strided_slice %1025 {offsets = [0, 0], sizes = [8, 16], strides = [1, 1]} : vector<8x48xf32> to vector<8x16xf32>
    %1054 = arith.addf %1052, %1053 : vector<8x16xf32>
    %cst_293 = arith.constant 0.000000e+00 : f32
    %1055 = vector.broadcast %cst_293 : f32 to vector<8x16xf32>
    %1056 = arith.subf %1055, %1054 : vector<8x16xf32>
    %1057 = math.exp %1056 : vector<8x16xf32>
    %cst_294 = arith.constant 1.000000e+00 : f32
    %1058 = vector.broadcast %cst_294 : f32 to vector<8x16xf32>
    %1059 = arith.addf %1058, %1057 : vector<8x16xf32>
    %cst_295 = arith.constant 1.000000e+00 : f32
    %1060 = vector.broadcast %cst_295 : f32 to vector<8x16xf32>
    %1061 = arith.divf %1060, %1059 : vector<8x16xf32>
    %1062 = vector.extract_strided_slice %1021 {offsets = [0, 16], sizes = [8, 16], strides = [1, 1]} : vector<8x48xf32> to vector<8x16xf32>
    %1063 = vector.extract_strided_slice %1025 {offsets = [0, 16], sizes = [8, 16], strides = [1, 1]} : vector<8x48xf32> to vector<8x16xf32>
    %1064 = arith.addf %1062, %1063 : vector<8x16xf32>
    %cst_296 = arith.constant 0.000000e+00 : f32
    %1065 = vector.broadcast %cst_296 : f32 to vector<8x16xf32>
    %1066 = arith.subf %1065, %1064 : vector<8x16xf32>
    %1067 = math.exp %1066 : vector<8x16xf32>
    %cst_297 = arith.constant 1.000000e+00 : f32
    %1068 = vector.broadcast %cst_297 : f32 to vector<8x16xf32>
    %1069 = arith.addf %1068, %1067 : vector<8x16xf32>
    %cst_298 = arith.constant 1.000000e+00 : f32
    %1070 = vector.broadcast %cst_298 : f32 to vector<8x16xf32>
    %1071 = arith.divf %1070, %1069 : vector<8x16xf32>
    %1072 = vector.extract_strided_slice %1021 {offsets = [0, 32], sizes = [8, 16], strides = [1, 1]} : vector<8x48xf32> to vector<8x16xf32>
    %1073 = vector.extract_strided_slice %1025 {offsets = [0, 32], sizes = [8, 16], strides = [1, 1]} : vector<8x48xf32> to vector<8x16xf32>
    %1074 = arith.addf %1073, %635 : vector<8x16xf32>
    %1075 = arith.mulf %1061, %1074 : vector<8x16xf32>
    %1076 = arith.addf %1072, %1075 : vector<8x16xf32>
    %1077 = math.tanh %1076 : vector<8x16xf32>
    %1078 = arith.subf %1010, %1051 : vector<8x16xf32>
    %1079 = arith.mulf %1045, %1078 : vector<8x16xf32>
    %1080 = arith.addf %1051, %1079 : vector<8x16xf32>
    %1081 = arith.subf %1013, %1077 : vector<8x16xf32>
    %1082 = arith.mulf %1071, %1081 : vector<8x16xf32>
    %1083 = arith.addf %1077, %1082 : vector<8x16xf32>
    %1084 = arith.subf %1080, %1010 : vector<8x16xf32>
    %1085 = arith.mulf %1022, %1084 : vector<8x16xf32>
    %1086 = arith.addf %1010, %1085 : vector<8x16xf32>
    %1087 = arith.subf %1083, %1013 : vector<8x16xf32>
    %1088 = arith.mulf %1023, %1087 : vector<8x16xf32>
    %1089 = arith.addf %1013, %1088 : vector<8x16xf32>
    %1090 = arith.mulf %1022, %1080 : vector<8x16xf32>
    %1091 = arith.mulf %1023, %1083 : vector<8x16xf32>
    %1092 = arith.subf %1090, %1014 : vector<8x16xf32>
    %c40_299 = arith.constant 40 : index
    %c0_300 = arith.constant 0 : index
    %1093 = vector.load %arg14[%c40_299, %c0_300] : memref<64x16xf32, #tpu.memory_space<vmem>>, vector<8x16xf32>
    tpu.vector_store %arg14[%c40_299, %c0_300], %1092 {strides = array<i32>} : memref<64x16xf32, #tpu.memory_space<vmem>>, vector<8x16xf32>,
    %1094 = arith.subf %1091, %1015 : vector<8x16xf32>
    %c16_301 = arith.constant 16 : index
    %c0_302 = arith.constant 0 : index
    %1095 = vector.load %arg15[%c16_301, %c0_302] : memref<64x16xf32, #tpu.memory_space<vmem>>, vector<8x16xf32>
    tpu.vector_store %arg15[%c16_301, %c0_302], %1094 {strides = array<i32>} : memref<64x16xf32, #tpu.memory_space<vmem>>, vector<8x16xf32>,
    %1096 = vector.extract_strided_slice %623 {offsets = [48, 0], sizes = [8, 48], strides = [1, 1]} : vector<64x96xf32> to vector<8x48xf32>
    %1097 = vector.extract_strided_slice %623 {offsets = [8, 48], sizes = [8, 48], strides = [1, 1]} : vector<64x96xf32> to vector<8x48xf32>
    %1098 = vector.extract_strided_slice %3 {offsets = [48, 0], sizes = [8, 16], strides = [1, 1]} : vector<64x16xf32> to vector<8x16xf32>
    %1099 = vector.extract_strided_slice %3 {offsets = [8, 0], sizes = [8, 16], strides = [1, 1]} : vector<64x16xf32> to vector<8x16xf32>
    %cst_303 = arith.constant dense<0.000000e+00> : vector<8x48xf32>
    %1100 = tpu.matmul %1086, %625, %cst_303 {dimension_numbers = #tpu.dot_dimension_numbers<[1], [0], [0], [1], [0, 0, 1, 1], [], []>} : vector<8x16xf32>, vector<16x48xf32>, vector<8x48xf32> -> vector<8x48xf32>
    %cst_304 = arith.constant dense<0.000000e+00> : vector<8x48xf32>
    %1101 = tpu.matmul %1089, %627, %cst_304 {dimension_numbers = #tpu.dot_dimension_numbers<[1], [0], [0], [1], [0, 0, 1, 1], [], []>} : vector<8x16xf32>, vector<16x48xf32>, vector<8x48xf32> -> vector<8x48xf32>
    %1102 = vector.extract_strided_slice %1096 {offsets = [0, 0], sizes = [8, 16], strides = [1, 1]} : vector<8x48xf32> to vector<8x16xf32>
    %1103 = vector.extract_strided_slice %1100 {offsets = [0, 0], sizes = [8, 16], strides = [1, 1]} : vector<8x48xf32> to vector<8x16xf32>
    %1104 = arith.addf %1102, %1103 : vector<8x16xf32>
    %cst_305 = arith.constant 0.000000e+00 : f32
    %1105 = vector.broadcast %cst_305 : f32 to vector<8x16xf32>
    %1106 = arith.subf %1105, %1104 : vector<8x16xf32>
    %1107 = math.exp %1106 : vector<8x16xf32>
    %cst_306 = arith.constant 1.000000e+00 : f32
    %1108 = vector.broadcast %cst_306 : f32 to vector<8x16xf32>
    %1109 = arith.addf %1108, %1107 : vector<8x16xf32>
    %cst_307 = arith.constant 1.000000e+00 : f32
    %1110 = vector.broadcast %cst_307 : f32 to vector<8x16xf32>
    %1111 = arith.divf %1110, %1109 : vector<8x16xf32>
    %1112 = vector.extract_strided_slice %1096 {offsets = [0, 16], sizes = [8, 16], strides = [1, 1]} : vector<8x48xf32> to vector<8x16xf32>
    %1113 = vector.extract_strided_slice %1100 {offsets = [0, 16], sizes = [8, 16], strides = [1, 1]} : vector<8x48xf32> to vector<8x16xf32>
    %1114 = arith.addf %1112, %1113 : vector<8x16xf32>
    %cst_308 = arith.constant 0.000000e+00 : f32
    %1115 = vector.broadcast %cst_308 : f32 to vector<8x16xf32>
    %1116 = arith.subf %1115, %1114 : vector<8x16xf32>
    %1117 = math.exp %1116 : vector<8x16xf32>
    %cst_309 = arith.constant 1.000000e+00 : f32
    %1118 = vector.broadcast %cst_309 : f32 to vector<8x16xf32>
    %1119 = arith.addf %1118, %1117 : vector<8x16xf32>
    %cst_310 = arith.constant 1.000000e+00 : f32
    %1120 = vector.broadcast %cst_310 : f32 to vector<8x16xf32>
    %1121 = arith.divf %1120, %1119 : vector<8x16xf32>
    %1122 = vector.extract_strided_slice %1096 {offsets = [0, 32], sizes = [8, 16], strides = [1, 1]} : vector<8x48xf32> to vector<8x16xf32>
    %1123 = vector.extract_strided_slice %1100 {offsets = [0, 32], sizes = [8, 16], strides = [1, 1]} : vector<8x48xf32> to vector<8x16xf32>
    %1124 = arith.addf %1123, %631 : vector<8x16xf32>
    %1125 = arith.mulf %1111, %1124 : vector<8x16xf32>
    %1126 = arith.addf %1122, %1125 : vector<8x16xf32>
    %1127 = math.tanh %1126 : vector<8x16xf32>
    %1128 = vector.extract_strided_slice %1097 {offsets = [0, 0], sizes = [8, 16], strides = [1, 1]} : vector<8x48xf32> to vector<8x16xf32>
    %1129 = vector.extract_strided_slice %1101 {offsets = [0, 0], sizes = [8, 16], strides = [1, 1]} : vector<8x48xf32> to vector<8x16xf32>
    %1130 = arith.addf %1128, %1129 : vector<8x16xf32>
    %cst_311 = arith.constant 0.000000e+00 : f32
    %1131 = vector.broadcast %cst_311 : f32 to vector<8x16xf32>
    %1132 = arith.subf %1131, %1130 : vector<8x16xf32>
    %1133 = math.exp %1132 : vector<8x16xf32>
    %cst_312 = arith.constant 1.000000e+00 : f32
    %1134 = vector.broadcast %cst_312 : f32 to vector<8x16xf32>
    %1135 = arith.addf %1134, %1133 : vector<8x16xf32>
    %cst_313 = arith.constant 1.000000e+00 : f32
    %1136 = vector.broadcast %cst_313 : f32 to vector<8x16xf32>
    %1137 = arith.divf %1136, %1135 : vector<8x16xf32>
    %1138 = vector.extract_strided_slice %1097 {offsets = [0, 16], sizes = [8, 16], strides = [1, 1]} : vector<8x48xf32> to vector<8x16xf32>
    %1139 = vector.extract_strided_slice %1101 {offsets = [0, 16], sizes = [8, 16], strides = [1, 1]} : vector<8x48xf32> to vector<8x16xf32>
    %1140 = arith.addf %1138, %1139 : vector<8x16xf32>
    %cst_314 = arith.constant 0.000000e+00 : f32
    %1141 = vector.broadcast %cst_314 : f32 to vector<8x16xf32>
    %1142 = arith.subf %1141, %1140 : vector<8x16xf32>
    %1143 = math.exp %1142 : vector<8x16xf32>
    %cst_315 = arith.constant 1.000000e+00 : f32
    %1144 = vector.broadcast %cst_315 : f32 to vector<8x16xf32>
    %1145 = arith.addf %1144, %1143 : vector<8x16xf32>
    %cst_316 = arith.constant 1.000000e+00 : f32
    %1146 = vector.broadcast %cst_316 : f32 to vector<8x16xf32>
    %1147 = arith.divf %1146, %1145 : vector<8x16xf32>
    %1148 = vector.extract_strided_slice %1097 {offsets = [0, 32], sizes = [8, 16], strides = [1, 1]} : vector<8x48xf32> to vector<8x16xf32>
    %1149 = vector.extract_strided_slice %1101 {offsets = [0, 32], sizes = [8, 16], strides = [1, 1]} : vector<8x48xf32> to vector<8x16xf32>
    %1150 = arith.addf %1149, %635 : vector<8x16xf32>
    %1151 = arith.mulf %1137, %1150 : vector<8x16xf32>
    %1152 = arith.addf %1148, %1151 : vector<8x16xf32>
    %1153 = math.tanh %1152 : vector<8x16xf32>
    %1154 = arith.subf %1086, %1127 : vector<8x16xf32>
    %1155 = arith.mulf %1121, %1154 : vector<8x16xf32>
    %1156 = arith.addf %1127, %1155 : vector<8x16xf32>
    %1157 = arith.subf %1089, %1153 : vector<8x16xf32>
    %1158 = arith.mulf %1147, %1157 : vector<8x16xf32>
    %1159 = arith.addf %1153, %1158 : vector<8x16xf32>
    %1160 = arith.subf %1156, %1086 : vector<8x16xf32>
    %1161 = arith.mulf %1098, %1160 : vector<8x16xf32>
    %1162 = arith.addf %1086, %1161 : vector<8x16xf32>
    %1163 = arith.subf %1159, %1089 : vector<8x16xf32>
    %1164 = arith.mulf %1099, %1163 : vector<8x16xf32>
    %1165 = arith.addf %1089, %1164 : vector<8x16xf32>
    %1166 = arith.mulf %1098, %1156 : vector<8x16xf32>
    %1167 = arith.mulf %1099, %1159 : vector<8x16xf32>
    %1168 = arith.subf %1166, %1090 : vector<8x16xf32>
    %c48_317 = arith.constant 48 : index
    %c0_318 = arith.constant 0 : index
    %1169 = vector.load %arg14[%c48_317, %c0_318] : memref<64x16xf32, #tpu.memory_space<vmem>>, vector<8x16xf32>
    tpu.vector_store %arg14[%c48_317, %c0_318], %1168 {strides = array<i32>} : memref<64x16xf32, #tpu.memory_space<vmem>>, vector<8x16xf32>,
    %1170 = arith.subf %1167, %1091 : vector<8x16xf32>
    %c8_319 = arith.constant 8 : index
    %c0_320 = arith.constant 0 : index
    %1171 = vector.load %arg15[%c8_319, %c0_320] : memref<64x16xf32, #tpu.memory_space<vmem>>, vector<8x16xf32>
    tpu.vector_store %arg15[%c8_319, %c0_320], %1170 {strides = array<i32>} : memref<64x16xf32, #tpu.memory_space<vmem>>, vector<8x16xf32>,
    %1172 = vector.extract_strided_slice %623 {offsets = [56, 0], sizes = [8, 48], strides = [1, 1]} : vector<64x96xf32> to vector<8x48xf32>
    %1173 = vector.extract_strided_slice %623 {offsets = [0, 48], sizes = [8, 48], strides = [1, 1]} : vector<64x96xf32> to vector<8x48xf32>
    %1174 = vector.extract_strided_slice %3 {offsets = [56, 0], sizes = [8, 16], strides = [1, 1]} : vector<64x16xf32> to vector<8x16xf32>
    %1175 = vector.extract_strided_slice %3 {offsets = [0, 0], sizes = [8, 16], strides = [1, 1]} : vector<64x16xf32> to vector<8x16xf32>
    %cst_321 = arith.constant dense<0.000000e+00> : vector<8x48xf32>
    %1176 = tpu.matmul %1162, %625, %cst_321 {dimension_numbers = #tpu.dot_dimension_numbers<[1], [0], [0], [1], [0, 0, 1, 1], [], []>} : vector<8x16xf32>, vector<16x48xf32>, vector<8x48xf32> -> vector<8x48xf32>
    %cst_322 = arith.constant dense<0.000000e+00> : vector<8x48xf32>
    %1177 = tpu.matmul %1165, %627, %cst_322 {dimension_numbers = #tpu.dot_dimension_numbers<[1], [0], [0], [1], [0, 0, 1, 1], [], []>} : vector<8x16xf32>, vector<16x48xf32>, vector<8x48xf32> -> vector<8x48xf32>
    %1178 = vector.extract_strided_slice %1172 {offsets = [0, 0], sizes = [8, 16], strides = [1, 1]} : vector<8x48xf32> to vector<8x16xf32>
    %1179 = vector.extract_strided_slice %1176 {offsets = [0, 0], sizes = [8, 16], strides = [1, 1]} : vector<8x48xf32> to vector<8x16xf32>
    %1180 = arith.addf %1178, %1179 : vector<8x16xf32>
    %cst_323 = arith.constant 0.000000e+00 : f32
    %1181 = vector.broadcast %cst_323 : f32 to vector<8x16xf32>
    %1182 = arith.subf %1181, %1180 : vector<8x16xf32>
    %1183 = math.exp %1182 : vector<8x16xf32>
    %cst_324 = arith.constant 1.000000e+00 : f32
    %1184 = vector.broadcast %cst_324 : f32 to vector<8x16xf32>
    %1185 = arith.addf %1184, %1183 : vector<8x16xf32>
    %cst_325 = arith.constant 1.000000e+00 : f32
    %1186 = vector.broadcast %cst_325 : f32 to vector<8x16xf32>
    %1187 = arith.divf %1186, %1185 : vector<8x16xf32>
    %1188 = vector.extract_strided_slice %1172 {offsets = [0, 16], sizes = [8, 16], strides = [1, 1]} : vector<8x48xf32> to vector<8x16xf32>
    %1189 = vector.extract_strided_slice %1176 {offsets = [0, 16], sizes = [8, 16], strides = [1, 1]} : vector<8x48xf32> to vector<8x16xf32>
    %1190 = arith.addf %1188, %1189 : vector<8x16xf32>
    %cst_326 = arith.constant 0.000000e+00 : f32
    %1191 = vector.broadcast %cst_326 : f32 to vector<8x16xf32>
    %1192 = arith.subf %1191, %1190 : vector<8x16xf32>
    %1193 = math.exp %1192 : vector<8x16xf32>
    %cst_327 = arith.constant 1.000000e+00 : f32
    %1194 = vector.broadcast %cst_327 : f32 to vector<8x16xf32>
    %1195 = arith.addf %1194, %1193 : vector<8x16xf32>
    %cst_328 = arith.constant 1.000000e+00 : f32
    %1196 = vector.broadcast %cst_328 : f32 to vector<8x16xf32>
    %1197 = arith.divf %1196, %1195 : vector<8x16xf32>
    %1198 = vector.extract_strided_slice %1172 {offsets = [0, 32], sizes = [8, 16], strides = [1, 1]} : vector<8x48xf32> to vector<8x16xf32>
    %1199 = vector.extract_strided_slice %1176 {offsets = [0, 32], sizes = [8, 16], strides = [1, 1]} : vector<8x48xf32> to vector<8x16xf32>
    %1200 = arith.addf %1199, %631 : vector<8x16xf32>
    %1201 = arith.mulf %1187, %1200 : vector<8x16xf32>
    %1202 = arith.addf %1198, %1201 : vector<8x16xf32>
    %1203 = math.tanh %1202 : vector<8x16xf32>
    %1204 = vector.extract_strided_slice %1173 {offsets = [0, 0], sizes = [8, 16], strides = [1, 1]} : vector<8x48xf32> to vector<8x16xf32>
    %1205 = vector.extract_strided_slice %1177 {offsets = [0, 0], sizes = [8, 16], strides = [1, 1]} : vector<8x48xf32> to vector<8x16xf32>
    %1206 = arith.addf %1204, %1205 : vector<8x16xf32>
    %cst_329 = arith.constant 0.000000e+00 : f32
    %1207 = vector.broadcast %cst_329 : f32 to vector<8x16xf32>
    %1208 = arith.subf %1207, %1206 : vector<8x16xf32>
    %1209 = math.exp %1208 : vector<8x16xf32>
    %cst_330 = arith.constant 1.000000e+00 : f32
    %1210 = vector.broadcast %cst_330 : f32 to vector<8x16xf32>
    %1211 = arith.addf %1210, %1209 : vector<8x16xf32>
    %cst_331 = arith.constant 1.000000e+00 : f32
    %1212 = vector.broadcast %cst_331 : f32 to vector<8x16xf32>
    %1213 = arith.divf %1212, %1211 : vector<8x16xf32>
    %1214 = vector.extract_strided_slice %1173 {offsets = [0, 16], sizes = [8, 16], strides = [1, 1]} : vector<8x48xf32> to vector<8x16xf32>
    %1215 = vector.extract_strided_slice %1177 {offsets = [0, 16], sizes = [8, 16], strides = [1, 1]} : vector<8x48xf32> to vector<8x16xf32>
    %1216 = arith.addf %1214, %1215 : vector<8x16xf32>
    %cst_332 = arith.constant 0.000000e+00 : f32
    %1217 = vector.broadcast %cst_332 : f32 to vector<8x16xf32>
    %1218 = arith.subf %1217, %1216 : vector<8x16xf32>
    %1219 = math.exp %1218 : vector<8x16xf32>
    %cst_333 = arith.constant 1.000000e+00 : f32
    %1220 = vector.broadcast %cst_333 : f32 to vector<8x16xf32>
    %1221 = arith.addf %1220, %1219 : vector<8x16xf32>
    %cst_334 = arith.constant 1.000000e+00 : f32
    %1222 = vector.broadcast %cst_334 : f32 to vector<8x16xf32>
    %1223 = arith.divf %1222, %1221 : vector<8x16xf32>
    %1224 = vector.extract_strided_slice %1173 {offsets = [0, 32], sizes = [8, 16], strides = [1, 1]} : vector<8x48xf32> to vector<8x16xf32>
    %1225 = vector.extract_strided_slice %1177 {offsets = [0, 32], sizes = [8, 16], strides = [1, 1]} : vector<8x48xf32> to vector<8x16xf32>
    %1226 = arith.addf %1225, %635 : vector<8x16xf32>
    %1227 = arith.mulf %1213, %1226 : vector<8x16xf32>
    %1228 = arith.addf %1224, %1227 : vector<8x16xf32>
    %1229 = math.tanh %1228 : vector<8x16xf32>
    %1230 = arith.subf %1162, %1203 : vector<8x16xf32>
    %1231 = arith.mulf %1197, %1230 : vector<8x16xf32>
    %1232 = arith.addf %1203, %1231 : vector<8x16xf32>
    %1233 = arith.subf %1165, %1229 : vector<8x16xf32>
    %1234 = arith.mulf %1223, %1233 : vector<8x16xf32>
    %1235 = arith.addf %1229, %1234 : vector<8x16xf32>
    %1236 = arith.mulf %1174, %1232 : vector<8x16xf32>
    %1237 = arith.mulf %1175, %1235 : vector<8x16xf32>
    %1238 = arith.subf %1236, %1166 : vector<8x16xf32>
    %c56_335 = arith.constant 56 : index
    %c0_336 = arith.constant 0 : index
    %1239 = vector.load %arg14[%c56_335, %c0_336] : memref<64x16xf32, #tpu.memory_space<vmem>>, vector<8x16xf32>
    tpu.vector_store %arg14[%c56_335, %c0_336], %1238 {strides = array<i32>} : memref<64x16xf32, #tpu.memory_space<vmem>>, vector<8x16xf32>,
    %1240 = arith.subf %1237, %1167 : vector<8x16xf32>
    %c0_337 = arith.constant 0 : index
    %c0_338 = arith.constant 0 : index
    %1241 = vector.load %arg15[%c0_337, %c0_338] : memref<64x16xf32, #tpu.memory_space<vmem>>, vector<8x16xf32>
    tpu.vector_store %arg15[%c0_337, %c0_338], %1240 {strides = array<i32>} : memref<64x16xf32, #tpu.memory_space<vmem>>, vector<8x16xf32>,
    %c0_339 = arith.constant 0 : index
    %c0_340 = arith.constant 0 : index
    %1242 = vector.load %arg7[%c0_339, %c0_340] : memref<64x32xf32, #tpu.memory_space<vmem>>, vector<64x32xf32>
    %c0_341 = arith.constant 0 : index
    %c0_342 = arith.constant 0 : index
    %1243 = vector.load %arg14[%c0_341, %c0_342] : memref<64x16xf32, #tpu.memory_space<vmem>>, vector<64x16xf32>
    %1244 = vector.extract_strided_slice %1242 {offsets = [0, 0], sizes = [16, 32], strides = [1, 1]} : vector<64x32xf32> to vector<16x32xf32>
    %cst_343 = arith.constant dense<0.000000e+00> : vector<64x32xf32>
    %1245 = tpu.matmul %1243, %1244, %cst_343 {dimension_numbers = #tpu.dot_dimension_numbers<[1], [0], [0], [1], [0, 0, 1, 1], [], []>} : vector<64x16xf32>, vector<16x32xf32>, vector<64x32xf32> -> vector<64x32xf32>
    %c0_344 = arith.constant 0 : index
    %c0_345 = arith.constant 0 : index
    %1246 = vector.load %arg15[%c0_344, %c0_345] : memref<64x16xf32, #tpu.memory_space<vmem>>, vector<64x16xf32>
    %1247 = vector.extract_strided_slice %1242 {offsets = [16, 0], sizes = [16, 32], strides = [1, 1]} : vector<64x32xf32> to vector<16x32xf32>
    %cst_346 = arith.constant dense<0.000000e+00> : vector<64x32xf32>
    %1248 = tpu.matmul %1246, %1247, %cst_346 {dimension_numbers = #tpu.dot_dimension_numbers<[1], [0], [0], [1], [0, 0, 1, 1], [], []>} : vector<64x16xf32>, vector<16x32xf32>, vector<64x32xf32> -> vector<64x32xf32>
    %1249 = arith.addf %1245, %1248 : vector<64x32xf32>
    %1250 = vector.extract_strided_slice %1242 {offsets = [32, 0], sizes = [32, 32], strides = [1, 1]} : vector<64x32xf32> to vector<32x32xf32>
    %cst_347 = arith.constant dense<0.000000e+00> : vector<64x32xf32>
    %1251 = tpu.matmul %0, %1250, %cst_347 {dimension_numbers = #tpu.dot_dimension_numbers<[1], [0], [0], [1], [0, 0, 1, 1], [], []>} : vector<64x32xf32>, vector<32x32xf32>, vector<64x32xf32> -> vector<64x32xf32>
    %1252 = arith.addf %1249, %1251 : vector<64x32xf32>
    %c0_348 = arith.constant 0 : index
    %c0_349 = arith.constant 0 : index
    %1253 = vector.load %arg8[%c0_348, %c0_349] : memref<1x32xf32, #tpu.memory_space<vmem>>, vector<1x32xf32>
    %1254 = vector.broadcast %1253 : vector<1x32xf32> to vector<64x32xf32>
    %1255 = arith.addf %1252, %1254 : vector<64x32xf32>
    %cst_350 = arith.constant 0.000000e+00 : f32
    %1256 = vector.broadcast %cst_350 : f32 to vector<64x32xf32>
    %1257 = arith.maximumf %1255, %1256 : vector<64x32xf32>
    %c0_351 = arith.constant 0 : index
    %c0_352 = arith.constant 0 : index
    %1258 = vector.load %arg9[%c0_351, %c0_352] : memref<32x1xf32, #tpu.memory_space<vmem>>, vector<32x1xf32>
    %cst_353 = arith.constant dense<0.000000e+00> : vector<64x1xf32>
    %1259 = tpu.matmul %1257, %1258, %cst_353 {dimension_numbers = #tpu.dot_dimension_numbers<[1], [0], [0], [1], [0, 0, 1, 1], [], []>} : vector<64x32xf32>, vector<32x1xf32>, vector<64x1xf32> -> vector<64x1xf32>
    %c0_354 = arith.constant 0 : index
    %c0_355 = arith.constant 0 : index
    %1260 = vector.load %arg10[%c0_354, %c0_355] : memref<1x1xf32, #tpu.memory_space<vmem>>, vector<1x1xf32>
    %1261 = vector.broadcast %1260 : vector<1x1xf32> to vector<64x1xf32>
    %1262 = arith.addf %1259, %1261 : vector<64x1xf32>
    %cst_356 = arith.constant 0.000000e+00 : f32
    %1263 = vector.broadcast %cst_356 : f32 to vector<64x1xf32>
    %1264 = arith.subf %1263, %1262 : vector<64x1xf32>
    %1265 = math.exp %1264 : vector<64x1xf32>
    %cst_357 = arith.constant 1.000000e+00 : f32
    %1266 = vector.broadcast %cst_357 : f32 to vector<64x1xf32>
    %1267 = arith.addf %1266, %1265 : vector<64x1xf32>
    %1268 = tpu.reciprocal %1267 {approx = true} : vector<64x1xf32> -> vector<64x1xf32>
    %cst_358 = arith.constant 0.000000e+00 : f32
    %1269 = vector.broadcast %cst_358 : f32 to vector<64x1xf32>
    %1270 = arith.cmpf ogt, %1, %1269 : vector<64x1xf32>
    %cst_359 = arith.constant 0.000000e+00 : f32
    %1271 = vector.broadcast %cst_359 : f32 to vector<64x1xf32>
    %1272 = arith.select %1270, %1268, %1271 : vector<64x1xi1>, vector<64x1xf32>
    %c0_360 = arith.constant 0 : index
    %c0_361 = arith.constant 0 : index
    %1273 = vector.load %arg11[%c0_360, %c0_361] : memref<64x1xf32, #tpu.memory_space<vmem>>, vector<64x1xf32>
    tpu.vector_store %arg11[%c0_360, %c0_361], %1272 {strides = array<i32>} : memref<64x1xf32, #tpu.memory_space<vmem>>, vector<64x1xf32>,
    return
  }
  func.func @transform_0(%arg0: i32) -> (i32, i32) {
    %c0_i32 = arith.constant 0 : i32
    %c0_i32_0 = arith.constant 0 : i32
    %c0_i32_1 = arith.constant 0 : i32
    return %c0_i32, %c0_i32_0 : i32, i32
  }
  func.func @transform_1(%arg0: i32) -> (i32, i32) {
    %c0_i32 = arith.constant 0 : i32
    %c0_i32_0 = arith.constant 0 : i32
    %c0_i32_1 = arith.constant 0 : i32
    return %c0_i32, %c0_i32_0 : i32, i32
  }
  func.func @transform_2(%arg0: i32) -> (i32, i32, i32) {
    %c0_i32 = arith.constant 0 : i32
    %c0_i32_0 = arith.constant 0 : i32
    %c0_i32_1 = arith.constant 0 : i32
    %c0_i32_2 = arith.constant 0 : i32
    return %c0_i32, %c0_i32_0, %c0_i32_1 : i32, i32, i32
  }
  func.func @transform_3(%arg0: i32) -> (i32, i32, i32, i32) {
    %c0_i32 = arith.constant 0 : i32
    %c0_i32_0 = arith.constant 0 : i32
    %c0_i32_1 = arith.constant 0 : i32
    %c0_i32_2 = arith.constant 0 : i32
    %c0_i32_3 = arith.constant 0 : i32
    return %c0_i32, %c0_i32_0, %c0_i32_1, %c0_i32_2 : i32, i32, i32, i32
  }
  func.func @transform_4(%arg0: i32) -> (i32, i32, i32) {
    %c0_i32 = arith.constant 0 : i32
    %c0_i32_0 = arith.constant 0 : i32
    %c0_i32_1 = arith.constant 0 : i32
    %c0_i32_2 = arith.constant 0 : i32
    return %c0_i32, %c0_i32_0, %c0_i32_1 : i32, i32, i32
  }
  func.func @transform_5(%arg0: i32) -> (i32, i32, i32, i32) {
    %c0_i32 = arith.constant 0 : i32
    %c0_i32_0 = arith.constant 0 : i32
    %c0_i32_1 = arith.constant 0 : i32
    %c0_i32_2 = arith.constant 0 : i32
    %c0_i32_3 = arith.constant 0 : i32
    return %c0_i32, %c0_i32_0, %c0_i32_1, %c0_i32_2 : i32, i32, i32, i32
  }
  func.func @transform_6(%arg0: i32) -> (i32, i32) {
    %c0_i32 = arith.constant 0 : i32
    %c0_i32_0 = arith.constant 0 : i32
    %c0_i32_1 = arith.constant 0 : i32
    return %c0_i32, %c0_i32_0 : i32, i32
  }
  func.func @transform_7(%arg0: i32) -> (i32, i32) {
    %c0_i32 = arith.constant 0 : i32
    %c0_i32_0 = arith.constant 0 : i32
    %c0_i32_1 = arith.constant 0 : i32
    return %c0_i32, %c0_i32_0 : i32, i32
  }
  func.func @transform_8(%arg0: i32) -> (i32, i32) {
    %c0_i32 = arith.constant 0 : i32
    %c0_i32_0 = arith.constant 0 : i32
    %c0_i32_1 = arith.constant 0 : i32
    return %c0_i32, %c0_i32_0 : i32, i32
  }
  func.func @transform_9(%arg0: i32) -> (i32, i32) {
    %c0_i32 = arith.constant 0 : i32
    %c0_i32_0 = arith.constant 0 : i32
    %c0_i32_1 = arith.constant 0 : i32
    return %c0_i32, %c0_i32_0 : i32, i32
  }
  func.func @transform_10(%arg0: i32) -> (i32, i32) {
    %c0_i32 = arith.constant 0 : i32
    %c0_i32_0 = arith.constant 0 : i32
    %c0_i32_1 = arith.constant 0 : i32
    return %c0_i32, %c0_i32_0 : i32, i32
  }
}

</mosaic_0001>

<llo_original>
// kernel: query_encoder_forward.1
$region0: #{query_encoder_forward.1}
  #allocation0 [shape = 'u32[]', space=smem, size = 0x4, offset = 0x4, fixed_abs, tag = 'smem constant byte address 0x4 - core index']
  #allocation1 [shape = 'u32[144,128]{1,0:T(1,128)}', space=vmem, size = 0x12000, scoped, tag = 'internal scratch']
  #allocation2 [shape = 'f32[64,16]{1,0:T(8,128)}', space=vmem, size = 0x8000, scoped, tag = 'scratch operand']
  #allocation3 [shape = 'f32[64,16]{1,0:T(8,128)}', space=vmem, size = 0x8000, scoped, tag = 'scratch operand']
  #allocation4 [shape = 'f32[64,16]{1,0:T(8,128)}', space=vmem, size = 0x8000, scoped, tag = 'scratch operand']
  #allocation5 [shape = 'f32[64,16]{1,0:T(8,128)}', space=vmem, size = 0x8000, scoped, tag = 'scratch operand']
  #allocation6 [shape = 'f32[1,1]{1,0:T(1,128)S(1)}', space=vmem, size = 0x200, scoped, tag = 'scoped memory for query_encoder_forward.1']
  %s0 = inlined_call_operand.vmem [shape: f32[64,32], index: 0, kind: input, shape index: {}]
  %s1 = inlined_call_operand.vmem [shape: f32[64,1], index: 1, kind: input, shape index: {}]
  %s2 = inlined_call_operand.vmem [shape: f32[2,32,96], index: 2, kind: input, shape index: {}]
  %s3 = inlined_call_operand.vmem [shape: f32[2,2,16,48], index: 3, kind: input, shape index: {}]
  %s4 = inlined_call_operand.vmem [shape: f32[2,1,96], index: 4, kind: input, shape index: {}]
  %s5 = inlined_call_operand.vmem [shape: f32[2,2,1,16], index: 5, kind: input, shape index: {}]
  %s6 = inlined_call_operand.vmem [shape: f32[64,32], index: 6, kind: input, shape index: {}]
  %s7 = inlined_call_operand.vmem [shape: f32[1,32], index: 7, kind: input, shape index: {}]
  %s8 = inlined_call_operand.vmem [shape: f32[32,1], index: 8, kind: input, shape index: {}]
  %s9 = inlined_call_operand.<no memory space> [shape: f32[1,1], index: 9, kind: input, shape index: {}]
  %s10 = inlined_call_operand.vmem [shape: f32[64,1], index: 10, kind: output, shape index: {}]
  %s11 = sld [smem:[#allocation0]]
  $region50: #{query_encoder_forward.1} parent=0
    _
  %s13 = ssub.s32 1, %s11
  %s14 = scalar_select 0, %s13, %s11
  %v15 = vstv %s9
  %16 = vst [vmem:[#allocation6] sm:$0x1] %v15
  // Predicated region
  $region2: #{query_encoder_forward.1} parent=0 // pred_check
    _
  $region3: #{query_encoder_forward.1} parent=0 // pred_check_branch
    %18 = sbr.rel (0) target = $region5
  $region4: #{query_encoder_forward.1} parent=0 // pred_region
    _
  $region5: #{query_encoder_forward.1} parent=0 // pred_fallthru
    _
  // Predicated region
  $region6: #{query_encoder_forward.1} parent=0 // pred_check
    _
  $region7: #{query_encoder_forward.1} parent=0 // pred_check_branch
    %20 = sbr.rel (0) target = $region9
  $region8: #{query_encoder_forward.1} parent=0 // pred_region
    _
  $region9: #{query_encoder_forward.1} parent=0 // pred_fallthru
    _
  // Predicated region
  $region10: #{query_encoder_forward.1} parent=0 // pred_check
    _
  $region11: #{query_encoder_forward.1} parent=0 // pred_check_branch
    %22 = sbr.rel (0) target = $region13
  $region12: #{query_encoder_forward.1} parent=0 // pred_region
    _
  $region13: #{query_encoder_forward.1} parent=0 // pred_fallthru
    _
  // Predicated region
  $region14: #{query_encoder_forward.1} parent=0 // pred_check
    _
  $region15: #{query_encoder_forward.1} parent=0 // pred_check_branch
    %24 = sbr.rel (0) target = $region17
  $region16: #{query_encoder_forward.1} parent=0 // pred_region
    _
  $region17: #{query_encoder_forward.1} parent=0 // pred_fallthru
    _
  // Predicated region
  $region18: #{query_encoder_forward.1} parent=0 // pred_check
    _
  $region19: #{query_encoder_forward.1} parent=0 // pred_check_branch
    %26 = sbr.rel (0) target = $region21
  $region20: #{query_encoder_forward.1} parent=0 // pred_region
    _
  $region21: #{query_encoder_forward.1} parent=0 // pred_fallthru
    _
  // Predicated region
  $region22: #{query_encoder_forward.1} parent=0 // pred_check
    _
  $region23: #{query_encoder_forward.1} parent=0 // pred_check_branch
    %28 = sbr.rel (0) target = $region25
  $region24: #{query_encoder_forward.1} parent=0 // pred_region
    _
  $region25: #{query_encoder_forward.1} parent=0 // pred_fallthru
    _
  // Predicated region
  $region26: #{query_encoder_forward.1} parent=0 // pred_check
    _
  $region27: #{query_encoder_forward.1} parent=0 // pred_check_branch
    %30 = sbr.rel (0) target = $region29
  $region28: #{query_encoder_forward.1} parent=0 // pred_region
    _
  $region29: #{query_encoder_forward.1} parent=0 // pred_fallthru
    _
  // Predicated region
  $region30: #{query_encoder_forward.1} parent=0 // pred_check
    _
  $region31: #{query_encoder_forward.1} parent=0 // pred_check_branch
    %32 = sbr.rel (0) target = $region33
  $region32: #{query_encoder_forward.1} parent=0 // pred_region
    _
  $region33: #{query_encoder_forward.1} parent=0 // pred_fallthru
    _
  // Predicated region
  $region34: #{query_encoder_forward.1} parent=0 // pred_check
    _
  $region35: #{query_encoder_forward.1} parent=0 // pred_check_branch
    %34 = sbr.rel (0) target = $region37
  $region36: #{query_encoder_forward.1} parent=0 // pred_region
    _
  $region37: #{query_encoder_forward.1} parent=0 // pred_fallthru
    _
  // Predicated region
  $region38: #{query_encoder_forward.1} parent=0 // pred_check
    _
  $region39: #{query_encoder_forward.1} parent=0 // pred_check_branch
    %36 = sbr.rel (0) target = $region41
  $region40: #{query_encoder_forward.1} parent=0 // pred_region
    _
  $region41: #{query_encoder_forward.1} parent=0 // pred_fallthru
    _
  %v37 = vld [vmem:[%s0] sm:$0xff]
  %v38 = vld [vmem:[%s0 + $0x8] sm:$0xff]
  %v39 = vld [vmem:[%s0 + $0x10] sm:$0xff]
  %v40 = vld [vmem:[%s0 + $0x18] sm:$0xff]
  %v41 = vld [vmem:[%s0 + $0x20] sm:$0xff]
  %v42 = vld [vmem:[%s0 + $0x28] sm:$0xff]
  %v43 = vld [vmem:[%s0 + $0x30] sm:$0xff]
  %v44 = vld [vmem:[%s0 + $0x38] sm:$0xff]
  %v45 = vld [vmem:[%s1] sm:$0xff]
  %v46 = vld [vmem:[%s1 + $0x8] sm:$0xff]
  %v47 = vld [vmem:[%s1 + $0x10] sm:$0xff]
  %v48 = vld [vmem:[%s1 + $0x18] sm:$0xff]
  %v49 = vld [vmem:[%s1 + $0x20] sm:$0xff]
  %v50 = vld [vmem:[%s1 + $0x28] sm:$0xff]
  %v51 = vld [vmem:[%s1 + $0x30] sm:$0xff]
  %v52 = vld [vmem:[%s1 + $0x38] sm:$0xff]
  %v53 = vld [vmem:[%s2] sm:$0xff]
  %v54 = vld [vmem:[%s2 + $0x8] sm:$0xff]
  %v55 = vld [vmem:[%s2 + $0x10] sm:$0xff]
  %v56 = vld [vmem:[%s2 + $0x18] sm:$0xff]
  %v57 = vld [vmem:[%s4] sm:$0x1]
  %v59 = vlaneseq
  %v60 = vshrl.u32 %v59, 7
  %v61 = vsub.s32 0, %v60
  %v62 = vrot.slane %v57, %v61
  %vm64 = vcmask 261120
  %v66 = vsel %vm64, %v37, 0
  %v69 = vsel %vm64, %v38, 0
  %v72 = vsel %vm64, %v39, 0
  %v75 = vsel %vm64, %v40, 0
  %v78 = vsel %vm64, %v41, 0
  %v81 = vsel %vm64, %v42, 0
  %v84 = vsel %vm64, %v43, 0
  %v87 = vsel %vm64, %v44, 0
  %89 = vmatprep.subr.mxu0 0.0
  %90 = vmatpush1.msra.mxu0 %v53
  %91 = vmatprep.subr.mxu0 0.0
  %92 = vmatpush1.msra.mxu0 %v54
  %93 = vmatprep.subr.mxu0 0.0
  %94 = vmatpush1.msra.mxu0 %v55
  %95 = vmatprep.subr.mxu0 0.0
  %96 = vmatpush1.msra.mxu0 %v56
  %97 = vmatprep.subr.mxu0 0.0
  %98 = vmatpush1.msra.mxu0 0.0
  %99 = vmatprep.subr.mxu0 0.0
  %100 = vmatpush1.msra.mxu0 0.0
  %101 = vmatprep.subr.mxu0 0.0
  %102 = vmatpush1.msra.mxu0 0.0
  %103 = vmatprep.subr.mxu0 0.0
  %104 = vmatpush1.msra.mxu0 0.0
  %105 = vmatprep.subr.mxu0 0.0
  %106 = vmatpush1.msra.mxu0 0.0
  %107 = vmatprep.subr.mxu0 0.0
  %108 = vmatpush1.msra.mxu0 0.0
  %109 = vmatprep.subr.mxu0 0.0
  %110 = vmatpush1.msra.mxu0 0.0
  %111 = vmatprep.subr.mxu0 0.0
  %112 = vmatpush1.msra.mxu0 0.0
  %113 = vmatprep.subr.mxu0 0.0
  %114 = vmatpush1.msra.mxu0 0.0
  %115 = vmatprep.subr.mxu0 0.0
  %116 = vmatpush1.msra.mxu0 0.0
  %117 = vmatprep.subr.mxu0 0.0
  %118 = vmatpush1.msra.mxu0 0.0
  %119 = vmatprep.subr.mxu0 0.0
  %120 = vmatpush1.msra.mxu0 0.0
  %121 = vmatprep.subr.mxu0 0.0
  %122 = vmatpush1.msra.mxu0 0.0
  %123 = vmatprep.subr.mxu0 0.0
  %124 = vmatpush1.msra.mxu0 0.0
  %125 = vmatprep.subr.mxu0 0.0
  %126 = vmatpush1.msra.mxu0 0.0
  %127 = vmatprep.subr.mxu0 0.0
  %128 = vmatpush1.msra.mxu0 0.0
  %129 = vmatprep.subr.mxu0 0.0
  %130 = vmatpush1.msra.mxu0 0.0
  %131 = vmatprep.subr.mxu0 0.0
  %132 = vmatpush1.msra.mxu0 0.0
  %133 = vmatprep.subr.mxu0 0.0
  %134 = vmatpush1.msra.mxu0 0.0
  %135 = vmatprep.subr.mxu0 0.0
  %136 = vmatpush1.msra.mxu0 0.0
  %137 = vmatprep.subr.mxu0 0.0
  %138 = vmatpush1.msra.mxu0 0.0
  %139 = vmatprep.subr.mxu0 0.0
  %140 = vmatpush1.msra.mxu0 0.0
  %141 = vmatprep.subr.mxu0 0.0
  %142 = vmatpush1.msra.mxu0 0.0
  %143 = vmatprep.subr.mxu0 0.0
  %144 = vmatpush1.msra.mxu0 0.0
  %145 = vmatprep.subr.mxu0 0.0
  %146 = vmatpush1.msra.mxu0 0.0
  %147 = vmatprep.subr.mxu0 0.0
  %148 = vmatpush1.msra.mxu0 0.0
  %149 = vmatprep.subr.mxu0 0.0
  %150 = vmatpush1.msra.mxu0 0.0
  %151 = vmatprep.subr.mxu0 0.0
  %152 = vmatpush1.msra.mxu0 0.0
  %153 = vmatprep.mubr.f32.mxu0 0.0
  %154 = vmatmul.mubr.f32.gmra.mrb[0].mxu0 %v66
  %v155 = vpop.f32.mrb[0].mxu0
  %v156 = vadd.f32 %v62, %v155
  %v157 = vpop.f32.mrb[0].mxu0
  %158 = vmatprep.mubr.f32.mxu0 0.0
  %159 = vmatmul.mubr.f32.gmra.mrb[0].mxu0 %v69
  %v160 = vpop.f32.mrb[0].mxu0
  %v161 = vadd.f32 %v62, %v160
  %v162 = vpop.f32.mrb[0].mxu0
  %163 = vmatprep.mubr.f32.mxu0 0.0
  %164 = vmatmul.mubr.f32.gmra.mrb[0].mxu0 %v72
  %v165 = vpop.f32.mrb[0].mxu0
  %v166 = vadd.f32 %v62, %v165
  %v167 = vpop.f32.mrb[0].mxu0
  %168 = vmatprep.mubr.f32.mxu0 0.0
  %169 = vmatmul.mubr.f32.gmra.mrb[0].mxu0 %v75
  %v170 = vpop.f32.mrb[0].mxu0
  %v171 = vadd.f32 %v62, %v170
  %v172 = vpop.f32.mrb[0].mxu0
  %173 = vmatprep.mubr.f32.mxu0 0.0
  %174 = vmatmul.mubr.f32.gmra.mrb[0].mxu0 %v78
  %v175 = vpop.f32.mrb[0].mxu0
  %v176 = vadd.f32 %v62, %v175
  %v177 = vpop.f32.mrb[0].mxu0
  %178 = vmatprep.mubr.f32.mxu0 0.0
  %179 = vmatmul.mubr.f32.gmra.mrb[0].mxu0 %v81
  %v180 = vpop.f32.mrb[0].mxu0
  %v181 = vadd.f32 %v62, %v180
  %v182 = vpop.f32.mrb[0].mxu0
  %183 = vmatprep.mubr.f32.mxu0 0.0
  %184 = vmatmul.mubr.f32.gmra.mrb[0].mxu0 %v84
  %v185 = vpop.f32.mrb[0].mxu0
  %v186 = vadd.f32 %v62, %v185
  %v187 = vpop.f32.mrb[0].mxu0
  %188 = vmatprep.mubr.f32.mxu0 0.0
  %189 = vmatmul.mubr.f32.gmra.mrb[0].mxu0 %v87
  %v190 = vpop.f32.mrb[0].mxu0
  %v191 = vadd.f32 %v62, %v190
  %v192 = vpop.f32.mrb[0].mxu0
  %193 = vdwg.mxu0
  %v194 = vld [vmem:[%s3] sm:$0xff]
  %v195 = vld [vmem:[%s3 + $0x8] sm:$0xff]
  %s196 = scalar_lea.vmem %s3, 16
  %v197 = vld [vmem:[%s196] sm:$0xff]
  %v198 = vld [vmem:[%s196 + $0x8] sm:$0xff]
  %v199 = vld [vmem:[%s5] sm:$0x1]
  %v201 = vlaneseq
  %v202 = vshrl.u32 %v201, 7
  %v203 = vsub.s32 0, %v202
  %v204 = vrot.slane %v199, %v203
  %s205 = scalar_lea.vmem %s5, 1
  %v206 = vld [vmem:[%s205] sm:$0x1]
  %v208 = vlaneseq
  %v209 = vshrl.u32 %v208, 7
  %v210 = vsub.s32 0, %v209
  %v211 = vrot.slane %v206, %v210
  %213 = vset.pattern.permute.xlu0 0
  %214 = vperm.xlu0 %213, %v45
  %v215 = vpop.permute.xlu0 %214
  %218 = vset.pattern.permute.xlu0 0
  %219 = vperm.xlu0 %218, %v52
  %v220 = vpop.permute.xlu0 %219
  %vm222 = vcmask 130048
  %v224 = vsel %vm222, 0.0, 0
  %226 = vmatprep.subr.mxu0 0.0
  %227 = vmatpush1.msra.mxu0 %v194
  %228 = vmatprep.subr.mxu0 0.0
  %229 = vmatpush1.msra.mxu0 %v195
  %230 = vmatprep.subr.mxu0 0.0
  %231 = vmatpush1.msra.mxu0 0.0
  %232 = vmatprep.subr.mxu0 0.0
  %233 = vmatpush1.msra.mxu0 0.0
  %234 = vmatprep.subr.mxu0 0.0
  %235 = vmatpush1.msra.mxu0 0.0
  %236 = vmatprep.subr.mxu0 0.0
  %237 = vmatpush1.msra.mxu0 0.0
  %238 = vmatprep.subr.mxu0 0.0
  %239 = vmatpush1.msra.mxu0 0.0
  %240 = vmatprep.subr.mxu0 0.0
  %241 = vmatpush1.msra.mxu0 0.0
  %242 = vmatprep.subr.mxu0 0.0
  %243 = vmatpush1.msra.mxu0 0.0
  %244 = vmatprep.subr.mxu0 0.0
  %245 = vmatpush1.msra.mxu0 0.0
  %246 = vmatprep.subr.mxu0 0.0
  %247 = vmatpush1.msra.mxu0 0.0
  %248 = vmatprep.subr.mxu0 0.0
  %249 = vmatpush1.msra.mxu0 0.0
  %250 = vmatprep.subr.mxu0 0.0
  %251 = vmatpush1.msra.mxu0 0.0
  %252 = vmatprep.subr.mxu0 0.0
  %253 = vmatpush1.msra.mxu0 0.0
  %254 = vmatprep.subr.mxu0 0.0
  %255 = vmatpush1.msra.mxu0 0.0
  %256 = vmatprep.subr.mxu0 0.0
  %257 = vmatpush1.msra.mxu0 0.0
  %258 = vmatprep.subr.mxu0 0.0
  %259 = vmatpush1.msra.mxu0 0.0
  %260 = vmatprep.subr.mxu0 0.0
  %261 = vmatpush1.msra.mxu0 0.0
  %262 = vmatprep.subr.mxu0 0.0
  %263 = vmatpush1.msra.mxu0 0.0
  %264 = vmatprep.subr.mxu0 0.0
  %265 = vmatpush1.msra.mxu0 0.0
  %266 = vmatprep.subr.mxu0 0.0
  %267 = vmatpush1.msra.mxu0 0.0
  %268 = vmatprep.subr.mxu0 0.0
  %269 = vmatpush1.msra.mxu0 0.0
  %270 = vmatprep.subr.mxu0 0.0
  %271 = vmatpush1.msra.mxu0 0.0
  %272 = vmatprep.subr.mxu0 0.0
  %273 = vmatpush1.msra.mxu0 0.0
  %274 = vmatprep.subr.mxu0 0.0
  %275 = vmatpush1.msra.mxu0 0.0
  %276 = vmatprep.subr.mxu0 0.0
  %277 = vmatpush1.msra.mxu0 0.0
  %278 = vmatprep.subr.mxu0 0.0
  %279 = vmatpush1.msra.mxu0 0.0
  %280 = vmatprep.subr.mxu0 0.0
  %281 = vmatpush1.msra.mxu0 0.0
  %282 = vmatprep.subr.mxu0 0.0
  %283 = vmatpush1.msra.mxu0 0.0
  %284 = vmatprep.subr.mxu0 0.0
  %285 = vmatpush1.msra.mxu0 0.0
  %286 = vmatprep.subr.mxu0 0.0
  %287 = vmatpush1.msra.mxu0 0.0
  %288 = vmatprep.subr.mxu0 0.0
  %289 = vmatpush1.msra.mxu0 0.0
  %290 = vmatprep.mubr.f32.mxu0 0.0
  %291 = vmatmul.mubr.f32.gmra.mrb[0].mxu0 %v224
  %v292 = vpop.f32.mrb[0].mxu0
  %v293 = vadd.f32 0.0, %v292
  %v294 = vpop.f32.mrb[0].mxu0
  %295 = vdwg.mxu0
  %296 = vmatprep.subr.mxu0 0.0
  %297 = vmatpush1.msra.mxu0 %v197
  %298 = vmatprep.subr.mxu0 0.0
  %299 = vmatpush1.msra.mxu0 %v198
  %300 = vmatprep.subr.mxu0 0.0
  %301 = vmatpush1.msra.mxu0 0.0
  %302 = vmatprep.subr.mxu0 0.0
  %303 = vmatpush1.msra.mxu0 0.0
  %304 = vmatprep.subr.mxu0 0.0
  %305 = vmatpush1.msra.mxu0 0.0
  %306 = vmatprep.subr.mxu0 0.0
  %307 = vmatpush1.msra.mxu0 0.0
  %308 = vmatprep.subr.mxu0 0.0
  %309 = vmatpush1.msra.mxu0 0.0
  %310 = vmatprep.subr.mxu0 0.0
  %311 = vmatpush1.msra.mxu0 0.0
  %312 = vmatprep.subr.mxu0 0.0
  %313 = vmatpush1.msra.mxu0 0.0
  %314 = vmatprep.subr.mxu0 0.0
  %315 = vmatpush1.msra.mxu0 0.0
  %316 = vmatprep.subr.mxu0 0.0
  %317 = vmatpush1.msra.mxu0 0.0
  %318 = vmatprep.subr.mxu0 0.0
  %319 = vmatpush1.msra.mxu0 0.0
  %320 = vmatprep.subr.mxu0 0.0
  %321 = vmatpush1.msra.mxu0 0.0
  %322 = vmatprep.subr.mxu0 0.0
  %323 = vmatpush1.msra.mxu0 0.0
  %324 = vmatprep.subr.mxu0 0.0
  %325 = vmatpush1.msra.mxu0 0.0
  %326 = vmatprep.subr.mxu0 0.0
  %327 = vmatpush1.msra.mxu0 0.0
  %328 = vmatprep.subr.mxu0 0.0
  %329 = vmatpush1.msra.mxu0 0.0
  %330 = vmatprep.subr.mxu0 0.0
  %331 = vmatpush1.msra.mxu0 0.0
  %332 = vmatprep.subr.mxu0 0.0
  %333 = vmatpush1.msra.mxu0 0.0
  %334 = vmatprep.subr.mxu0 0.0
  %335 = vmatpush1.msra.mxu0 0.0
  %336 = vmatprep.subr.mxu0 0.0
  %337 = vmatpush1.msra.mxu0 0.0
  %338 = vmatprep.subr.mxu0 0.0
  %339 = vmatpush1.msra.mxu0 0.0
  %340 = vmatprep.subr.mxu0 0.0
  %341 = vmatpush1.msra.mxu0 0.0
  %342 = vmatprep.subr.mxu0 0.0
  %343 = vmatpush1.msra.mxu0 0.0
  %344 = vmatprep.subr.mxu0 0.0
  %345 = vmatpush1.msra.mxu0 0.0
  %346 = vmatprep.subr.mxu0 0.0
  %347 = vmatpush1.msra.mxu0 0.0
  %348 = vmatprep.subr.mxu0 0.0
  %349 = vmatpush1.msra.mxu0 0.0
  %350 = vmatprep.subr.mxu0 0.0
  %351 = vmatpush1.msra.mxu0 0.0
  %352 = vmatprep.subr.mxu0 0.0
  %353 = vmatpush1.msra.mxu0 0.0
  %354 = vmatprep.subr.mxu0 0.0
  %355 = vmatpush1.msra.mxu0 0.0
  %356 = vmatprep.subr.mxu0 0.0
  %357 = vmatpush1.msra.mxu0 0.0
  %358 = vmatprep.subr.mxu0 0.0
  %359 = vmatpush1.msra.mxu0 0.0
  %360 = vmatprep.mubr.f32.mxu0 0.0
  %361 = vmatmul.mubr.f32.gmra.mrb[0].mxu0 %v224
  %v362 = vpop.f32.mrb[0].mxu0
  %v363 = vadd.f32 0.0, %v362
  %v364 = vpop.f32.mrb[0].mxu0
  %365 = vdwg.mxu0
  %v366 = vadd.f32 %v156, %v293
  %v367 = vsub.f32 0.0, %v366
  %v368 = vmul.f32 %v367, 1.442695
  %v369 = vpow.pop %v368
  %v370 = vadd.f32 %v369, 1.0
  %v371 = vrcp.pop %v370
  %v372 = vmul.f32 1.0, %v371
  %373 = vrot.lane.b32.xlu0 %v204, 32
  %v374 = vpop.permute.xlu0 %373
  %v376 = vadd.f32 %v293, %v374
  %378 = vrot.lane.b32.xlu0 %v376, 96
  %v379 = vpop.permute.xlu0 %378
  %v381 = vmul.f32 %v372, %v379
  %383 = vrot.lane.b32.xlu0 %v381, 32
  %v384 = vpop.permute.xlu0 %383
  %v386 = vadd.f32 %v156, %v384
  %v387 = vtanh.pop %v386
  %389 = vrot.lane.b32.xlu0 %v363, 48
  %v390 = vpop.permute.xlu0 %389
  %v392 = vadd.f32 %v191, %v390
  %v393 = vsub.f32 0.0, %v392
  %v394 = vmul.f32 %v393, 1.442695
  %v395 = vpow.pop %v394
  %v396 = vadd.f32 %v395, 1.0
  %v397 = vrcp.pop %v396
  %v398 = vmul.f32 1.0, %v397
  %399 = vrot.lane.b32.xlu0 %v211, 32
  %v400 = vpop.permute.xlu0 %399
  %v402 = vadd.f32 %v363, %v400
  %404 = vrot.lane.b32.xlu0 %v402, 16
  %v405 = vpop.permute.xlu0 %404
  %v407 = vmul.f32 %v398, %v405
  %409 = vrot.lane.b32.xlu0 %v407, 32
  %v410 = vpop.permute.xlu0 %409
  %v412 = vadd.f32 %v191, %v410
  %v413 = vtanh.pop %v412
  %v414 = vsub.f32 0.0, %v387
  %416 = vrot.lane.b32.xlu0 %v414, 112
  %v417 = vpop.permute.xlu0 %416
  %v419 = vmul.f32 %v372, %v417
  %421 = vrot.lane.b32.xlu0 %v419, 16
  %v422 = vpop.permute.xlu0 %421
  %v424 = vadd.f32 %v387, %v422
  %v425 = vsub.f32 0.0, %v413
  %427 = vrot.lane.b32.xlu0 %v425, 112
  %v428 = vpop.permute.xlu0 %427
  %v430 = vmul.f32 %v398, %v428
  %432 = vrot.lane.b32.xlu0 %v430, 16
  %v433 = vpop.permute.xlu0 %432
  %v435 = vadd.f32 %v413, %v433
  %v436 = vmul.f32 %v215, %v424
  %v437 = vadd.f32 %v436, 0.0
  %v438 = vmul.f32 %v220, %v435
  %v439 = vadd.f32 %v438, 0.0
  %441 = vrot.lane.b32.xlu0 %v436, 96
  %v442 = vpop.permute.xlu0 %441
  %444 = vst.msk [vmem:[#allocation2] sm:$0xff] %vm222, %v442
  %446 = vrot.lane.b32.xlu0 %v438, 48
  %v447 = vpop.permute.xlu0 %446
  %449 = vst.msk [vmem:[#allocation3 + $0x38] sm:$0xff] %vm222, %v447
  %451 = vset.pattern.permute.xlu0 0
  %452 = vperm.xlu0 %451, %v46
  %v453 = vpop.permute.xlu0 %452
  %456 = vset.pattern.permute.xlu0 0
  %457 = vperm.xlu0 %456, %v51
  %v458 = vpop.permute.xlu0 %457
  %461 = vrot.lane.b32.xlu0 %v437, 96
  %v462 = vpop.permute.xlu0 %461
  %v463 = vsel %vm222, %v462, 0
  %465 = vmatprep.subr.mxu0 0.0
  %466 = vmatpush1.msra.mxu0 %v194
  %467 = vmatprep.subr.mxu0 0.0
  %468 = vmatpush1.msra.mxu0 %v195
  %469 = vmatprep.subr.mxu0 0.0
  %470 = vmatpush1.msra.mxu0 0.0
  %471 = vmatprep.subr.mxu0 0.0
  %472 = vmatpush1.msra.mxu0 0.0
  %473 = vmatprep.subr.mxu0 0.0
  %474 = vmatpush1.msra.mxu0 0.0
  %475 = vmatprep.subr.mxu0 0.0
  %476 = vmatpush1.msra.mxu0 0.0
  %477 = vmatprep.subr.mxu0 0.0
  %478 = vmatpush1.msra.mxu0 0.0
  %479 = vmatprep.subr.mxu0 0.0
  %480 = vmatpush1.msra.mxu0 0.0
  %481 = vmatprep.subr.mxu0 0.0
  %482 = vmatpush1.msra.mxu0 0.0
  %483 = vmatprep.subr.mxu0 0.0
  %484 = vmatpush1.msra.mxu0 0.0
  %485 = vmatprep.subr.mxu0 0.0
  %486 = vmatpush1.msra.mxu0 0.0
  %487 = vmatprep.subr.mxu0 0.0
  %488 = vmatpush1.msra.mxu0 0.0
  %489 = vmatprep.subr.mxu0 0.0
  %490 = vmatpush1.msra.mxu0 0.0
  %491 = vmatprep.subr.mxu0 0.0
  %492 = vmatpush1.msra.mxu0 0.0
  %493 = vmatprep.subr.mxu0 0.0
  %494 = vmatpush1.msra.mxu0 0.0
  %495 = vmatprep.subr.mxu0 0.0
  %496 = vmatpush1.msra.mxu0 0.0
  %497 = vmatprep.subr.mxu0 0.0
  %498 = vmatpush1.msra.mxu0 0.0
  %499 = vmatprep.subr.mxu0 0.0
  %500 = vmatpush1.msra.mxu0 0.0
  %501 = vmatprep.subr.mxu0 0.0
  %502 = vmatpush1.msra.mxu0 0.0
  %503 = vmatprep.subr.mxu0 0.0
  %504 = vmatpush1.msra.mxu0 0.0
  %505 = vmatprep.subr.mxu0 0.0
  %506 = vmatpush1.msra.mxu0 0.0
  %507 = vmatprep.subr.mxu0 0.0
  %508 = vmatpush1.msra.mxu0 0.0
  %509 = vmatprep.subr.mxu0 0.0
  %510 = vmatpush1.msra.mxu0 0.0
  %511 = vmatprep.subr.mxu0 0.0
  %512 = vmatpush1.msra.mxu0 0.0
  %513 = vmatprep.subr.mxu0 0.0
  %514 = vmatpush1.msra.mxu0 0.0
  %515 = vmatprep.subr.mxu0 0.0
  %516 = vmatpush1.msra.mxu0 0.0
  %517 = vmatprep.subr.mxu0 0.0
  %518 = vmatpush1.msra.mxu0 0.0
  %519 = vmatprep.subr.mxu0 0.0
  %520 = vmatpush1.msra.mxu0 0.0
  %521 = vmatprep.subr.mxu0 0.0
  %522 = vmatpush1.msra.mxu0 0.0
  %523 = vmatprep.subr.mxu0 0.0
  %524 = vmatpush1.msra.mxu0 0.0
  %525 = vmatprep.subr.mxu0 0.0
  %526 = vmatpush1.msra.mxu0 0.0
  %527 = vmatprep.subr.mxu0 0.0
  %528 = vmatpush1.msra.mxu0 0.0
  %529 = vmatprep.mubr.f32.mxu0 0.0
  %530 = vmatmul.mubr.f32.gmra.mrb[0].mxu0 %v463
  %v531 = vpop.f32.mrb[0].mxu0
  %v532 = vadd.f32 0.0, %v531
  %v533 = vpop.f32.mrb[0].mxu0
  %534 = vdwg.mxu0
  %536 = vrot.lane.b32.xlu0 %v439, 48
  %v537 = vpop.permute.xlu0 %536
  %v538 = vsel %vm222, %v537, 0
  %540 = vmatprep.subr.mxu0 0.0
  %541 = vmatpush1.msra.mxu0 %v197
  %542 = vmatprep.subr.mxu0 0.0
  %543 = vmatpush1.msra.mxu0 %v198
  %544 = vmatprep.subr.mxu0 0.0
  %545 = vmatpush1.msra.mxu0 0.0
  %546 = vmatprep.subr.mxu0 0.0
  %547 = vmatpush1.msra.mxu0 0.0
  %548 = vmatprep.subr.mxu0 0.0
  %549 = vmatpush1.msra.mxu0 0.0
  %550 = vmatprep.subr.mxu0 0.0
  %551 = vmatpush1.msra.mxu0 0.0
  %552 = vmatprep.subr.mxu0 0.0
  %553 = vmatpush1.msra.mxu0 0.0
  %554 = vmatprep.subr.mxu0 0.0
  %555 = vmatpush1.msra.mxu0 0.0
  %556 = vmatprep.subr.mxu0 0.0
  %557 = vmatpush1.msra.mxu0 0.0
  %558 = vmatprep.subr.mxu0 0.0
  %559 = vmatpush1.msra.mxu0 0.0
  %560 = vmatprep.subr.mxu0 0.0
  %561 = vmatpush1.msra.mxu0 0.0
  %562 = vmatprep.subr.mxu0 0.0
  %563 = vmatpush1.msra.mxu0 0.0
  %564 = vmatprep.subr.mxu0 0.0
  %565 = vmatpush1.msra.mxu0 0.0
  %566 = vmatprep.subr.mxu0 0.0
  %567 = vmatpush1.msra.mxu0 0.0
  %568 = vmatprep.subr.mxu0 0.0
  %569 = vmatpush1.msra.mxu0 0.0
  %570 = vmatprep.subr.mxu0 0.0
  %571 = vmatpush1.msra.mxu0 0.0
  %572 = vmatprep.subr.mxu0 0.0
  %573 = vmatpush1.msra.mxu0 0.0
  %574 = vmatprep.subr.mxu0 0.0
  %575 = vmatpush1.msra.mxu0 0.0
  %576 = vmatprep.subr.mxu0 0.0
  %577 = vmatpush1.msra.mxu0 0.0
  %578 = vmatprep.subr.mxu0 0.0
  %579 = vmatpush1.msra.mxu0 0.0
  %580 = vmatprep.subr.mxu0 0.0
  %581 = vmatpush1.msra.mxu0 0.0
  %582 = vmatprep.subr.mxu0 0.0
  %583 = vmatpush1.msra.mxu0 0.0
  %584 = vmatprep.subr.mxu0 0.0
  %585 = vmatpush1.msra.mxu0 0.0
  %586 = vmatprep.subr.mxu0 0.0
  %587 = vmatpush1.msra.mxu0 0.0
  %588 = vmatprep.subr.mxu0 0.0
  %589 = vmatpush1.msra.mxu0 0.0
  %590 = vmatprep.subr.mxu0 0.0
  %591 = vmatpush1.msra.mxu0 0.0
  %592 = vmatprep.subr.mxu0 0.0
  %593 = vmatpush1.msra.mxu0 0.0
  %594 = vmatprep.subr.mxu0 0.0
  %595 = vmatpush1.msra.mxu0 0.0
  %596 = vmatprep.subr.mxu0 0.0
  %597 = vmatpush1.msra.mxu0 0.0
  %598 = vmatprep.subr.mxu0 0.0
  %599 = vmatpush1.msra.mxu0 0.0
  %600 = vmatprep.subr.mxu0 0.0
  %601 = vmatpush1.msra.mxu0 0.0
  %602 = vmatprep.subr.mxu0 0.0
  %603 = vmatpush1.msra.mxu0 0.0
  %604 = vmatprep.mubr.f32.mxu0 0.0
  %605 = vmatmul.mubr.f32.gmra.mrb[0].mxu0 %v538
  %v606 = vpop.f32.mrb[0].mxu0
  %v607 = vadd.f32 0.0, %v606
  %v608 = vpop.f32.mrb[0].mxu0
  %609 = vdwg.mxu0
  %v610 = vadd.f32 %v161, %v532
  %v611 = vsub.f32 0.0, %v610
  %v612 = vmul.f32 %v611, 1.442695
  %v613 = vpow.pop %v612
  %v614 = vadd.f32 %v613, 1.0
  %v615 = vrcp.pop %v614
  %v616 = vmul.f32 1.0, %v615
  %v617 = vadd.f32 %v532, %v374
  %619 = vrot.lane.b32.xlu0 %v617, 96
  %v620 = vpop.permute.xlu0 %619
  %v622 = vmul.f32 %v616, %v620
  %624 = vrot.lane.b32.xlu0 %v622, 32
  %v625 = vpop.permute.xlu0 %624
  %v627 = vadd.f32 %v161, %v625
  %v628 = vtanh.pop %v627
  %630 = vrot.lane.b32.xlu0 %v607, 48
  %v631 = vpop.permute.xlu0 %630
  %v633 = vadd.f32 %v186, %v631
  %v634 = vsub.f32 0.0, %v633
  %v635 = vmul.f32 %v634, 1.442695
  %v636 = vpow.pop %v635
  %v637 = vadd.f32 %v636, 1.0
  %v638 = vrcp.pop %v637
  %v639 = vmul.f32 1.0, %v638
  %v640 = vadd.f32 %v607, %v400
  %642 = vrot.lane.b32.xlu0 %v640, 16
  %v643 = vpop.permute.xlu0 %642
  %v645 = vmul.f32 %v639, %v643
  %647 = vrot.lane.b32.xlu0 %v645, 32
  %v648 = vpop.permute.xlu0 %647
  %v650 = vadd.f32 %v186, %v648
  %v651 = vtanh.pop %v650
  %v652 = vsub.f32 %v437, %v628
  %654 = vrot.lane.b32.xlu0 %v652, 112
  %v655 = vpop.permute.xlu0 %654
  %v657 = vmul.f32 %v616, %v655
  %659 = vrot.lane.b32.xlu0 %v657, 16
  %v660 = vpop.permute.xlu0 %659
  %v662 = vadd.f32 %v628, %v660
  %v663 = vsub.f32 %v439, %v651
  %665 = vrot.lane.b32.xlu0 %v663, 112
  %v666 = vpop.permute.xlu0 %665
  %v668 = vmul.f32 %v639, %v666
  %670 = vrot.lane.b32.xlu0 %v668, 16
  %v671 = vpop.permute.xlu0 %670
  %v673 = vadd.f32 %v651, %v671
  %v674 = vsub.f32 %v662, %v437
  %v675 = vmul.f32 %v453, %v674
  %v676 = vadd.f32 %v437, %v675
  %v677 = vsub.f32 %v673, %v439
  %v678 = vmul.f32 %v458, %v677
  %v679 = vadd.f32 %v439, %v678
  %v680 = vmul.f32 %v453, %v662
  %v681 = vmul.f32 %v458, %v673
  %683 = vrot.lane.b32.xlu0 %v680, 96
  %v684 = vpop.permute.xlu0 %683
  %686 = vst.msk [vmem:[#allocation2 + $0x8] sm:$0xff] %vm222, %v684
  %688 = vrot.lane.b32.xlu0 %v681, 48
  %v689 = vpop.permute.xlu0 %688
  %691 = vst.msk [vmem:[#allocation3 + $0x30] sm:$0xff] %vm222, %v689
  %693 = vset.pattern.permute.xlu0 0
  %694 = vperm.xlu0 %693, %v47
  %v695 = vpop.permute.xlu0 %694
  %698 = vset.pattern.permute.xlu0 0
  %699 = vperm.xlu0 %698, %v50
  %v700 = vpop.permute.xlu0 %699
  %703 = vrot.lane.b32.xlu0 %v676, 96
  %v704 = vpop.permute.xlu0 %703
  %v705 = vsel %vm222, %v704, 0
  %707 = vmatprep.subr.mxu0 0.0
  %708 = vmatpush1.msra.mxu0 %v194
  %709 = vmatprep.subr.mxu0 0.0
  %710 = vmatpush1.msra.mxu0 %v195
  %711 = vmatprep.subr.mxu0 0.0
  %712 = vmatpush1.msra.mxu0 0.0
  %713 = vmatprep.subr.mxu0 0.0
  %714 = vmatpush1.msra.mxu0 0.0
  %715 = vmatprep.subr.mxu0 0.0
  %716 = vmatpush1.msra.mxu0 0.0
  %717 = vmatprep.subr.mxu0 0.0
  %718 = vmatpush1.msra.mxu0 0.0
  %719 = vmatprep.subr.mxu0 0.0
  %720 = vmatpush1.msra.mxu0 0.0
  %721 = vmatprep.subr.mxu0 0.0
  %722 = vmatpush1.msra.mxu0 0.0
  %723 = vmatprep.subr.mxu0 0.0
  %724 = vmatpush1.msra.mxu0 0.0
  %725 = vmatprep.subr.mxu0 0.0
  %726 = vmatpush1.msra.mxu0 0.0
  %727 = vmatprep.subr.mxu0 0.0
  %728 = vmatpush1.msra.mxu0 0.0
  %729 = vmatprep.subr.mxu0 0.0
  %730 = vmatpush1.msra.mxu0 0.0
  %731 = vmatprep.subr.mxu0 0.0
  %732 = vmatpush1.msra.mxu0 0.0
  %733 = vmatprep.subr.mxu0 0.0
  %734 = vmatpush1.msra.mxu0 0.0
  %735 = vmatprep.subr.mxu0 0.0
  %736 = vmatpush1.msra.mxu0 0.0
  %737 = vmatprep.subr.mxu0 0.0
  %738 = vmatpush1.msra.mxu0 0.0
  %739 = vmatprep.subr.mxu0 0.0
  %740 = vmatpush1.msra.mxu0 0.0
  %741 = vmatprep.subr.mxu0 0.0
  %742 = vmatpush1.msra.mxu0 0.0
  %743 = vmatprep.subr.mxu0 0.0
  %744 = vmatpush1.msra.mxu0 0.0
  %745 = vmatprep.subr.mxu0 0.0
  %746 = vmatpush1.msra.mxu0 0.0
  %747 = vmatprep.subr.mxu0 0.0
  %748 = vmatpush1.msra.mxu0 0.0
  %749 = vmatprep.subr.mxu0 0.0
  %750 = vmatpush1.msra.mxu0 0.0
  %751 = vmatprep.subr.mxu0 0.0
  %752 = vmatpush1.msra.mxu0 0.0
  %753 = vmatprep.subr.mxu0 0.0
  %754 = vmatpush1.msra.mxu0 0.0
  %755 = vmatprep.subr.mxu0 0.0
  %756 = vmatpush1.msra.mxu0 0.0
  %757 = vmatprep.subr.mxu0 0.0
  %758 = vmatpush1.msra.mxu0 0.0
  %759 = vmatprep.subr.mxu0 0.0
  %760 = vmatpush1.msra.mxu0 0.0
  %761 = vmatprep.subr.mxu0 0.0
  %762 = vmatpush1.msra.mxu0 0.0
  %763 = vmatprep.subr.mxu0 0.0
  %764 = vmatpush1.msra.mxu0 0.0
  %765 = vmatprep.subr.mxu0 0.0
  %766 = vmatpush1.msra.mxu0 0.0
  %767 = vmatprep.subr.mxu0 0.0
  %768 = vmatpush1.msra.mxu0 0.0
  %769 = vmatprep.subr.mxu0 0.0
  %770 = vmatpush1.msra.mxu0 0.0
  %771 = vmatprep.mubr.f32.mxu0 0.0
  %772 = vmatmul.mubr.f32.gmra.mrb[0].mxu0 %v705
  %v773 = vpop.f32.mrb[0].mxu0
  %v774 = vadd.f32 0.0, %v773
  %v775 = vpop.f32.mrb[0].mxu0
  %776 = vdwg.mxu0
  %778 = vrot.lane.b32.xlu0 %v679, 48
  %v779 = vpop.permute.xlu0 %778
  %v780 = vsel %vm222, %v779, 0
  %782 = vmatprep.subr.mxu0 0.0
  %783 = vmatpush1.msra.mxu0 %v197
  %784 = vmatprep.subr.mxu0 0.0
  %785 = vmatpush1.msra.mxu0 %v198
  %786 = vmatprep.subr.mxu0 0.0
  %787 = vmatpush1.msra.mxu0 0.0
  %788 = vmatprep.subr.mxu0 0.0
  %789 = vmatpush1.msra.mxu0 0.0
  %790 = vmatprep.subr.mxu0 0.0
  %791 = vmatpush1.msra.mxu0 0.0
  %792 = vmatprep.subr.mxu0 0.0
  %793 = vmatpush1.msra.mxu0 0.0
  %794 = vmatprep.subr.mxu0 0.0
  %795 = vmatpush1.msra.mxu0 0.0
  %796 = vmatprep.subr.mxu0 0.0
  %797 = vmatpush1.msra.mxu0 0.0
  %798 = vmatprep.subr.mxu0 0.0
  %799 = vmatpush1.msra.mxu0 0.0
  %800 = vmatprep.subr.mxu0 0.0
  %801 = vmatpush1.msra.mxu0 0.0
  %802 = vmatprep.subr.mxu0 0.0
  %803 = vmatpush1.msra.mxu0 0.0
  %804 = vmatprep.subr.mxu0 0.0
  %805 = vmatpush1.msra.mxu0 0.0
  %806 = vmatprep.subr.mxu0 0.0
  %807 = vmatpush1.msra.mxu0 0.0
  %808 = vmatprep.subr.mxu0 0.0
  %809 = vmatpush1.msra.mxu0 0.0
  %810 = vmatprep.subr.mxu0 0.0
  %811 = vmatpush1.msra.mxu0 0.0
  %812 = vmatprep.subr.mxu0 0.0
  %813 = vmatpush1.msra.mxu0 0.0
  %814 = vmatprep.subr.mxu0 0.0
  %815 = vmatpush1.msra.mxu0 0.0
  %816 = vmatprep.subr.mxu0 0.0
  %817 = vmatpush1.msra.mxu0 0.0
  %818 = vmatprep.subr.mxu0 0.0
  %819 = vmatpush1.msra.mxu0 0.0
  %820 = vmatprep.subr.mxu0 0.0
  %821 = vmatpush1.msra.mxu0 0.0
  %822 = vmatprep.subr.mxu0 0.0
  %823 = vmatpush1.msra.mxu0 0.0
  %824 = vmatprep.subr.mxu0 0.0
  %825 = vmatpush1.msra.mxu0 0.0
  %826 = vmatprep.subr.mxu0 0.0
  %827 = vmatpush1.msra.mxu0 0.0
  %828 = vmatprep.subr.mxu0 0.0
  %829 = vmatpush1.msra.mxu0 0.0
  %830 = vmatprep.subr.mxu0 0.0
  %831 = vmatpush1.msra.mxu0 0.0
  %832 = vmatprep.subr.mxu0 0.0
  %833 = vmatpush1.msra.mxu0 0.0
  %834 = vmatprep.subr.mxu0 0.0
  %835 = vmatpush1.msra.mxu0 0.0
  %836 = vmatprep.subr.mxu0 0.0
  %837 = vmatpush1.msra.mxu0 0.0
  %838 = vmatprep.subr.mxu0 0.0
  %839 = vmatpush1.msra.mxu0 0.0
  %840 = vmatprep.subr.mxu0 0.0
  %841 = vmatpush1.msra.mxu0 0.0
  %842 = vmatprep.subr.mxu0 0.0
  %843 = vmatpush1.msra.mxu0 0.0
  %844 = vmatprep.subr.mxu0 0.0
  %845 = vmatpush1.msra.mxu0 0.0
  %846 = vmatprep.mubr.f32.mxu0 0.0
  %847 = vmatmul.mubr.f32.gmra.mrb[0].mxu0 %v780
  %v848 = vpop.f32.mrb[0].mxu0
  %v849 = vadd.f32 0.0, %v848
  %v850 = vpop.f32.mrb[0].mxu0
  %851 = vdwg.mxu0
  %v852 = vadd.f32 %v166, %v774
  %v853 = vsub.f32 0.0, %v852
  %v854 = vmul.f32 %v853, 1.442695
  %v855 = vpow.pop %v854
  %v856 = vadd.f32 %v855, 1.0
  %v857 = vrcp.pop %v856
  %v858 = vmul.f32 1.0, %v857
  %v859 = vadd.f32 %v774, %v374
  %861 = vrot.lane.b32.xlu0 %v859, 96
  %v862 = vpop.permute.xlu0 %861
  %v864 = vmul.f32 %v858, %v862
  %866 = vrot.lane.b32.xlu0 %v864, 32
  %v867 = vpop.permute.xlu0 %866
  %v869 = vadd.f32 %v166, %v867
  %v870 = vtanh.pop %v869
  %872 = vrot.lane.b32.xlu0 %v849, 48
  %v873 = vpop.permute.xlu0 %872
  %v875 = vadd.f32 %v181, %v873
  %v876 = vsub.f32 0.0, %v875
  %v877 = vmul.f32 %v876, 1.442695
  %v878 = vpow.pop %v877
  %v879 = vadd.f32 %v878, 1.0
  %v880 = vrcp.pop %v879
  %v881 = vmul.f32 1.0, %v880
  %v882 = vadd.f32 %v849, %v400
  %884 = vrot.lane.b32.xlu0 %v882, 16
  %v885 = vpop.permute.xlu0 %884
  %v887 = vmul.f32 %v881, %v885
  %889 = vrot.lane.b32.xlu0 %v887, 32
  %v890 = vpop.permute.xlu0 %889
  %v892 = vadd.f32 %v181, %v890
  %v893 = vtanh.pop %v892
  %v894 = vsub.f32 %v676, %v870
  %896 = vrot.lane.b32.xlu0 %v894, 112
  %v897 = vpop.permute.xlu0 %896
  %v899 = vmul.f32 %v858, %v897
  %901 = vrot.lane.b32.xlu0 %v899, 16
  %v902 = vpop.permute.xlu0 %901
  %v904 = vadd.f32 %v870, %v902
  %v905 = vsub.f32 %v679, %v893
  %907 = vrot.lane.b32.xlu0 %v905, 112
  %v908 = vpop.permute.xlu0 %907
  %v910 = vmul.f32 %v881, %v908
  %912 = vrot.lane.b32.xlu0 %v910, 16
  %v913 = vpop.permute.xlu0 %912
  %v915 = vadd.f32 %v893, %v913
  %v916 = vsub.f32 %v904, %v676
  %v917 = vmul.f32 %v695, %v916
  %v918 = vadd.f32 %v676, %v917
  %v919 = vsub.f32 %v915, %v679
  %v920 = vmul.f32 %v700, %v919
  %v921 = vadd.f32 %v679, %v920
  %v922 = vmul.f32 %v695, %v904
  %v923 = vmul.f32 %v700, %v915
  %925 = vrot.lane.b32.xlu0 %v922, 96
  %v926 = vpop.permute.xlu0 %925
  %928 = vst.msk [vmem:[#allocation2 + $0x10] sm:$0xff] %vm222, %v926
  %930 = vrot.lane.b32.xlu0 %v923, 48
  %v931 = vpop.permute.xlu0 %930
  %933 = vst.msk [vmem:[#allocation3 + $0x28] sm:$0xff] %vm222, %v931
  %935 = vset.pattern.permute.xlu0 0
  %936 = vperm.xlu0 %935, %v48
  %v937 = vpop.permute.xlu0 %936
  %940 = vset.pattern.permute.xlu0 0
  %941 = vperm.xlu0 %940, %v49
  %v942 = vpop.permute.xlu0 %941
  %945 = vrot.lane.b32.xlu0 %v918, 96
  %v946 = vpop.permute.xlu0 %945
  %v947 = vsel %vm222, %v946, 0
  %949 = vmatprep.subr.mxu0 0.0
  %950 = vmatpush1.msra.mxu0 %v194
  %951 = vmatprep.subr.mxu0 0.0
  %952 = vmatpush1.msra.mxu0 %v195
  %953 = vmatprep.subr.mxu0 0.0
  %954 = vmatpush1.msra.mxu0 0.0
  %955 = vmatprep.subr.mxu0 0.0
  %956 = vmatpush1.msra.mxu0 0.0
  %957 = vmatprep.subr.mxu0 0.0
  %958 = vmatpush1.msra.mxu0 0.0
  %959 = vmatprep.subr.mxu0 0.0
  %960 = vmatpush1.msra.mxu0 0.0
  %961 = vmatprep.subr.mxu0 0.0
  %962 = vmatpush1.msra.mxu0 0.0
  %963 = vmatprep.subr.mxu0 0.0
  %964 = vmatpush1.msra.mxu0 0.0
  %965 = vmatprep.subr.mxu0 0.0
  %966 = vmatpush1.msra.mxu0 0.0
  %967 = vmatprep.subr.mxu0 0.0
  %968 = vmatpush1.msra.mxu0 0.0
  %969 = vmatprep.subr.mxu0 0.0
  %970 = vmatpush1.msra.mxu0 0.0
  %971 = vmatprep.subr.mxu0 0.0
  %972 = vmatpush1.msra.mxu0 0.0
  %973 = vmatprep.subr.mxu0 0.0
  %974 = vmatpush1.msra.mxu0 0.0
  %975 = vmatprep.subr.mxu0 0.0
  %976 = vmatpush1.msra.mxu0 0.0
  %977 = vmatprep.subr.mxu0 0.0
  %978 = vmatpush1.msra.mxu0 0.0
  %979 = vmatprep.subr.mxu0 0.0
  %980 = vmatpush1.msra.mxu0 0.0
  %981 = vmatprep.subr.mxu0 0.0
  %982 = vmatpush1.msra.mxu0 0.0
  %983 = vmatprep.subr.mxu0 0.0
  %984 = vmatpush1.msra.mxu0 0.0
  %985 = vmatprep.subr.mxu0 0.0
  %986 = vmatpush1.msra.mxu0 0.0
  %987 = vmatprep.subr.mxu0 0.0
  %988 = vmatpush1.msra.mxu0 0.0
  %989 = vmatprep.subr.mxu0 0.0
  %990 = vmatpush1.msra.mxu0 0.0
  %991 = vmatprep.subr.mxu0 0.0
  %992 = vmatpush1.msra.mxu0 0.0
  %993 = vmatprep.subr.mxu0 0.0
  %994 = vmatpush1.msra.mxu0 0.0
  %995 = vmatprep.subr.mxu0 0.0
  %996 = vmatpush1.msra.mxu0 0.0
  %997 = vmatprep.subr.mxu0 0.0
  %998 = vmatpush1.msra.mxu0 0.0
  %999 = vmatprep.subr.mxu0 0.0
  %1000 = vmatpush1.msra.mxu0 0.0
  %1001 = vmatprep.subr.mxu0 0.0
  %1002 = vmatpush1.msra.mxu0 0.0
  %1003 = vmatprep.subr.mxu0 0.0
  %1004 = vmatpush1.msra.mxu0 0.0
  %1005 = vmatprep.subr.mxu0 0.0
  %1006 = vmatpush1.msra.mxu0 0.0
  %1007 = vmatprep.subr.mxu0 0.0
  %1008 = vmatpush1.msra.mxu0 0.0
  %1009 = vmatprep.subr.mxu0 0.0
  %1010 = vmatpush1.msra.mxu0 0.0
  %1011 = vmatprep.subr.mxu0 0.0
  %1012 = vmatpush1.msra.mxu0 0.0
  %1013 = vmatprep.mubr.f32.mxu0 0.0
  %1014 = vmatmul.mubr.f32.gmra.mrb[0].mxu0 %v947
  %v1015 = vpop.f32.mrb[0].mxu0
  %v1016 = vadd.f32 0.0, %v1015
  %v1017 = vpop.f32.mrb[0].mxu0
  %1018 = vdwg.mxu0
  %1020 = vrot.lane.b32.xlu0 %v921, 48
  %v1021 = vpop.permute.xlu0 %1020
  %v1022 = vsel %vm222, %v1021, 0
  %1024 = vmatprep.subr.mxu0 0.0
  %1025 = vmatpush1.msra.mxu0 %v197
  %1026 = vmatprep.subr.mxu0 0.0
  %1027 = vmatpush1.msra.mxu0 %v198
  %1028 = vmatprep.subr.mxu0 0.0
  %1029 = vmatpush1.msra.mxu0 0.0
  %1030 = vmatprep.subr.mxu0 0.0
  %1031 = vmatpush1.msra.mxu0 0.0
  %1032 = vmatprep.subr.mxu0 0.0
  %1033 = vmatpush1.msra.mxu0 0.0
  %1034 = vmatprep.subr.mxu0 0.0
  %1035 = vmatpush1.msra.mxu0 0.0
  %1036 = vmatprep.subr.mxu0 0.0
  %1037 = vmatpush1.msra.mxu0 0.0
  %1038 = vmatprep.subr.mxu0 0.0
  %1039 = vmatpush1.msra.mxu0 0.0
  %1040 = vmatprep.subr.mxu0 0.0
  %1041 = vmatpush1.msra.mxu0 0.0
  %1042 = vmatprep.subr.mxu0 0.0
  %1043 = vmatpush1.msra.mxu0 0.0
  %1044 = vmatprep.subr.mxu0 0.0
  %1045 = vmatpush1.msra.mxu0 0.0
  %1046 = vmatprep.subr.mxu0 0.0
  %1047 = vmatpush1.msra.mxu0 0.0
  %1048 = vmatprep.subr.mxu0 0.0
  %1049 = vmatpush1.msra.mxu0 0.0
  %1050 = vmatprep.subr.mxu0 0.0
  %1051 = vmatpush1.msra.mxu0 0.0
  %1052 = vmatprep.subr.mxu0 0.0
  %1053 = vmatpush1.msra.mxu0 0.0
  %1054 = vmatprep.subr.mxu0 0.0
  %1055 = vmatpush1.msra.mxu0 0.0
  %1056 = vmatprep.subr.mxu0 0.0
  %1057 = vmatpush1.msra.mxu0 0.0
  %1058 = vmatprep.subr.mxu0 0.0
  %1059 = vmatpush1.msra.mxu0 0.0
  %1060 = vmatprep.subr.mxu0 0.0
  %1061 = vmatpush1.msra.mxu0 0.0
  %1062 = vmatprep.subr.mxu0 0.0
  %1063 = vmatpush1.msra.mxu0 0.0
  %1064 = vmatprep.subr.mxu0 0.0
  %1065 = vmatpush1.msra.mxu0 0.0
  %1066 = vmatprep.subr.mxu0 0.0
  %1067 = vmatpush1.msra.mxu0 0.0
  %1068 = vmatprep.subr.mxu0 0.0
  %1069 = vmatpush1.msra.mxu0 0.0
  %1070 = vmatprep.subr.mxu0 0.0
  %1071 = vmatpush1.msra.mxu0 0.0
  %1072 = vmatprep.subr.mxu0 0.0
  %1073 = vmatpush1.msra.mxu0 0.0
  %1074 = vmatprep.subr.mxu0 0.0
  %1075 = vmatpush1.msra.mxu0 0.0
  %1076 = vmatprep.subr.mxu0 0.0
  %1077 = vmatpush1.msra.mxu0 0.0
  %1078 = vmatprep.subr.mxu0 0.0
  %1079 = vmatpush1.msra.mxu0 0.0
  %1080 = vmatprep.subr.mxu0 0.0
  %1081 = vmatpush1.msra.mxu0 0.0
  %1082 = vmatprep.subr.mxu0 0.0
  %1083 = vmatpush1.msra.mxu0 0.0
  %1084 = vmatprep.subr.mxu0 0.0
  %1085 = vmatpush1.msra.mxu0 0.0
  %1086 = vmatprep.subr.mxu0 0.0
  %1087 = vmatpush1.msra.mxu0 0.0
  %1088 = vmatprep.mubr.f32.mxu0 0.0
  %1089 = vmatmul.mubr.f32.gmra.mrb[0].mxu0 %v1022
  %v1090 = vpop.f32.mrb[0].mxu0
  %v1091 = vadd.f32 0.0, %v1090
  %v1092 = vpop.f32.mrb[0].mxu0
  %1093 = vdwg.mxu0
  %v1094 = vadd.f32 %v171, %v1016
  %v1095 = vsub.f32 0.0, %v1094
  %v1096 = vmul.f32 %v1095, 1.442695
  %v1097 = vpow.pop %v1096
  %v1098 = vadd.f32 %v1097, 1.0
  %v1099 = vrcp.pop %v1098
  %v1100 = vmul.f32 1.0, %v1099
  %v1101 = vadd.f32 %v1016, %v374
  %1103 = vrot.lane.b32.xlu0 %v1101, 96
  %v1104 = vpop.permute.xlu0 %1103
  %v1106 = vmul.f32 %v1100, %v1104
  %1108 = vrot.lane.b32.xlu0 %v1106, 32
  %v1109 = vpop.permute.xlu0 %1108
  %v1111 = vadd.f32 %v171, %v1109
  %v1112 = vtanh.pop %v1111
  %1114 = vrot.lane.b32.xlu0 %v1091, 48
  %v1115 = vpop.permute.xlu0 %1114
  %v1117 = vadd.f32 %v176, %v1115
  %v1118 = vsub.f32 0.0, %v1117
  %v1119 = vmul.f32 %v1118, 1.442695
  %v1120 = vpow.pop %v1119
  %v1121 = vadd.f32 %v1120, 1.0
  %v1122 = vrcp.pop %v1121
  %v1123 = vmul.f32 1.0, %v1122
  %v1124 = vadd.f32 %v1091, %v400
  %1126 = vrot.lane.b32.xlu0 %v1124, 16
  %v1127 = vpop.permute.xlu0 %1126
  %v1129 = vmul.f32 %v1123, %v1127
  %1131 = vrot.lane.b32.xlu0 %v1129, 32
  %v1132 = vpop.permute.xlu0 %1131
  %v1134 = vadd.f32 %v176, %v1132
  %v1135 = vtanh.pop %v1134
  %v1136 = vsub.f32 %v918, %v1112
  %1138 = vrot.lane.b32.xlu0 %v1136, 112
  %v1139 = vpop.permute.xlu0 %1138
  %v1141 = vmul.f32 %v1100, %v1139
  %1143 = vrot.lane.b32.xlu0 %v1141, 16
  %v1144 = vpop.permute.xlu0 %1143
  %v1146 = vadd.f32 %v1112, %v1144
  %v1147 = vsub.f32 %v921, %v1135
  %1149 = vrot.lane.b32.xlu0 %v1147, 112
  %v1150 = vpop.permute.xlu0 %1149
  %v1152 = vmul.f32 %v1123, %v1150
  %1154 = vrot.lane.b32.xlu0 %v1152, 16
  %v1155 = vpop.permute.xlu0 %1154
  %v1157 = vadd.f32 %v1135, %v1155
  %v1158 = vsub.f32 %v1146, %v918
  %v1159 = vmul.f32 %v937, %v1158
  %v1160 = vadd.f32 %v918, %v1159
  %v1161 = vsub.f32 %v1157, %v921
  %v1162 = vmul.f32 %v942, %v1161
  %v1163 = vadd.f32 %v921, %v1162
  %v1164 = vmul.f32 %v937, %v1146
  %v1165 = vmul.f32 %v942, %v1157
  %1167 = vrot.lane.b32.xlu0 %v1164, 96
  %v1168 = vpop.permute.xlu0 %1167
  %1170 = vst.msk [vmem:[#allocation2 + $0x18] sm:$0xff] %vm222, %v1168
  %1172 = vrot.lane.b32.xlu0 %v1165, 48
  %v1173 = vpop.permute.xlu0 %1172
  %1175 = vst.msk [vmem:[#allocation3 + $0x20] sm:$0xff] %vm222, %v1173
  %1177 = vrot.lane.b32.xlu0 %v1160, 96
  %v1178 = vpop.permute.xlu0 %1177
  %v1179 = vsel %vm222, %v1178, 0
  %1181 = vmatprep.subr.mxu0 0.0
  %1182 = vmatpush1.msra.mxu0 %v194
  %1183 = vmatprep.subr.mxu0 0.0
  %1184 = vmatpush1.msra.mxu0 %v195
  %1185 = vmatprep.subr.mxu0 0.0
  %1186 = vmatpush1.msra.mxu0 0.0
  %1187 = vmatprep.subr.mxu0 0.0
  %1188 = vmatpush1.msra.mxu0 0.0
  %1189 = vmatprep.subr.mxu0 0.0
  %1190 = vmatpush1.msra.mxu0 0.0
  %1191 = vmatprep.subr.mxu0 0.0
  %1192 = vmatpush1.msra.mxu0 0.0
  %1193 = vmatprep.subr.mxu0 0.0
  %1194 = vmatpush1.msra.mxu0 0.0
  %1195 = vmatprep.subr.mxu0 0.0
  %1196 = vmatpush1.msra.mxu0 0.0
  %1197 = vmatprep.subr.mxu0 0.0
  %1198 = vmatpush1.msra.mxu0 0.0
  %1199 = vmatprep.subr.mxu0 0.0
  %1200 = vmatpush1.msra.mxu0 0.0
  %1201 = vmatprep.subr.mxu0 0.0
  %1202 = vmatpush1.msra.mxu0 0.0
  %1203 = vmatprep.subr.mxu0 0.0
  %1204 = vmatpush1.msra.mxu0 0.0
  %1205 = vmatprep.subr.mxu0 0.0
  %1206 = vmatpush1.msra.mxu0 0.0
  %1207 = vmatprep.subr.mxu0 0.0
  %1208 = vmatpush1.msra.mxu0 0.0
  %1209 = vmatprep.subr.mxu0 0.0
  %1210 = vmatpush1.msra.mxu0 0.0
  %1211 = vmatprep.subr.mxu0 0.0
  %1212 = vmatpush1.msra.mxu0 0.0
  %1213 = vmatprep.subr.mxu0 0.0
  %1214 = vmatpush1.msra.mxu0 0.0
  %1215 = vmatprep.subr.mxu0 0.0
  %1216 = vmatpush1.msra.mxu0 0.0
  %1217 = vmatprep.subr.mxu0 0.0
  %1218 = vmatpush1.msra.mxu0 0.0
  %1219 = vmatprep.subr.mxu0 0.0
  %1220 = vmatpush1.msra.mxu0 0.0
  %1221 = vmatprep.subr.mxu0 0.0
  %1222 = vmatpush1.msra.mxu0 0.0
  %1223 = vmatprep.subr.mxu0 0.0
  %1224 = vmatpush1.msra.mxu0 0.0
  %1225 = vmatprep.subr.mxu0 0.0
  %1226 = vmatpush1.msra.mxu0 0.0
  %1227 = vmatprep.subr.mxu0 0.0
  %1228 = vmatpush1.msra.mxu0 0.0
  %1229 = vmatprep.subr.mxu0 0.0
  %1230 = vmatpush1.msra.mxu0 0.0
  %1231 = vmatprep.subr.mxu0 0.0
  %1232 = vmatpush1.msra.mxu0 0.0
  %1233 = vmatprep.subr.mxu0 0.0
  %1234 = vmatpush1.msra.mxu0 0.0
  %1235 = vmatprep.subr.mxu0 0.0
  %1236 = vmatpush1.msra.mxu0 0.0
  %1237 = vmatprep.subr.mxu0 0.0
  %1238 = vmatpush1.msra.mxu0 0.0
  %1239 = vmatprep.subr.mxu0 0.0
  %1240 = vmatpush1.msra.mxu0 0.0
  %1241 = vmatprep.subr.mxu0 0.0
  %1242 = vmatpush1.msra.mxu0 0.0
  %1243 = vmatprep.subr.mxu0 0.0
  %1244 = vmatpush1.msra.mxu0 0.0
  %1245 = vmatprep.mubr.f32.mxu0 0.0
  %1246 = vmatmul.mubr.f32.gmra.mrb[0].mxu0 %v1179
  %v1247 = vpop.f32.mrb[0].mxu0
  %v1248 = vadd.f32 0.0, %v1247
  %v1249 = vpop.f32.mrb[0].mxu0
  %1250 = vdwg.mxu0
  %1252 = vrot.lane.b32.xlu0 %v1163, 48
  %v1253 = vpop.permute.xlu0 %1252
  %v1254 = vsel %vm222, %v1253, 0
  %1256 = vmatprep.subr.mxu0 0.0
  %1257 = vmatpush1.msra.mxu0 %v197
  %1258 = vmatprep.subr.mxu0 0.0
  %1259 = vmatpush1.msra.mxu0 %v198
  %1260 = vmatprep.subr.mxu0 0.0
  %1261 = vmatpush1.msra.mxu0 0.0
  %1262 = vmatprep.subr.mxu0 0.0
  %1263 = vmatpush1.msra.mxu0 0.0
  %1264 = vmatprep.subr.mxu0 0.0
  %1265 = vmatpush1.msra.mxu0 0.0
  %1266 = vmatprep.subr.mxu0 0.0
  %1267 = vmatpush1.msra.mxu0 0.0
  %1268 = vmatprep.subr.mxu0 0.0
  %1269 = vmatpush1.msra.mxu0 0.0
  %1270 = vmatprep.subr.mxu0 0.0
  %1271 = vmatpush1.msra.mxu0 0.0
  %1272 = vmatprep.subr.mxu0 0.0
  %1273 = vmatpush1.msra.mxu0 0.0
  %1274 = vmatprep.subr.mxu0 0.0
  %1275 = vmatpush1.msra.mxu0 0.0
  %1276 = vmatprep.subr.mxu0 0.0
  %1277 = vmatpush1.msra.mxu0 0.0
  %1278 = vmatprep.subr.mxu0 0.0
  %1279 = vmatpush1.msra.mxu0 0.0
  %1280 = vmatprep.subr.mxu0 0.0
  %1281 = vmatpush1.msra.mxu0 0.0
  %1282 = vmatprep.subr.mxu0 0.0
  %1283 = vmatpush1.msra.mxu0 0.0
  %1284 = vmatprep.subr.mxu0 0.0
  %1285 = vmatpush1.msra.mxu0 0.0
  %1286 = vmatprep.subr.mxu0 0.0
  %1287 = vmatpush1.msra.mxu0 0.0
  %1288 = vmatprep.subr.mxu0 0.0
  %1289 = vmatpush1.msra.mxu0 0.0
  %1290 = vmatprep.subr.mxu0 0.0
  %1291 = vmatpush1.msra.mxu0 0.0
  %1292 = vmatprep.subr.mxu0 0.0
  %1293 = vmatpush1.msra.mxu0 0.0
  %1294 = vmatprep.subr.mxu0 0.0
  %1295 = vmatpush1.msra.mxu0 0.0
  %1296 = vmatprep.subr.mxu0 0.0
  %1297 = vmatpush1.msra.mxu0 0.0
  %1298 = vmatprep.subr.mxu0 0.0
  %1299 = vmatpush1.msra.mxu0 0.0
  %1300 = vmatprep.subr.mxu0 0.0
  %1301 = vmatpush1.msra.mxu0 0.0
  %1302 = vmatprep.subr.mxu0 0.0
  %1303 = vmatpush1.msra.mxu0 0.0
  %1304 = vmatprep.subr.mxu0 0.0
  %1305 = vmatpush1.msra.mxu0 0.0
  %1306 = vmatprep.subr.mxu0 0.0
  %1307 = vmatpush1.msra.mxu0 0.0
  %1308 = vmatprep.subr.mxu0 0.0
  %1309 = vmatpush1.msra.mxu0 0.0
  %1310 = vmatprep.subr.mxu0 0.0
  %1311 = vmatpush1.msra.mxu0 0.0
  %1312 = vmatprep.subr.mxu0 0.0
  %1313 = vmatpush1.msra.mxu0 0.0
  %1314 = vmatprep.subr.mxu0 0.0
  %1315 = vmatpush1.msra.mxu0 0.0
  %1316 = vmatprep.subr.mxu0 0.0
  %1317 = vmatpush1.msra.mxu0 0.0
  %1318 = vmatprep.subr.mxu0 0.0
  %1319 = vmatpush1.msra.mxu0 0.0
  %1320 = vmatprep.mubr.f32.mxu0 0.0
  %1321 = vmatmul.mubr.f32.gmra.mrb[0].mxu0 %v1254
  %v1322 = vpop.f32.mrb[0].mxu0
  %v1323 = vadd.f32 0.0, %v1322
  %v1324 = vpop.f32.mrb[0].mxu0
  %1325 = vdwg.mxu0
  %v1326 = vadd.f32 %v176, %v1248
  %v1327 = vsub.f32 0.0, %v1326
  %v1328 = vmul.f32 %v1327, 1.442695
  %v1329 = vpow.pop %v1328
  %v1330 = vadd.f32 %v1329, 1.0
  %v1331 = vrcp.pop %v1330
  %v1332 = vmul.f32 1.0, %v1331
  %v1333 = vadd.f32 %v1248, %v374
  %1335 = vrot.lane.b32.xlu0 %v1333, 96
  %v1336 = vpop.permute.xlu0 %1335
  %v1338 = vmul.f32 %v1332, %v1336
  %1340 = vrot.lane.b32.xlu0 %v1338, 32
  %v1341 = vpop.permute.xlu0 %1340
  %v1343 = vadd.f32 %v176, %v1341
  %v1344 = vtanh.pop %v1343
  %1346 = vrot.lane.b32.xlu0 %v1323, 48
  %v1347 = vpop.permute.xlu0 %1346
  %v1349 = vadd.f32 %v171, %v1347
  %v1350 = vsub.f32 0.0, %v1349
  %v1351 = vmul.f32 %v1350, 1.442695
  %v1352 = vpow.pop %v1351
  %v1353 = vadd.f32 %v1352, 1.0
  %v1354 = vrcp.pop %v1353
  %v1355 = vmul.f32 1.0, %v1354
  %v1356 = vadd.f32 %v1323, %v400
  %1358 = vrot.lane.b32.xlu0 %v1356, 16
  %v1359 = vpop.permute.xlu0 %1358
  %v1361 = vmul.f32 %v1355, %v1359
  %1363 = vrot.lane.b32.xlu0 %v1361, 32
  %v1364 = vpop.permute.xlu0 %1363
  %v1366 = vadd.f32 %v171, %v1364
  %v1367 = vtanh.pop %v1366
  %v1368 = vsub.f32 %v1160, %v1344
  %1370 = vrot.lane.b32.xlu0 %v1368, 112
  %v1371 = vpop.permute.xlu0 %1370
  %v1373 = vmul.f32 %v1332, %v1371
  %1375 = vrot.lane.b32.xlu0 %v1373, 16
  %v1376 = vpop.permute.xlu0 %1375
  %v1378 = vadd.f32 %v1344, %v1376
  %v1379 = vsub.f32 %v1163, %v1367
  %1381 = vrot.lane.b32.xlu0 %v1379, 112
  %v1382 = vpop.permute.xlu0 %1381
  %v1384 = vmul.f32 %v1355, %v1382
  %1386 = vrot.lane.b32.xlu0 %v1384, 16
  %v1387 = vpop.permute.xlu0 %1386
  %v1389 = vadd.f32 %v1367, %v1387
  %v1390 = vsub.f32 %v1378, %v1160
  %v1391 = vmul.f32 %v942, %v1390
  %v1392 = vadd.f32 %v1160, %v1391
  %v1393 = vsub.f32 %v1389, %v1163
  %v1394 = vmul.f32 %v937, %v1393
  %v1395 = vadd.f32 %v1163, %v1394
  %v1396 = vmul.f32 %v942, %v1378
  %v1397 = vmul.f32 %v937, %v1389
  %1399 = vrot.lane.b32.xlu0 %v1396, 96
  %v1400 = vpop.permute.xlu0 %1399
  %1402 = vst.msk [vmem:[#allocation2 + $0x20] sm:$0xff] %vm222, %v1400
  %1404 = vrot.lane.b32.xlu0 %v1397, 48
  %v1405 = vpop.permute.xlu0 %1404
  %1407 = vst.msk [vmem:[#allocation3 + $0x18] sm:$0xff] %vm222, %v1405
  %1409 = vrot.lane.b32.xlu0 %v1392, 96
  %v1410 = vpop.permute.xlu0 %1409
  %v1411 = vsel %vm222, %v1410, 0
  %1413 = vmatprep.subr.mxu0 0.0
  %1414 = vmatpush1.msra.mxu0 %v194
  %1415 = vmatprep.subr.mxu0 0.0
  %1416 = vmatpush1.msra.mxu0 %v195
  %1417 = vmatprep.subr.mxu0 0.0
  %1418 = vmatpush1.msra.mxu0 0.0
  %1419 = vmatprep.subr.mxu0 0.0
  %1420 = vmatpush1.msra.mxu0 0.0
  %1421 = vmatprep.subr.mxu0 0.0
  %1422 = vmatpush1.msra.mxu0 0.0
  %1423 = vmatprep.subr.mxu0 0.0
  %1424 = vmatpush1.msra.mxu0 0.0
  %1425 = vmatprep.subr.mxu0 0.0
  %1426 = vmatpush1.msra.mxu0 0.0
  %1427 = vmatprep.subr.mxu0 0.0
  %1428 = vmatpush1.msra.mxu0 0.0
  %1429 = vmatprep.subr.mxu0 0.0
  %1430 = vmatpush1.msra.mxu0 0.0
  %1431 = vmatprep.subr.mxu0 0.0
  %1432 = vmatpush1.msra.mxu0 0.0
  %1433 = vmatprep.subr.mxu0 0.0
  %1434 = vmatpush1.msra.mxu0 0.0
  %1435 = vmatprep.subr.mxu0 0.0
  %1436 = vmatpush1.msra.mxu0 0.0
  %1437 = vmatprep.subr.mxu0 0.0
  %1438 = vmatpush1.msra.mxu0 0.0
  %1439 = vmatprep.subr.mxu0 0.0
  %1440 = vmatpush1.msra.mxu0 0.0
  %1441 = vmatprep.subr.mxu0 0.0
  %1442 = vmatpush1.msra.mxu0 0.0
  %1443 = vmatprep.subr.mxu0 0.0
  %1444 = vmatpush1.msra.mxu0 0.0
  %1445 = vmatprep.subr.mxu0 0.0
  %1446 = vmatpush1.msra.mxu0 0.0
  %1447 = vmatprep.subr.mxu0 0.0
  %1448 = vmatpush1.msra.mxu0 0.0
  %1449 = vmatprep.subr.mxu0 0.0
  %1450 = vmatpush1.msra.mxu0 0.0
  %1451 = vmatprep.subr.mxu0 0.0
  %1452 = vmatpush1.msra.mxu0 0.0
  %1453 = vmatprep.subr.mxu0 0.0
  %1454 = vmatpush1.msra.mxu0 0.0
  %1455 = vmatprep.subr.mxu0 0.0
  %1456 = vmatpush1.msra.mxu0 0.0
  %1457 = vmatprep.subr.mxu0 0.0
  %1458 = vmatpush1.msra.mxu0 0.0
  %1459 = vmatprep.subr.mxu0 0.0
  %1460 = vmatpush1.msra.mxu0 0.0
  %1461 = vmatprep.subr.mxu0 0.0
  %1462 = vmatpush1.msra.mxu0 0.0
  %1463 = vmatprep.subr.mxu0 0.0
  %1464 = vmatpush1.msra.mxu0 0.0
  %1465 = vmatprep.subr.mxu0 0.0
  %1466 = vmatpush1.msra.mxu0 0.0
  %1467 = vmatprep.subr.mxu0 0.0
  %1468 = vmatpush1.msra.mxu0 0.0
  %1469 = vmatprep.subr.mxu0 0.0
  %1470 = vmatpush1.msra.mxu0 0.0
  %1471 = vmatprep.subr.mxu0 0.0
  %1472 = vmatpush1.msra.mxu0 0.0
  %1473 = vmatprep.subr.mxu0 0.0
  %1474 = vmatpush1.msra.mxu0 0.0
  %1475 = vmatprep.subr.mxu0 0.0
  %1476 = vmatpush1.msra.mxu0 0.0
  %1477 = vmatprep.mubr.f32.mxu0 0.0
  %1478 = vmatmul.mubr.f32.gmra.mrb[0].mxu0 %v1411
  %v1479 = vpop.f32.mrb[0].mxu0
  %v1480 = vadd.f32 0.0, %v1479
  %v1481 = vpop.f32.mrb[0].mxu0
  %1482 = vdwg.mxu0
  %1484 = vrot.lane.b32.xlu0 %v1395, 48
  %v1485 = vpop.permute.xlu0 %1484
  %v1486 = vsel %vm222, %v1485, 0
  %1488 = vmatprep.subr.mxu0 0.0
  %1489 = vmatpush1.msra.mxu0 %v197
  %1490 = vmatprep.subr.mxu0 0.0
  %1491 = vmatpush1.msra.mxu0 %v198
  %1492 = vmatprep.subr.mxu0 0.0
  %1493 = vmatpush1.msra.mxu0 0.0
  %1494 = vmatprep.subr.mxu0 0.0
  %1495 = vmatpush1.msra.mxu0 0.0
  %1496 = vmatprep.subr.mxu0 0.0
  %1497 = vmatpush1.msra.mxu0 0.0
  %1498 = vmatprep.subr.mxu0 0.0
  %1499 = vmatpush1.msra.mxu0 0.0
  %1500 = vmatprep.subr.mxu0 0.0
  %1501 = vmatpush1.msra.mxu0 0.0
  %1502 = vmatprep.subr.mxu0 0.0
  %1503 = vmatpush1.msra.mxu0 0.0
  %1504 = vmatprep.subr.mxu0 0.0
  %1505 = vmatpush1.msra.mxu0 0.0
  %1506 = vmatprep.subr.mxu0 0.0
  %1507 = vmatpush1.msra.mxu0 0.0
  %1508 = vmatprep.subr.mxu0 0.0
  %1509 = vmatpush1.msra.mxu0 0.0
  %1510 = vmatprep.subr.mxu0 0.0
  %1511 = vmatpush1.msra.mxu0 0.0
  %1512 = vmatprep.subr.mxu0 0.0
  %1513 = vmatpush1.msra.mxu0 0.0
  %1514 = vmatprep.subr.mxu0 0.0
  %1515 = vmatpush1.msra.mxu0 0.0
  %1516 = vmatprep.subr.mxu0 0.0
  %1517 = vmatpush1.msra.mxu0 0.0
  %1518 = vmatprep.subr.mxu0 0.0
  %1519 = vmatpush1.msra.mxu0 0.0
  %1520 = vmatprep.subr.mxu0 0.0
  %1521 = vmatpush1.msra.mxu0 0.0
  %1522 = vmatprep.subr.mxu0 0.0
  %1523 = vmatpush1.msra.mxu0 0.0
  %1524 = vmatprep.subr.mxu0 0.0
  %1525 = vmatpush1.msra.mxu0 0.0
  %1526 = vmatprep.subr.mxu0 0.0
  %1527 = vmatpush1.msra.mxu0 0.0
  %1528 = vmatprep.subr.mxu0 0.0
  %1529 = vmatpush1.msra.mxu0 0.0
  %1530 = vmatprep.subr.mxu0 0.0
  %1531 = vmatpush1.msra.mxu0 0.0
  %1532 = vmatprep.subr.mxu0 0.0
  %1533 = vmatpush1.msra.mxu0 0.0
  %1534 = vmatprep.subr.mxu0 0.0
  %1535 = vmatpush1.msra.mxu0 0.0
  %1536 = vmatprep.subr.mxu0 0.0
  %1537 = vmatpush1.msra.mxu0 0.0
  %1538 = vmatprep.subr.mxu0 0.0
  %1539 = vmatpush1.msra.mxu0 0.0
  %1540 = vmatprep.subr.mxu0 0.0
  %1541 = vmatpush1.msra.mxu0 0.0
  %1542 = vmatprep.subr.mxu0 0.0
  %1543 = vmatpush1.msra.mxu0 0.0
  %1544 = vmatprep.subr.mxu0 0.0
  %1545 = vmatpush1.msra.mxu0 0.0
  %1546 = vmatprep.subr.mxu0 0.0
  %1547 = vmatpush1.msra.mxu0 0.0
  %1548 = vmatprep.subr.mxu0 0.0
  %1549 = vmatpush1.msra.mxu0 0.0
  %1550 = vmatprep.subr.mxu0 0.0
  %1551 = vmatpush1.msra.mxu0 0.0
  %1552 = vmatprep.mubr.f32.mxu0 0.0
  %1553 = vmatmul.mubr.f32.gmra.mrb[0].mxu0 %v1486
  %v1554 = vpop.f32.mrb[0].mxu0
  %v1555 = vadd.f32 0.0, %v1554
  %v1556 = vpop.f32.mrb[0].mxu0
  %1557 = vdwg.mxu0
  %v1558 = vadd.f32 %v181, %v1480
  %v1559 = vsub.f32 0.0, %v1558
  %v1560 = vmul.f32 %v1559, 1.442695
  %v1561 = vpow.pop %v1560
  %v1562 = vadd.f32 %v1561, 1.0
  %v1563 = vrcp.pop %v1562
  %v1564 = vmul.f32 1.0, %v1563
  %v1565 = vadd.f32 %v1480, %v374
  %1567 = vrot.lane.b32.xlu0 %v1565, 96
  %v1568 = vpop.permute.xlu0 %1567
  %v1570 = vmul.f32 %v1564, %v1568
  %1572 = vrot.lane.b32.xlu0 %v1570, 32
  %v1573 = vpop.permute.xlu0 %1572
  %v1575 = vadd.f32 %v181, %v1573
  %v1576 = vtanh.pop %v1575
  %1578 = vrot.lane.b32.xlu0 %v1555, 48
  %v1579 = vpop.permute.xlu0 %1578
  %v1581 = vadd.f32 %v166, %v1579
  %v1582 = vsub.f32 0.0, %v1581
  %v1583 = vmul.f32 %v1582, 1.442695
  %v1584 = vpow.pop %v1583
  %v1585 = vadd.f32 %v1584, 1.0
  %v1586 = vrcp.pop %v1585
  %v1587 = vmul.f32 1.0, %v1586
  %v1588 = vadd.f32 %v1555, %v400
  %1590 = vrot.lane.b32.xlu0 %v1588, 16
  %v1591 = vpop.permute.xlu0 %1590
  %v1593 = vmul.f32 %v1587, %v1591
  %1595 = vrot.lane.b32.xlu0 %v1593, 32
  %v1596 = vpop.permute.xlu0 %1595
  %v1598 = vadd.f32 %v166, %v1596
  %v1599 = vtanh.pop %v1598
  %v1600 = vsub.f32 %v1392, %v1576
  %1602 = vrot.lane.b32.xlu0 %v1600, 112
  %v1603 = vpop.permute.xlu0 %1602
  %v1605 = vmul.f32 %v1564, %v1603
  %1607 = vrot.lane.b32.xlu0 %v1605, 16
  %v1608 = vpop.permute.xlu0 %1607
  %v1610 = vadd.f32 %v1576, %v1608
  %v1611 = vsub.f32 %v1395, %v1599
  %1613 = vrot.lane.b32.xlu0 %v1611, 112
  %v1614 = vpop.permute.xlu0 %1613
  %v1616 = vmul.f32 %v1587, %v1614
  %1618 = vrot.lane.b32.xlu0 %v1616, 16
  %v1619 = vpop.permute.xlu0 %1618
  %v1621 = vadd.f32 %v1599, %v1619
  %v1622 = vsub.f32 %v1610, %v1392
  %v1623 = vmul.f32 %v700, %v1622
  %v1624 = vadd.f32 %v1392, %v1623
  %v1625 = vsub.f32 %v1621, %v1395
  %v1626 = vmul.f32 %v695, %v1625
  %v1627 = vadd.f32 %v1395, %v1626
  %v1628 = vmul.f32 %v700, %v1610
  %v1629 = vmul.f32 %v695, %v1621
  %1631 = vrot.lane.b32.xlu0 %v1628, 96
  %v1632 = vpop.permute.xlu0 %1631
  %1634 = vst.msk [vmem:[#allocation2 + $0x28] sm:$0xff] %vm222, %v1632
  %1636 = vrot.lane.b32.xlu0 %v1629, 48
  %v1637 = vpop.permute.xlu0 %1636
  %1639 = vst.msk [vmem:[#allocation3 + $0x10] sm:$0xff] %vm222, %v1637
  %1641 = vrot.lane.b32.xlu0 %v1624, 96
  %v1642 = vpop.permute.xlu0 %1641
  %v1643 = vsel %vm222, %v1642, 0
  %1645 = vmatprep.subr.mxu0 0.0
  %1646 = vmatpush1.msra.mxu0 %v194
  %1647 = vmatprep.subr.mxu0 0.0
  %1648 = vmatpush1.msra.mxu0 %v195
  %1649 = vmatprep.subr.mxu0 0.0
  %1650 = vmatpush1.msra.mxu0 0.0
  %1651 = vmatprep.subr.mxu0 0.0
  %1652 = vmatpush1.msra.mxu0 0.0
  %1653 = vmatprep.subr.mxu0 0.0
  %1654 = vmatpush1.msra.mxu0 0.0
  %1655 = vmatprep.subr.mxu0 0.0
  %1656 = vmatpush1.msra.mxu0 0.0
  %1657 = vmatprep.subr.mxu0 0.0
  %1658 = vmatpush1.msra.mxu0 0.0
  %1659 = vmatprep.subr.mxu0 0.0
  %1660 = vmatpush1.msra.mxu0 0.0
  %1661 = vmatprep.subr.mxu0 0.0
  %1662 = vmatpush1.msra.mxu0 0.0
  %1663 = vmatprep.subr.mxu0 0.0
  %1664 = vmatpush1.msra.mxu0 0.0
  %1665 = vmatprep.subr.mxu0 0.0
  %1666 = vmatpush1.msra.mxu0 0.0
  %1667 = vmatprep.subr.mxu0 0.0
  %1668 = vmatpush1.msra.mxu0 0.0
  %1669 = vmatprep.subr.mxu0 0.0
  %1670 = vmatpush1.msra.mxu0 0.0
  %1671 = vmatprep.subr.mxu0 0.0
  %1672 = vmatpush1.msra.mxu0 0.0
  %1673 = vmatprep.subr.mxu0 0.0
  %1674 = vmatpush1.msra.mxu0 0.0
  %1675 = vmatprep.subr.mxu0 0.0
  %1676 = vmatpush1.msra.mxu0 0.0
  %1677 = vmatprep.subr.mxu0 0.0
  %1678 = vmatpush1.msra.mxu0 0.0
  %1679 = vmatprep.subr.mxu0 0.0
  %1680 = vmatpush1.msra.mxu0 0.0
  %1681 = vmatprep.subr.mxu0 0.0
  %1682 = vmatpush1.msra.mxu0 0.0
  %1683 = vmatprep.subr.mxu0 0.0
  %1684 = vmatpush1.msra.mxu0 0.0
  %1685 = vmatprep.subr.mxu0 0.0
  %1686 = vmatpush1.msra.mxu0 0.0
  %1687 = vmatprep.subr.mxu0 0.0
  %1688 = vmatpush1.msra.mxu0 0.0
  %1689 = vmatprep.subr.mxu0 0.0
  %1690 = vmatpush1.msra.mxu0 0.0
  %1691 = vmatprep.subr.mxu0 0.0
  %1692 = vmatpush1.msra.mxu0 0.0
  %1693 = vmatprep.subr.mxu0 0.0
  %1694 = vmatpush1.msra.mxu0 0.0
  %1695 = vmatprep.subr.mxu0 0.0
  %1696 = vmatpush1.msra.mxu0 0.0
  %1697 = vmatprep.subr.mxu0 0.0
  %1698 = vmatpush1.msra.mxu0 0.0
  %1699 = vmatprep.subr.mxu0 0.0
  %1700 = vmatpush1.msra.mxu0 0.0
  %1701 = vmatprep.subr.mxu0 0.0
  %1702 = vmatpush1.msra.mxu0 0.0
  %1703 = vmatprep.subr.mxu0 0.0
  %1704 = vmatpush1.msra.mxu0 0.0
  %1705 = vmatprep.subr.mxu0 0.0
  %1706 = vmatpush1.msra.mxu0 0.0
  %1707 = vmatprep.subr.mxu0 0.0
  %1708 = vmatpush1.msra.mxu0 0.0
  %1709 = vmatprep.mubr.f32.mxu0 0.0
  %1710 = vmatmul.mubr.f32.gmra.mrb[0].mxu0 %v1643
  %v1711 = vpop.f32.mrb[0].mxu0
  %v1712 = vadd.f32 0.0, %v1711
  %v1713 = vpop.f32.mrb[0].mxu0
  %1714 = vdwg.mxu0
  %1716 = vrot.lane.b32.xlu0 %v1627, 48
  %v1717 = vpop.permute.xlu0 %1716
  %v1718 = vsel %vm222, %v1717, 0
  %1720 = vmatprep.subr.mxu0 0.0
  %1721 = vmatpush1.msra.mxu0 %v197
  %1722 = vmatprep.subr.mxu0 0.0
  %1723 = vmatpush1.msra.mxu0 %v198
  %1724 = vmatprep.subr.mxu0 0.0
  %1725 = vmatpush1.msra.mxu0 0.0
  %1726 = vmatprep.subr.mxu0 0.0
  %1727 = vmatpush1.msra.mxu0 0.0
  %1728 = vmatprep.subr.mxu0 0.0
  %1729 = vmatpush1.msra.mxu0 0.0
  %1730 = vmatprep.subr.mxu0 0.0
  %1731 = vmatpush1.msra.mxu0 0.0
  %1732 = vmatprep.subr.mxu0 0.0
  %1733 = vmatpush1.msra.mxu0 0.0
  %1734 = vmatprep.subr.mxu0 0.0
  %1735 = vmatpush1.msra.mxu0 0.0
  %1736 = vmatprep.subr.mxu0 0.0
  %1737 = vmatpush1.msra.mxu0 0.0
  %1738 = vmatprep.subr.mxu0 0.0
  %1739 = vmatpush1.msra.mxu0 0.0
  %1740 = vmatprep.subr.mxu0 0.0
  %1741 = vmatpush1.msra.mxu0 0.0
  %1742 = vmatprep.subr.mxu0 0.0
  %1743 = vmatpush1.msra.mxu0 0.0
  %1744 = vmatprep.subr.mxu0 0.0
  %1745 = vmatpush1.msra.mxu0 0.0
  %1746 = vmatprep.subr.mxu0 0.0
  %1747 = vmatpush1.msra.mxu0 0.0
  %1748 = vmatprep.subr.mxu0 0.0
  %1749 = vmatpush1.msra.mxu0 0.0
  %1750 = vmatprep.subr.mxu0 0.0
  %1751 = vmatpush1.msra.mxu0 0.0
  %1752 = vmatprep.subr.mxu0 0.0
  %1753 = vmatpush1.msra.mxu0 0.0
  %1754 = vmatprep.subr.mxu0 0.0
  %1755 = vmatpush1.msra.mxu0 0.0
  %1756 = vmatprep.subr.mxu0 0.0
  %1757 = vmatpush1.msra.mxu0 0.0
  %1758 = vmatprep.subr.mxu0 0.0
  %1759 = vmatpush1.msra.mxu0 0.0
  %1760 = vmatprep.subr.mxu0 0.0
  %1761 = vmatpush1.msra.mxu0 0.0
  %1762 = vmatprep.subr.mxu0 0.0
  %1763 = vmatpush1.msra.mxu0 0.0
  %1764 = vmatprep.subr.mxu0 0.0
  %1765 = vmatpush1.msra.mxu0 0.0
  %1766 = vmatprep.subr.mxu0 0.0
  %1767 = vmatpush1.msra.mxu0 0.0
  %1768 = vmatprep.subr.mxu0 0.0
  %1769 = vmatpush1.msra.mxu0 0.0
  %1770 = vmatprep.subr.mxu0 0.0
  %1771 = vmatpush1.msra.mxu0 0.0
  %1772 = vmatprep.subr.mxu0 0.0
  %1773 = vmatpush1.msra.mxu0 0.0
  %1774 = vmatprep.subr.mxu0 0.0
  %1775 = vmatpush1.msra.mxu0 0.0
  %1776 = vmatprep.subr.mxu0 0.0
  %1777 = vmatpush1.msra.mxu0 0.0
  %1778 = vmatprep.subr.mxu0 0.0
  %1779 = vmatpush1.msra.mxu0 0.0
  %1780 = vmatprep.subr.mxu0 0.0
  %1781 = vmatpush1.msra.mxu0 0.0
  %1782 = vmatprep.subr.mxu0 0.0
  %1783 = vmatpush1.msra.mxu0 0.0
  %1784 = vmatprep.mubr.f32.mxu0 0.0
  %1785 = vmatmul.mubr.f32.gmra.mrb[0].mxu0 %v1718
  %v1786 = vpop.f32.mrb[0].mxu0
  %v1787 = vadd.f32 0.0, %v1786
  %v1788 = vpop.f32.mrb[0].mxu0
  %1789 = vdwg.mxu0
  %v1790 = vadd.f32 %v186, %v1712
  %v1791 = vsub.f32 0.0, %v1790
  %v1792 = vmul.f32 %v1791, 1.442695
  %v1793 = vpow.pop %v1792
  %v1794 = vadd.f32 %v1793, 1.0
  %v1795 = vrcp.pop %v1794
  %v1796 = vmul.f32 1.0, %v1795
  %v1797 = vadd.f32 %v1712, %v374
  %1799 = vrot.lane.b32.xlu0 %v1797, 96
  %v1800 = vpop.permute.xlu0 %1799
  %v1802 = vmul.f32 %v1796, %v1800
  %1804 = vrot.lane.b32.xlu0 %v1802, 32
  %v1805 = vpop.permute.xlu0 %1804
  %v1807 = vadd.f32 %v186, %v1805
  %v1808 = vtanh.pop %v1807
  %1810 = vrot.lane.b32.xlu0 %v1787, 48
  %v1811 = vpop.permute.xlu0 %1810
  %v1813 = vadd.f32 %v161, %v1811
  %v1814 = vsub.f32 0.0, %v1813
  %v1815 = vmul.f32 %v1814, 1.442695
  %v1816 = vpow.pop %v1815
  %v1817 = vadd.f32 %v1816, 1.0
  %v1818 = vrcp.pop %v1817
  %v1819 = vmul.f32 1.0, %v1818
  %v1820 = vadd.f32 %v1787, %v400
  %1822 = vrot.lane.b32.xlu0 %v1820, 16
  %v1823 = vpop.permute.xlu0 %1822
  %v1825 = vmul.f32 %v1819, %v1823
  %1827 = vrot.lane.b32.xlu0 %v1825, 32
  %v1828 = vpop.permute.xlu0 %1827
  %v1830 = vadd.f32 %v161, %v1828
  %v1831 = vtanh.pop %v1830
  %v1832 = vsub.f32 %v1624, %v1808
  %1834 = vrot.lane.b32.xlu0 %v1832, 112
  %v1835 = vpop.permute.xlu0 %1834
  %v1837 = vmul.f32 %v1796, %v1835
  %1839 = vrot.lane.b32.xlu0 %v1837, 16
  %v1840 = vpop.permute.xlu0 %1839
  %v1842 = vadd.f32 %v1808, %v1840
  %v1843 = vsub.f32 %v1627, %v1831
  %1845 = vrot.lane.b32.xlu0 %v1843, 112
  %v1846 = vpop.permute.xlu0 %1845
  %v1848 = vmul.f32 %v1819, %v1846
  %1850 = vrot.lane.b32.xlu0 %v1848, 16
  %v1851 = vpop.permute.xlu0 %1850
  %v1853 = vadd.f32 %v1831, %v1851
  %v1854 = vsub.f32 %v1842, %v1624
  %v1855 = vmul.f32 %v458, %v1854
  %v1856 = vadd.f32 %v1624, %v1855
  %v1857 = vsub.f32 %v1853, %v1627
  %v1858 = vmul.f32 %v453, %v1857
  %v1859 = vadd.f32 %v1627, %v1858
  %v1860 = vmul.f32 %v458, %v1842
  %v1861 = vmul.f32 %v453, %v1853
  %1863 = vrot.lane.b32.xlu0 %v1860, 96
  %v1864 = vpop.permute.xlu0 %1863
  %1866 = vst.msk [vmem:[#allocation2 + $0x30] sm:$0xff] %vm222, %v1864
  %1868 = vrot.lane.b32.xlu0 %v1861, 48
  %v1869 = vpop.permute.xlu0 %1868
  %1871 = vst.msk [vmem:[#allocation3 + $0x8] sm:$0xff] %vm222, %v1869
  %1873 = vrot.lane.b32.xlu0 %v1856, 96
  %v1874 = vpop.permute.xlu0 %1873
  %v1875 = vsel %vm222, %v1874, 0
  %1877 = vmatprep.subr.mxu0 0.0
  %1878 = vmatpush1.msra.mxu0 %v194
  %1879 = vmatprep.subr.mxu0 0.0
  %1880 = vmatpush1.msra.mxu0 %v195
  %1881 = vmatprep.subr.mxu0 0.0
  %1882 = vmatpush1.msra.mxu0 0.0
  %1883 = vmatprep.subr.mxu0 0.0
  %1884 = vmatpush1.msra.mxu0 0.0
  %1885 = vmatprep.subr.mxu0 0.0
  %1886 = vmatpush1.msra.mxu0 0.0
  %1887 = vmatprep.subr.mxu0 0.0
  %1888 = vmatpush1.msra.mxu0 0.0
  %1889 = vmatprep.subr.mxu0 0.0
  %1890 = vmatpush1.msra.mxu0 0.0
  %1891 = vmatprep.subr.mxu0 0.0
  %1892 = vmatpush1.msra.mxu0 0.0
  %1893 = vmatprep.subr.mxu0 0.0
  %1894 = vmatpush1.msra.mxu0 0.0
  %1895 = vmatprep.subr.mxu0 0.0
  %1896 = vmatpush1.msra.mxu0 0.0
  %1897 = vmatprep.subr.mxu0 0.0
  %1898 = vmatpush1.msra.mxu0 0.0
  %1899 = vmatprep.subr.mxu0 0.0
  %1900 = vmatpush1.msra.mxu0 0.0
  %1901 = vmatprep.subr.mxu0 0.0
  %1902 = vmatpush1.msra.mxu0 0.0
  %1903 = vmatprep.subr.mxu0 0.0
  %1904 = vmatpush1.msra.mxu0 0.0
  %1905 = vmatprep.subr.mxu0 0.0
  %1906 = vmatpush1.msra.mxu0 0.0
  %1907 = vmatprep.subr.mxu0 0.0
  %1908 = vmatpush1.msra.mxu0 0.0
  %1909 = vmatprep.subr.mxu0 0.0
  %1910 = vmatpush1.msra.mxu0 0.0
  %1911 = vmatprep.subr.mxu0 0.0
  %1912 = vmatpush1.msra.mxu0 0.0
  %1913 = vmatprep.subr.mxu0 0.0
  %1914 = vmatpush1.msra.mxu0 0.0
  %1915 = vmatprep.subr.mxu0 0.0
  %1916 = vmatpush1.msra.mxu0 0.0
  %1917 = vmatprep.subr.mxu0 0.0
  %1918 = vmatpush1.msra.mxu0 0.0
  %1919 = vmatprep.subr.mxu0 0.0
  %1920 = vmatpush1.msra.mxu0 0.0
  %1921 = vmatprep.subr.mxu0 0.0
  %1922 = vmatpush1.msra.mxu0 0.0
  %1923 = vmatprep.subr.mxu0 0.0
  %1924 = vmatpush1.msra.mxu0 0.0
  %1925 = vmatprep.subr.mxu0 0.0
  %1926 = vmatpush1.msra.mxu0 0.0
  %1927 = vmatprep.subr.mxu0 0.0
  %1928 = vmatpush1.msra.mxu0 0.0
  %1929 = vmatprep.subr.mxu0 0.0
  %1930 = vmatpush1.msra.mxu0 0.0
  %1931 = vmatprep.subr.mxu0 0.0
  %1932 = vmatpush1.msra.mxu0 0.0
  %1933 = vmatprep.subr.mxu0 0.0
  %1934 = vmatpush1.msra.mxu0 0.0
  %1935 = vmatprep.subr.mxu0 0.0
  %1936 = vmatpush1.msra.mxu0 0.0
  %1937 = vmatprep.subr.mxu0 0.0
  %1938 = vmatpush1.msra.mxu0 0.0
  %1939 = vmatprep.subr.mxu0 0.0
  %1940 = vmatpush1.msra.mxu0 0.0
  %1941 = vmatprep.mubr.f32.mxu0 0.0
  %1942 = vmatmul.mubr.f32.gmra.mrb[0].mxu0 %v1875
  %v1943 = vpop.f32.mrb[0].mxu0
  %v1944 = vadd.f32 0.0, %v1943
  %v1945 = vpop.f32.mrb[0].mxu0
  %1946 = vdwg.mxu0
  %1948 = vrot.lane.b32.xlu0 %v1859, 48
  %v1949 = vpop.permute.xlu0 %1948
  %v1950 = vsel %vm222, %v1949, 0
  %1952 = vmatprep.subr.mxu0 0.0
  %1953 = vmatpush1.msra.mxu0 %v197
  %1954 = vmatprep.subr.mxu0 0.0
  %1955 = vmatpush1.msra.mxu0 %v198
  %1956 = vmatprep.subr.mxu0 0.0
  %1957 = vmatpush1.msra.mxu0 0.0
  %1958 = vmatprep.subr.mxu0 0.0
  %1959 = vmatpush1.msra.mxu0 0.0
  %1960 = vmatprep.subr.mxu0 0.0
  %1961 = vmatpush1.msra.mxu0 0.0
  %1962 = vmatprep.subr.mxu0 0.0
  %1963 = vmatpush1.msra.mxu0 0.0
  %1964 = vmatprep.subr.mxu0 0.0
  %1965 = vmatpush1.msra.mxu0 0.0
  %1966 = vmatprep.subr.mxu0 0.0
  %1967 = vmatpush1.msra.mxu0 0.0
  %1968 = vmatprep.subr.mxu0 0.0
  %1969 = vmatpush1.msra.mxu0 0.0
  %1970 = vmatprep.subr.mxu0 0.0
  %1971 = vmatpush1.msra.mxu0 0.0
  %1972 = vmatprep.subr.mxu0 0.0
  %1973 = vmatpush1.msra.mxu0 0.0
  %1974 = vmatprep.subr.mxu0 0.0
  %1975 = vmatpush1.msra.mxu0 0.0
  %1976 = vmatprep.subr.mxu0 0.0
  %1977 = vmatpush1.msra.mxu0 0.0
  %1978 = vmatprep.subr.mxu0 0.0
  %1979 = vmatpush1.msra.mxu0 0.0
  %1980 = vmatprep.subr.mxu0 0.0
  %1981 = vmatpush1.msra.mxu0 0.0
  %1982 = vmatprep.subr.mxu0 0.0
  %1983 = vmatpush1.msra.mxu0 0.0
  %1984 = vmatprep.subr.mxu0 0.0
  %1985 = vmatpush1.msra.mxu0 0.0
  %1986 = vmatprep.subr.mxu0 0.0
  %1987 = vmatpush1.msra.mxu0 0.0
  %1988 = vmatprep.subr.mxu0 0.0
  %1989 = vmatpush1.msra.mxu0 0.0
  %1990 = vmatprep.subr.mxu0 0.0
  %1991 = vmatpush1.msra.mxu0 0.0
  %1992 = vmatprep.subr.mxu0 0.0
  %1993 = vmatpush1.msra.mxu0 0.0
  %1994 = vmatprep.subr.mxu0 0.0
  %1995 = vmatpush1.msra.mxu0 0.0
  %1996 = vmatprep.subr.mxu0 0.0
  %1997 = vmatpush1.msra.mxu0 0.0
  %1998 = vmatprep.subr.mxu0 0.0
  %1999 = vmatpush1.msra.mxu0 0.0
  %2000 = vmatprep.subr.mxu0 0.0
  %2001 = vmatpush1.msra.mxu0 0.0
  %2002 = vmatprep.subr.mxu0 0.0
  %2003 = vmatpush1.msra.mxu0 0.0
  %2004 = vmatprep.subr.mxu0 0.0
  %2005 = vmatpush1.msra.mxu0 0.0
  %2006 = vmatprep.subr.mxu0 0.0
  %2007 = vmatpush1.msra.mxu0 0.0
  %2008 = vmatprep.subr.mxu0 0.0
  %2009 = vmatpush1.msra.mxu0 0.0
  %2010 = vmatprep.subr.mxu0 0.0
  %2011 = vmatpush1.msra.mxu0 0.0
  %2012 = vmatprep.subr.mxu0 0.0
  %2013 = vmatpush1.msra.mxu0 0.0
  %2014 = vmatprep.subr.mxu0 0.0
  %2015 = vmatpush1.msra.mxu0 0.0
  %2016 = vmatprep.mubr.f32.mxu0 0.0
  %2017 = vmatmul.mubr.f32.gmra.mrb[0].mxu0 %v1950
  %v2018 = vpop.f32.mrb[0].mxu0
  %v2019 = vadd.f32 0.0, %v2018
  %v2020 = vpop.f32.mrb[0].mxu0
  %2021 = vdwg.mxu0
  %v2022 = vadd.f32 %v191, %v1944
  %v2023 = vsub.f32 0.0, %v2022
  %v2024 = vmul.f32 %v2023, 1.442695
  %v2025 = vpow.pop %v2024
  %v2026 = vadd.f32 %v2025, 1.0
  %v2027 = vrcp.pop %v2026
  %v2028 = vmul.f32 1.0, %v2027
  %v2029 = vadd.f32 %v1944, %v374
  %2031 = vrot.lane.b32.xlu0 %v2029, 96
  %v2032 = vpop.permute.xlu0 %2031
  %v2034 = vmul.f32 %v2028, %v2032
  %2036 = vrot.lane.b32.xlu0 %v2034, 32
  %v2037 = vpop.permute.xlu0 %2036
  %v2039 = vadd.f32 %v191, %v2037
  %v2040 = vtanh.pop %v2039
  %2042 = vrot.lane.b32.xlu0 %v2019, 48
  %v2043 = vpop.permute.xlu0 %2042
  %v2045 = vadd.f32 %v156, %v2043
  %v2046 = vsub.f32 0.0, %v2045
  %v2047 = vmul.f32 %v2046, 1.442695
  %v2048 = vpow.pop %v2047
  %v2049 = vadd.f32 %v2048, 1.0
  %v2050 = vrcp.pop %v2049
  %v2051 = vmul.f32 1.0, %v2050
  %v2052 = vadd.f32 %v2019, %v400
  %2054 = vrot.lane.b32.xlu0 %v2052, 16
  %v2055 = vpop.permute.xlu0 %2054
  %v2057 = vmul.f32 %v2051, %v2055
  %2059 = vrot.lane.b32.xlu0 %v2057, 32
  %v2060 = vpop.permute.xlu0 %2059
  %v2062 = vadd.f32 %v156, %v2060
  %v2063 = vtanh.pop %v2062
  %v2064 = vsub.f32 %v1856, %v2040
  %2066 = vrot.lane.b32.xlu0 %v2064, 112
  %v2067 = vpop.permute.xlu0 %2066
  %v2069 = vmul.f32 %v2028, %v2067
  %2071 = vrot.lane.b32.xlu0 %v2069, 16
  %v2072 = vpop.permute.xlu0 %2071
  %v2074 = vadd.f32 %v2040, %v2072
  %v2075 = vsub.f32 %v1859, %v2063
  %2077 = vrot.lane.b32.xlu0 %v2075, 112
  %v2078 = vpop.permute.xlu0 %2077
  %v2080 = vmul.f32 %v2051, %v2078
  %2082 = vrot.lane.b32.xlu0 %v2080, 16
  %v2083 = vpop.permute.xlu0 %2082
  %v2085 = vadd.f32 %v2063, %v2083
  %v2086 = vmul.f32 %v220, %v2074
  %v2087 = vmul.f32 %v215, %v2085
  %2089 = vrot.lane.b32.xlu0 %v2086, 96
  %v2090 = vpop.permute.xlu0 %2089
  %2092 = vst.msk [vmem:[#allocation2 + $0x38] sm:$0xff] %vm222, %v2090
  %2094 = vrot.lane.b32.xlu0 %v2087, 48
  %v2095 = vpop.permute.xlu0 %2094
  %2097 = vst.msk [vmem:[#allocation3] sm:$0xff] %vm222, %v2095
  %s2098 = scalar_lea.vmem %s2, 32
  %v2099 = vld [vmem:[%s2098] sm:$0xff]
  %v2100 = vld [vmem:[%s2098 + $0x8] sm:$0xff]
  %v2101 = vld [vmem:[%s2098 + $0x10] sm:$0xff]
  %v2102 = vld [vmem:[%s2098 + $0x18] sm:$0xff]
  %v2103 = vld [vmem:[#allocation2] sm:$0xff]
  %v2104 = vld [vmem:[#allocation2 + $0x8] sm:$0xff]
  %v2105 = vld [vmem:[#allocation2 + $0x10] sm:$0xff]
  %v2106 = vld [vmem:[#allocation2 + $0x18] sm:$0xff]
  %v2107 = vld [vmem:[#allocation2 + $0x20] sm:$0xff]
  %v2108 = vld [vmem:[#allocation2 + $0x28] sm:$0xff]
  %v2109 = vld [vmem:[#allocation2 + $0x30] sm:$0xff]
  %v2110 = vld [vmem:[#allocation2 + $0x38] sm:$0xff]
  %v2111 = vld [vmem:[#allocation3] sm:$0xff]
  %v2112 = vld [vmem:[#allocation3 + $0x8] sm:$0xff]
  %v2113 = vld [vmem:[#allocation3 + $0x10] sm:$0xff]
  %v2114 = vld [vmem:[#allocation3 + $0x18] sm:$0xff]
  %v2115 = vld [vmem:[#allocation3 + $0x20] sm:$0xff]
  %v2116 = vld [vmem:[#allocation3 + $0x28] sm:$0xff]
  %v2117 = vld [vmem:[#allocation3 + $0x30] sm:$0xff]
  %v2118 = vld [vmem:[#allocation3 + $0x38] sm:$0xff]
  %v2120 = vsel %vm222, %v2111, 0
  %v2123 = vsel %vm222, %v2112, 0
  %v2126 = vsel %vm222, %v2113, 0
  %v2129 = vsel %vm222, %v2114, 0
  %v2132 = vsel %vm222, %v2115, 0
  %v2135 = vsel %vm222, %v2116, 0
  %v2138 = vsel %vm222, %v2117, 0
  %v2141 = vsel %vm222, %v2118, 0
  %2143 = vmatprep.subr.mxu0 0.0
  %2144 = vmatpush1.msra.mxu0 %v2101
  %2145 = vmatprep.subr.mxu0 0.0
  %2146 = vmatpush1.msra.mxu0 %v2102
  %2147 = vmatprep.subr.mxu0 0.0
  %2148 = vmatpush1.msra.mxu0 0.0
  %2149 = vmatprep.subr.mxu0 0.0
  %2150 = vmatpush1.msra.mxu0 0.0
  %2151 = vmatprep.subr.mxu0 0.0
  %2152 = vmatpush1.msra.mxu0 0.0
  %2153 = vmatprep.subr.mxu0 0.0
  %2154 = vmatpush1.msra.mxu0 0.0
  %2155 = vmatprep.subr.mxu0 0.0
  %2156 = vmatpush1.msra.mxu0 0.0
  %2157 = vmatprep.subr.mxu0 0.0
  %2158 = vmatpush1.msra.mxu0 0.0
  %2159 = vmatprep.subr.mxu0 0.0
  %2160 = vmatpush1.msra.mxu0 0.0
  %2161 = vmatprep.subr.mxu0 0.0
  %2162 = vmatpush1.msra.mxu0 0.0
  %2163 = vmatprep.subr.mxu0 0.0
  %2164 = vmatpush1.msra.mxu0 0.0
  %2165 = vmatprep.subr.mxu0 0.0
  %2166 = vmatpush1.msra.mxu0 0.0
  %2167 = vmatprep.subr.mxu0 0.0
  %2168 = vmatpush1.msra.mxu0 0.0
  %2169 = vmatprep.subr.mxu0 0.0
  %2170 = vmatpush1.msra.mxu0 0.0
  %2171 = vmatprep.subr.mxu0 0.0
  %2172 = vmatpush1.msra.mxu0 0.0
  %2173 = vmatprep.subr.mxu0 0.0
  %2174 = vmatpush1.msra.mxu0 0.0
  %2175 = vmatprep.subr.mxu0 0.0
  %2176 = vmatpush1.msra.mxu0 0.0
  %2177 = vmatprep.subr.mxu0 0.0
  %2178 = vmatpush1.msra.mxu0 0.0
  %2179 = vmatprep.subr.mxu0 0.0
  %2180 = vmatpush1.msra.mxu0 0.0
  %2181 = vmatprep.subr.mxu0 0.0
  %2182 = vmatpush1.msra.mxu0 0.0
  %2183 = vmatprep.subr.mxu0 0.0
  %2184 = vmatpush1.msra.mxu0 0.0
  %2185 = vmatprep.subr.mxu0 0.0
  %2186 = vmatpush1.msra.mxu0 0.0
  %2187 = vmatprep.subr.mxu0 0.0
  %2188 = vmatpush1.msra.mxu0 0.0
  %2189 = vmatprep.subr.mxu0 0.0
  %2190 = vmatpush1.msra.mxu0 0.0
  %2191 = vmatprep.subr.mxu0 0.0
  %2192 = vmatpush1.msra.mxu0 0.0
  %2193 = vmatprep.subr.mxu0 0.0
  %2194 = vmatpush1.msra.mxu0 0.0
  %2195 = vmatprep.subr.mxu0 0.0
  %2196 = vmatpush1.msra.mxu0 0.0
  %2197 = vmatprep.subr.mxu0 0.0
  %2198 = vmatpush1.msra.mxu0 0.0
  %2199 = vmatprep.subr.mxu0 0.0
  %2200 = vmatpush1.msra.mxu0 0.0
  %2201 = vmatprep.subr.mxu0 0.0
  %2202 = vmatpush1.msra.mxu0 0.0
  %2203 = vmatprep.subr.mxu0 0.0
  %2204 = vmatpush1.msra.mxu0 0.0
  %2205 = vmatprep.subr.mxu0 0.0
  %2206 = vmatpush1.msra.mxu0 0.0
  %2207 = vmatprep.mubr.f32.mxu0 0.0
  %2208 = vmatmul.mubr.f32.gmra.mrb[0].mxu0 %v2120
  %v2209 = vpop.f32.mrb[0].mxu0
  %v2210 = vadd.f32 0.0, %v2209
  %v2211 = vpop.f32.mrb[0].mxu0
  %2212 = vmatprep.mubr.f32.mxu0 0.0
  %2213 = vmatmul.mubr.f32.gmra.mrb[0].mxu0 %v2123
  %v2214 = vpop.f32.mrb[0].mxu0
  %v2215 = vadd.f32 0.0, %v2214
  %v2216 = vpop.f32.mrb[0].mxu0
  %2217 = vmatprep.mubr.f32.mxu0 0.0
  %2218 = vmatmul.mubr.f32.gmra.mrb[0].mxu0 %v2126
  %v2219 = vpop.f32.mrb[0].mxu0
  %v2220 = vadd.f32 0.0, %v2219
  %v2221 = vpop.f32.mrb[0].mxu0
  %2222 = vmatprep.mubr.f32.mxu0 0.0
  %2223 = vmatmul.mubr.f32.gmra.mrb[0].mxu0 %v2129
  %v2224 = vpop.f32.mrb[0].mxu0
  %v2225 = vadd.f32 0.0, %v2224
  %v2226 = vpop.f32.mrb[0].mxu0
  %2227 = vmatprep.mubr.f32.mxu0 0.0
  %2228 = vmatmul.mubr.f32.gmra.mrb[0].mxu0 %v2132
  %v2229 = vpop.f32.mrb[0].mxu0
  %v2230 = vadd.f32 0.0, %v2229
  %v2231 = vpop.f32.mrb[0].mxu0
  %2232 = vmatprep.mubr.f32.mxu0 0.0
  %2233 = vmatmul.mubr.f32.gmra.mrb[0].mxu0 %v2135
  %v2234 = vpop.f32.mrb[0].mxu0
  %v2235 = vadd.f32 0.0, %v2234
  %v2236 = vpop.f32.mrb[0].mxu0
  %2237 = vmatprep.mubr.f32.mxu0 0.0
  %2238 = vmatmul.mubr.f32.gmra.mrb[0].mxu0 %v2138
  %v2239 = vpop.f32.mrb[0].mxu0
  %v2240 = vadd.f32 0.0, %v2239
  %v2241 = vpop.f32.mrb[0].mxu0
  %2242 = vmatprep.mubr.f32.mxu0 0.0
  %2243 = vmatmul.mubr.f32.gmra.mrb[0].mxu0 %v2141
  %v2244 = vpop.f32.mrb[0].mxu0
  %v2245 = vadd.f32 0.0, %v2244
  %v2246 = vpop.f32.mrb[0].mxu0
  %2247 = vdwg.mxu0
  %v2249 = vsel %vm222, %v2103, 0
  %v2252 = vsel %vm222, %v2104, 0
  %v2255 = vsel %vm222, %v2105, 0
  %v2258 = vsel %vm222, %v2106, 0
  %v2261 = vsel %vm222, %v2107, 0
  %v2264 = vsel %vm222, %v2108, 0
  %v2267 = vsel %vm222, %v2109, 0
  %v2270 = vsel %vm222, %v2110, 0
  %2272 = vmatprep.subr.mxu0 0.0
  %2273 = vmatpush1.msra.mxu0 %v2099
  %2274 = vmatprep.subr.mxu0 0.0
  %2275 = vmatpush1.msra.mxu0 %v2100
  %2276 = vmatprep.subr.mxu0 0.0
  %2277 = vmatpush1.msra.mxu0 0.0
  %2278 = vmatprep.subr.mxu0 0.0
  %2279 = vmatpush1.msra.mxu0 0.0
  %2280 = vmatprep.subr.mxu0 0.0
  %2281 = vmatpush1.msra.mxu0 0.0
  %2282 = vmatprep.subr.mxu0 0.0
  %2283 = vmatpush1.msra.mxu0 0.0
  %2284 = vmatprep.subr.mxu0 0.0
  %2285 = vmatpush1.msra.mxu0 0.0
  %2286 = vmatprep.subr.mxu0 0.0
  %2287 = vmatpush1.msra.mxu0 0.0
  %2288 = vmatprep.subr.mxu0 0.0
  %2289 = vmatpush1.msra.mxu0 0.0
  %2290 = vmatprep.subr.mxu0 0.0
  %2291 = vmatpush1.msra.mxu0 0.0
  %2292 = vmatprep.subr.mxu0 0.0
  %2293 = vmatpush1.msra.mxu0 0.0
  %2294 = vmatprep.subr.mxu0 0.0
  %2295 = vmatpush1.msra.mxu0 0.0
  %2296 = vmatprep.subr.mxu0 0.0
  %2297 = vmatpush1.msra.mxu0 0.0
  %2298 = vmatprep.subr.mxu0 0.0
  %2299 = vmatpush1.msra.mxu0 0.0
  %2300 = vmatprep.subr.mxu0 0.0
  %2301 = vmatpush1.msra.mxu0 0.0
  %2302 = vmatprep.subr.mxu0 0.0
  %2303 = vmatpush1.msra.mxu0 0.0
  %2304 = vmatprep.subr.mxu0 0.0
  %2305 = vmatpush1.msra.mxu0 0.0
  %2306 = vmatprep.subr.mxu0 0.0
  %2307 = vmatpush1.msra.mxu0 0.0
  %2308 = vmatprep.subr.mxu0 0.0
  %2309 = vmatpush1.msra.mxu0 0.0
  %2310 = vmatprep.subr.mxu0 0.0
  %2311 = vmatpush1.msra.mxu0 0.0
  %2312 = vmatprep.subr.mxu0 0.0
  %2313 = vmatpush1.msra.mxu0 0.0
  %2314 = vmatprep.subr.mxu0 0.0
  %2315 = vmatpush1.msra.mxu0 0.0
  %2316 = vmatprep.subr.mxu0 0.0
  %2317 = vmatpush1.msra.mxu0 0.0
  %2318 = vmatprep.subr.mxu0 0.0
  %2319 = vmatpush1.msra.mxu0 0.0
  %2320 = vmatprep.subr.mxu0 0.0
  %2321 = vmatpush1.msra.mxu0 0.0
  %2322 = vmatprep.subr.mxu0 0.0
  %2323 = vmatpush1.msra.mxu0 0.0
  %2324 = vmatprep.subr.mxu0 0.0
  %2325 = vmatpush1.msra.mxu0 0.0
  %2326 = vmatprep.subr.mxu0 0.0
  %2327 = vmatpush1.msra.mxu0 0.0
  %2328 = vmatprep.subr.mxu0 0.0
  %2329 = vmatpush1.msra.mxu0 0.0
  %2330 = vmatprep.subr.mxu0 0.0
  %2331 = vmatpush1.msra.mxu0 0.0
  %2332 = vmatprep.subr.mxu0 0.0
  %2333 = vmatpush1.msra.mxu0 0.0
  %2334 = vmatprep.subr.mxu0 0.0
  %2335 = vmatpush1.msra.mxu0 0.0
  %2336 = vmatprep.mubr.f32.mxu0 0.0
  %2337 = vmatmul.mubr.f32.gmra.mrb[0].mxu0 %v2249
  %v2338 = vpop.f32.mrb[0].mxu0
  %v2339 = vadd.f32 %v2210, %v2338
  %v2340 = vpop.f32.mrb[0].mxu0
  %2341 = vmatprep.mubr.f32.mxu0 0.0
  %2342 = vmatmul.mubr.f32.gmra.mrb[0].mxu0 %v2252
  %v2343 = vpop.f32.mrb[0].mxu0
  %v2344 = vadd.f32 %v2215, %v2343
  %v2345 = vpop.f32.mrb[0].mxu0
  %2346 = vmatprep.mubr.f32.mxu0 0.0
  %2347 = vmatmul.mubr.f32.gmra.mrb[0].mxu0 %v2255
  %v2348 = vpop.f32.mrb[0].mxu0
  %v2349 = vadd.f32 %v2220, %v2348
  %v2350 = vpop.f32.mrb[0].mxu0
  %2351 = vmatprep.mubr.f32.mxu0 0.0
  %2352 = vmatmul.mubr.f32.gmra.mrb[0].mxu0 %v2258
  %v2353 = vpop.f32.mrb[0].mxu0
  %v2354 = vadd.f32 %v2225, %v2353
  %v2355 = vpop.f32.mrb[0].mxu0
  %2356 = vmatprep.mubr.f32.mxu0 0.0
  %2357 = vmatmul.mubr.f32.gmra.mrb[0].mxu0 %v2261
  %v2358 = vpop.f32.mrb[0].mxu0
  %v2359 = vadd.f32 %v2230, %v2358
  %v2360 = vpop.f32.mrb[0].mxu0
  %2361 = vmatprep.mubr.f32.mxu0 0.0
  %2362 = vmatmul.mubr.f32.gmra.mrb[0].mxu0 %v2264
  %v2363 = vpop.f32.mrb[0].mxu0
  %v2364 = vadd.f32 %v2235, %v2363
  %v2365 = vpop.f32.mrb[0].mxu0
  %2366 = vmatprep.mubr.f32.mxu0 0.0
  %2367 = vmatmul.mubr.f32.gmra.mrb[0].mxu0 %v2267
  %v2368 = vpop.f32.mrb[0].mxu0
  %v2369 = vadd.f32 %v2240, %v2368
  %v2370 = vpop.f32.mrb[0].mxu0
  %2371 = vmatprep.mubr.f32.mxu0 0.0
  %2372 = vmatmul.mubr.f32.gmra.mrb[0].mxu0 %v2270
  %v2373 = vpop.f32.mrb[0].mxu0
  %v2374 = vadd.f32 %v2245, %v2373
  %v2375 = vpop.f32.mrb[0].mxu0
  %2376 = vdwg.mxu0
  %s2377 = scalar_lea.vmem %s4, 1
  %v2378 = vld [vmem:[%s2377] sm:$0x1]
  %v2380 = vlaneseq
  %v2381 = vshrl.u32 %v2380, 7
  %v2382 = vsub.s32 0, %v2381
  %v2383 = vrot.slane %v2378, %v2382
  %v2385 = vadd.f32 %v2339, %v2383
  %v2386 = vadd.f32 %v2344, %v2383
  %v2387 = vadd.f32 %v2349, %v2383
  %v2388 = vadd.f32 %v2354, %v2383
  %v2389 = vadd.f32 %v2359, %v2383
  %v2390 = vadd.f32 %v2364, %v2383
  %v2391 = vadd.f32 %v2369, %v2383
  %v2392 = vadd.f32 %v2374, %v2383
  %s2393 = scalar_lea.vmem %s3, 32
  %v2394 = vld [vmem:[%s2393] sm:$0xff]
  %v2395 = vld [vmem:[%s2393 + $0x8] sm:$0xff]
  %s2396 = scalar_lea.vmem %s3, 48
  %v2397 = vld [vmem:[%s2396] sm:$0xff]
  %v2398 = vld [vmem:[%s2396 + $0x8] sm:$0xff]
  %s2399 = scalar_lea.vmem %s5, 2
  %v2400 = vld [vmem:[%s2399] sm:$0x1]
  %v2402 = vlaneseq
  %v2403 = vshrl.u32 %v2402, 7
  %v2404 = vsub.s32 0, %v2403
  %v2405 = vrot.slane %v2400, %v2404
  %s2406 = scalar_lea.vmem %s5, 3
  %v2407 = vld [vmem:[%s2406] sm:$0x1]
  %v2409 = vlaneseq
  %v2410 = vshrl.u32 %v2409, 7
  %v2411 = vsub.s32 0, %v2410
  %v2412 = vrot.slane %v2407, %v2411
  %2413 = vmatprep.subr.mxu0 0.0
  %2414 = vmatpush1.msra.mxu0 %v2394
  %2415 = vmatprep.subr.mxu0 0.0
  %2416 = vmatpush1.msra.mxu0 %v2395
  %2417 = vmatprep.subr.mxu0 0.0
  %2418 = vmatpush1.msra.mxu0 0.0
  %2419 = vmatprep.subr.mxu0 0.0
  %2420 = vmatpush1.msra.mxu0 0.0
  %2421 = vmatprep.subr.mxu0 0.0
  %2422 = vmatpush1.msra.mxu0 0.0
  %2423 = vmatprep.subr.mxu0 0.0
  %2424 = vmatpush1.msra.mxu0 0.0
  %2425 = vmatprep.subr.mxu0 0.0
  %2426 = vmatpush1.msra.mxu0 0.0
  %2427 = vmatprep.subr.mxu0 0.0
  %2428 = vmatpush1.msra.mxu0 0.0
  %2429 = vmatprep.subr.mxu0 0.0
  %2430 = vmatpush1.msra.mxu0 0.0
  %2431 = vmatprep.subr.mxu0 0.0
  %2432 = vmatpush1.msra.mxu0 0.0
  %2433 = vmatprep.subr.mxu0 0.0
  %2434 = vmatpush1.msra.mxu0 0.0
  %2435 = vmatprep.subr.mxu0 0.0
  %2436 = vmatpush1.msra.mxu0 0.0
  %2437 = vmatprep.subr.mxu0 0.0
  %2438 = vmatpush1.msra.mxu0 0.0
  %2439 = vmatprep.subr.mxu0 0.0
  %2440 = vmatpush1.msra.mxu0 0.0
  %2441 = vmatprep.subr.mxu0 0.0
  %2442 = vmatpush1.msra.mxu0 0.0
  %2443 = vmatprep.subr.mxu0 0.0
  %2444 = vmatpush1.msra.mxu0 0.0
  %2445 = vmatprep.subr.mxu0 0.0
  %2446 = vmatpush1.msra.mxu0 0.0
  %2447 = vmatprep.subr.mxu0 0.0
  %2448 = vmatpush1.msra.mxu0 0.0
  %2449 = vmatprep.subr.mxu0 0.0
  %2450 = vmatpush1.msra.mxu0 0.0
  %2451 = vmatprep.subr.mxu0 0.0
  %2452 = vmatpush1.msra.mxu0 0.0
  %2453 = vmatprep.subr.mxu0 0.0
  %2454 = vmatpush1.msra.mxu0 0.0
  %2455 = vmatprep.subr.mxu0 0.0
  %2456 = vmatpush1.msra.mxu0 0.0
  %2457 = vmatprep.subr.mxu0 0.0
  %2458 = vmatpush1.msra.mxu0 0.0
  %2459 = vmatprep.subr.mxu0 0.0
  %2460 = vmatpush1.msra.mxu0 0.0
  %2461 = vmatprep.subr.mxu0 0.0
  %2462 = vmatpush1.msra.mxu0 0.0
  %2463 = vmatprep.subr.mxu0 0.0
  %2464 = vmatpush1.msra.mxu0 0.0
  %2465 = vmatprep.subr.mxu0 0.0
  %2466 = vmatpush1.msra.mxu0 0.0
  %2467 = vmatprep.subr.mxu0 0.0
  %2468 = vmatpush1.msra.mxu0 0.0
  %2469 = vmatprep.subr.mxu0 0.0
  %2470 = vmatpush1.msra.mxu0 0.0
  %2471 = vmatprep.subr.mxu0 0.0
  %2472 = vmatpush1.msra.mxu0 0.0
  %2473 = vmatprep.subr.mxu0 0.0
  %2474 = vmatpush1.msra.mxu0 0.0
  %2475 = vmatprep.subr.mxu0 0.0
  %2476 = vmatpush1.msra.mxu0 0.0
  %2477 = vmatprep.mubr.f32.mxu0 0.0
  %2478 = vmatmul.mubr.f32.gmra.mrb[0].mxu0 %v224
  %v2479 = vpop.f32.mrb[0].mxu0
  %v2480 = vadd.f32 0.0, %v2479
  %v2481 = vpop.f32.mrb[0].mxu0
  %2482 = vdwg.mxu0
  %2483 = vmatprep.subr.mxu0 0.0
  %2484 = vmatpush1.msra.mxu0 %v2397
  %2485 = vmatprep.subr.mxu0 0.0
  %2486 = vmatpush1.msra.mxu0 %v2398
  %2487 = vmatprep.subr.mxu0 0.0
  %2488 = vmatpush1.msra.mxu0 0.0
  %2489 = vmatprep.subr.mxu0 0.0
  %2490 = vmatpush1.msra.mxu0 0.0
  %2491 = vmatprep.subr.mxu0 0.0
  %2492 = vmatpush1.msra.mxu0 0.0
  %2493 = vmatprep.subr.mxu0 0.0
  %2494 = vmatpush1.msra.mxu0 0.0
  %2495 = vmatprep.subr.mxu0 0.0
  %2496 = vmatpush1.msra.mxu0 0.0
  %2497 = vmatprep.subr.mxu0 0.0
  %2498 = vmatpush1.msra.mxu0 0.0
  %2499 = vmatprep.subr.mxu0 0.0
  %2500 = vmatpush1.msra.mxu0 0.0
  %2501 = vmatprep.subr.mxu0 0.0
  %2502 = vmatpush1.msra.mxu0 0.0
  %2503 = vmatprep.subr.mxu0 0.0
  %2504 = vmatpush1.msra.mxu0 0.0
  %2505 = vmatprep.subr.mxu0 0.0
  %2506 = vmatpush1.msra.mxu0 0.0
  %2507 = vmatprep.subr.mxu0 0.0
  %2508 = vmatpush1.msra.mxu0 0.0
  %2509 = vmatprep.subr.mxu0 0.0
  %2510 = vmatpush1.msra.mxu0 0.0
  %2511 = vmatprep.subr.mxu0 0.0
  %2512 = vmatpush1.msra.mxu0 0.0
  %2513 = vmatprep.subr.mxu0 0.0
  %2514 = vmatpush1.msra.mxu0 0.0
  %2515 = vmatprep.subr.mxu0 0.0
  %2516 = vmatpush1.msra.mxu0 0.0
  %2517 = vmatprep.subr.mxu0 0.0
  %2518 = vmatpush1.msra.mxu0 0.0
  %2519 = vmatprep.subr.mxu0 0.0
  %2520 = vmatpush1.msra.mxu0 0.0
  %2521 = vmatprep.subr.mxu0 0.0
  %2522 = vmatpush1.msra.mxu0 0.0
  %2523 = vmatprep.subr.mxu0 0.0
  %2524 = vmatpush1.msra.mxu0 0.0
  %2525 = vmatprep.subr.mxu0 0.0
  %2526 = vmatpush1.msra.mxu0 0.0
  %2527 = vmatprep.subr.mxu0 0.0
  %2528 = vmatpush1.msra.mxu0 0.0
  %2529 = vmatprep.subr.mxu0 0.0
  %2530 = vmatpush1.msra.mxu0 0.0
  %2531 = vmatprep.subr.mxu0 0.0
  %2532 = vmatpush1.msra.mxu0 0.0
  %2533 = vmatprep.subr.mxu0 0.0
  %2534 = vmatpush1.msra.mxu0 0.0
  %2535 = vmatprep.subr.mxu0 0.0
  %2536 = vmatpush1.msra.mxu0 0.0
  %2537 = vmatprep.subr.mxu0 0.0
  %2538 = vmatpush1.msra.mxu0 0.0
  %2539 = vmatprep.subr.mxu0 0.0
  %2540 = vmatpush1.msra.mxu0 0.0
  %2541 = vmatprep.subr.mxu0 0.0
  %2542 = vmatpush1.msra.mxu0 0.0
  %2543 = vmatprep.subr.mxu0 0.0
  %2544 = vmatpush1.msra.mxu0 0.0
  %2545 = vmatprep.subr.mxu0 0.0
  %2546 = vmatpush1.msra.mxu0 0.0
  %2547 = vmatprep.mubr.f32.mxu0 0.0
  %2548 = vmatmul.mubr.f32.gmra.mrb[0].mxu0 %v224
  %v2549 = vpop.f32.mrb[0].mxu0
  %v2550 = vadd.f32 0.0, %v2549
  %v2551 = vpop.f32.mrb[0].mxu0
  %2552 = vdwg.mxu0
  %v2553 = vadd.f32 %v2385, %v2480
  %v2554 = vsub.f32 0.0, %v2553
  %v2555 = vmul.f32 %v2554, 1.442695
  %v2556 = vpow.pop %v2555
  %v2557 = vadd.f32 %v2556, 1.0
  %v2558 = vrcp.pop %v2557
  %v2559 = vmul.f32 1.0, %v2558
  %2560 = vrot.lane.b32.xlu0 %v2405, 32
  %v2561 = vpop.permute.xlu0 %2560
  %v2563 = vadd.f32 %v2480, %v2561
  %2565 = vrot.lane.b32.xlu0 %v2563, 96
  %v2566 = vpop.permute.xlu0 %2565
  %v2568 = vmul.f32 %v2559, %v2566
  %2570 = vrot.lane.b32.xlu0 %v2568, 32
  %v2571 = vpop.permute.xlu0 %2570
  %v2573 = vadd.f32 %v2385, %v2571
  %v2574 = vtanh.pop %v2573
  %2576 = vrot.lane.b32.xlu0 %v2550, 48
  %v2577 = vpop.permute.xlu0 %2576
  %v2579 = vadd.f32 %v2392, %v2577
  %v2580 = vsub.f32 0.0, %v2579
  %v2581 = vmul.f32 %v2580, 1.442695
  %v2582 = vpow.pop %v2581
  %v2583 = vadd.f32 %v2582, 1.0
  %v2584 = vrcp.pop %v2583
  %v2585 = vmul.f32 1.0, %v2584
  %2586 = vrot.lane.b32.xlu0 %v2412, 32
  %v2587 = vpop.permute.xlu0 %2586
  %v2589 = vadd.f32 %v2550, %v2587
  %2591 = vrot.lane.b32.xlu0 %v2589, 16
  %v2592 = vpop.permute.xlu0 %2591
  %v2594 = vmul.f32 %v2585, %v2592
  %2596 = vrot.lane.b32.xlu0 %v2594, 32
  %v2597 = vpop.permute.xlu0 %2596
  %v2599 = vadd.f32 %v2392, %v2597
  %v2600 = vtanh.pop %v2599
  %v2601 = vsub.f32 0.0, %v2574
  %2603 = vrot.lane.b32.xlu0 %v2601, 112
  %v2604 = vpop.permute.xlu0 %2603
  %v2606 = vmul.f32 %v2559, %v2604
  %2608 = vrot.lane.b32.xlu0 %v2606, 16
  %v2609 = vpop.permute.xlu0 %2608
  %v2611 = vadd.f32 %v2574, %v2609
  %v2612 = vsub.f32 0.0, %v2600
  %2614 = vrot.lane.b32.xlu0 %v2612, 112
  %v2615 = vpop.permute.xlu0 %2614
  %v2617 = vmul.f32 %v2585, %v2615
  %2619 = vrot.lane.b32.xlu0 %v2617, 16
  %v2620 = vpop.permute.xlu0 %2619
  %v2622 = vadd.f32 %v2600, %v2620
  %v2623 = vmul.f32 %v215, %v2611
  %v2624 = vadd.f32 %v2623, 0.0
  %v2625 = vmul.f32 %v220, %v2622
  %v2626 = vadd.f32 %v2625, 0.0
  %2628 = vrot.lane.b32.xlu0 %v2623, 96
  %v2629 = vpop.permute.xlu0 %2628
  %2631 = vst.msk [vmem:[#allocation4] sm:$0xff] %vm222, %v2629
  %2633 = vrot.lane.b32.xlu0 %v2625, 48
  %v2634 = vpop.permute.xlu0 %2633
  %2636 = vst.msk [vmem:[#allocation5 + $0x38] sm:$0xff] %vm222, %v2634
  %2638 = vrot.lane.b32.xlu0 %v2624, 96
  %v2639 = vpop.permute.xlu0 %2638
  %v2640 = vsel %vm222, %v2639, 0
  %2642 = vmatprep.subr.mxu0 0.0
  %2643 = vmatpush1.msra.mxu0 %v2394
  %2644 = vmatprep.subr.mxu0 0.0
  %2645 = vmatpush1.msra.mxu0 %v2395
  %2646 = vmatprep.subr.mxu0 0.0
  %2647 = vmatpush1.msra.mxu0 0.0
  %2648 = vmatprep.subr.mxu0 0.0
  %2649 = vmatpush1.msra.mxu0 0.0
  %2650 = vmatprep.subr.mxu0 0.0
  %2651 = vmatpush1.msra.mxu0 0.0
  %2652 = vmatprep.subr.mxu0 0.0
  %2653 = vmatpush1.msra.mxu0 0.0
  %2654 = vmatprep.subr.mxu0 0.0
  %2655 = vmatpush1.msra.mxu0 0.0
  %2656 = vmatprep.subr.mxu0 0.0
  %2657 = vmatpush1.msra.mxu0 0.0
  %2658 = vmatprep.subr.mxu0 0.0
  %2659 = vmatpush1.msra.mxu0 0.0
  %2660 = vmatprep.subr.mxu0 0.0
  %2661 = vmatpush1.msra.mxu0 0.0
  %2662 = vmatprep.subr.mxu0 0.0
  %2663 = vmatpush1.msra.mxu0 0.0
  %2664 = vmatprep.subr.mxu0 0.0
  %2665 = vmatpush1.msra.mxu0 0.0
  %2666 = vmatprep.subr.mxu0 0.0
  %2667 = vmatpush1.msra.mxu0 0.0
  %2668 = vmatprep.subr.mxu0 0.0
  %2669 = vmatpush1.msra.mxu0 0.0
  %2670 = vmatprep.subr.mxu0 0.0
  %2671 = vmatpush1.msra.mxu0 0.0
  %2672 = vmatprep.subr.mxu0 0.0
  %2673 = vmatpush1.msra.mxu0 0.0
  %2674 = vmatprep.subr.mxu0 0.0
  %2675 = vmatpush1.msra.mxu0 0.0
  %2676 = vmatprep.subr.mxu0 0.0
  %2677 = vmatpush1.msra.mxu0 0.0
  %2678 = vmatprep.subr.mxu0 0.0
  %2679 = vmatpush1.msra.mxu0 0.0
  %2680 = vmatprep.subr.mxu0 0.0
  %2681 = vmatpush1.msra.mxu0 0.0
  %2682 = vmatprep.subr.mxu0 0.0
  %2683 = vmatpush1.msra.mxu0 0.0
  %2684 = vmatprep.subr.mxu0 0.0
  %2685 = vmatpush1.msra.mxu0 0.0
  %2686 = vmatprep.subr.mxu0 0.0
  %2687 = vmatpush1.msra.mxu0 0.0
  %2688 = vmatprep.subr.mxu0 0.0
  %2689 = vmatpush1.msra.mxu0 0.0
  %2690 = vmatprep.subr.mxu0 0.0
  %2691 = vmatpush1.msra.mxu0 0.0
  %2692 = vmatprep.subr.mxu0 0.0
  %2693 = vmatpush1.msra.mxu0 0.0
  %2694 = vmatprep.subr.mxu0 0.0
  %2695 = vmatpush1.msra.mxu0 0.0
  %2696 = vmatprep.subr.mxu0 0.0
  %2697 = vmatpush1.msra.mxu0 0.0
  %2698 = vmatprep.subr.mxu0 0.0
  %2699 = vmatpush1.msra.mxu0 0.0
  %2700 = vmatprep.subr.mxu0 0.0
  %2701 = vmatpush1.msra.mxu0 0.0
  %2702 = vmatprep.subr.mxu0 0.0
  %2703 = vmatpush1.msra.mxu0 0.0
  %2704 = vmatprep.subr.mxu0 0.0
  %2705 = vmatpush1.msra.mxu0 0.0
  %2706 = vmatprep.mubr.f32.mxu0 0.0
  %2707 = vmatmul.mubr.f32.gmra.mrb[0].mxu0 %v2640
  %v2708 = vpop.f32.mrb[0].mxu0
  %v2709 = vadd.f32 0.0, %v2708
  %v2710 = vpop.f32.mrb[0].mxu0
  %2711 = vdwg.mxu0
  %2713 = vrot.lane.b32.xlu0 %v2626, 48
  %v2714 = vpop.permute.xlu0 %2713
  %v2715 = vsel %vm222, %v2714, 0
  %2717 = vmatprep.subr.mxu0 0.0
  %2718 = vmatpush1.msra.mxu0 %v2397
  %2719 = vmatprep.subr.mxu0 0.0
  %2720 = vmatpush1.msra.mxu0 %v2398
  %2721 = vmatprep.subr.mxu0 0.0
  %2722 = vmatpush1.msra.mxu0 0.0
  %2723 = vmatprep.subr.mxu0 0.0
  %2724 = vmatpush1.msra.mxu0 0.0
  %2725 = vmatprep.subr.mxu0 0.0
  %2726 = vmatpush1.msra.mxu0 0.0
  %2727 = vmatprep.subr.mxu0 0.0
  %2728 = vmatpush1.msra.mxu0 0.0
  %2729 = vmatprep.subr.mxu0 0.0
  %2730 = vmatpush1.msra.mxu0 0.0
  %2731 = vmatprep.subr.mxu0 0.0
  %2732 = vmatpush1.msra.mxu0 0.0
  %2733 = vmatprep.subr.mxu0 0.0
  %2734 = vmatpush1.msra.mxu0 0.0
  %2735 = vmatprep.subr.mxu0 0.0
  %2736 = vmatpush1.msra.mxu0 0.0
  %2737 = vmatprep.subr.mxu0 0.0
  %2738 = vmatpush1.msra.mxu0 0.0
  %2739 = vmatprep.subr.mxu0 0.0
  %2740 = vmatpush1.msra.mxu0 0.0
  %2741 = vmatprep.subr.mxu0 0.0
  %2742 = vmatpush1.msra.mxu0 0.0
  %2743 = vmatprep.subr.mxu0 0.0
  %2744 = vmatpush1.msra.mxu0 0.0
  %2745 = vmatprep.subr.mxu0 0.0
  %2746 = vmatpush1.msra.mxu0 0.0
  %2747 = vmatprep.subr.mxu0 0.0
  %2748 = vmatpush1.msra.mxu0 0.0
  %2749 = vmatprep.subr.mxu0 0.0
  %2750 = vmatpush1.msra.mxu0 0.0
  %2751 = vmatprep.subr.mxu0 0.0
  %2752 = vmatpush1.msra.mxu0 0.0
  %2753 = vmatprep.subr.mxu0 0.0
  %2754 = vmatpush1.msra.mxu0 0.0
  %2755 = vmatprep.subr.mxu0 0.0
  %2756 = vmatpush1.msra.mxu0 0.0
  %2757 = vmatprep.subr.mxu0 0.0
  %2758 = vmatpush1.msra.mxu0 0.0
  %2759 = vmatprep.subr.mxu0 0.0
  %2760 = vmatpush1.msra.mxu0 0.0
  %2761 = vmatprep.subr.mxu0 0.0
  %2762 = vmatpush1.msra.mxu0 0.0
  %2763 = vmatprep.subr.mxu0 0.0
  %2764 = vmatpush1.msra.mxu0 0.0
  %2765 = vmatprep.subr.mxu0 0.0
  %2766 = vmatpush1.msra.mxu0 0.0
  %2767 = vmatprep.subr.mxu0 0.0
  %2768 = vmatpush1.msra.mxu0 0.0
  %2769 = vmatprep.subr.mxu0 0.0
  %2770 = vmatpush1.msra.mxu0 0.0
  %2771 = vmatprep.subr.mxu0 0.0
  %2772 = vmatpush1.msra.mxu0 0.0
  %2773 = vmatprep.subr.mxu0 0.0
  %2774 = vmatpush1.msra.mxu0 0.0
  %2775 = vmatprep.subr.mxu0 0.0
  %2776 = vmatpush1.msra.mxu0 0.0
  %2777 = vmatprep.subr.mxu0 0.0
  %2778 = vmatpush1.msra.mxu0 0.0
  %2779 = vmatprep.subr.mxu0 0.0
  %2780 = vmatpush1.msra.mxu0 0.0
  %2781 = vmatprep.mubr.f32.mxu0 0.0
  %2782 = vmatmul.mubr.f32.gmra.mrb[0].mxu0 %v2715
  %v2783 = vpop.f32.mrb[0].mxu0
  %v2784 = vadd.f32 0.0, %v2783
  %v2785 = vpop.f32.mrb[0].mxu0
  %2786 = vdwg.mxu0
  %v2787 = vadd.f32 %v2386, %v2709
  %v2788 = vsub.f32 0.0, %v2787
  %v2789 = vmul.f32 %v2788, 1.442695
  %v2790 = vpow.pop %v2789
  %v2791 = vadd.f32 %v2790, 1.0
  %v2792 = vrcp.pop %v2791
  %v2793 = vmul.f32 1.0, %v2792
  %v2794 = vadd.f32 %v2709, %v2561
  %2796 = vrot.lane.b32.xlu0 %v2794, 96
  %v2797 = vpop.permute.xlu0 %2796
  %v2799 = vmul.f32 %v2793, %v2797
  %2801 = vrot.lane.b32.xlu0 %v2799, 32
  %v2802 = vpop.permute.xlu0 %2801
  %v2804 = vadd.f32 %v2386, %v2802
  %v2805 = vtanh.pop %v2804
  %2807 = vrot.lane.b32.xlu0 %v2784, 48
  %v2808 = vpop.permute.xlu0 %2807
  %v2810 = vadd.f32 %v2391, %v2808
  %v2811 = vsub.f32 0.0, %v2810
  %v2812 = vmul.f32 %v2811, 1.442695
  %v2813 = vpow.pop %v2812
  %v2814 = vadd.f32 %v2813, 1.0
  %v2815 = vrcp.pop %v2814
  %v2816 = vmul.f32 1.0, %v2815
  %v2817 = vadd.f32 %v2784, %v2587
  %2819 = vrot.lane.b32.xlu0 %v2817, 16
  %v2820 = vpop.permute.xlu0 %2819
  %v2822 = vmul.f32 %v2816, %v2820
  %2824 = vrot.lane.b32.xlu0 %v2822, 32
  %v2825 = vpop.permute.xlu0 %2824
  %v2827 = vadd.f32 %v2391, %v2825
  %v2828 = vtanh.pop %v2827
  %v2829 = vsub.f32 %v2624, %v2805
  %2831 = vrot.lane.b32.xlu0 %v2829, 112
  %v2832 = vpop.permute.xlu0 %2831
  %v2834 = vmul.f32 %v2793, %v2832
  %2836 = vrot.lane.b32.xlu0 %v2834, 16
  %v2837 = vpop.permute.xlu0 %2836
  %v2839 = vadd.f32 %v2805, %v2837
  %v2840 = vsub.f32 %v2626, %v2828
  %2842 = vrot.lane.b32.xlu0 %v2840, 112
  %v2843 = vpop.permute.xlu0 %2842
  %v2845 = vmul.f32 %v2816, %v2843
  %2847 = vrot.lane.b32.xlu0 %v2845, 16
  %v2848 = vpop.permute.xlu0 %2847
  %v2850 = vadd.f32 %v2828, %v2848
  %v2851 = vsub.f32 %v2839, %v2624
  %v2852 = vmul.f32 %v453, %v2851
  %v2853 = vadd.f32 %v2624, %v2852
  %v2854 = vsub.f32 %v2850, %v2626
  %v2855 = vmul.f32 %v458, %v2854
  %v2856 = vadd.f32 %v2626, %v2855
  %v2857 = vmul.f32 %v453, %v2839
  %v2858 = vmul.f32 %v458, %v2850
  %v2859 = vsub.f32 %v2857, %v2623
  %2861 = vrot.lane.b32.xlu0 %v2859, 96
  %v2862 = vpop.permute.xlu0 %2861
  %2864 = vst.msk [vmem:[#allocation4 + $0x8] sm:$0xff] %vm222, %v2862
  %v2865 = vsub.f32 %v2858, %v2625
  %2867 = vrot.lane.b32.xlu0 %v2865, 48
  %v2868 = vpop.permute.xlu0 %2867
  %2870 = vst.msk [vmem:[#allocation5 + $0x30] sm:$0xff] %vm222, %v2868
  %2872 = vrot.lane.b32.xlu0 %v2853, 96
  %v2873 = vpop.permute.xlu0 %2872
  %v2874 = vsel %vm222, %v2873, 0
  %2876 = vmatprep.subr.mxu0 0.0
  %2877 = vmatpush1.msra.mxu0 %v2394
  %2878 = vmatprep.subr.mxu0 0.0
  %2879 = vmatpush1.msra.mxu0 %v2395
  %2880 = vmatprep.subr.mxu0 0.0
  %2881 = vmatpush1.msra.mxu0 0.0
  %2882 = vmatprep.subr.mxu0 0.0
  %2883 = vmatpush1.msra.mxu0 0.0
  %2884 = vmatprep.subr.mxu0 0.0
  %2885 = vmatpush1.msra.mxu0 0.0
  %2886 = vmatprep.subr.mxu0 0.0
  %2887 = vmatpush1.msra.mxu0 0.0
  %2888 = vmatprep.subr.mxu0 0.0
  %2889 = vmatpush1.msra.mxu0 0.0
  %2890 = vmatprep.subr.mxu0 0.0
  %2891 = vmatpush1.msra.mxu0 0.0
  %2892 = vmatprep.subr.mxu0 0.0
  %2893 = vmatpush1.msra.mxu0 0.0
  %2894 = vmatprep.subr.mxu0 0.0
  %2895 = vmatpush1.msra.mxu0 0.0
  %2896 = vmatprep.subr.mxu0 0.0
  %2897 = vmatpush1.msra.mxu0 0.0
  %2898 = vmatprep.subr.mxu0 0.0
  %2899 = vmatpush1.msra.mxu0 0.0
  %2900 = vmatprep.subr.mxu0 0.0
  %2901 = vmatpush1.msra.mxu0 0.0
  %2902 = vmatprep.subr.mxu0 0.0
  %2903 = vmatpush1.msra.mxu0 0.0
  %2904 = vmatprep.subr.mxu0 0.0
  %2905 = vmatpush1.msra.mxu0 0.0
  %2906 = vmatprep.subr.mxu0 0.0
  %2907 = vmatpush1.msra.mxu0 0.0
  %2908 = vmatprep.subr.mxu0 0.0
  %2909 = vmatpush1.msra.mxu0 0.0
  %2910 = vmatprep.subr.mxu0 0.0
  %2911 = vmatpush1.msra.mxu0 0.0
  %2912 = vmatprep.subr.mxu0 0.0
  %2913 = vmatpush1.msra.mxu0 0.0
  %2914 = vmatprep.subr.mxu0 0.0
  %2915 = vmatpush1.msra.mxu0 0.0
  %2916 = vmatprep.subr.mxu0 0.0
  %2917 = vmatpush1.msra.mxu0 0.0
  %2918 = vmatprep.subr.mxu0 0.0
  %2919 = vmatpush1.msra.mxu0 0.0
  %2920 = vmatprep.subr.mxu0 0.0
  %2921 = vmatpush1.msra.mxu0 0.0
  %2922 = vmatprep.subr.mxu0 0.0
  %2923 = vmatpush1.msra.mxu0 0.0
  %2924 = vmatprep.subr.mxu0 0.0
  %2925 = vmatpush1.msra.mxu0 0.0
  %2926 = vmatprep.subr.mxu0 0.0
  %2927 = vmatpush1.msra.mxu0 0.0
  %2928 = vmatprep.subr.mxu0 0.0
  %2929 = vmatpush1.msra.mxu0 0.0
  %2930 = vmatprep.subr.mxu0 0.0
  %2931 = vmatpush1.msra.mxu0 0.0
  %2932 = vmatprep.subr.mxu0 0.0
  %2933 = vmatpush1.msra.mxu0 0.0
  %2934 = vmatprep.subr.mxu0 0.0
  %2935 = vmatpush1.msra.mxu0 0.0
  %2936 = vmatprep.subr.mxu0 0.0
  %2937 = vmatpush1.msra.mxu0 0.0
  %2938 = vmatprep.subr.mxu0 0.0
  %2939 = vmatpush1.msra.mxu0 0.0
  %2940 = vmatprep.mubr.f32.mxu0 0.0
  %2941 = vmatmul.mubr.f32.gmra.mrb[0].mxu0 %v2874
  %v2942 = vpop.f32.mrb[0].mxu0
  %v2943 = vadd.f32 0.0, %v2942
  %v2944 = vpop.f32.mrb[0].mxu0
  %2945 = vdwg.mxu0
  %2947 = vrot.lane.b32.xlu0 %v2856, 48
  %v2948 = vpop.permute.xlu0 %2947
  %v2949 = vsel %vm222, %v2948, 0
  %2951 = vmatprep.subr.mxu0 0.0
  %2952 = vmatpush1.msra.mxu0 %v2397
  %2953 = vmatprep.subr.mxu0 0.0
  %2954 = vmatpush1.msra.mxu0 %v2398
  %2955 = vmatprep.subr.mxu0 0.0
  %2956 = vmatpush1.msra.mxu0 0.0
  %2957 = vmatprep.subr.mxu0 0.0
  %2958 = vmatpush1.msra.mxu0 0.0
  %2959 = vmatprep.subr.mxu0 0.0
  %2960 = vmatpush1.msra.mxu0 0.0
  %2961 = vmatprep.subr.mxu0 0.0
  %2962 = vmatpush1.msra.mxu0 0.0
  %2963 = vmatprep.subr.mxu0 0.0
  %2964 = vmatpush1.msra.mxu0 0.0
  %2965 = vmatprep.subr.mxu0 0.0
  %2966 = vmatpush1.msra.mxu0 0.0
  %2967 = vmatprep.subr.mxu0 0.0
  %2968 = vmatpush1.msra.mxu0 0.0
  %2969 = vmatprep.subr.mxu0 0.0
  %2970 = vmatpush1.msra.mxu0 0.0
  %2971 = vmatprep.subr.mxu0 0.0
  %2972 = vmatpush1.msra.mxu0 0.0
  %2973 = vmatprep.subr.mxu0 0.0
  %2974 = vmatpush1.msra.mxu0 0.0
  %2975 = vmatprep.subr.mxu0 0.0
  %2976 = vmatpush1.msra.mxu0 0.0
  %2977 = vmatprep.subr.mxu0 0.0
  %2978 = vmatpush1.msra.mxu0 0.0
  %2979 = vmatprep.subr.mxu0 0.0
  %2980 = vmatpush1.msra.mxu0 0.0
  %2981 = vmatprep.subr.mxu0 0.0
  %2982 = vmatpush1.msra.mxu0 0.0
  %2983 = vmatprep.subr.mxu0 0.0
  %2984 = vmatpush1.msra.mxu0 0.0
  %2985 = vmatprep.subr.mxu0 0.0
  %2986 = vmatpush1.msra.mxu0 0.0
  %2987 = vmatprep.subr.mxu0 0.0
  %2988 = vmatpush1.msra.mxu0 0.0
  %2989 = vmatprep.subr.mxu0 0.0
  %2990 = vmatpush1.msra.mxu0 0.0
  %2991 = vmatprep.subr.mxu0 0.0
  %2992 = vmatpush1.msra.mxu0 0.0
  %2993 = vmatprep.subr.mxu0 0.0
  %2994 = vmatpush1.msra.mxu0 0.0
  %2995 = vmatprep.subr.mxu0 0.0
  %2996 = vmatpush1.msra.mxu0 0.0
  %2997 = vmatprep.subr.mxu0 0.0
  %2998 = vmatpush1.msra.mxu0 0.0
  %2999 = vmatprep.subr.mxu0 0.0
  %3000 = vmatpush1.msra.mxu0 0.0
  %3001 = vmatprep.subr.mxu0 0.0
  %3002 = vmatpush1.msra.mxu0 0.0
  %3003 = vmatprep.subr.mxu0 0.0
  %3004 = vmatpush1.msra.mxu0 0.0
  %3005 = vmatprep.subr.mxu0 0.0
  %3006 = vmatpush1.msra.mxu0 0.0
  %3007 = vmatprep.subr.mxu0 0.0
  %3008 = vmatpush1.msra.mxu0 0.0
  %3009 = vmatprep.subr.mxu0 0.0
  %3010 = vmatpush1.msra.mxu0 0.0
  %3011 = vmatprep.subr.mxu0 0.0
  %3012 = vmatpush1.msra.mxu0 0.0
  %3013 = vmatprep.subr.mxu0 0.0
  %3014 = vmatpush1.msra.mxu0 0.0
  %3015 = vmatprep.mubr.f32.mxu0 0.0
  %3016 = vmatmul.mubr.f32.gmra.mrb[0].mxu0 %v2949
  %v3017 = vpop.f32.mrb[0].mxu0
  %v3018 = vadd.f32 0.0, %v3017
  %v3019 = vpop.f32.mrb[0].mxu0
  %3020 = vdwg.mxu0
  %v3021 = vadd.f32 %v2387, %v2943
  %v3022 = vsub.f32 0.0, %v3021
  %v3023 = vmul.f32 %v3022, 1.442695
  %v3024 = vpow.pop %v3023
  %v3025 = vadd.f32 %v3024, 1.0
  %v3026 = vrcp.pop %v3025
  %v3027 = vmul.f32 1.0, %v3026
  %v3028 = vadd.f32 %v2943, %v2561
  %3030 = vrot.lane.b32.xlu0 %v3028, 96
  %v3031 = vpop.permute.xlu0 %3030
  %v3033 = vmul.f32 %v3027, %v3031
  %3035 = vrot.lane.b32.xlu0 %v3033, 32
  %v3036 = vpop.permute.xlu0 %3035
  %v3038 = vadd.f32 %v2387, %v3036
  %v3039 = vtanh.pop %v3038
  %3041 = vrot.lane.b32.xlu0 %v3018, 48
  %v3042 = vpop.permute.xlu0 %3041
  %v3044 = vadd.f32 %v2390, %v3042
  %v3045 = vsub.f32 0.0, %v3044
  %v3046 = vmul.f32 %v3045, 1.442695
  %v3047 = vpow.pop %v3046
  %v3048 = vadd.f32 %v3047, 1.0
  %v3049 = vrcp.pop %v3048
  %v3050 = vmul.f32 1.0, %v3049
  %v3051 = vadd.f32 %v3018, %v2587
  %3053 = vrot.lane.b32.xlu0 %v3051, 16
  %v3054 = vpop.permute.xlu0 %3053
  %v3056 = vmul.f32 %v3050, %v3054
  %3058 = vrot.lane.b32.xlu0 %v3056, 32
  %v3059 = vpop.permute.xlu0 %3058
  %v3061 = vadd.f32 %v2390, %v3059
  %v3062 = vtanh.pop %v3061
  %v3063 = vsub.f32 %v2853, %v3039
  %3065 = vrot.lane.b32.xlu0 %v3063, 112
  %v3066 = vpop.permute.xlu0 %3065
  %v3068 = vmul.f32 %v3027, %v3066
  %3070 = vrot.lane.b32.xlu0 %v3068, 16
  %v3071 = vpop.permute.xlu0 %3070
  %v3073 = vadd.f32 %v3039, %v3071
  %v3074 = vsub.f32 %v2856, %v3062
  %3076 = vrot.lane.b32.xlu0 %v3074, 112
  %v3077 = vpop.permute.xlu0 %3076
  %v3079 = vmul.f32 %v3050, %v3077
  %3081 = vrot.lane.b32.xlu0 %v3079, 16
  %v3082 = vpop.permute.xlu0 %3081
  %v3084 = vadd.f32 %v3062, %v3082
  %v3085 = vsub.f32 %v3073, %v2853
  %v3086 = vmul.f32 %v695, %v3085
  %v3087 = vadd.f32 %v2853, %v3086
  %v3088 = vsub.f32 %v3084, %v2856
  %v3089 = vmul.f32 %v700, %v3088
  %v3090 = vadd.f32 %v2856, %v3089
  %v3091 = vmul.f32 %v695, %v3073
  %v3092 = vmul.f32 %v700, %v3084
  %v3093 = vsub.f32 %v3091, %v2857
  %3095 = vrot.lane.b32.xlu0 %v3093, 96
  %v3096 = vpop.permute.xlu0 %3095
  %3098 = vst.msk [vmem:[#allocation4 + $0x10] sm:$0xff] %vm222, %v3096
  %v3099 = vsub.f32 %v3092, %v2858
  %3101 = vrot.lane.b32.xlu0 %v3099, 48
  %v3102 = vpop.permute.xlu0 %3101
  %3104 = vst.msk [vmem:[#allocation5 + $0x28] sm:$0xff] %vm222, %v3102
  %3106 = vrot.lane.b32.xlu0 %v3087, 96
  %v3107 = vpop.permute.xlu0 %3106
  %v3108 = vsel %vm222, %v3107, 0
  %3110 = vmatprep.subr.mxu0 0.0
  %3111 = vmatpush1.msra.mxu0 %v2394
  %3112 = vmatprep.subr.mxu0 0.0
  %3113 = vmatpush1.msra.mxu0 %v2395
  %3114 = vmatprep.subr.mxu0 0.0
  %3115 = vmatpush1.msra.mxu0 0.0
  %3116 = vmatprep.subr.mxu0 0.0
  %3117 = vmatpush1.msra.mxu0 0.0
  %3118 = vmatprep.subr.mxu0 0.0
  %3119 = vmatpush1.msra.mxu0 0.0
  %3120 = vmatprep.subr.mxu0 0.0
  %3121 = vmatpush1.msra.mxu0 0.0
  %3122 = vmatprep.subr.mxu0 0.0
  %3123 = vmatpush1.msra.mxu0 0.0
  %3124 = vmatprep.subr.mxu0 0.0
  %3125 = vmatpush1.msra.mxu0 0.0
  %3126 = vmatprep.subr.mxu0 0.0
  %3127 = vmatpush1.msra.mxu0 0.0
  %3128 = vmatprep.subr.mxu0 0.0
  %3129 = vmatpush1.msra.mxu0 0.0
  %3130 = vmatprep.subr.mxu0 0.0
  %3131 = vmatpush1.msra.mxu0 0.0
  %3132 = vmatprep.subr.mxu0 0.0
  %3133 = vmatpush1.msra.mxu0 0.0
  %3134 = vmatprep.subr.mxu0 0.0
  %3135 = vmatpush1.msra.mxu0 0.0
  %3136 = vmatprep.subr.mxu0 0.0
  %3137 = vmatpush1.msra.mxu0 0.0
  %3138 = vmatprep.subr.mxu0 0.0
  %3139 = vmatpush1.msra.mxu0 0.0
  %3140 = vmatprep.subr.mxu0 0.0
  %3141 = vmatpush1.msra.mxu0 0.0
  %3142 = vmatprep.subr.mxu0 0.0
  %3143 = vmatpush1.msra.mxu0 0.0
  %3144 = vmatprep.subr.mxu0 0.0
  %3145 = vmatpush1.msra.mxu0 0.0
  %3146 = vmatprep.subr.mxu0 0.0
  %3147 = vmatpush1.msra.mxu0 0.0
  %3148 = vmatprep.subr.mxu0 0.0
  %3149 = vmatpush1.msra.mxu0 0.0
  %3150 = vmatprep.subr.mxu0 0.0
  %3151 = vmatpush1.msra.mxu0 0.0
  %3152 = vmatprep.subr.mxu0 0.0
  %3153 = vmatpush1.msra.mxu0 0.0
  %3154 = vmatprep.subr.mxu0 0.0
  %3155 = vmatpush1.msra.mxu0 0.0
  %3156 = vmatprep.subr.mxu0 0.0
  %3157 = vmatpush1.msra.mxu0 0.0
  %3158 = vmatprep.subr.mxu0 0.0
  %3159 = vmatpush1.msra.mxu0 0.0
  %3160 = vmatprep.subr.mxu0 0.0
  %3161 = vmatpush1.msra.mxu0 0.0
  %3162 = vmatprep.subr.mxu0 0.0
  %3163 = vmatpush1.msra.mxu0 0.0
  %3164 = vmatprep.subr.mxu0 0.0
  %3165 = vmatpush1.msra.mxu0 0.0
  %3166 = vmatprep.subr.mxu0 0.0
  %3167 = vmatpush1.msra.mxu0 0.0
  %3168 = vmatprep.subr.mxu0 0.0
  %3169 = vmatpush1.msra.mxu0 0.0
  %3170 = vmatprep.subr.mxu0 0.0
  %3171 = vmatpush1.msra.mxu0 0.0
  %3172 = vmatprep.subr.mxu0 0.0
  %3173 = vmatpush1.msra.mxu0 0.0
  %3174 = vmatprep.mubr.f32.mxu0 0.0
  %3175 = vmatmul.mubr.f32.gmra.mrb[0].mxu0 %v3108
  %v3176 = vpop.f32.mrb[0].mxu0
  %v3177 = vadd.f32 0.0, %v3176
  %v3178 = vpop.f32.mrb[0].mxu0
  %3179 = vdwg.mxu0
  %3181 = vrot.lane.b32.xlu0 %v3090, 48
  %v3182 = vpop.permute.xlu0 %3181
  %v3183 = vsel %vm222, %v3182, 0
  %3185 = vmatprep.subr.mxu0 0.0
  %3186 = vmatpush1.msra.mxu0 %v2397
  %3187 = vmatprep.subr.mxu0 0.0
  %3188 = vmatpush1.msra.mxu0 %v2398
  %3189 = vmatprep.subr.mxu0 0.0
  %3190 = vmatpush1.msra.mxu0 0.0
  %3191 = vmatprep.subr.mxu0 0.0
  %3192 = vmatpush1.msra.mxu0 0.0
  %3193 = vmatprep.subr.mxu0 0.0
  %3194 = vmatpush1.msra.mxu0 0.0
  %3195 = vmatprep.subr.mxu0 0.0
  %3196 = vmatpush1.msra.mxu0 0.0
  %3197 = vmatprep.subr.mxu0 0.0
  %3198 = vmatpush1.msra.mxu0 0.0
  %3199 = vmatprep.subr.mxu0 0.0
  %3200 = vmatpush1.msra.mxu0 0.0
  %3201 = vmatprep.subr.mxu0 0.0
  %3202 = vmatpush1.msra.mxu0 0.0
  %3203 = vmatprep.subr.mxu0 0.0
  %3204 = vmatpush1.msra.mxu0 0.0
  %3205 = vmatprep.subr.mxu0 0.0
  %3206 = vmatpush1.msra.mxu0 0.0
  %3207 = vmatprep.subr.mxu0 0.0
  %3208 = vmatpush1.msra.mxu0 0.0
  %3209 = vmatprep.subr.mxu0 0.0
  %3210 = vmatpush1.msra.mxu0 0.0
  %3211 = vmatprep.subr.mxu0 0.0
  %3212 = vmatpush1.msra.mxu0 0.0
  %3213 = vmatprep.subr.mxu0 0.0
  %3214 = vmatpush1.msra.mxu0 0.0
  %3215 = vmatprep.subr.mxu0 0.0
  %3216 = vmatpush1.msra.mxu0 0.0
  %3217 = vmatprep.subr.mxu0 0.0
  %3218 = vmatpush1.msra.mxu0 0.0
  %3219 = vmatprep.subr.mxu0 0.0
  %3220 = vmatpush1.msra.mxu0 0.0
  %3221 = vmatprep.subr.mxu0 0.0
  %3222 = vmatpush1.msra.mxu0 0.0
  %3223 = vmatprep.subr.mxu0 0.0
  %3224 = vmatpush1.msra.mxu0 0.0
  %3225 = vmatprep.subr.mxu0 0.0
  %3226 = vmatpush1.msra.mxu0 0.0
  %3227 = vmatprep.subr.mxu0 0.0
  %3228 = vmatpush1.msra.mxu0 0.0
  %3229 = vmatprep.subr.mxu0 0.0
  %3230 = vmatpush1.msra.mxu0 0.0
  %3231 = vmatprep.subr.mxu0 0.0
  %3232 = vmatpush1.msra.mxu0 0.0
  %3233 = vmatprep.subr.mxu0 0.0
  %3234 = vmatpush1.msra.mxu0 0.0
  %3235 = vmatprep.subr.mxu0 0.0
  %3236 = vmatpush1.msra.mxu0 0.0
  %3237 = vmatprep.subr.mxu0 0.0
  %3238 = vmatpush1.msra.mxu0 0.0
  %3239 = vmatprep.subr.mxu0 0.0
  %3240 = vmatpush1.msra.mxu0 0.0
  %3241 = vmatprep.subr.mxu0 0.0
  %3242 = vmatpush1.msra.mxu0 0.0
  %3243 = vmatprep.subr.mxu0 0.0
  %3244 = vmatpush1.msra.mxu0 0.0
  %3245 = vmatprep.subr.mxu0 0.0
  %3246 = vmatpush1.msra.mxu0 0.0
  %3247 = vmatprep.subr.mxu0 0.0
  %3248 = vmatpush1.msra.mxu0 0.0
  %3249 = vmatprep.mubr.f32.mxu0 0.0
  %3250 = vmatmul.mubr.f32.gmra.mrb[0].mxu0 %v3183
  %v3251 = vpop.f32.mrb[0].mxu0
  %v3252 = vadd.f32 0.0, %v3251
  %v3253 = vpop.f32.mrb[0].mxu0
  %3254 = vdwg.mxu0
  %v3255 = vadd.f32 %v2388, %v3177
  %v3256 = vsub.f32 0.0, %v3255
  %v3257 = vmul.f32 %v3256, 1.442695
  %v3258 = vpow.pop %v3257
  %v3259 = vadd.f32 %v3258, 1.0
  %v3260 = vrcp.pop %v3259
  %v3261 = vmul.f32 1.0, %v3260
  %v3262 = vadd.f32 %v3177, %v2561
  %3264 = vrot.lane.b32.xlu0 %v3262, 96
  %v3265 = vpop.permute.xlu0 %3264
  %v3267 = vmul.f32 %v3261, %v3265
  %3269 = vrot.lane.b32.xlu0 %v3267, 32
  %v3270 = vpop.permute.xlu0 %3269
  %v3272 = vadd.f32 %v2388, %v3270
  %v3273 = vtanh.pop %v3272
  %3275 = vrot.lane.b32.xlu0 %v3252, 48
  %v3276 = vpop.permute.xlu0 %3275
  %v3278 = vadd.f32 %v2389, %v3276
  %v3279 = vsub.f32 0.0, %v3278
  %v3280 = vmul.f32 %v3279, 1.442695
  %v3281 = vpow.pop %v3280
  %v3282 = vadd.f32 %v3281, 1.0
  %v3283 = vrcp.pop %v3282
  %v3284 = vmul.f32 1.0, %v3283
  %v3285 = vadd.f32 %v3252, %v2587
  %3287 = vrot.lane.b32.xlu0 %v3285, 16
  %v3288 = vpop.permute.xlu0 %3287
  %v3290 = vmul.f32 %v3284, %v3288
  %3292 = vrot.lane.b32.xlu0 %v3290, 32
  %v3293 = vpop.permute.xlu0 %3292
  %v3295 = vadd.f32 %v2389, %v3293
  %v3296 = vtanh.pop %v3295
  %v3297 = vsub.f32 %v3087, %v3273
  %3299 = vrot.lane.b32.xlu0 %v3297, 112
  %v3300 = vpop.permute.xlu0 %3299
  %v3302 = vmul.f32 %v3261, %v3300
  %3304 = vrot.lane.b32.xlu0 %v3302, 16
  %v3305 = vpop.permute.xlu0 %3304
  %v3307 = vadd.f32 %v3273, %v3305
  %v3308 = vsub.f32 %v3090, %v3296
  %3310 = vrot.lane.b32.xlu0 %v3308, 112
  %v3311 = vpop.permute.xlu0 %3310
  %v3313 = vmul.f32 %v3284, %v3311
  %3315 = vrot.lane.b32.xlu0 %v3313, 16
  %v3316 = vpop.permute.xlu0 %3315
  %v3318 = vadd.f32 %v3296, %v3316
  %v3319 = vsub.f32 %v3307, %v3087
  %v3320 = vmul.f32 %v937, %v3319
  %v3321 = vadd.f32 %v3087, %v3320
  %v3322 = vsub.f32 %v3318, %v3090
  %v3323 = vmul.f32 %v942, %v3322
  %v3324 = vadd.f32 %v3090, %v3323
  %v3325 = vmul.f32 %v937, %v3307
  %v3326 = vmul.f32 %v942, %v3318
  %v3327 = vsub.f32 %v3325, %v3091
  %3329 = vrot.lane.b32.xlu0 %v3327, 96
  %v3330 = vpop.permute.xlu0 %3329
  %3332 = vst.msk [vmem:[#allocation4 + $0x18] sm:$0xff] %vm222, %v3330
  %v3333 = vsub.f32 %v3326, %v3092
  %3335 = vrot.lane.b32.xlu0 %v3333, 48
  %v3336 = vpop.permute.xlu0 %3335
  %3338 = vst.msk [vmem:[#allocation5 + $0x20] sm:$0xff] %vm222, %v3336
  %3340 = vrot.lane.b32.xlu0 %v3321, 96
  %v3341 = vpop.permute.xlu0 %3340
  %v3342 = vsel %vm222, %v3341, 0
  %3344 = vmatprep.subr.mxu0 0.0
  %3345 = vmatpush1.msra.mxu0 %v2394
  %3346 = vmatprep.subr.mxu0 0.0
  %3347 = vmatpush1.msra.mxu0 %v2395
  %3348 = vmatprep.subr.mxu0 0.0
  %3349 = vmatpush1.msra.mxu0 0.0
  %3350 = vmatprep.subr.mxu0 0.0
  %3351 = vmatpush1.msra.mxu0 0.0
  %3352 = vmatprep.subr.mxu0 0.0
  %3353 = vmatpush1.msra.mxu0 0.0
  %3354 = vmatprep.subr.mxu0 0.0
  %3355 = vmatpush1.msra.mxu0 0.0
  %3356 = vmatprep.subr.mxu0 0.0
  %3357 = vmatpush1.msra.mxu0 0.0
  %3358 = vmatprep.subr.mxu0 0.0
  %3359 = vmatpush1.msra.mxu0 0.0
  %3360 = vmatprep.subr.mxu0 0.0
  %3361 = vmatpush1.msra.mxu0 0.0
  %3362 = vmatprep.subr.mxu0 0.0
  %3363 = vmatpush1.msra.mxu0 0.0
  %3364 = vmatprep.subr.mxu0 0.0
  %3365 = vmatpush1.msra.mxu0 0.0
  %3366 = vmatprep.subr.mxu0 0.0
  %3367 = vmatpush1.msra.mxu0 0.0
  %3368 = vmatprep.subr.mxu0 0.0
  %3369 = vmatpush1.msra.mxu0 0.0
  %3370 = vmatprep.subr.mxu0 0.0
  %3371 = vmatpush1.msra.mxu0 0.0
  %3372 = vmatprep.subr.mxu0 0.0
  %3373 = vmatpush1.msra.mxu0 0.0
  %3374 = vmatprep.subr.mxu0 0.0
  %3375 = vmatpush1.msra.mxu0 0.0
  %3376 = vmatprep.subr.mxu0 0.0
  %3377 = vmatpush1.msra.mxu0 0.0
  %3378 = vmatprep.subr.mxu0 0.0
  %3379 = vmatpush1.msra.mxu0 0.0
  %3380 = vmatprep.subr.mxu0 0.0
  %3381 = vmatpush1.msra.mxu0 0.0
  %3382 = vmatprep.subr.mxu0 0.0
  %3383 = vmatpush1.msra.mxu0 0.0
  %3384 = vmatprep.subr.mxu0 0.0
  %3385 = vmatpush1.msra.mxu0 0.0
  %3386 = vmatprep.subr.mxu0 0.0
  %3387 = vmatpush1.msra.mxu0 0.0
  %3388 = vmatprep.subr.mxu0 0.0
  %3389 = vmatpush1.msra.mxu0 0.0
  %3390 = vmatprep.subr.mxu0 0.0
  %3391 = vmatpush1.msra.mxu0 0.0
  %3392 = vmatprep.subr.mxu0 0.0
  %3393 = vmatpush1.msra.mxu0 0.0
  %3394 = vmatprep.subr.mxu0 0.0
  %3395 = vmatpush1.msra.mxu0 0.0
  %3396 = vmatprep.subr.mxu0 0.0
  %3397 = vmatpush1.msra.mxu0 0.0
  %3398 = vmatprep.subr.mxu0 0.0
  %3399 = vmatpush1.msra.mxu0 0.0
  %3400 = vmatprep.subr.mxu0 0.0
  %3401 = vmatpush1.msra.mxu0 0.0
  %3402 = vmatprep.subr.mxu0 0.0
  %3403 = vmatpush1.msra.mxu0 0.0
  %3404 = vmatprep.subr.mxu0 0.0
  %3405 = vmatpush1.msra.mxu0 0.0
  %3406 = vmatprep.subr.mxu0 0.0
  %3407 = vmatpush1.msra.mxu0 0.0
  %3408 = vmatprep.mubr.f32.mxu0 0.0
  %3409 = vmatmul.mubr.f32.gmra.mrb[0].mxu0 %v3342
  %v3410 = vpop.f32.mrb[0].mxu0
  %v3411 = vadd.f32 0.0, %v3410
  %v3412 = vpop.f32.mrb[0].mxu0
  %3413 = vdwg.mxu0
  %3415 = vrot.lane.b32.xlu0 %v3324, 48
  %v3416 = vpop.permute.xlu0 %3415
  %v3417 = vsel %vm222, %v3416, 0
  %3419 = vmatprep.subr.mxu0 0.0
  %3420 = vmatpush1.msra.mxu0 %v2397
  %3421 = vmatprep.subr.mxu0 0.0
  %3422 = vmatpush1.msra.mxu0 %v2398
  %3423 = vmatprep.subr.mxu0 0.0
  %3424 = vmatpush1.msra.mxu0 0.0
  %3425 = vmatprep.subr.mxu0 0.0
  %3426 = vmatpush1.msra.mxu0 0.0
  %3427 = vmatprep.subr.mxu0 0.0
  %3428 = vmatpush1.msra.mxu0 0.0
  %3429 = vmatprep.subr.mxu0 0.0
  %3430 = vmatpush1.msra.mxu0 0.0
  %3431 = vmatprep.subr.mxu0 0.0
  %3432 = vmatpush1.msra.mxu0 0.0
  %3433 = vmatprep.subr.mxu0 0.0
  %3434 = vmatpush1.msra.mxu0 0.0
  %3435 = vmatprep.subr.mxu0 0.0
  %3436 = vmatpush1.msra.mxu0 0.0
  %3437 = vmatprep.subr.mxu0 0.0
  %3438 = vmatpush1.msra.mxu0 0.0
  %3439 = vmatprep.subr.mxu0 0.0
  %3440 = vmatpush1.msra.mxu0 0.0
  %3441 = vmatprep.subr.mxu0 0.0
  %3442 = vmatpush1.msra.mxu0 0.0
  %3443 = vmatprep.subr.mxu0 0.0
  %3444 = vmatpush1.msra.mxu0 0.0
  %3445 = vmatprep.subr.mxu0 0.0
  %3446 = vmatpush1.msra.mxu0 0.0
  %3447 = vmatprep.subr.mxu0 0.0
  %3448 = vmatpush1.msra.mxu0 0.0
  %3449 = vmatprep.subr.mxu0 0.0
  %3450 = vmatpush1.msra.mxu0 0.0
  %3451 = vmatprep.subr.mxu0 0.0
  %3452 = vmatpush1.msra.mxu0 0.0
  %3453 = vmatprep.subr.mxu0 0.0
  %3454 = vmatpush1.msra.mxu0 0.0
  %3455 = vmatprep.subr.mxu0 0.0
  %3456 = vmatpush1.msra.mxu0 0.0
  %3457 = vmatprep.subr.mxu0 0.0
  %3458 = vmatpush1.msra.mxu0 0.0
  %3459 = vmatprep.subr.mxu0 0.0
  %3460 = vmatpush1.msra.mxu0 0.0
  %3461 = vmatprep.subr.mxu0 0.0
  %3462 = vmatpush1.msra.mxu0 0.0
  %3463 = vmatprep.subr.mxu0 0.0
  %3464 = vmatpush1.msra.mxu0 0.0
  %3465 = vmatprep.subr.mxu0 0.0
  %3466 = vmatpush1.msra.mxu0 0.0
  %3467 = vmatprep.subr.mxu0 0.0
  %3468 = vmatpush1.msra.mxu0 0.0
  %3469 = vmatprep.subr.mxu0 0.0
  %3470 = vmatpush1.msra.mxu0 0.0
  %3471 = vmatprep.subr.mxu0 0.0
  %3472 = vmatpush1.msra.mxu0 0.0
  %3473 = vmatprep.subr.mxu0 0.0
  %3474 = vmatpush1.msra.mxu0 0.0
  %3475 = vmatprep.subr.mxu0 0.0
  %3476 = vmatpush1.msra.mxu0 0.0
  %3477 = vmatprep.subr.mxu0 0.0
  %3478 = vmatpush1.msra.mxu0 0.0
  %3479 = vmatprep.subr.mxu0 0.0
  %3480 = vmatpush1.msra.mxu0 0.0
  %3481 = vmatprep.subr.mxu0 0.0
  %3482 = vmatpush1.msra.mxu0 0.0
  %3483 = vmatprep.mubr.f32.mxu0 0.0
  %3484 = vmatmul.mubr.f32.gmra.mrb[0].mxu0 %v3417
  %v3485 = vpop.f32.mrb[0].mxu0
  %v3486 = vadd.f32 0.0, %v3485
  %v3487 = vpop.f32.mrb[0].mxu0
  %3488 = vdwg.mxu0
  %v3489 = vadd.f32 %v2389, %v3411
  %v3490 = vsub.f32 0.0, %v3489
  %v3491 = vmul.f32 %v3490, 1.442695
  %v3492 = vpow.pop %v3491
  %v3493 = vadd.f32 %v3492, 1.0
  %v3494 = vrcp.pop %v3493
  %v3495 = vmul.f32 1.0, %v3494
  %v3496 = vadd.f32 %v3411, %v2561
  %3498 = vrot.lane.b32.xlu0 %v3496, 96
  %v3499 = vpop.permute.xlu0 %3498
  %v3501 = vmul.f32 %v3495, %v3499
  %3503 = vrot.lane.b32.xlu0 %v3501, 32
  %v3504 = vpop.permute.xlu0 %3503
  %v3506 = vadd.f32 %v2389, %v3504
  %v3507 = vtanh.pop %v3506
  %3509 = vrot.lane.b32.xlu0 %v3486, 48
  %v3510 = vpop.permute.xlu0 %3509
  %v3512 = vadd.f32 %v2388, %v3510
  %v3513 = vsub.f32 0.0, %v3512
  %v3514 = vmul.f32 %v3513, 1.442695
  %v3515 = vpow.pop %v3514
  %v3516 = vadd.f32 %v3515, 1.0
  %v3517 = vrcp.pop %v3516
  %v3518 = vmul.f32 1.0, %v3517
  %v3519 = vadd.f32 %v3486, %v2587
  %3521 = vrot.lane.b32.xlu0 %v3519, 16
  %v3522 = vpop.permute.xlu0 %3521
  %v3524 = vmul.f32 %v3518, %v3522
  %3526 = vrot.lane.b32.xlu0 %v3524, 32
  %v3527 = vpop.permute.xlu0 %3526
  %v3529 = vadd.f32 %v2388, %v3527
  %v3530 = vtanh.pop %v3529
  %v3531 = vsub.f32 %v3321, %v3507
  %3533 = vrot.lane.b32.xlu0 %v3531, 112
  %v3534 = vpop.permute.xlu0 %3533
  %v3536 = vmul.f32 %v3495, %v3534
  %3538 = vrot.lane.b32.xlu0 %v3536, 16
  %v3539 = vpop.permute.xlu0 %3538
  %v3541 = vadd.f32 %v3507, %v3539
  %v3542 = vsub.f32 %v3324, %v3530
  %3544 = vrot.lane.b32.xlu0 %v3542, 112
  %v3545 = vpop.permute.xlu0 %3544
  %v3547 = vmul.f32 %v3518, %v3545
  %3549 = vrot.lane.b32.xlu0 %v3547, 16
  %v3550 = vpop.permute.xlu0 %3549
  %v3552 = vadd.f32 %v3530, %v3550
  %v3553 = vsub.f32 %v3541, %v3321
  %v3554 = vmul.f32 %v942, %v3553
  %v3555 = vadd.f32 %v3321, %v3554
  %v3556 = vsub.f32 %v3552, %v3324
  %v3557 = vmul.f32 %v937, %v3556
  %v3558 = vadd.f32 %v3324, %v3557
  %v3559 = vmul.f32 %v942, %v3541
  %v3560 = vmul.f32 %v937, %v3552
  %v3561 = vsub.f32 %v3559, %v3325
  %3563 = vrot.lane.b32.xlu0 %v3561, 96
  %v3564 = vpop.permute.xlu0 %3563
  %3566 = vst.msk [vmem:[#allocation4 + $0x20] sm:$0xff] %vm222, %v3564
  %v3567 = vsub.f32 %v3560, %v3326
  %3569 = vrot.lane.b32.xlu0 %v3567, 48
  %v3570 = vpop.permute.xlu0 %3569
  %3572 = vst.msk [vmem:[#allocation5 + $0x18] sm:$0xff] %vm222, %v3570
  %3574 = vrot.lane.b32.xlu0 %v3555, 96
  %v3575 = vpop.permute.xlu0 %3574
  %v3576 = vsel %vm222, %v3575, 0
  %3578 = vmatprep.subr.mxu0 0.0
  %3579 = vmatpush1.msra.mxu0 %v2394
  %3580 = vmatprep.subr.mxu0 0.0
  %3581 = vmatpush1.msra.mxu0 %v2395
  %3582 = vmatprep.subr.mxu0 0.0
  %3583 = vmatpush1.msra.mxu0 0.0
  %3584 = vmatprep.subr.mxu0 0.0
  %3585 = vmatpush1.msra.mxu0 0.0
  %3586 = vmatprep.subr.mxu0 0.0
  %3587 = vmatpush1.msra.mxu0 0.0
  %3588 = vmatprep.subr.mxu0 0.0
  %3589 = vmatpush1.msra.mxu0 0.0
  %3590 = vmatprep.subr.mxu0 0.0
  %3591 = vmatpush1.msra.mxu0 0.0
  %3592 = vmatprep.subr.mxu0 0.0
  %3593 = vmatpush1.msra.mxu0 0.0
  %3594 = vmatprep.subr.mxu0 0.0
  %3595 = vmatpush1.msra.mxu0 0.0
  %3596 = vmatprep.subr.mxu0 0.0
  %3597 = vmatpush1.msra.mxu0 0.0
  %3598 = vmatprep.subr.mxu0 0.0
  %3599 = vmatpush1.msra.mxu0 0.0
  %3600 = vmatprep.subr.mxu0 0.0
  %3601 = vmatpush1.msra.mxu0 0.0
  %3602 = vmatprep.subr.mxu0 0.0
  %3603 = vmatpush1.msra.mxu0 0.0
  %3604 = vmatprep.subr.mxu0 0.0
  %3605 = vmatpush1.msra.mxu0 0.0
  %3606 = vmatprep.subr.mxu0 0.0
  %3607 = vmatpush1.msra.mxu0 0.0
  %3608 = vmatprep.subr.mxu0 0.0
  %3609 = vmatpush1.msra.mxu0 0.0
  %3610 = vmatprep.subr.mxu0 0.0
  %3611 = vmatpush1.msra.mxu0 0.0
  %3612 = vmatprep.subr.mxu0 0.0
  %3613 = vmatpush1.msra.mxu0 0.0
  %3614 = vmatprep.subr.mxu0 0.0
  %3615 = vmatpush1.msra.mxu0 0.0
  %3616 = vmatprep.subr.mxu0 0.0
  %3617 = vmatpush1.msra.mxu0 0.0
  %3618 = vmatprep.subr.mxu0 0.0
  %3619 = vmatpush1.msra.mxu0 0.0
  %3620 = vmatprep.subr.mxu0 0.0
  %3621 = vmatpush1.msra.mxu0 0.0
  %3622 = vmatprep.subr.mxu0 0.0
  %3623 = vmatpush1.msra.mxu0 0.0
  %3624 = vmatprep.subr.mxu0 0.0
  %3625 = vmatpush1.msra.mxu0 0.0
  %3626 = vmatprep.subr.mxu0 0.0
  %3627 = vmatpush1.msra.mxu0 0.0
  %3628 = vmatprep.subr.mxu0 0.0
  %3629 = vmatpush1.msra.mxu0 0.0
  %3630 = vmatprep.subr.mxu0 0.0
  %3631 = vmatpush1.msra.mxu0 0.0
  %3632 = vmatprep.subr.mxu0 0.0
  %3633 = vmatpush1.msra.mxu0 0.0
  %3634 = vmatprep.subr.mxu0 0.0
  %3635 = vmatpush1.msra.mxu0 0.0
  %3636 = vmatprep.subr.mxu0 0.0
  %3637 = vmatpush1.msra.mxu0 0.0
  %3638 = vmatprep.subr.mxu0 0.0
  %3639 = vmatpush1.msra.mxu0 0.0
  %3640 = vmatprep.subr.mxu0 0.0
  %3641 = vmatpush1.msra.mxu0 0.0
  %3642 = vmatprep.mubr.f32.mxu0 0.0
  %3643 = vmatmul.mubr.f32.gmra.mrb[0].mxu0 %v3576
  %v3644 = vpop.f32.mrb[0].mxu0
  %v3645 = vadd.f32 0.0, %v3644
  %v3646 = vpop.f32.mrb[0].mxu0
  %3647 = vdwg.mxu0
  %3649 = vrot.lane.b32.xlu0 %v3558, 48
  %v3650 = vpop.permute.xlu0 %3649
  %v3651 = vsel %vm222, %v3650, 0
  %3653 = vmatprep.subr.mxu0 0.0
  %3654 = vmatpush1.msra.mxu0 %v2397
  %3655 = vmatprep.subr.mxu0 0.0
  %3656 = vmatpush1.msra.mxu0 %v2398
  %3657 = vmatprep.subr.mxu0 0.0
  %3658 = vmatpush1.msra.mxu0 0.0
  %3659 = vmatprep.subr.mxu0 0.0
  %3660 = vmatpush1.msra.mxu0 0.0
  %3661 = vmatprep.subr.mxu0 0.0
  %3662 = vmatpush1.msra.mxu0 0.0
  %3663 = vmatprep.subr.mxu0 0.0
  %3664 = vmatpush1.msra.mxu0 0.0
  %3665 = vmatprep.subr.mxu0 0.0
  %3666 = vmatpush1.msra.mxu0 0.0
  %3667 = vmatprep.subr.mxu0 0.0
  %3668 = vmatpush1.msra.mxu0 0.0
  %3669 = vmatprep.subr.mxu0 0.0
  %3670 = vmatpush1.msra.mxu0 0.0
  %3671 = vmatprep.subr.mxu0 0.0
  %3672 = vmatpush1.msra.mxu0 0.0
  %3673 = vmatprep.subr.mxu0 0.0
  %3674 = vmatpush1.msra.mxu0 0.0
  %3675 = vmatprep.subr.mxu0 0.0
  %3676 = vmatpush1.msra.mxu0 0.0
  %3677 = vmatprep.subr.mxu0 0.0
  %3678 = vmatpush1.msra.mxu0 0.0
  %3679 = vmatprep.subr.mxu0 0.0
  %3680 = vmatpush1.msra.mxu0 0.0
  %3681 = vmatprep.subr.mxu0 0.0
  %3682 = vmatpush1.msra.mxu0 0.0
  %3683 = vmatprep.subr.mxu0 0.0
  %3684 = vmatpush1.msra.mxu0 0.0
  %3685 = vmatprep.subr.mxu0 0.0
  %3686 = vmatpush1.msra.mxu0 0.0
  %3687 = vmatprep.subr.mxu0 0.0
  %3688 = vmatpush1.msra.mxu0 0.0
  %3689 = vmatprep.subr.mxu0 0.0
  %3690 = vmatpush1.msra.mxu0 0.0
  %3691 = vmatprep.subr.mxu0 0.0
  %3692 = vmatpush1.msra.mxu0 0.0
  %3693 = vmatprep.subr.mxu0 0.0
  %3694 = vmatpush1.msra.mxu0 0.0
  %3695 = vmatprep.subr.mxu0 0.0
  %3696 = vmatpush1.msra.mxu0 0.0
  %3697 = vmatprep.subr.mxu0 0.0
  %3698 = vmatpush1.msra.mxu0 0.0
  %3699 = vmatprep.subr.mxu0 0.0
  %3700 = vmatpush1.msra.mxu0 0.0
  %3701 = vmatprep.subr.mxu0 0.0
  %3702 = vmatpush1.msra.mxu0 0.0
  %3703 = vmatprep.subr.mxu0 0.0
  %3704 = vmatpush1.msra.mxu0 0.0
  %3705 = vmatprep.subr.mxu0 0.0
  %3706 = vmatpush1.msra.mxu0 0.0
  %3707 = vmatprep.subr.mxu0 0.0
  %3708 = vmatpush1.msra.mxu0 0.0
  %3709 = vmatprep.subr.mxu0 0.0
  %3710 = vmatpush1.msra.mxu0 0.0
  %3711 = vmatprep.subr.mxu0 0.0
  %3712 = vmatpush1.msra.mxu0 0.0
  %3713 = vmatprep.subr.mxu0 0.0
  %3714 = vmatpush1.msra.mxu0 0.0
  %3715 = vmatprep.subr.mxu0 0.0
  %3716 = vmatpush1.msra.mxu0 0.0
  %3717 = vmatprep.mubr.f32.mxu0 0.0
  %3718 = vmatmul.mubr.f32.gmra.mrb[0].mxu0 %v3651
  %v3719 = vpop.f32.mrb[0].mxu0
  %v3720 = vadd.f32 0.0, %v3719
  %v3721 = vpop.f32.mrb[0].mxu0
  %3722 = vdwg.mxu0
  %v3723 = vadd.f32 %v2390, %v3645
  %v3724 = vsub.f32 0.0, %v3723
  %v3725 = vmul.f32 %v3724, 1.442695
  %v3726 = vpow.pop %v3725
  %v3727 = vadd.f32 %v3726, 1.0
  %v3728 = vrcp.pop %v3727
  %v3729 = vmul.f32 1.0, %v3728
  %v3730 = vadd.f32 %v3645, %v2561
  %3732 = vrot.lane.b32.xlu0 %v3730, 96
  %v3733 = vpop.permute.xlu0 %3732
  %v3735 = vmul.f32 %v3729, %v3733
  %3737 = vrot.lane.b32.xlu0 %v3735, 32
  %v3738 = vpop.permute.xlu0 %3737
  %v3740 = vadd.f32 %v2390, %v3738
  %v3741 = vtanh.pop %v3740
  %3743 = vrot.lane.b32.xlu0 %v3720, 48
  %v3744 = vpop.permute.xlu0 %3743
  %v3746 = vadd.f32 %v2387, %v3744
  %v3747 = vsub.f32 0.0, %v3746
  %v3748 = vmul.f32 %v3747, 1.442695
  %v3749 = vpow.pop %v3748
  %v3750 = vadd.f32 %v3749, 1.0
  %v3751 = vrcp.pop %v3750
  %v3752 = vmul.f32 1.0, %v3751
  %v3753 = vadd.f32 %v3720, %v2587
  %3755 = vrot.lane.b32.xlu0 %v3753, 16
  %v3756 = vpop.permute.xlu0 %3755
  %v3758 = vmul.f32 %v3752, %v3756
  %3760 = vrot.lane.b32.xlu0 %v3758, 32
  %v3761 = vpop.permute.xlu0 %3760
  %v3763 = vadd.f32 %v2387, %v3761
  %v3764 = vtanh.pop %v3763
  %v3765 = vsub.f32 %v3555, %v3741
  %3767 = vrot.lane.b32.xlu0 %v3765, 112
  %v3768 = vpop.permute.xlu0 %3767
  %v3770 = vmul.f32 %v3729, %v3768
  %3772 = vrot.lane.b32.xlu0 %v3770, 16
  %v3773 = vpop.permute.xlu0 %3772
  %v3775 = vadd.f32 %v3741, %v3773
  %v3776 = vsub.f32 %v3558, %v3764
  %3778 = vrot.lane.b32.xlu0 %v3776, 112
  %v3779 = vpop.permute.xlu0 %3778
  %v3781 = vmul.f32 %v3752, %v3779
  %3783 = vrot.lane.b32.xlu0 %v3781, 16
  %v3784 = vpop.permute.xlu0 %3783
  %v3786 = vadd.f32 %v3764, %v3784
  %v3787 = vsub.f32 %v3775, %v3555
  %v3788 = vmul.f32 %v700, %v3787
  %v3789 = vadd.f32 %v3555, %v3788
  %v3790 = vsub.f32 %v3786, %v3558
  %v3791 = vmul.f32 %v695, %v3790
  %v3792 = vadd.f32 %v3558, %v3791
  %v3793 = vmul.f32 %v700, %v3775
  %v3794 = vmul.f32 %v695, %v3786
  %v3795 = vsub.f32 %v3793, %v3559
  %3797 = vrot.lane.b32.xlu0 %v3795, 96
  %v3798 = vpop.permute.xlu0 %3797
  %3800 = vst.msk [vmem:[#allocation4 + $0x28] sm:$0xff] %vm222, %v3798
  %v3801 = vsub.f32 %v3794, %v3560
  %3803 = vrot.lane.b32.xlu0 %v3801, 48
  %v3804 = vpop.permute.xlu0 %3803
  %3806 = vst.msk [vmem:[#allocation5 + $0x10] sm:$0xff] %vm222, %v3804
  %3808 = vrot.lane.b32.xlu0 %v3789, 96
  %v3809 = vpop.permute.xlu0 %3808
  %v3810 = vsel %vm222, %v3809, 0
  %3812 = vmatprep.subr.mxu0 0.0
  %3813 = vmatpush1.msra.mxu0 %v2394
  %3814 = vmatprep.subr.mxu0 0.0
  %3815 = vmatpush1.msra.mxu0 %v2395
  %3816 = vmatprep.subr.mxu0 0.0
  %3817 = vmatpush1.msra.mxu0 0.0
  %3818 = vmatprep.subr.mxu0 0.0
  %3819 = vmatpush1.msra.mxu0 0.0
  %3820 = vmatprep.subr.mxu0 0.0
  %3821 = vmatpush1.msra.mxu0 0.0
  %3822 = vmatprep.subr.mxu0 0.0
  %3823 = vmatpush1.msra.mxu0 0.0
  %3824 = vmatprep.subr.mxu0 0.0
  %3825 = vmatpush1.msra.mxu0 0.0
  %3826 = vmatprep.subr.mxu0 0.0
  %3827 = vmatpush1.msra.mxu0 0.0
  %3828 = vmatprep.subr.mxu0 0.0
  %3829 = vmatpush1.msra.mxu0 0.0
  %3830 = vmatprep.subr.mxu0 0.0
  %3831 = vmatpush1.msra.mxu0 0.0
  %3832 = vmatprep.subr.mxu0 0.0
  %3833 = vmatpush1.msra.mxu0 0.0
  %3834 = vmatprep.subr.mxu0 0.0
  %3835 = vmatpush1.msra.mxu0 0.0
  %3836 = vmatprep.subr.mxu0 0.0
  %3837 = vmatpush1.msra.mxu0 0.0
  %3838 = vmatprep.subr.mxu0 0.0
  %3839 = vmatpush1.msra.mxu0 0.0
  %3840 = vmatprep.subr.mxu0 0.0
  %3841 = vmatpush1.msra.mxu0 0.0
  %3842 = vmatprep.subr.mxu0 0.0
  %3843 = vmatpush1.msra.mxu0 0.0
  %3844 = vmatprep.subr.mxu0 0.0
  %3845 = vmatpush1.msra.mxu0 0.0
  %3846 = vmatprep.subr.mxu0 0.0
  %3847 = vmatpush1.msra.mxu0 0.0
  %3848 = vmatprep.subr.mxu0 0.0
  %3849 = vmatpush1.msra.mxu0 0.0
  %3850 = vmatprep.subr.mxu0 0.0
  %3851 = vmatpush1.msra.mxu0 0.0
  %3852 = vmatprep.subr.mxu0 0.0
  %3853 = vmatpush1.msra.mxu0 0.0
  %3854 = vmatprep.subr.mxu0 0.0
  %3855 = vmatpush1.msra.mxu0 0.0
  %3856 = vmatprep.subr.mxu0 0.0
  %3857 = vmatpush1.msra.mxu0 0.0
  %3858 = vmatprep.subr.mxu0 0.0
  %3859 = vmatpush1.msra.mxu0 0.0
  %3860 = vmatprep.subr.mxu0 0.0
  %3861 = vmatpush1.msra.mxu0 0.0
  %3862 = vmatprep.subr.mxu0 0.0
  %3863 = vmatpush1.msra.mxu0 0.0
  %3864 = vmatprep.subr.mxu0 0.0
  %3865 = vmatpush1.msra.mxu0 0.0
  %3866 = vmatprep.subr.mxu0 0.0
  %3867 = vmatpush1.msra.mxu0 0.0
  %3868 = vmatprep.subr.mxu0 0.0
  %3869 = vmatpush1.msra.mxu0 0.0
  %3870 = vmatprep.subr.mxu0 0.0
  %3871 = vmatpush1.msra.mxu0 0.0
  %3872 = vmatprep.subr.mxu0 0.0
  %3873 = vmatpush1.msra.mxu0 0.0
  %3874 = vmatprep.subr.mxu0 0.0
  %3875 = vmatpush1.msra.mxu0 0.0
  %3876 = vmatprep.mubr.f32.mxu0 0.0
  %3877 = vmatmul.mubr.f32.gmra.mrb[0].mxu0 %v3810
  %v3878 = vpop.f32.mrb[0].mxu0
  %v3879 = vadd.f32 0.0, %v3878
  %v3880 = vpop.f32.mrb[0].mxu0
  %3881 = vdwg.mxu0
  %3883 = vrot.lane.b32.xlu0 %v3792, 48
  %v3884 = vpop.permute.xlu0 %3883
  %v3885 = vsel %vm222, %v3884, 0
  %3887 = vmatprep.subr.mxu0 0.0
  %3888 = vmatpush1.msra.mxu0 %v2397
  %3889 = vmatprep.subr.mxu0 0.0
  %3890 = vmatpush1.msra.mxu0 %v2398
  %3891 = vmatprep.subr.mxu0 0.0
  %3892 = vmatpush1.msra.mxu0 0.0
  %3893 = vmatprep.subr.mxu0 0.0
  %3894 = vmatpush1.msra.mxu0 0.0
  %3895 = vmatprep.subr.mxu0 0.0
  %3896 = vmatpush1.msra.mxu0 0.0
  %3897 = vmatprep.subr.mxu0 0.0
  %3898 = vmatpush1.msra.mxu0 0.0
  %3899 = vmatprep.subr.mxu0 0.0
  %3900 = vmatpush1.msra.mxu0 0.0
  %3901 = vmatprep.subr.mxu0 0.0
  %3902 = vmatpush1.msra.mxu0 0.0
  %3903 = vmatprep.subr.mxu0 0.0
  %3904 = vmatpush1.msra.mxu0 0.0
  %3905 = vmatprep.subr.mxu0 0.0
  %3906 = vmatpush1.msra.mxu0 0.0
  %3907 = vmatprep.subr.mxu0 0.0
  %3908 = vmatpush1.msra.mxu0 0.0
  %3909 = vmatprep.subr.mxu0 0.0
  %3910 = vmatpush1.msra.mxu0 0.0
  %3911 = vmatprep.subr.mxu0 0.0
  %3912 = vmatpush1.msra.mxu0 0.0
  %3913 = vmatprep.subr.mxu0 0.0
  %3914 = vmatpush1.msra.mxu0 0.0
  %3915 = vmatprep.subr.mxu0 0.0
  %3916 = vmatpush1.msra.mxu0 0.0
  %3917 = vmatprep.subr.mxu0 0.0
  %3918 = vmatpush1.msra.mxu0 0.0
  %3919 = vmatprep.subr.mxu0 0.0
  %3920 = vmatpush1.msra.mxu0 0.0
  %3921 = vmatprep.subr.mxu0 0.0
  %3922 = vmatpush1.msra.mxu0 0.0
  %3923 = vmatprep.subr.mxu0 0.0
  %3924 = vmatpush1.msra.mxu0 0.0
  %3925 = vmatprep.subr.mxu0 0.0
  %3926 = vmatpush1.msra.mxu0 0.0
  %3927 = vmatprep.subr.mxu0 0.0
  %3928 = vmatpush1.msra.mxu0 0.0
  %3929 = vmatprep.subr.mxu0 0.0
  %3930 = vmatpush1.msra.mxu0 0.0
  %3931 = vmatprep.subr.mxu0 0.0
  %3932 = vmatpush1.msra.mxu0 0.0
  %3933 = vmatprep.subr.mxu0 0.0
  %3934 = vmatpush1.msra.mxu0 0.0
  %3935 = vmatprep.subr.mxu0 0.0
  %3936 = vmatpush1.msra.mxu0 0.0
  %3937 = vmatprep.subr.mxu0 0.0
  %3938 = vmatpush1.msra.mxu0 0.0
  %3939 = vmatprep.subr.mxu0 0.0
  %3940 = vmatpush1.msra.mxu0 0.0
  %3941 = vmatprep.subr.mxu0 0.0
  %3942 = vmatpush1.msra.mxu0 0.0
  %3943 = vmatprep.subr.mxu0 0.0
  %3944 = vmatpush1.msra.mxu0 0.0
  %3945 = vmatprep.subr.mxu0 0.0
  %3946 = vmatpush1.msra.mxu0 0.0
  %3947 = vmatprep.subr.mxu0 0.0
  %3948 = vmatpush1.msra.mxu0 0.0
  %3949 = vmatprep.subr.mxu0 0.0
  %3950 = vmatpush1.msra.mxu0 0.0
  %3951 = vmatprep.mubr.f32.mxu0 0.0
  %3952 = vmatmul.mubr.f32.gmra.mrb[0].mxu0 %v3885
  %v3953 = vpop.f32.mrb[0].mxu0
  %v3954 = vadd.f32 0.0, %v3953
  %v3955 = vpop.f32.mrb[0].mxu0
  %3956 = vdwg.mxu0
  %v3957 = vadd.f32 %v2391, %v3879
  %v3958 = vsub.f32 0.0, %v3957
  %v3959 = vmul.f32 %v3958, 1.442695
  %v3960 = vpow.pop %v3959
  %v3961 = vadd.f32 %v3960, 1.0
  %v3962 = vrcp.pop %v3961
  %v3963 = vmul.f32 1.0, %v3962
  %v3964 = vadd.f32 %v3879, %v2561
  %3966 = vrot.lane.b32.xlu0 %v3964, 96
  %v3967 = vpop.permute.xlu0 %3966
  %v3969 = vmul.f32 %v3963, %v3967
  %3971 = vrot.lane.b32.xlu0 %v3969, 32
  %v3972 = vpop.permute.xlu0 %3971
  %v3974 = vadd.f32 %v2391, %v3972
  %v3975 = vtanh.pop %v3974
  %3977 = vrot.lane.b32.xlu0 %v3954, 48
  %v3978 = vpop.permute.xlu0 %3977
  %v3980 = vadd.f32 %v2386, %v3978
  %v3981 = vsub.f32 0.0, %v3980
  %v3982 = vmul.f32 %v3981, 1.442695
  %v3983 = vpow.pop %v3982
  %v3984 = vadd.f32 %v3983, 1.0
  %v3985 = vrcp.pop %v3984
  %v3986 = vmul.f32 1.0, %v3985
  %v3987 = vadd.f32 %v3954, %v2587
  %3989 = vrot.lane.b32.xlu0 %v3987, 16
  %v3990 = vpop.permute.xlu0 %3989
  %v3992 = vmul.f32 %v3986, %v3990
  %3994 = vrot.lane.b32.xlu0 %v3992, 32
  %v3995 = vpop.permute.xlu0 %3994
  %v3997 = vadd.f32 %v2386, %v3995
  %v3998 = vtanh.pop %v3997
  %v3999 = vsub.f32 %v3789, %v3975
  %4001 = vrot.lane.b32.xlu0 %v3999, 112
  %v4002 = vpop.permute.xlu0 %4001
  %v4004 = vmul.f32 %v3963, %v4002
  %4006 = vrot.lane.b32.xlu0 %v4004, 16
  %v4007 = vpop.permute.xlu0 %4006
  %v4009 = vadd.f32 %v3975, %v4007
  %v4010 = vsub.f32 %v3792, %v3998
  %4012 = vrot.lane.b32.xlu0 %v4010, 112
  %v4013 = vpop.permute.xlu0 %4012
  %v4015 = vmul.f32 %v3986, %v4013
  %4017 = vrot.lane.b32.xlu0 %v4015, 16
  %v4018 = vpop.permute.xlu0 %4017
  %v4020 = vadd.f32 %v3998, %v4018
  %v4021 = vsub.f32 %v4009, %v3789
  %v4022 = vmul.f32 %v458, %v4021
  %v4023 = vadd.f32 %v3789, %v4022
  %v4024 = vsub.f32 %v4020, %v3792
  %v4025 = vmul.f32 %v453, %v4024
  %v4026 = vadd.f32 %v3792, %v4025
  %v4027 = vmul.f32 %v458, %v4009
  %v4028 = vmul.f32 %v453, %v4020
  %v4029 = vsub.f32 %v4027, %v3793
  %4031 = vrot.lane.b32.xlu0 %v4029, 96
  %v4032 = vpop.permute.xlu0 %4031
  %4034 = vst.msk [vmem:[#allocation4 + $0x30] sm:$0xff] %vm222, %v4032
  %v4035 = vsub.f32 %v4028, %v3794
  %4037 = vrot.lane.b32.xlu0 %v4035, 48
  %v4038 = vpop.permute.xlu0 %4037
  %4040 = vst.msk [vmem:[#allocation5 + $0x8] sm:$0xff] %vm222, %v4038
  %4042 = vrot.lane.b32.xlu0 %v4023, 96
  %v4043 = vpop.permute.xlu0 %4042
  %v4044 = vsel %vm222, %v4043, 0
  %4046 = vmatprep.subr.mxu0 0.0
  %4047 = vmatpush1.msra.mxu0 %v2394
  %4048 = vmatprep.subr.mxu0 0.0
  %4049 = vmatpush1.msra.mxu0 %v2395
  %4050 = vmatprep.subr.mxu0 0.0
  %4051 = vmatpush1.msra.mxu0 0.0
  %4052 = vmatprep.subr.mxu0 0.0
  %4053 = vmatpush1.msra.mxu0 0.0
  %4054 = vmatprep.subr.mxu0 0.0
  %4055 = vmatpush1.msra.mxu0 0.0
  %4056 = vmatprep.subr.mxu0 0.0
  %4057 = vmatpush1.msra.mxu0 0.0
  %4058 = vmatprep.subr.mxu0 0.0
  %4059 = vmatpush1.msra.mxu0 0.0
  %4060 = vmatprep.subr.mxu0 0.0
  %4061 = vmatpush1.msra.mxu0 0.0
  %4062 = vmatprep.subr.mxu0 0.0
  %4063 = vmatpush1.msra.mxu0 0.0
  %4064 = vmatprep.subr.mxu0 0.0
  %4065 = vmatpush1.msra.mxu0 0.0
  %4066 = vmatprep.subr.mxu0 0.0
  %4067 = vmatpush1.msra.mxu0 0.0
  %4068 = vmatprep.subr.mxu0 0.0
  %4069 = vmatpush1.msra.mxu0 0.0
  %4070 = vmatprep.subr.mxu0 0.0
  %4071 = vmatpush1.msra.mxu0 0.0
  %4072 = vmatprep.subr.mxu0 0.0
  %4073 = vmatpush1.msra.mxu0 0.0
  %4074 = vmatprep.subr.mxu0 0.0
  %4075 = vmatpush1.msra.mxu0 0.0
  %4076 = vmatprep.subr.mxu0 0.0
  %4077 = vmatpush1.msra.mxu0 0.0
  %4078 = vmatprep.subr.mxu0 0.0
  %4079 = vmatpush1.msra.mxu0 0.0
  %4080 = vmatprep.subr.mxu0 0.0
  %4081 = vmatpush1.msra.mxu0 0.0
  %4082 = vmatprep.subr.mxu0 0.0
  %4083 = vmatpush1.msra.mxu0 0.0
  %4084 = vmatprep.subr.mxu0 0.0
  %4085 = vmatpush1.msra.mxu0 0.0
  %4086 = vmatprep.subr.mxu0 0.0
  %4087 = vmatpush1.msra.mxu0 0.0
  %4088 = vmatprep.subr.mxu0 0.0
  %4089 = vmatpush1.msra.mxu0 0.0
  %4090 = vmatprep.subr.mxu0 0.0
  %4091 = vmatpush1.msra.mxu0 0.0
  %4092 = vmatprep.subr.mxu0 0.0
  %4093 = vmatpush1.msra.mxu0 0.0
  %4094 = vmatprep.subr.mxu0 0.0
  %4095 = vmatpush1.msra.mxu0 0.0
  %4096 = vmatprep.subr.mxu0 0.0
  %4097 = vmatpush1.msra.mxu0 0.0
  %4098 = vmatprep.subr.mxu0 0.0
  %4099 = vmatpush1.msra.mxu0 0.0
  %4100 = vmatprep.subr.mxu0 0.0
  %4101 = vmatpush1.msra.mxu0 0.0
  %4102 = vmatprep.subr.mxu0 0.0
  %4103 = vmatpush1.msra.mxu0 0.0
  %4104 = vmatprep.subr.mxu0 0.0
  %4105 = vmatpush1.msra.mxu0 0.0
  %4106 = vmatprep.subr.mxu0 0.0
  %4107 = vmatpush1.msra.mxu0 0.0
  %4108 = vmatprep.subr.mxu0 0.0
  %4109 = vmatpush1.msra.mxu0 0.0
  %4110 = vmatprep.mubr.f32.mxu0 0.0
  %4111 = vmatmul.mubr.f32.gmra.mrb[0].mxu0 %v4044
  %v4112 = vpop.f32.mrb[0].mxu0
  %v4113 = vadd.f32 0.0, %v4112
  %v4114 = vpop.f32.mrb[0].mxu0
  %4115 = vdwg.mxu0
  %4117 = vrot.lane.b32.xlu0 %v4026, 48
  %v4118 = vpop.permute.xlu0 %4117
  %v4119 = vsel %vm222, %v4118, 0
  %4121 = vmatprep.subr.mxu0 0.0
  %4122 = vmatpush1.msra.mxu0 %v2397
  %4123 = vmatprep.subr.mxu0 0.0
  %4124 = vmatpush1.msra.mxu0 %v2398
  %4125 = vmatprep.subr.mxu0 0.0
  %4126 = vmatpush1.msra.mxu0 0.0
  %4127 = vmatprep.subr.mxu0 0.0
  %4128 = vmatpush1.msra.mxu0 0.0
  %4129 = vmatprep.subr.mxu0 0.0
  %4130 = vmatpush1.msra.mxu0 0.0
  %4131 = vmatprep.subr.mxu0 0.0
  %4132 = vmatpush1.msra.mxu0 0.0
  %4133 = vmatprep.subr.mxu0 0.0
  %4134 = vmatpush1.msra.mxu0 0.0
  %4135 = vmatprep.subr.mxu0 0.0
  %4136 = vmatpush1.msra.mxu0 0.0
  %4137 = vmatprep.subr.mxu0 0.0
  %4138 = vmatpush1.msra.mxu0 0.0
  %4139 = vmatprep.subr.mxu0 0.0
  %4140 = vmatpush1.msra.mxu0 0.0
  %4141 = vmatprep.subr.mxu0 0.0
  %4142 = vmatpush1.msra.mxu0 0.0
  %4143 = vmatprep.subr.mxu0 0.0
  %4144 = vmatpush1.msra.mxu0 0.0
  %4145 = vmatprep.subr.mxu0 0.0
  %4146 = vmatpush1.msra.mxu0 0.0
  %4147 = vmatprep.subr.mxu0 0.0
  %4148 = vmatpush1.msra.mxu0 0.0
  %4149 = vmatprep.subr.mxu0 0.0
  %4150 = vmatpush1.msra.mxu0 0.0
  %4151 = vmatprep.subr.mxu0 0.0
  %4152 = vmatpush1.msra.mxu0 0.0
  %4153 = vmatprep.subr.mxu0 0.0
  %4154 = vmatpush1.msra.mxu0 0.0
  %4155 = vmatprep.subr.mxu0 0.0
  %4156 = vmatpush1.msra.mxu0 0.0
  %4157 = vmatprep.subr.mxu0 0.0
  %4158 = vmatpush1.msra.mxu0 0.0
  %4159 = vmatprep.subr.mxu0 0.0
  %4160 = vmatpush1.msra.mxu0 0.0
  %4161 = vmatprep.subr.mxu0 0.0
  %4162 = vmatpush1.msra.mxu0 0.0
  %4163 = vmatprep.subr.mxu0 0.0
  %4164 = vmatpush1.msra.mxu0 0.0
  %4165 = vmatprep.subr.mxu0 0.0
  %4166 = vmatpush1.msra.mxu0 0.0
  %4167 = vmatprep.subr.mxu0 0.0
  %4168 = vmatpush1.msra.mxu0 0.0
  %4169 = vmatprep.subr.mxu0 0.0
  %4170 = vmatpush1.msra.mxu0 0.0
  %4171 = vmatprep.subr.mxu0 0.0
  %4172 = vmatpush1.msra.mxu0 0.0
  %4173 = vmatprep.subr.mxu0 0.0
  %4174 = vmatpush1.msra.mxu0 0.0
  %4175 = vmatprep.subr.mxu0 0.0
  %4176 = vmatpush1.msra.mxu0 0.0
  %4177 = vmatprep.subr.mxu0 0.0
  %4178 = vmatpush1.msra.mxu0 0.0
  %4179 = vmatprep.subr.mxu0 0.0
  %4180 = vmatpush1.msra.mxu0 0.0
  %4181 = vmatprep.subr.mxu0 0.0
  %4182 = vmatpush1.msra.mxu0 0.0
  %4183 = vmatprep.subr.mxu0 0.0
  %4184 = vmatpush1.msra.mxu0 0.0
  %4185 = vmatprep.mubr.f32.mxu0 0.0
  %4186 = vmatmul.mubr.f32.gmra.mrb[0].mxu0 %v4119
  %v4187 = vpop.f32.mrb[0].mxu0
  %v4188 = vadd.f32 0.0, %v4187
  %v4189 = vpop.f32.mrb[0].mxu0
  %4190 = vdwg.mxu0
  %v4191 = vadd.f32 %v2392, %v4113
  %v4192 = vsub.f32 0.0, %v4191
  %v4193 = vmul.f32 %v4192, 1.442695
  %v4194 = vpow.pop %v4193
  %v4195 = vadd.f32 %v4194, 1.0
  %v4196 = vrcp.pop %v4195
  %v4197 = vmul.f32 1.0, %v4196
  %v4198 = vadd.f32 %v4113, %v2561
  %4200 = vrot.lane.b32.xlu0 %v4198, 96
  %v4201 = vpop.permute.xlu0 %4200
  %v4203 = vmul.f32 %v4197, %v4201
  %4205 = vrot.lane.b32.xlu0 %v4203, 32
  %v4206 = vpop.permute.xlu0 %4205
  %v4208 = vadd.f32 %v2392, %v4206
  %v4209 = vtanh.pop %v4208
  %4211 = vrot.lane.b32.xlu0 %v4188, 48
  %v4212 = vpop.permute.xlu0 %4211
  %v4214 = vadd.f32 %v2385, %v4212
  %v4215 = vsub.f32 0.0, %v4214
  %v4216 = vmul.f32 %v4215, 1.442695
  %v4217 = vpow.pop %v4216
  %v4218 = vadd.f32 %v4217, 1.0
  %v4219 = vrcp.pop %v4218
  %v4220 = vmul.f32 1.0, %v4219
  %v4221 = vadd.f32 %v4188, %v2587
  %4223 = vrot.lane.b32.xlu0 %v4221, 16
  %v4224 = vpop.permute.xlu0 %4223
  %v4226 = vmul.f32 %v4220, %v4224
  %4228 = vrot.lane.b32.xlu0 %v4226, 32
  %v4229 = vpop.permute.xlu0 %4228
  %v4231 = vadd.f32 %v2385, %v4229
  %v4232 = vtanh.pop %v4231
  %v4233 = vsub.f32 %v4023, %v4209
  %4235 = vrot.lane.b32.xlu0 %v4233, 112
  %v4236 = vpop.permute.xlu0 %4235
  %v4238 = vmul.f32 %v4197, %v4236
  %4240 = vrot.lane.b32.xlu0 %v4238, 16
  %v4241 = vpop.permute.xlu0 %4240
  %v4243 = vadd.f32 %v4209, %v4241
  %v4244 = vsub.f32 %v4026, %v4232
  %4246 = vrot.lane.b32.xlu0 %v4244, 112
  %v4247 = vpop.permute.xlu0 %4246
  %v4249 = vmul.f32 %v4220, %v4247
  %4251 = vrot.lane.b32.xlu0 %v4249, 16
  %v4252 = vpop.permute.xlu0 %4251
  %v4254 = vadd.f32 %v4232, %v4252
  %v4255 = vmul.f32 %v220, %v4243
  %v4256 = vmul.f32 %v215, %v4254
  %v4257 = vsub.f32 %v4255, %v4027
  %4259 = vrot.lane.b32.xlu0 %v4257, 96
  %v4260 = vpop.permute.xlu0 %4259
  %4262 = vst.msk [vmem:[#allocation4 + $0x38] sm:$0xff] %vm222, %v4260
  %v4263 = vsub.f32 %v4256, %v4028
  %4265 = vrot.lane.b32.xlu0 %v4263, 48
  %v4266 = vpop.permute.xlu0 %4265
  %4268 = vst.msk [vmem:[#allocation5] sm:$0xff] %vm222, %v4266
  %v4269 = vld [vmem:[%s6] sm:$0xff]
  %v4270 = vld [vmem:[%s6 + $0x8] sm:$0xff]
  %v4271 = vld [vmem:[%s6 + $0x10] sm:$0xff]
  %v4272 = vld [vmem:[%s6 + $0x18] sm:$0xff]
  %v4273 = vld [vmem:[%s6 + $0x20] sm:$0xff]
  %v4274 = vld [vmem:[%s6 + $0x28] sm:$0xff]
  %v4275 = vld [vmem:[%s6 + $0x30] sm:$0xff]
  %v4276 = vld [vmem:[%s6 + $0x38] sm:$0xff]
  %v4277 = vld [vmem:[#allocation4] sm:$0xff]
  %v4278 = vld [vmem:[#allocation4 + $0x8] sm:$0xff]
  %v4279 = vld [vmem:[#allocation4 + $0x10] sm:$0xff]
  %v4280 = vld [vmem:[#allocation4 + $0x18] sm:$0xff]
  %v4281 = vld [vmem:[#allocation4 + $0x20] sm:$0xff]
  %v4282 = vld [vmem:[#allocation4 + $0x28] sm:$0xff]
  %v4283 = vld [vmem:[#allocation4 + $0x30] sm:$0xff]
  %v4284 = vld [vmem:[#allocation4 + $0x38] sm:$0xff]
  %v4285 = vld [vmem:[#allocation5] sm:$0xff]
  %v4286 = vld [vmem:[#allocation5 + $0x8] sm:$0xff]
  %v4287 = vld [vmem:[#allocation5 + $0x10] sm:$0xff]
  %v4288 = vld [vmem:[#allocation5 + $0x18] sm:$0xff]
  %v4289 = vld [vmem:[#allocation5 + $0x20] sm:$0xff]
  %v4290 = vld [vmem:[#allocation5 + $0x28] sm:$0xff]
  %v4291 = vld [vmem:[#allocation5 + $0x30] sm:$0xff]
  %v4292 = vld [vmem:[#allocation5 + $0x38] sm:$0xff]
  %v4294 = vsel %vm222, %v4285, 0
  %v4297 = vsel %vm222, %v4286, 0
  %v4300 = vsel %vm222, %v4287, 0
  %v4303 = vsel %vm222, %v4288, 0
  %v4306 = vsel %vm222, %v4289, 0
  %v4309 = vsel %vm222, %v4290, 0
  %v4312 = vsel %vm222, %v4291, 0
  %v4315 = vsel %vm222, %v4292, 0
  %4317 = vmatprep.subr.mxu0 0.0
  %4318 = vmatpush1.msra.mxu0 %v4271
  %4319 = vmatprep.subr.mxu0 0.0
  %4320 = vmatpush1.msra.mxu0 %v4272
  %4321 = vmatprep.subr.mxu0 0.0
  %4322 = vmatpush1.msra.mxu0 0.0
  %4323 = vmatprep.subr.mxu0 0.0
  %4324 = vmatpush1.msra.mxu0 0.0
  %4325 = vmatprep.subr.mxu0 0.0
  %4326 = vmatpush1.msra.mxu0 0.0
  %4327 = vmatprep.subr.mxu0 0.0
  %4328 = vmatpush1.msra.mxu0 0.0
  %4329 = vmatprep.subr.mxu0 0.0
  %4330 = vmatpush1.msra.mxu0 0.0
  %4331 = vmatprep.subr.mxu0 0.0
  %4332 = vmatpush1.msra.mxu0 0.0
  %4333 = vmatprep.subr.mxu0 0.0
  %4334 = vmatpush1.msra.mxu0 0.0
  %4335 = vmatprep.subr.mxu0 0.0
  %4336 = vmatpush1.msra.mxu0 0.0
  %4337 = vmatprep.subr.mxu0 0.0
  %4338 = vmatpush1.msra.mxu0 0.0
  %4339 = vmatprep.subr.mxu0 0.0
  %4340 = vmatpush1.msra.mxu0 0.0
  %4341 = vmatprep.subr.mxu0 0.0
  %4342 = vmatpush1.msra.mxu0 0.0
  %4343 = vmatprep.subr.mxu0 0.0
  %4344 = vmatpush1.msra.mxu0 0.0
  %4345 = vmatprep.subr.mxu0 0.0
  %4346 = vmatpush1.msra.mxu0 0.0
  %4347 = vmatprep.subr.mxu0 0.0
  %4348 = vmatpush1.msra.mxu0 0.0
  %4349 = vmatprep.subr.mxu0 0.0
  %4350 = vmatpush1.msra.mxu0 0.0
  %4351 = vmatprep.subr.mxu0 0.0
  %4352 = vmatpush1.msra.mxu0 0.0
  %4353 = vmatprep.subr.mxu0 0.0
  %4354 = vmatpush1.msra.mxu0 0.0
  %4355 = vmatprep.subr.mxu0 0.0
  %4356 = vmatpush1.msra.mxu0 0.0
  %4357 = vmatprep.subr.mxu0 0.0
  %4358 = vmatpush1.msra.mxu0 0.0
  %4359 = vmatprep.subr.mxu0 0.0
  %4360 = vmatpush1.msra.mxu0 0.0
  %4361 = vmatprep.subr.mxu0 0.0
  %4362 = vmatpush1.msra.mxu0 0.0
  %4363 = vmatprep.subr.mxu0 0.0
  %4364 = vmatpush1.msra.mxu0 0.0
  %4365 = vmatprep.subr.mxu0 0.0
  %4366 = vmatpush1.msra.mxu0 0.0
  %4367 = vmatprep.subr.mxu0 0.0
  %4368 = vmatpush1.msra.mxu0 0.0
  %4369 = vmatprep.subr.mxu0 0.0
  %4370 = vmatpush1.msra.mxu0 0.0
  %4371 = vmatprep.subr.mxu0 0.0
  %4372 = vmatpush1.msra.mxu0 0.0
  %4373 = vmatprep.subr.mxu0 0.0
  %4374 = vmatpush1.msra.mxu0 0.0
  %4375 = vmatprep.subr.mxu0 0.0
  %4376 = vmatpush1.msra.mxu0 0.0
  %4377 = vmatprep.subr.mxu0 0.0
  %4378 = vmatpush1.msra.mxu0 0.0
  %4379 = vmatprep.subr.mxu0 0.0
  %4380 = vmatpush1.msra.mxu0 0.0
  %4381 = vmatprep.mubr.f32.mxu0 0.0
  %4382 = vmatmul.mubr.f32.gmra.mrb[0].mxu0 %v4294
  %v4383 = vpop.f32.mrb[0].mxu0
  %v4384 = vadd.f32 0.0, %v4383
  %v4385 = vpop.f32.mrb[0].mxu0
  %4386 = vmatprep.mubr.f32.mxu0 0.0
  %4387 = vmatmul.mubr.f32.gmra.mrb[0].mxu0 %v4297
  %v4388 = vpop.f32.mrb[0].mxu0
  %v4389 = vadd.f32 0.0, %v4388
  %v4390 = vpop.f32.mrb[0].mxu0
  %4391 = vmatprep.mubr.f32.mxu0 0.0
  %4392 = vmatmul.mubr.f32.gmra.mrb[0].mxu0 %v4300
  %v4393 = vpop.f32.mrb[0].mxu0
  %v4394 = vadd.f32 0.0, %v4393
  %v4395 = vpop.f32.mrb[0].mxu0
  %4396 = vmatprep.mubr.f32.mxu0 0.0
  %4397 = vmatmul.mubr.f32.gmra.mrb[0].mxu0 %v4303
  %v4398 = vpop.f32.mrb[0].mxu0
  %v4399 = vadd.f32 0.0, %v4398
  %v4400 = vpop.f32.mrb[0].mxu0
  %4401 = vmatprep.mubr.f32.mxu0 0.0
  %4402 = vmatmul.mubr.f32.gmra.mrb[0].mxu0 %v4306
  %v4403 = vpop.f32.mrb[0].mxu0
  %v4404 = vadd.f32 0.0, %v4403
  %v4405 = vpop.f32.mrb[0].mxu0
  %4406 = vmatprep.mubr.f32.mxu0 0.0
  %4407 = vmatmul.mubr.f32.gmra.mrb[0].mxu0 %v4309
  %v4408 = vpop.f32.mrb[0].mxu0
  %v4409 = vadd.f32 0.0, %v4408
  %v4410 = vpop.f32.mrb[0].mxu0
  %4411 = vmatprep.mubr.f32.mxu0 0.0
  %4412 = vmatmul.mubr.f32.gmra.mrb[0].mxu0 %v4312
  %v4413 = vpop.f32.mrb[0].mxu0
  %v4414 = vadd.f32 0.0, %v4413
  %v4415 = vpop.f32.mrb[0].mxu0
  %4416 = vmatprep.mubr.f32.mxu0 0.0
  %4417 = vmatmul.mubr.f32.gmra.mrb[0].mxu0 %v4315
  %v4418 = vpop.f32.mrb[0].mxu0
  %v4419 = vadd.f32 0.0, %v4418
  %v4420 = vpop.f32.mrb[0].mxu0
  %4421 = vdwg.mxu0
  %v4423 = vsel %vm222, %v4277, 0
  %v4426 = vsel %vm222, %v4278, 0
  %v4429 = vsel %vm222, %v4279, 0
  %v4432 = vsel %vm222, %v4280, 0
  %v4435 = vsel %vm222, %v4281, 0
  %v4438 = vsel %vm222, %v4282, 0
  %v4441 = vsel %vm222, %v4283, 0
  %v4444 = vsel %vm222, %v4284, 0
  %4446 = vmatprep.subr.mxu0 0.0
  %4447 = vmatpush1.msra.mxu0 %v4269
  %4448 = vmatprep.subr.mxu0 0.0
  %4449 = vmatpush1.msra.mxu0 %v4270
  %4450 = vmatprep.subr.mxu0 0.0
  %4451 = vmatpush1.msra.mxu0 0.0
  %4452 = vmatprep.subr.mxu0 0.0
  %4453 = vmatpush1.msra.mxu0 0.0
  %4454 = vmatprep.subr.mxu0 0.0
  %4455 = vmatpush1.msra.mxu0 0.0
  %4456 = vmatprep.subr.mxu0 0.0
  %4457 = vmatpush1.msra.mxu0 0.0
  %4458 = vmatprep.subr.mxu0 0.0
  %4459 = vmatpush1.msra.mxu0 0.0
  %4460 = vmatprep.subr.mxu0 0.0
  %4461 = vmatpush1.msra.mxu0 0.0
  %4462 = vmatprep.subr.mxu0 0.0
  %4463 = vmatpush1.msra.mxu0 0.0
  %4464 = vmatprep.subr.mxu0 0.0
  %4465 = vmatpush1.msra.mxu0 0.0
  %4466 = vmatprep.subr.mxu0 0.0
  %4467 = vmatpush1.msra.mxu0 0.0
  %4468 = vmatprep.subr.mxu0 0.0
  %4469 = vmatpush1.msra.mxu0 0.0
  %4470 = vmatprep.subr.mxu0 0.0
  %4471 = vmatpush1.msra.mxu0 0.0
  %4472 = vmatprep.subr.mxu0 0.0
  %4473 = vmatpush1.msra.mxu0 0.0
  %4474 = vmatprep.subr.mxu0 0.0
  %4475 = vmatpush1.msra.mxu0 0.0
  %4476 = vmatprep.subr.mxu0 0.0
  %4477 = vmatpush1.msra.mxu0 0.0
  %4478 = vmatprep.subr.mxu0 0.0
  %4479 = vmatpush1.msra.mxu0 0.0
  %4480 = vmatprep.subr.mxu0 0.0
  %4481 = vmatpush1.msra.mxu0 0.0
  %4482 = vmatprep.subr.mxu0 0.0
  %4483 = vmatpush1.msra.mxu0 0.0
  %4484 = vmatprep.subr.mxu0 0.0
  %4485 = vmatpush1.msra.mxu0 0.0
  %4486 = vmatprep.subr.mxu0 0.0
  %4487 = vmatpush1.msra.mxu0 0.0
  %4488 = vmatprep.subr.mxu0 0.0
  %4489 = vmatpush1.msra.mxu0 0.0
  %4490 = vmatprep.subr.mxu0 0.0
  %4491 = vmatpush1.msra.mxu0 0.0
  %4492 = vmatprep.subr.mxu0 0.0
  %4493 = vmatpush1.msra.mxu0 0.0
  %4494 = vmatprep.subr.mxu0 0.0
  %4495 = vmatpush1.msra.mxu0 0.0
  %4496 = vmatprep.subr.mxu0 0.0
  %4497 = vmatpush1.msra.mxu0 0.0
  %4498 = vmatprep.subr.mxu0 0.0
  %4499 = vmatpush1.msra.mxu0 0.0
  %4500 = vmatprep.subr.mxu0 0.0
  %4501 = vmatpush1.msra.mxu0 0.0
  %4502 = vmatprep.subr.mxu0 0.0
  %4503 = vmatpush1.msra.mxu0 0.0
  %4504 = vmatprep.subr.mxu0 0.0
  %4505 = vmatpush1.msra.mxu0 0.0
  %4506 = vmatprep.subr.mxu0 0.0
  %4507 = vmatpush1.msra.mxu0 0.0
  %4508 = vmatprep.subr.mxu0 0.0
  %4509 = vmatpush1.msra.mxu0 0.0
  %4510 = vmatprep.mubr.f32.mxu0 0.0
  %4511 = vmatmul.mubr.f32.gmra.mrb[0].mxu0 %v4423
  %v4512 = vpop.f32.mrb[0].mxu0
  %v4513 = vadd.f32 %v4384, %v4512
  %v4514 = vpop.f32.mrb[0].mxu0
  %4515 = vmatprep.mubr.f32.mxu0 0.0
  %4516 = vmatmul.mubr.f32.gmra.mrb[0].mxu0 %v4426
  %v4517 = vpop.f32.mrb[0].mxu0
  %v4518 = vadd.f32 %v4389, %v4517
  %v4519 = vpop.f32.mrb[0].mxu0
  %4520 = vmatprep.mubr.f32.mxu0 0.0
  %4521 = vmatmul.mubr.f32.gmra.mrb[0].mxu0 %v4429
  %v4522 = vpop.f32.mrb[0].mxu0
  %v4523 = vadd.f32 %v4394, %v4522
  %v4524 = vpop.f32.mrb[0].mxu0
  %4525 = vmatprep.mubr.f32.mxu0 0.0
  %4526 = vmatmul.mubr.f32.gmra.mrb[0].mxu0 %v4432
  %v4527 = vpop.f32.mrb[0].mxu0
  %v4528 = vadd.f32 %v4399, %v4527
  %v4529 = vpop.f32.mrb[0].mxu0
  %4530 = vmatprep.mubr.f32.mxu0 0.0
  %4531 = vmatmul.mubr.f32.gmra.mrb[0].mxu0 %v4435
  %v4532 = vpop.f32.mrb[0].mxu0
  %v4533 = vadd.f32 %v4404, %v4532
  %v4534 = vpop.f32.mrb[0].mxu0
  %4535 = vmatprep.mubr.f32.mxu0 0.0
  %4536 = vmatmul.mubr.f32.gmra.mrb[0].mxu0 %v4438
  %v4537 = vpop.f32.mrb[0].mxu0
  %v4538 = vadd.f32 %v4409, %v4537
  %v4539 = vpop.f32.mrb[0].mxu0
  %4540 = vmatprep.mubr.f32.mxu0 0.0
  %4541 = vmatmul.mubr.f32.gmra.mrb[0].mxu0 %v4441
  %v4542 = vpop.f32.mrb[0].mxu0
  %v4543 = vadd.f32 %v4414, %v4542
  %v4544 = vpop.f32.mrb[0].mxu0
  %4545 = vmatprep.mubr.f32.mxu0 0.0
  %4546 = vmatmul.mubr.f32.gmra.mrb[0].mxu0 %v4444
  %v4547 = vpop.f32.mrb[0].mxu0
  %v4548 = vadd.f32 %v4419, %v4547
  %v4549 = vpop.f32.mrb[0].mxu0
  %4550 = vdwg.mxu0
  %4551 = vmatprep.subr.mxu0 0.0
  %4552 = vmatpush1.msra.mxu0 %v4273
  %4553 = vmatprep.subr.mxu0 0.0
  %4554 = vmatpush1.msra.mxu0 %v4274
  %4555 = vmatprep.subr.mxu0 0.0
  %4556 = vmatpush1.msra.mxu0 %v4275
  %4557 = vmatprep.subr.mxu0 0.0
  %4558 = vmatpush1.msra.mxu0 %v4276
  %4559 = vmatprep.subr.mxu0 0.0
  %4560 = vmatpush1.msra.mxu0 0.0
  %4561 = vmatprep.subr.mxu0 0.0
  %4562 = vmatpush1.msra.mxu0 0.0
  %4563 = vmatprep.subr.mxu0 0.0
  %4564 = vmatpush1.msra.mxu0 0.0
  %4565 = vmatprep.subr.mxu0 0.0
  %4566 = vmatpush1.msra.mxu0 0.0
  %4567 = vmatprep.subr.mxu0 0.0
  %4568 = vmatpush1.msra.mxu0 0.0
  %4569 = vmatprep.subr.mxu0 0.0
  %4570 = vmatpush1.msra.mxu0 0.0
  %4571 = vmatprep.subr.mxu0 0.0
  %4572 = vmatpush1.msra.mxu0 0.0
  %4573 = vmatprep.subr.mxu0 0.0
  %4574 = vmatpush1.msra.mxu0 0.0
  %4575 = vmatprep.subr.mxu0 0.0
  %4576 = vmatpush1.msra.mxu0 0.0
  %4577 = vmatprep.subr.mxu0 0.0
  %4578 = vmatpush1.msra.mxu0 0.0
  %4579 = vmatprep.subr.mxu0 0.0
  %4580 = vmatpush1.msra.mxu0 0.0
  %4581 = vmatprep.subr.mxu0 0.0
  %4582 = vmatpush1.msra.mxu0 0.0
  %4583 = vmatprep.subr.mxu0 0.0
  %4584 = vmatpush1.msra.mxu0 0.0
  %4585 = vmatprep.subr.mxu0 0.0
  %4586 = vmatpush1.msra.mxu0 0.0
  %4587 = vmatprep.subr.mxu0 0.0
  %4588 = vmatpush1.msra.mxu0 0.0
  %4589 = vmatprep.subr.mxu0 0.0
  %4590 = vmatpush1.msra.mxu0 0.0
  %4591 = vmatprep.subr.mxu0 0.0
  %4592 = vmatpush1.msra.mxu0 0.0
  %4593 = vmatprep.subr.mxu0 0.0
  %4594 = vmatpush1.msra.mxu0 0.0
  %4595 = vmatprep.subr.mxu0 0.0
  %4596 = vmatpush1.msra.mxu0 0.0
  %4597 = vmatprep.subr.mxu0 0.0
  %4598 = vmatpush1.msra.mxu0 0.0
  %4599 = vmatprep.subr.mxu0 0.0
  %4600 = vmatpush1.msra.mxu0 0.0
  %4601 = vmatprep.subr.mxu0 0.0
  %4602 = vmatpush1.msra.mxu0 0.0
  %4603 = vmatprep.subr.mxu0 0.0
  %4604 = vmatpush1.msra.mxu0 0.0
  %4605 = vmatprep.subr.mxu0 0.0
  %4606 = vmatpush1.msra.mxu0 0.0
  %4607 = vmatprep.subr.mxu0 0.0
  %4608 = vmatpush1.msra.mxu0 0.0
  %4609 = vmatprep.subr.mxu0 0.0
  %4610 = vmatpush1.msra.mxu0 0.0
  %4611 = vmatprep.subr.mxu0 0.0
  %4612 = vmatpush1.msra.mxu0 0.0
  %4613 = vmatprep.subr.mxu0 0.0
  %4614 = vmatpush1.msra.mxu0 0.0
  %4615 = vmatprep.mubr.f32.mxu0 0.0
  %4616 = vmatmul.mubr.f32.gmra.mrb[0].mxu0 %v66
  %v4617 = vpop.f32.mrb[0].mxu0
  %v4618 = vadd.f32 0.0, %v4617
  %v4619 = vpop.f32.mrb[0].mxu0
  %4620 = vmatprep.mubr.f32.mxu0 0.0
  %4621 = vmatmul.mubr.f32.gmra.mrb[0].mxu0 %v69
  %v4622 = vpop.f32.mrb[0].mxu0
  %v4623 = vadd.f32 0.0, %v4622
  %v4624 = vpop.f32.mrb[0].mxu0
  %4625 = vmatprep.mubr.f32.mxu0 0.0
  %4626 = vmatmul.mubr.f32.gmra.mrb[0].mxu0 %v72
  %v4627 = vpop.f32.mrb[0].mxu0
  %v4628 = vadd.f32 0.0, %v4627
  %v4629 = vpop.f32.mrb[0].mxu0
  %4630 = vmatprep.mubr.f32.mxu0 0.0
  %4631 = vmatmul.mubr.f32.gmra.mrb[0].mxu0 %v75
  %v4632 = vpop.f32.mrb[0].mxu0
  %v4633 = vadd.f32 0.0, %v4632
  %v4634 = vpop.f32.mrb[0].mxu0
  %4635 = vmatprep.mubr.f32.mxu0 0.0
  %4636 = vmatmul.mubr.f32.gmra.mrb[0].mxu0 %v78
  %v4637 = vpop.f32.mrb[0].mxu0
  %v4638 = vadd.f32 0.0, %v4637
  %v4639 = vpop.f32.mrb[0].mxu0
  %4640 = vmatprep.mubr.f32.mxu0 0.0
  %4641 = vmatmul.mubr.f32.gmra.mrb[0].mxu0 %v81
  %v4642 = vpop.f32.mrb[0].mxu0
  %v4643 = vadd.f32 0.0, %v4642
  %v4644 = vpop.f32.mrb[0].mxu0
  %4645 = vmatprep.mubr.f32.mxu0 0.0
  %4646 = vmatmul.mubr.f32.gmra.mrb[0].mxu0 %v84
  %v4647 = vpop.f32.mrb[0].mxu0
  %v4648 = vadd.f32 0.0, %v4647
  %v4649 = vpop.f32.mrb[0].mxu0
  %4650 = vmatprep.mubr.f32.mxu0 0.0
  %4651 = vmatmul.mubr.f32.gmra.mrb[0].mxu0 %v87
  %v4652 = vpop.f32.mrb[0].mxu0
  %v4653 = vadd.f32 0.0, %v4652
  %v4654 = vpop.f32.mrb[0].mxu0
  %4655 = vdwg.mxu0
  %v4656 = vadd.f32 %v4513, %v4618
  %v4657 = vadd.f32 %v4518, %v4623
  %v4658 = vadd.f32 %v4523, %v4628
  %v4659 = vadd.f32 %v4528, %v4633
  %v4660 = vadd.f32 %v4533, %v4638
  %v4661 = vadd.f32 %v4538, %v4643
  %v4662 = vadd.f32 %v4543, %v4648
  %v4663 = vadd.f32 %v4548, %v4653
  %v4664 = vld [vmem:[%s7] sm:$0x1]
  %v4666 = vlaneseq
  %v4667 = vshrl.u32 %v4666, 7
  %v4668 = vsub.s32 0, %v4667
  %v4669 = vrot.slane %v4664, %v4668
  %v4671 = vadd.f32 %v4656, %v4669
  %v4672 = vadd.f32 %v4657, %v4669
  %v4673 = vadd.f32 %v4658, %v4669
  %v4674 = vadd.f32 %v4659, %v4669
  %v4675 = vadd.f32 %v4660, %v4669
  %v4676 = vadd.f32 %v4661, %v4669
  %v4677 = vadd.f32 %v4662, %v4669
  %v4678 = vadd.f32 %v4663, %v4669
  %v4679 = vmax.f32 %v4671, 0.0
  %v4680 = vmax.f32 %v4672, 0.0
  %v4681 = vmax.f32 %v4673, 0.0
  %v4682 = vmax.f32 %v4674, 0.0
  %v4683 = vmax.f32 %v4675, 0.0
  %v4684 = vmax.f32 %v4676, 0.0
  %v4685 = vmax.f32 %v4677, 0.0
  %v4686 = vmax.f32 %v4678, 0.0
  %v4687 = vld [vmem:[%s8] sm:$0xff]
  %v4688 = vld [vmem:[%s8 + $0x8] sm:$0xff]
  %v4689 = vld [vmem:[%s8 + $0x10] sm:$0xff]
  %v4690 = vld [vmem:[%s8 + $0x18] sm:$0xff]
  %v4691 = vld [vmem:[#allocation6] sm:$0x1]
  %v4693 = vlaneseq
  %v4694 = vshrl.u32 %v4693, 7
  %v4695 = vsub.s32 0, %v4694
  %v4696 = vrot.slane %v4691, %v4695
  %v4699 = vsel %vm64, %v4679, 0
  %v4702 = vsel %vm64, %v4680, 0
  %v4705 = vsel %vm64, %v4681, 0
  %v4708 = vsel %vm64, %v4682, 0
  %v4711 = vsel %vm64, %v4683, 0
  %v4714 = vsel %vm64, %v4684, 0
  %v4717 = vsel %vm64, %v4685, 0
  %v4720 = vsel %vm64, %v4686, 0
  %4722 = vmatprep.subr.mxu0 0.0
  %4723 = vmatpush1.msra.mxu0 %v4687
  %4724 = vmatprep.subr.mxu0 0.0
  %4725 = vmatpush1.msra.mxu0 %v4688
  %4726 = vmatprep.subr.mxu0 0.0
  %4727 = vmatpush1.msra.mxu0 %v4689
  %4728 = vmatprep.subr.mxu0 0.0
  %4729 = vmatpush1.msra.mxu0 %v4690
  %4730 = vmatprep.subr.mxu0 0.0
  %4731 = vmatpush1.msra.mxu0 0.0
  %4732 = vmatprep.subr.mxu0 0.0
  %4733 = vmatpush1.msra.mxu0 0.0
  %4734 = vmatprep.subr.mxu0 0.0
  %4735 = vmatpush1.msra.mxu0 0.0
  %4736 = vmatprep.subr.mxu0 0.0
  %4737 = vmatpush1.msra.mxu0 0.0
  %4738 = vmatprep.subr.mxu0 0.0
  %4739 = vmatpush1.msra.mxu0 0.0
  %4740 = vmatprep.subr.mxu0 0.0
  %4741 = vmatpush1.msra.mxu0 0.0
  %4742 = vmatprep.subr.mxu0 0.0
  %4743 = vmatpush1.msra.mxu0 0.0
  %4744 = vmatprep.subr.mxu0 0.0
  %4745 = vmatpush1.msra.mxu0 0.0
  %4746 = vmatprep.subr.mxu0 0.0
  %4747 = vmatpush1.msra.mxu0 0.0
  %4748 = vmatprep.subr.mxu0 0.0
  %4749 = vmatpush1.msra.mxu0 0.0
  %4750 = vmatprep.subr.mxu0 0.0
  %4751 = vmatpush1.msra.mxu0 0.0
  %4752 = vmatprep.subr.mxu0 0.0
  %4753 = vmatpush1.msra.mxu0 0.0
  %4754 = vmatprep.subr.mxu0 0.0
  %4755 = vmatpush1.msra.mxu0 0.0
  %4756 = vmatprep.subr.mxu0 0.0
  %4757 = vmatpush1.msra.mxu0 0.0
  %4758 = vmatprep.subr.mxu0 0.0
  %4759 = vmatpush1.msra.mxu0 0.0
  %4760 = vmatprep.subr.mxu0 0.0
  %4761 = vmatpush1.msra.mxu0 0.0
  %4762 = vmatprep.subr.mxu0 0.0
  %4763 = vmatpush1.msra.mxu0 0.0
  %4764 = vmatprep.subr.mxu0 0.0
  %4765 = vmatpush1.msra.mxu0 0.0
  %4766 = vmatprep.subr.mxu0 0.0
  %4767 = vmatpush1.msra.mxu0 0.0
  %4768 = vmatprep.subr.mxu0 0.0
  %4769 = vmatpush1.msra.mxu0 0.0
  %4770 = vmatprep.subr.mxu0 0.0
  %4771 = vmatpush1.msra.mxu0 0.0
  %4772 = vmatprep.subr.mxu0 0.0
  %4773 = vmatpush1.msra.mxu0 0.0
  %4774 = vmatprep.subr.mxu0 0.0
  %4775 = vmatpush1.msra.mxu0 0.0
  %4776 = vmatprep.subr.mxu0 0.0
  %4777 = vmatpush1.msra.mxu0 0.0
  %4778 = vmatprep.subr.mxu0 0.0
  %4779 = vmatpush1.msra.mxu0 0.0
  %4780 = vmatprep.subr.mxu0 0.0
  %4781 = vmatpush1.msra.mxu0 0.0
  %4782 = vmatprep.subr.mxu0 0.0
  %4783 = vmatpush1.msra.mxu0 0.0
  %4784 = vmatprep.subr.mxu0 0.0
  %4785 = vmatpush1.msra.mxu0 0.0
  %4786 = vmatprep.mubr.f32.mxu0 0.0
  %4787 = vmatmul.mubr.f32.gmra.mrb[0].mxu0 %v4699
  %v4788 = vpop.f32.mrb[0].mxu0
  %v4789 = vadd.f32 %v4696, %v4788
  %v4790 = vpop.f32.mrb[0].mxu0
  %4791 = vmatprep.mubr.f32.mxu0 0.0
  %4792 = vmatmul.mubr.f32.gmra.mrb[0].mxu0 %v4702
  %v4793 = vpop.f32.mrb[0].mxu0
  %v4794 = vadd.f32 %v4696, %v4793
  %v4795 = vpop.f32.mrb[0].mxu0
  %4796 = vmatprep.mubr.f32.mxu0 0.0
  %4797 = vmatmul.mubr.f32.gmra.mrb[0].mxu0 %v4705
  %v4798 = vpop.f32.mrb[0].mxu0
  %v4799 = vadd.f32 %v4696, %v4798
  %v4800 = vpop.f32.mrb[0].mxu0
  %4801 = vmatprep.mubr.f32.mxu0 0.0
  %4802 = vmatmul.mubr.f32.gmra.mrb[0].mxu0 %v4708
  %v4803 = vpop.f32.mrb[0].mxu0
  %v4804 = vadd.f32 %v4696, %v4803
  %v4805 = vpop.f32.mrb[0].mxu0
  %4806 = vmatprep.mubr.f32.mxu0 0.0
  %4807 = vmatmul.mubr.f32.gmra.mrb[0].mxu0 %v4711
  %v4808 = vpop.f32.mrb[0].mxu0
  %v4809 = vadd.f32 %v4696, %v4808
  %v4810 = vpop.f32.mrb[0].mxu0
  %4811 = vmatprep.mubr.f32.mxu0 0.0
  %4812 = vmatmul.mubr.f32.gmra.mrb[0].mxu0 %v4714
  %v4813 = vpop.f32.mrb[0].mxu0
  %v4814 = vadd.f32 %v4696, %v4813
  %v4815 = vpop.f32.mrb[0].mxu0
  %4816 = vmatprep.mubr.f32.mxu0 0.0
  %4817 = vmatmul.mubr.f32.gmra.mrb[0].mxu0 %v4717
  %v4818 = vpop.f32.mrb[0].mxu0
  %v4819 = vadd.f32 %v4696, %v4818
  %v4820 = vpop.f32.mrb[0].mxu0
  %4821 = vmatprep.mubr.f32.mxu0 0.0
  %4822 = vmatmul.mubr.f32.gmra.mrb[0].mxu0 %v4720
  %v4823 = vpop.f32.mrb[0].mxu0
  %v4824 = vadd.f32 %v4696, %v4823
  %v4825 = vpop.f32.mrb[0].mxu0
  %4826 = vdwg.mxu0
  %v4827 = vsub.f32 0.0, %v4789
  %v4828 = vsub.f32 0.0, %v4794
  %v4829 = vsub.f32 0.0, %v4799
  %v4830 = vsub.f32 0.0, %v4804
  %v4831 = vsub.f32 0.0, %v4809
  %v4832 = vsub.f32 0.0, %v4814
  %v4833 = vsub.f32 0.0, %v4819
  %v4834 = vsub.f32 0.0, %v4824
  %v4835 = vmul.f32 %v4827, 1.442695
  %v4836 = vpow.pop %v4835
  %v4837 = vmul.f32 %v4828, 1.442695
  %v4838 = vpow.pop %v4837
  %v4839 = vmul.f32 %v4829, 1.442695
  %v4840 = vpow.pop %v4839
  %v4841 = vmul.f32 %v4830, 1.442695
  %v4842 = vpow.pop %v4841
  %v4843 = vmul.f32 %v4831, 1.442695
  %v4844 = vpow.pop %v4843
  %v4845 = vmul.f32 %v4832, 1.442695
  %v4846 = vpow.pop %v4845
  %v4847 = vmul.f32 %v4833, 1.442695
  %v4848 = vpow.pop %v4847
  %v4849 = vmul.f32 %v4834, 1.442695
  %v4850 = vpow.pop %v4849
  %v4851 = vadd.f32 %v4836, 1.0
  %v4852 = vadd.f32 %v4838, 1.0
  %v4853 = vadd.f32 %v4840, 1.0
  %v4854 = vadd.f32 %v4842, 1.0
  %v4855 = vadd.f32 %v4844, 1.0
  %v4856 = vadd.f32 %v4846, 1.0
  %v4857 = vadd.f32 %v4848, 1.0
  %v4858 = vadd.f32 %v4850, 1.0
  %v4859 = vrcp.pop %v4851
  %v4860 = vrcp.pop %v4852
  %v4861 = vrcp.pop %v4853
  %v4862 = vrcp.pop %v4854
  %v4863 = vrcp.pop %v4855
  %v4864 = vrcp.pop %v4856
  %v4865 = vrcp.pop %v4857
  %v4866 = vrcp.pop %v4858
  %vm4867 = vcmp.gt.f32.partialorder %v45, 0.0
  %vm4868 = vcmp.gt.f32.partialorder %v46, 0.0
  %vm4869 = vcmp.gt.f32.partialorder %v47, 0.0
  %vm4870 = vcmp.gt.f32.partialorder %v48, 0.0
  %vm4871 = vcmp.gt.f32.partialorder %v49, 0.0
  %vm4872 = vcmp.gt.f32.partialorder %v50, 0.0
  %vm4873 = vcmp.gt.f32.partialorder %v51, 0.0
  %vm4874 = vcmp.gt.f32.partialorder %v52, 0.0
  %v4875 = vsel %vm4867, %v4859, 0.0
  %v4876 = vsel %vm4868, %v4860, 0.0
  %v4877 = vsel %vm4869, %v4861, 0.0
  %v4878 = vsel %vm4870, %v4862, 0.0
  %v4879 = vsel %vm4871, %v4863, 0.0
  %v4880 = vsel %vm4872, %v4864, 0.0
  %v4881 = vsel %vm4873, %v4865, 0.0
  %v4882 = vsel %vm4874, %v4866, 0.0
  %vm4883 = vcmask 7168
  %4884 = vst.msk [vmem:[%s10] sm:$0xff] %vm4883, %v4875
  %4885 = vst.msk [vmem:[%s10 + $0x8] sm:$0xff] %vm4883, %v4876
  %4886 = vst.msk [vmem:[%s10 + $0x10] sm:$0xff] %vm4883, %v4877
  %4887 = vst.msk [vmem:[%s10 + $0x18] sm:$0xff] %vm4883, %v4878
  %4888 = vst.msk [vmem:[%s10 + $0x20] sm:$0xff] %vm4883, %v4879
  %4889 = vst.msk [vmem:[%s10 + $0x28] sm:$0xff] %vm4883, %v4880
  %4890 = vst.msk [vmem:[%s10 + $0x30] sm:$0xff] %vm4883, %v4881
  %4891 = vst.msk [vmem:[%s10 + $0x38] sm:$0xff] %vm4883, %v4882
  // Predicated region
  $region42: #{query_encoder_forward.1} parent=0 // pred_check
    _
  $region43: #{query_encoder_forward.1} parent=0 // pred_check_branch
    %4893 = sbr.rel (0) target = $region45
  $region44: #{query_encoder_forward.1} parent=0 // pred_region
    _
  $region45: #{query_encoder_forward.1} parent=0 // pred_fallthru
    _
  // Predicated region
  $region46: #{query_encoder_forward.1} parent=0 // pred_check
    _
  $region47: #{query_encoder_forward.1} parent=0 // pred_check_branch
    %4895 = sbr.rel (0) target = $region49
  $region48: #{query_encoder_forward.1} parent=0 // pred_region
    _
  $region49: #{query_encoder_forward.1} parent=0 // pred_fallthru
    _

</llo_original>
